<compile_context>
chip_gen: v6e
topology: v6e:2x2x1
jax: 0.10.0
libtpu: 0.0.40
codegen_flags: <defaults>
</compile_context>

<pallas_src>
import jax
import jax.numpy as jnp
from jax import lax
from jax.experimental import pallas as pl
from jax.experimental.pallas import tpu as pltpu

EPS = 1e-5          # nn.InstanceNorm2d default
KSIZE = 3           # kernel_size in the module defaults
PW = (KSIZE - 1) // 2


def _instance_norm(xp):
    # xp: (Hp, Wp, C) float32; normalize per channel over the (padded) spatial dims.
    mean = jnp.mean(xp, axis=(0, 1), keepdims=True)
    var = jnp.mean((xp - mean) ** 2, axis=(0, 1), keepdims=True)
    return (xp - mean) * lax.rsqrt(var + EPS)


def _reflect_pad_into(pad_ref, img, H, W):
    """Write ReflectionPad2d(1)(img) into pad_ref, a (H+2, W+2, C) VMEM scratch."""
    # interior
    pad_ref[1:H + 1, 1:W + 1, :] = img
    # top / bottom rows: padded row 0 <- img row 1, padded row H+1 <- img row H-2
    pad_ref[0:1, 1:W + 1, :] = img[1:2, :, :]
    pad_ref[H + 1:H + 2, 1:W + 1, :] = img[H - 2:H - 1, :, :]
    # left / right cols copied from already-filled padded cols (corners come out right)
    pad_ref[:, 0:1, :] = pad_ref[:, 2:3, :]
    pad_ref[:, W + 1:W + 2, :] = pad_ref[:, W - 1:W, :]


def _conv3x3_from_padded(pad_ref, w_ref, b_ref, H, W, C):
    """3x3 valid conv of the normalized padded image held in pad_ref ((H+2, W+2, C))."""
    Hp = H + 2 * PW
    acc = None
    for dx in range(KSIZE):
        # One width-shifted view per dx (3 shifted loads total instead of 9 misaligned
        # slice+reshape relayouts).  W is a multiple of the 8-sublane tile here, so the
        # flatten to 2D is layout-preserving.
        xdx = pad_ref[:, dx:dx + W, :].reshape(Hp * W, C)
        for dy in range(KSIZE):
            # Row window: rows (h+dy)*W + w, i.e. a sublane-aligned offset of dy*W.
            patch = xdx[dy * W:dy * W + H * W, :]
            # TODO(synk): cast patch/w to bfloat16 for large C on v6e/v7x; f32 kept here
            #             to match PyTorch numerics exactly at these shapes.
            p = jnp.dot(patch, w_ref[dy, dx], preferred_element_type=jnp.float32)
            acc = p if acc is None else acc + p
    return acc + b_ref[...]            # (H*W, C) + (1, C)


def _resnet_block_kernel(x_ref, w1_ref, b1_ref, w2_ref, b2_ref, o_ref, pad_ref):
    H, W, C = x_ref.shape[1], x_ref.shape[2], x_ref.shape[3]
    x0 = x_ref[0]                                        # (H, W, C)

    # ---- pad -> instance norm -> conv3x3 -> ReLU (stays in VMEM) ----
    _reflect_pad_into(pad_ref, x0, H, W)
    pad_ref[...] = _instance_norm(pad_ref[...])
    h = jnp.maximum(_conv3x3_from_padded(pad_ref, w1_ref, b1_ref, H, W, C), 0.0)
    h = h.reshape(H, W, C)

    # ---- pad -> instance norm -> conv3x3 -> residual add ----
    _reflect_pad_into(pad_ref, h, H, W)
    pad_ref[...] = _instance_norm(pad_ref[...])
    y = _conv3x3_from_padded(pad_ref, w2_ref, b2_ref, H, W, C)
    o_ref[0] = x0 + y.reshape(H, W, C)


def resnet_block(x_nhwc, w1, b1, w2, b2):
    """x_nhwc: (N, H, W, C) float32.  w*: (3, 3, C, C) HWIO.  b*: (C,)."""
    N, H, W, C = x_nhwc.shape
    Hp, Wp = H + 2 * PW, W + 2 * PW
    b1_2d = b1.reshape(1, C)
    b2_2d = b2.reshape(1, C)

    x_spec = pl.BlockSpec((1, H, W, C), lambda n: (n, 0, 0, 0))
    w_spec = pl.BlockSpec((KSIZE, KSIZE, C, C), lambda n: (0, 0, 0, 0))
    b_spec = pl.BlockSpec((1, C), lambda n: (0, 0))

    return pl.pallas_call(
        _resnet_block_kernel,
        out_shape=jax.ShapeDtypeStruct((N, H, W, C), jnp.float32),
        grid=(N,),
        in_specs=[x_spec, w_spec, b_spec, w_spec, b_spec],
        out_specs=x_spec,
        scratch_shapes=[pltpu.VMEM((Hp, Wp, C), jnp.float32)],
        compiler_params=pltpu.CompilerParams(
            dimension_semantics=("parallel",)),
    )(x_nhwc, w1, b1_2d, w2, b2_2d)


# ----------------------------- pure-JAX reference -----------------------------
def _ref_resnet_block(x_nhwc, w1, b1, w2, b2):
    pad_cfg = ((0, 0), (PW, PW), (PW, PW), (0, 0))

    def inorm(xp):
        m = jnp.mean(xp, axis=(1, 2), keepdims=True)
        v = jnp.mean((xp - m) ** 2, axis=(1, 2), keepdims=True)
        return (xp - m) / jnp.sqrt(v + EPS)

    def conv(xp, w, b):
        y = lax.conv_general_dilated(
            xp, w, window_strides=(1, 1), padding="VALID",
            dimension_numbers=("NHWC", "HWIO", "NHWC"))
        return y + b.reshape(1, 1, 1, -1)

    h = jnp.maximum(conv(inorm(jnp.pad(x_nhwc, pad_cfg, mode="reflect")), w1, b1), 0.0)
    y = conv(inorm(jnp.pad(h, pad_cfg, mode="reflect")), w2, b2)
    return x_nhwc + y


if __name__ == "__main__":
    # Small shapes consistent with the module: batch=2, dim(channels)=4, spatial=16.
    N, C, H, W = 2, 4, 16, 16
    key = jax.random.PRNGKey(0)
    kx, kw1, kb1, kw2, kb2 = jax.random.split(key, 5)

    # PyTorch-style NCHW input, transposed to the kernel's NHWC layout.
    x_nchw = jax.random.normal(kx, (N, C, H, W), dtype=jnp.float32)
    x_nhwc = jnp.transpose(x_nchw, (0, 2, 3, 1))

    # Deterministic synthetic Conv2d params (HWIO weights, per-channel bias).
    # TODO(synk): norm_layer is assumed to be nn.InstanceNorm2d(dim) (no affine params);
    #             spectral_norm is imported but unused in the reference forward.
    w1 = 0.1 * jax.random.normal(kw1, (KSIZE, KSIZE, C, C), dtype=jnp.float32)
    b1 = 0.05 * jax.random.normal(kb1, (C,), dtype=jnp.float32)
    w2 = 0.1 * jax.random.normal(kw2, (KSIZE, KSIZE, C, C), dtype=jnp.float32)
    b2 = 0.05 * jax.random.normal(kb2, (C,), dtype=jnp.float32)

    out = jax.block_until_ready(resnet_block(x_nhwc, w1, b1, w2, b2))
    ref = jax.block_until_ready(_ref_resnet_block(x_nhwc, w1, b1, w2, b2))

    assert out.shape == (N, H, W, C)
    assert jnp.allclose(out, ref, atol=1e-4, rtol=1e-4), "mismatch vs JAX reference"
    print("KERNEL_OK")
</pallas_src>

<mosaic_0001>
module attributes {stable_mosaic.version = 11 : i64} {
  func.func @_resnet_block_kernel(%arg0: i32, %arg1: memref<1x16x16x4xf32, #tpu.memory_space<vmem>>, %arg2: memref<3x3x4x4xf32, #tpu.memory_space<vmem>>, %arg3: memref<1x4xf32, #tpu.memory_space<vmem>>, %arg4: memref<3x3x4x4xf32, #tpu.memory_space<vmem>>, %arg5: memref<1x4xf32, #tpu.memory_space<vmem>>, %arg6: memref<1x16x16x4xf32, #tpu.memory_space<vmem>>, %arg7: memref<18x18x4xf32, #tpu.memory_space<vmem>>) attributes {dimension_semantics = [#tpu.dimension_semantics<parallel>], iteration_bounds = array<i64: 2>, scalar_prefetch = 0 : i64, scratch_operands = 1 : i64, tpu.core_type = #tpu.core_type<tc>, window_params = [{transform_indices = @transform_0, window_bounds = array<i64: 1, 16, 16, 4>}, {pipeline_mode = #tpu.pipeline_mode<synchronous>, transform_indices = @transform_1, window_bounds = array<i64: 3, 3, 4, 4>}, {pipeline_mode = #tpu.pipeline_mode<synchronous>, transform_indices = @transform_2, window_bounds = array<i64: 1, 4>}, {pipeline_mode = #tpu.pipeline_mode<synchronous>, transform_indices = @transform_3, window_bounds = array<i64: 3, 3, 4, 4>}, {pipeline_mode = #tpu.pipeline_mode<synchronous>, transform_indices = @transform_4, window_bounds = array<i64: 1, 4>}, {transform_indices = @transform_5, window_bounds = array<i64: 1, 16, 16, 4>}]} {
    %c0 = arith.constant 0 : index
    %c0_0 = arith.constant 0 : index
    %c0_1 = arith.constant 0 : index
    %c0_2 = arith.constant 0 : index
    %0 = vector.load %arg1[%c0, %c0_0, %c0_1, %c0_2] : memref<1x16x16x4xf32, #tpu.memory_space<vmem>>, vector<1x16x16x4xf32>
    %1 = vector.shape_cast %0 : vector<1x16x16x4xf32> to vector<16x16x4xf32>
    %c1 = arith.constant 1 : index
    %c1_3 = arith.constant 1 : index
    %c0_4 = arith.constant 0 : index
    %2 = vector.load %arg7[%c1, %c1_3, %c0_4] : memref<18x18x4xf32, #tpu.memory_space<vmem>>, vector<16x16x4xf32>
    tpu.vector_store %arg7[%c1, %c1_3, %c0_4], %1 {strides = array<i32>} : memref<18x18x4xf32, #tpu.memory_space<vmem>>, vector<16x16x4xf32>,
    %3 = vector.extract_strided_slice %1 {offsets = [1, 0, 0], sizes = [1, 16, 4], strides = [1, 1, 1]} : vector<16x16x4xf32> to vector<1x16x4xf32>
    %c0_5 = arith.constant 0 : index
    %c1_6 = arith.constant 1 : index
    %c0_7 = arith.constant 0 : index
    %4 = vector.load %arg7[%c0_5, %c1_6, %c0_7] : memref<18x18x4xf32, #tpu.memory_space<vmem>>, vector<1x16x4xf32>
    tpu.vector_store %arg7[%c0_5, %c1_6, %c0_7], %3 {strides = array<i32>} : memref<18x18x4xf32, #tpu.memory_space<vmem>>, vector<1x16x4xf32>,
    %5 = vector.extract_strided_slice %1 {offsets = [14, 0, 0], sizes = [1, 16, 4], strides = [1, 1, 1]} : vector<16x16x4xf32> to vector<1x16x4xf32>
    %c17 = arith.constant 17 : index
    %c1_8 = arith.constant 1 : index
    %c0_9 = arith.constant 0 : index
    %6 = vector.load %arg7[%c17, %c1_8, %c0_9] : memref<18x18x4xf32, #tpu.memory_space<vmem>>, vector<1x16x4xf32>
    tpu.vector_store %arg7[%c17, %c1_8, %c0_9], %5 {strides = array<i32>} : memref<18x18x4xf32, #tpu.memory_space<vmem>>, vector<1x16x4xf32>,
    %c0_10 = arith.constant 0 : index
    %c2 = arith.constant 2 : index
    %c0_11 = arith.constant 0 : index
    %7 = vector.load %arg7[%c0_10, %c2, %c0_11] : memref<18x18x4xf32, #tpu.memory_space<vmem>>, vector<18x1x4xf32>
    %c0_12 = arith.constant 0 : index
    %c0_13 = arith.constant 0 : index
    %c0_14 = arith.constant 0 : index
    %8 = vector.load %arg7[%c0_12, %c0_13, %c0_14] : memref<18x18x4xf32, #tpu.memory_space<vmem>>, vector<18x1x4xf32>
    tpu.vector_store %arg7[%c0_12, %c0_13, %c0_14], %7 {strides = array<i32>} : memref<18x18x4xf32, #tpu.memory_space<vmem>>, vector<18x1x4xf32>,
    %c0_15 = arith.constant 0 : index
    %c15 = arith.constant 15 : index
    %c0_16 = arith.constant 0 : index
    %9 = vector.load %arg7[%c0_15, %c15, %c0_16] : memref<18x18x4xf32, #tpu.memory_space<vmem>>, vector<18x1x4xf32>
    %c0_17 = arith.constant 0 : index
    %c17_18 = arith.constant 17 : index
    %c0_19 = arith.constant 0 : index
    %10 = vector.load %arg7[%c0_17, %c17_18, %c0_19] : memref<18x18x4xf32, #tpu.memory_space<vmem>>, vector<18x1x4xf32>
    tpu.vector_store %arg7[%c0_17, %c17_18, %c0_19], %9 {strides = array<i32>} : memref<18x18x4xf32, #tpu.memory_space<vmem>>, vector<18x1x4xf32>,
    %c0_20 = arith.constant 0 : index
    %c0_21 = arith.constant 0 : index
    %c0_22 = arith.constant 0 : index
    %11 = vector.load %arg7[%c0_20, %c0_21, %c0_22] : memref<18x18x4xf32, #tpu.memory_space<vmem>>, vector<18x18x4xf32>
    %cst = arith.constant dense<0.000000e+00> : vector<4xf32>
    %12 = vector.multi_reduction <add>, %11, %cst [0, 1] : vector<18x18x4xf32> to vector<4xf32>
    %13 = vector.shape_cast %12 : vector<4xf32> to vector<1x1x4xf32>
    %cst_23 = arith.constant 3.240000e+02 : f32
    %14 = vector.broadcast %cst_23 : f32 to vector<1x1x4xf32>
    %15 = arith.divf %13, %14 : vector<1x1x4xf32>
    %16 = vector.broadcast %15 : vector<1x1x4xf32> to vector<18x18x4xf32>
    %17 = arith.subf %11, %16 : vector<18x18x4xf32>
    %18 = arith.mulf %17, %17 : vector<18x18x4xf32>
    %cst_24 = arith.constant dense<0.000000e+00> : vector<4xf32>
    %19 = vector.multi_reduction <add>, %18, %cst_24 [0, 1] : vector<18x18x4xf32> to vector<4xf32>
    %20 = vector.shape_cast %19 : vector<4xf32> to vector<1x1x4xf32>
    %cst_25 = arith.constant 3.240000e+02 : f32
    %21 = vector.broadcast %cst_25 : f32 to vector<1x1x4xf32>
    %22 = arith.divf %20, %21 : vector<1x1x4xf32>
    %23 = vector.broadcast %15 : vector<1x1x4xf32> to vector<18x18x4xf32>
    %24 = arith.subf %11, %23 : vector<18x18x4xf32>
    %cst_26 = arith.constant 9.99999974E-6 : f32
    %25 = vector.broadcast %cst_26 : f32 to vector<1x1x4xf32>
    %26 = arith.addf %22, %25 : vector<1x1x4xf32>
    %27 = math.rsqrt %26 : vector<1x1x4xf32>
    %28 = vector.broadcast %27 : vector<1x1x4xf32> to vector<18x18x4xf32>
    %29 = arith.mulf %24, %28 : vector<18x18x4xf32>
    %c0_27 = arith.constant 0 : index
    %c0_28 = arith.constant 0 : index
    %c0_29 = arith.constant 0 : index
    %30 = vector.load %arg7[%c0_27, %c0_28, %c0_29] : memref<18x18x4xf32, #tpu.memory_space<vmem>>, vector<18x18x4xf32>
    tpu.vector_store %arg7[%c0_27, %c0_28, %c0_29], %29 {strides = array<i32>} : memref<18x18x4xf32, #tpu.memory_space<vmem>>, vector<18x18x4xf32>,
    %c0_30 = arith.constant 0 : index
    %c0_31 = arith.constant 0 : index
    %c0_32 = arith.constant 0 : index
    %31 = vector.load %arg7[%c0_30, %c0_31, %c0_32] : memref<18x18x4xf32, #tpu.memory_space<vmem>>, vector<18x16x4xf32>
    %32 = vector.shape_cast %31 : vector<18x16x4xf32> to vector<288x4xf32>
    %33 = vector.extract_strided_slice %32 {offsets = [0, 0], sizes = [256, 4], strides = [1, 1]} : vector<288x4xf32> to vector<256x4xf32>
    %c0_33 = arith.constant 0 : index
    %c0_34 = arith.constant 0 : index
    %c0_35 = arith.constant 0 : index
    %c0_36 = arith.constant 0 : index
    %34 = vector.load %arg2[%c0_33, %c0_34, %c0_35, %c0_36] : memref<3x3x4x4xf32, #tpu.memory_space<vmem>>, vector<1x1x4x4xf32>
    %35 = vector.shape_cast %34 : vector<1x1x4x4xf32> to vector<4x4xf32>
    %cst_37 = arith.constant dense<0.000000e+00> : vector<256x4xf32>
    %36 = tpu.matmul %33, %35, %cst_37 {dimension_numbers = #tpu.dot_dimension_numbers<[1], [0], [0], [1], [0, 0, 1, 1], [], []>} : vector<256x4xf32>, vector<4x4xf32>, vector<256x4xf32> -> vector<256x4xf32>
    %37 = vector.extract_strided_slice %32 {offsets = [16, 0], sizes = [256, 4], strides = [1, 1]} : vector<288x4xf32> to vector<256x4xf32>
    %c1_38 = arith.constant 1 : index
    %c0_39 = arith.constant 0 : index
    %c0_40 = arith.constant 0 : index
    %c0_41 = arith.constant 0 : index
    %38 = vector.load %arg2[%c1_38, %c0_39, %c0_40, %c0_41] : memref<3x3x4x4xf32, #tpu.memory_space<vmem>>, vector<1x1x4x4xf32>
    %39 = vector.shape_cast %38 : vector<1x1x4x4xf32> to vector<4x4xf32>
    %cst_42 = arith.constant dense<0.000000e+00> : vector<256x4xf32>
    %40 = tpu.matmul %37, %39, %cst_42 {dimension_numbers = #tpu.dot_dimension_numbers<[1], [0], [0], [1], [0, 0, 1, 1], [], []>} : vector<256x4xf32>, vector<4x4xf32>, vector<256x4xf32> -> vector<256x4xf32>
    %41 = arith.addf %36, %40 : vector<256x4xf32>
    %42 = vector.extract_strided_slice %32 {offsets = [32, 0], sizes = [256, 4], strides = [1, 1]} : vector<288x4xf32> to vector<256x4xf32>
    %c2_43 = arith.constant 2 : index
    %c0_44 = arith.constant 0 : index
    %c0_45 = arith.constant 0 : index
    %c0_46 = arith.constant 0 : index
    %43 = vector.load %arg2[%c2_43, %c0_44, %c0_45, %c0_46] : memref<3x3x4x4xf32, #tpu.memory_space<vmem>>, vector<1x1x4x4xf32>
    %44 = vector.shape_cast %43 : vector<1x1x4x4xf32> to vector<4x4xf32>
    %cst_47 = arith.constant dense<0.000000e+00> : vector<256x4xf32>
    %45 = tpu.matmul %42, %44, %cst_47 {dimension_numbers = #tpu.dot_dimension_numbers<[1], [0], [0], [1], [0, 0, 1, 1], [], []>} : vector<256x4xf32>, vector<4x4xf32>, vector<256x4xf32> -> vector<256x4xf32>
    %46 = arith.addf %41, %45 : vector<256x4xf32>
    %c0_48 = arith.constant 0 : index
    %c1_49 = arith.constant 1 : index
    %c0_50 = arith.constant 0 : index
    %47 = vector.load %arg7[%c0_48, %c1_49, %c0_50] : memref<18x18x4xf32, #tpu.memory_space<vmem>>, vector<18x16x4xf32>
    %48 = vector.shape_cast %47 : vector<18x16x4xf32> to vector<288x4xf32>
    %49 = vector.extract_strided_slice %48 {offsets = [0, 0], sizes = [256, 4], strides = [1, 1]} : vector<288x4xf32> to vector<256x4xf32>
    %c0_51 = arith.constant 0 : index
    %c1_52 = arith.constant 1 : index
    %c0_53 = arith.constant 0 : index
    %c0_54 = arith.constant 0 : index
    %50 = vector.load %arg2[%c0_51, %c1_52, %c0_53, %c0_54] : memref<3x3x4x4xf32, #tpu.memory_space<vmem>>, vector<1x1x4x4xf32>
    %51 = vector.shape_cast %50 : vector<1x1x4x4xf32> to vector<4x4xf32>
    %cst_55 = arith.constant dense<0.000000e+00> : vector<256x4xf32>
    %52 = tpu.matmul %49, %51, %cst_55 {dimension_numbers = #tpu.dot_dimension_numbers<[1], [0], [0], [1], [0, 0, 1, 1], [], []>} : vector<256x4xf32>, vector<4x4xf32>, vector<256x4xf32> -> vector<256x4xf32>
    %53 = arith.addf %46, %52 : vector<256x4xf32>
    %54 = vector.extract_strided_slice %48 {offsets = [16, 0], sizes = [256, 4], strides = [1, 1]} : vector<288x4xf32> to vector<256x4xf32>
    %c1_56 = arith.constant 1 : index
    %c1_57 = arith.constant 1 : index
    %c0_58 = arith.constant 0 : index
    %c0_59 = arith.constant 0 : index
    %55 = vector.load %arg2[%c1_56, %c1_57, %c0_58, %c0_59] : memref<3x3x4x4xf32, #tpu.memory_space<vmem>>, vector<1x1x4x4xf32>
    %56 = vector.shape_cast %55 : vector<1x1x4x4xf32> to vector<4x4xf32>
    %cst_60 = arith.constant dense<0.000000e+00> : vector<256x4xf32>
    %57 = tpu.matmul %54, %56, %cst_60 {dimension_numbers = #tpu.dot_dimension_numbers<[1], [0], [0], [1], [0, 0, 1, 1], [], []>} : vector<256x4xf32>, vector<4x4xf32>, vector<256x4xf32> -> vector<256x4xf32>
    %58 = arith.addf %53, %57 : vector<256x4xf32>
    %59 = vector.extract_strided_slice %48 {offsets = [32, 0], sizes = [256, 4], strides = [1, 1]} : vector<288x4xf32> to vector<256x4xf32>
    %c2_61 = arith.constant 2 : index
    %c1_62 = arith.constant 1 : index
    %c0_63 = arith.constant 0 : index
    %c0_64 = arith.constant 0 : index
    %60 = vector.load %arg2[%c2_61, %c1_62, %c0_63, %c0_64] : memref<3x3x4x4xf32, #tpu.memory_space<vmem>>, vector<1x1x4x4xf32>
    %61 = vector.shape_cast %60 : vector<1x1x4x4xf32> to vector<4x4xf32>
    %cst_65 = arith.constant dense<0.000000e+00> : vector<256x4xf32>
    %62 = tpu.matmul %59, %61, %cst_65 {dimension_numbers = #tpu.dot_dimension_numbers<[1], [0], [0], [1], [0, 0, 1, 1], [], []>} : vector<256x4xf32>, vector<4x4xf32>, vector<256x4xf32> -> vector<256x4xf32>
    %63 = arith.addf %58, %62 : vector<256x4xf32>
    %c0_66 = arith.constant 0 : index
    %c2_67 = arith.constant 2 : index
    %c0_68 = arith.constant 0 : index
    %64 = vector.load %arg7[%c0_66, %c2_67, %c0_68] : memref<18x18x4xf32, #tpu.memory_space<vmem>>, vector<18x16x4xf32>
    %65 = vector.shape_cast %64 : vector<18x16x4xf32> to vector<288x4xf32>
    %66 = vector.extract_strided_slice %65 {offsets = [0, 0], sizes = [256, 4], strides = [1, 1]} : vector<288x4xf32> to vector<256x4xf32>
    %c0_69 = arith.constant 0 : index
    %c2_70 = arith.constant 2 : index
    %c0_71 = arith.constant 0 : index
    %c0_72 = arith.constant 0 : index
    %67 = vector.load %arg2[%c0_69, %c2_70, %c0_71, %c0_72] : memref<3x3x4x4xf32, #tpu.memory_space<vmem>>, vector<1x1x4x4xf32>
    %68 = vector.shape_cast %67 : vector<1x1x4x4xf32> to vector<4x4xf32>
    %cst_73 = arith.constant dense<0.000000e+00> : vector<256x4xf32>
    %69 = tpu.matmul %66, %68, %cst_73 {dimension_numbers = #tpu.dot_dimension_numbers<[1], [0], [0], [1], [0, 0, 1, 1], [], []>} : vector<256x4xf32>, vector<4x4xf32>, vector<256x4xf32> -> vector<256x4xf32>
    %70 = arith.addf %63, %69 : vector<256x4xf32>
    %71 = vector.extract_strided_slice %65 {offsets = [16, 0], sizes = [256, 4], strides = [1, 1]} : vector<288x4xf32> to vector<256x4xf32>
    %c1_74 = arith.constant 1 : index
    %c2_75 = arith.constant 2 : index
    %c0_76 = arith.constant 0 : index
    %c0_77 = arith.constant 0 : index
    %72 = vector.load %arg2[%c1_74, %c2_75, %c0_76, %c0_77] : memref<3x3x4x4xf32, #tpu.memory_space<vmem>>, vector<1x1x4x4xf32>
    %73 = vector.shape_cast %72 : vector<1x1x4x4xf32> to vector<4x4xf32>
    %cst_78 = arith.constant dense<0.000000e+00> : vector<256x4xf32>
    %74 = tpu.matmul %71, %73, %cst_78 {dimension_numbers = #tpu.dot_dimension_numbers<[1], [0], [0], [1], [0, 0, 1, 1], [], []>} : vector<256x4xf32>, vector<4x4xf32>, vector<256x4xf32> -> vector<256x4xf32>
    %75 = arith.addf %70, %74 : vector<256x4xf32>
    %76 = vector.extract_strided_slice %65 {offsets = [32, 0], sizes = [256, 4], strides = [1, 1]} : vector<288x4xf32> to vector<256x4xf32>
    %c2_79 = arith.constant 2 : index
    %c2_80 = arith.constant 2 : index
    %c0_81 = arith.constant 0 : index
    %c0_82 = arith.constant 0 : index
    %77 = vector.load %arg2[%c2_79, %c2_80, %c0_81, %c0_82] : memref<3x3x4x4xf32, #tpu.memory_space<vmem>>, vector<1x1x4x4xf32>
    %78 = vector.shape_cast %77 : vector<1x1x4x4xf32> to vector<4x4xf32>
    %cst_83 = arith.constant dense<0.000000e+00> : vector<256x4xf32>
    %79 = tpu.matmul %76, %78, %cst_83 {dimension_numbers = #tpu.dot_dimension_numbers<[1], [0], [0], [1], [0, 0, 1, 1], [], []>} : vector<256x4xf32>, vector<4x4xf32>, vector<256x4xf32> -> vector<256x4xf32>
    %80 = arith.addf %75, %79 : vector<256x4xf32>
    %c0_84 = arith.constant 0 : index
    %c0_85 = arith.constant 0 : index
    %81 = vector.load %arg3[%c0_84, %c0_85] : memref<1x4xf32, #tpu.memory_space<vmem>>, vector<1x4xf32>
    %82 = vector.broadcast %81 : vector<1x4xf32> to vector<256x4xf32>
    %83 = arith.addf %80, %82 : vector<256x4xf32>
    %cst_86 = arith.constant 0.000000e+00 : f32
    %84 = vector.broadcast %cst_86 : f32 to vector<256x4xf32>
    %85 = arith.maximumf %83, %84 : vector<256x4xf32>
    %86 = vector.shape_cast %85 : vector<256x4xf32> to vector<16x16x4xf32>
    %c1_87 = arith.constant 1 : index
    %c1_88 = arith.constant 1 : index
    %c0_89 = arith.constant 0 : index
    %87 = vector.load %arg7[%c1_87, %c1_88, %c0_89] : memref<18x18x4xf32, #tpu.memory_space<vmem>>, vector<16x16x4xf32>
    tpu.vector_store %arg7[%c1_87, %c1_88, %c0_89], %86 {strides = array<i32>} : memref<18x18x4xf32, #tpu.memory_space<vmem>>, vector<16x16x4xf32>,
    %88 = vector.extract_strided_slice %86 {offsets = [1, 0, 0], sizes = [1, 16, 4], strides = [1, 1, 1]} : vector<16x16x4xf32> to vector<1x16x4xf32>
    %c0_90 = arith.constant 0 : index
    %c1_91 = arith.constant 1 : index
    %c0_92 = arith.constant 0 : index
    %89 = vector.load %arg7[%c0_90, %c1_91, %c0_92] : memref<18x18x4xf32, #tpu.memory_space<vmem>>, vector<1x16x4xf32>
    tpu.vector_store %arg7[%c0_90, %c1_91, %c0_92], %88 {strides = array<i32>} : memref<18x18x4xf32, #tpu.memory_space<vmem>>, vector<1x16x4xf32>,
    %90 = vector.extract_strided_slice %86 {offsets = [14, 0, 0], sizes = [1, 16, 4], strides = [1, 1, 1]} : vector<16x16x4xf32> to vector<1x16x4xf32>
    %c17_93 = arith.constant 17 : index
    %c1_94 = arith.constant 1 : index
    %c0_95 = arith.constant 0 : index
    %91 = vector.load %arg7[%c17_93, %c1_94, %c0_95] : memref<18x18x4xf32, #tpu.memory_space<vmem>>, vector<1x16x4xf32>
    tpu.vector_store %arg7[%c17_93, %c1_94, %c0_95], %90 {strides = array<i32>} : memref<18x18x4xf32, #tpu.memory_space<vmem>>, vector<1x16x4xf32>,
    %c0_96 = arith.constant 0 : index
    %c2_97 = arith.constant 2 : index
    %c0_98 = arith.constant 0 : index
    %92 = vector.load %arg7[%c0_96, %c2_97, %c0_98] : memref<18x18x4xf32, #tpu.memory_space<vmem>>, vector<18x1x4xf32>
    %c0_99 = arith.constant 0 : index
    %c0_100 = arith.constant 0 : index
    %c0_101 = arith.constant 0 : index
    %93 = vector.load %arg7[%c0_99, %c0_100, %c0_101] : memref<18x18x4xf32, #tpu.memory_space<vmem>>, vector<18x1x4xf32>
    tpu.vector_store %arg7[%c0_99, %c0_100, %c0_101], %92 {strides = array<i32>} : memref<18x18x4xf32, #tpu.memory_space<vmem>>, vector<18x1x4xf32>,
    %c0_102 = arith.constant 0 : index
    %c15_103 = arith.constant 15 : index
    %c0_104 = arith.constant 0 : index
    %94 = vector.load %arg7[%c0_102, %c15_103, %c0_104] : memref<18x18x4xf32, #tpu.memory_space<vmem>>, vector<18x1x4xf32>
    %c0_105 = arith.constant 0 : index
    %c17_106 = arith.constant 17 : index
    %c0_107 = arith.constant 0 : index
    %95 = vector.load %arg7[%c0_105, %c17_106, %c0_107] : memref<18x18x4xf32, #tpu.memory_space<vmem>>, vector<18x1x4xf32>
    tpu.vector_store %arg7[%c0_105, %c17_106, %c0_107], %94 {strides = array<i32>} : memref<18x18x4xf32, #tpu.memory_space<vmem>>, vector<18x1x4xf32>,
    %c0_108 = arith.constant 0 : index
    %c0_109 = arith.constant 0 : index
    %c0_110 = arith.constant 0 : index
    %96 = vector.load %arg7[%c0_108, %c0_109, %c0_110] : memref<18x18x4xf32, #tpu.memory_space<vmem>>, vector<18x18x4xf32>
    %cst_111 = arith.constant dense<0.000000e+00> : vector<4xf32>
    %97 = vector.multi_reduction <add>, %96, %cst_111 [0, 1] : vector<18x18x4xf32> to vector<4xf32>
    %98 = vector.shape_cast %97 : vector<4xf32> to vector<1x1x4xf32>
    %cst_112 = arith.constant 3.240000e+02 : f32
    %99 = vector.broadcast %cst_112 : f32 to vector<1x1x4xf32>
    %100 = arith.divf %98, %99 : vector<1x1x4xf32>
    %101 = vector.broadcast %100 : vector<1x1x4xf32> to vector<18x18x4xf32>
    %102 = arith.subf %96, %101 : vector<18x18x4xf32>
    %103 = arith.mulf %102, %102 : vector<18x18x4xf32>
    %cst_113 = arith.constant dense<0.000000e+00> : vector<4xf32>
    %104 = vector.multi_reduction <add>, %103, %cst_113 [0, 1] : vector<18x18x4xf32> to vector<4xf32>
    %105 = vector.shape_cast %104 : vector<4xf32> to vector<1x1x4xf32>
    %cst_114 = arith.constant 3.240000e+02 : f32
    %106 = vector.broadcast %cst_114 : f32 to vector<1x1x4xf32>
    %107 = arith.divf %105, %106 : vector<1x1x4xf32>
    %108 = vector.broadcast %100 : vector<1x1x4xf32> to vector<18x18x4xf32>
    %109 = arith.subf %96, %108 : vector<18x18x4xf32>
    %cst_115 = arith.constant 9.99999974E-6 : f32
    %110 = vector.broadcast %cst_115 : f32 to vector<1x1x4xf32>
    %111 = arith.addf %107, %110 : vector<1x1x4xf32>
    %112 = math.rsqrt %111 : vector<1x1x4xf32>
    %113 = vector.broadcast %112 : vector<1x1x4xf32> to vector<18x18x4xf32>
    %114 = arith.mulf %109, %113 : vector<18x18x4xf32>
    %c0_116 = arith.constant 0 : index
    %c0_117 = arith.constant 0 : index
    %c0_118 = arith.constant 0 : index
    %115 = vector.load %arg7[%c0_116, %c0_117, %c0_118] : memref<18x18x4xf32, #tpu.memory_space<vmem>>, vector<18x18x4xf32>
    tpu.vector_store %arg7[%c0_116, %c0_117, %c0_118], %114 {strides = array<i32>} : memref<18x18x4xf32, #tpu.memory_space<vmem>>, vector<18x18x4xf32>,
    %c0_119 = arith.constant 0 : index
    %c0_120 = arith.constant 0 : index
    %c0_121 = arith.constant 0 : index
    %116 = vector.load %arg7[%c0_119, %c0_120, %c0_121] : memref<18x18x4xf32, #tpu.memory_space<vmem>>, vector<18x16x4xf32>
    %117 = vector.shape_cast %116 : vector<18x16x4xf32> to vector<288x4xf32>
    %118 = vector.extract_strided_slice %117 {offsets = [0, 0], sizes = [256, 4], strides = [1, 1]} : vector<288x4xf32> to vector<256x4xf32>
    %c0_122 = arith.constant 0 : index
    %c0_123 = arith.constant 0 : index
    %c0_124 = arith.constant 0 : index
    %c0_125 = arith.constant 0 : index
    %119 = vector.load %arg4[%c0_122, %c0_123, %c0_124, %c0_125] : memref<3x3x4x4xf32, #tpu.memory_space<vmem>>, vector<1x1x4x4xf32>
    %120 = vector.shape_cast %119 : vector<1x1x4x4xf32> to vector<4x4xf32>
    %cst_126 = arith.constant dense<0.000000e+00> : vector<256x4xf32>
    %121 = tpu.matmul %118, %120, %cst_126 {dimension_numbers = #tpu.dot_dimension_numbers<[1], [0], [0], [1], [0, 0, 1, 1], [], []>} : vector<256x4xf32>, vector<4x4xf32>, vector<256x4xf32> -> vector<256x4xf32>
    %122 = vector.extract_strided_slice %117 {offsets = [16, 0], sizes = [256, 4], strides = [1, 1]} : vector<288x4xf32> to vector<256x4xf32>
    %c1_127 = arith.constant 1 : index
    %c0_128 = arith.constant 0 : index
    %c0_129 = arith.constant 0 : index
    %c0_130 = arith.constant 0 : index
    %123 = vector.load %arg4[%c1_127, %c0_128, %c0_129, %c0_130] : memref<3x3x4x4xf32, #tpu.memory_space<vmem>>, vector<1x1x4x4xf32>
    %124 = vector.shape_cast %123 : vector<1x1x4x4xf32> to vector<4x4xf32>
    %cst_131 = arith.constant dense<0.000000e+00> : vector<256x4xf32>
    %125 = tpu.matmul %122, %124, %cst_131 {dimension_numbers = #tpu.dot_dimension_numbers<[1], [0], [0], [1], [0, 0, 1, 1], [], []>} : vector<256x4xf32>, vector<4x4xf32>, vector<256x4xf32> -> vector<256x4xf32>
    %126 = arith.addf %121, %125 : vector<256x4xf32>
    %127 = vector.extract_strided_slice %117 {offsets = [32, 0], sizes = [256, 4], strides = [1, 1]} : vector<288x4xf32> to vector<256x4xf32>
    %c2_132 = arith.constant 2 : index
    %c0_133 = arith.constant 0 : index
    %c0_134 = arith.constant 0 : index
    %c0_135 = arith.constant 0 : index
    %128 = vector.load %arg4[%c2_132, %c0_133, %c0_134, %c0_135] : memref<3x3x4x4xf32, #tpu.memory_space<vmem>>, vector<1x1x4x4xf32>
    %129 = vector.shape_cast %128 : vector<1x1x4x4xf32> to vector<4x4xf32>
    %cst_136 = arith.constant dense<0.000000e+00> : vector<256x4xf32>
    %130 = tpu.matmul %127, %129, %cst_136 {dimension_numbers = #tpu.dot_dimension_numbers<[1], [0], [0], [1], [0, 0, 1, 1], [], []>} : vector<256x4xf32>, vector<4x4xf32>, vector<256x4xf32> -> vector<256x4xf32>
    %131 = arith.addf %126, %130 : vector<256x4xf32>
    %c0_137 = arith.constant 0 : index
    %c1_138 = arith.constant 1 : index
    %c0_139 = arith.constant 0 : index
    %132 = vector.load %arg7[%c0_137, %c1_138, %c0_139] : memref<18x18x4xf32, #tpu.memory_space<vmem>>, vector<18x16x4xf32>
    %133 = vector.shape_cast %132 : vector<18x16x4xf32> to vector<288x4xf32>
    %134 = vector.extract_strided_slice %133 {offsets = [0, 0], sizes = [256, 4], strides = [1, 1]} : vector<288x4xf32> to vector<256x4xf32>
    %c0_140 = arith.constant 0 : index
    %c1_141 = arith.constant 1 : index
    %c0_142 = arith.constant 0 : index
    %c0_143 = arith.constant 0 : index
    %135 = vector.load %arg4[%c0_140, %c1_141, %c0_142, %c0_143] : memref<3x3x4x4xf32, #tpu.memory_space<vmem>>, vector<1x1x4x4xf32>
    %136 = vector.shape_cast %135 : vector<1x1x4x4xf32> to vector<4x4xf32>
    %cst_144 = arith.constant dense<0.000000e+00> : vector<256x4xf32>
    %137 = tpu.matmul %134, %136, %cst_144 {dimension_numbers = #tpu.dot_dimension_numbers<[1], [0], [0], [1], [0, 0, 1, 1], [], []>} : vector<256x4xf32>, vector<4x4xf32>, vector<256x4xf32> -> vector<256x4xf32>
    %138 = arith.addf %131, %137 : vector<256x4xf32>
    %139 = vector.extract_strided_slice %133 {offsets = [16, 0], sizes = [256, 4], strides = [1, 1]} : vector<288x4xf32> to vector<256x4xf32>
    %c1_145 = arith.constant 1 : index
    %c1_146 = arith.constant 1 : index
    %c0_147 = arith.constant 0 : index
    %c0_148 = arith.constant 0 : index
    %140 = vector.load %arg4[%c1_145, %c1_146, %c0_147, %c0_148] : memref<3x3x4x4xf32, #tpu.memory_space<vmem>>, vector<1x1x4x4xf32>
    %141 = vector.shape_cast %140 : vector<1x1x4x4xf32> to vector<4x4xf32>
    %cst_149 = arith.constant dense<0.000000e+00> : vector<256x4xf32>
    %142 = tpu.matmul %139, %141, %cst_149 {dimension_numbers = #tpu.dot_dimension_numbers<[1], [0], [0], [1], [0, 0, 1, 1], [], []>} : vector<256x4xf32>, vector<4x4xf32>, vector<256x4xf32> -> vector<256x4xf32>
    %143 = arith.addf %138, %142 : vector<256x4xf32>
    %144 = vector.extract_strided_slice %133 {offsets = [32, 0], sizes = [256, 4], strides = [1, 1]} : vector<288x4xf32> to vector<256x4xf32>
    %c2_150 = arith.constant 2 : index
    %c1_151 = arith.constant 1 : index
    %c0_152 = arith.constant 0 : index
    %c0_153 = arith.constant 0 : index
    %145 = vector.load %arg4[%c2_150, %c1_151, %c0_152, %c0_153] : memref<3x3x4x4xf32, #tpu.memory_space<vmem>>, vector<1x1x4x4xf32>
    %146 = vector.shape_cast %145 : vector<1x1x4x4xf32> to vector<4x4xf32>
    %cst_154 = arith.constant dense<0.000000e+00> : vector<256x4xf32>
    %147 = tpu.matmul %144, %146, %cst_154 {dimension_numbers = #tpu.dot_dimension_numbers<[1], [0], [0], [1], [0, 0, 1, 1], [], []>} : vector<256x4xf32>, vector<4x4xf32>, vector<256x4xf32> -> vector<256x4xf32>
    %148 = arith.addf %143, %147 : vector<256x4xf32>
    %c0_155 = arith.constant 0 : index
    %c2_156 = arith.constant 2 : index
    %c0_157 = arith.constant 0 : index
    %149 = vector.load %arg7[%c0_155, %c2_156, %c0_157] : memref<18x18x4xf32, #tpu.memory_space<vmem>>, vector<18x16x4xf32>
    %150 = vector.shape_cast %149 : vector<18x16x4xf32> to vector<288x4xf32>
    %151 = vector.extract_strided_slice %150 {offsets = [0, 0], sizes = [256, 4], strides = [1, 1]} : vector<288x4xf32> to vector<256x4xf32>
    %c0_158 = arith.constant 0 : index
    %c2_159 = arith.constant 2 : index
    %c0_160 = arith.constant 0 : index
    %c0_161 = arith.constant 0 : index
    %152 = vector.load %arg4[%c0_158, %c2_159, %c0_160, %c0_161] : memref<3x3x4x4xf32, #tpu.memory_space<vmem>>, vector<1x1x4x4xf32>
    %153 = vector.shape_cast %152 : vector<1x1x4x4xf32> to vector<4x4xf32>
    %cst_162 = arith.constant dense<0.000000e+00> : vector<256x4xf32>
    %154 = tpu.matmul %151, %153, %cst_162 {dimension_numbers = #tpu.dot_dimension_numbers<[1], [0], [0], [1], [0, 0, 1, 1], [], []>} : vector<256x4xf32>, vector<4x4xf32>, vector<256x4xf32> -> vector<256x4xf32>
    %155 = arith.addf %148, %154 : vector<256x4xf32>
    %156 = vector.extract_strided_slice %150 {offsets = [16, 0], sizes = [256, 4], strides = [1, 1]} : vector<288x4xf32> to vector<256x4xf32>
    %c1_163 = arith.constant 1 : index
    %c2_164 = arith.constant 2 : index
    %c0_165 = arith.constant 0 : index
    %c0_166 = arith.constant 0 : index
    %157 = vector.load %arg4[%c1_163, %c2_164, %c0_165, %c0_166] : memref<3x3x4x4xf32, #tpu.memory_space<vmem>>, vector<1x1x4x4xf32>
    %158 = vector.shape_cast %157 : vector<1x1x4x4xf32> to vector<4x4xf32>
    %cst_167 = arith.constant dense<0.000000e+00> : vector<256x4xf32>
    %159 = tpu.matmul %156, %158, %cst_167 {dimension_numbers = #tpu.dot_dimension_numbers<[1], [0], [0], [1], [0, 0, 1, 1], [], []>} : vector<256x4xf32>, vector<4x4xf32>, vector<256x4xf32> -> vector<256x4xf32>
    %160 = arith.addf %155, %159 : vector<256x4xf32>
    %161 = vector.extract_strided_slice %150 {offsets = [32, 0], sizes = [256, 4], strides = [1, 1]} : vector<288x4xf32> to vector<256x4xf32>
    %c2_168 = arith.constant 2 : index
    %c2_169 = arith.constant 2 : index
    %c0_170 = arith.constant 0 : index
    %c0_171 = arith.constant 0 : index
    %162 = vector.load %arg4[%c2_168, %c2_169, %c0_170, %c0_171] : memref<3x3x4x4xf32, #tpu.memory_space<vmem>>, vector<1x1x4x4xf32>
    %163 = vector.shape_cast %162 : vector<1x1x4x4xf32> to vector<4x4xf32>
    %cst_172 = arith.constant dense<0.000000e+00> : vector<256x4xf32>
    %164 = tpu.matmul %161, %163, %cst_172 {dimension_numbers = #tpu.dot_dimension_numbers<[1], [0], [0], [1], [0, 0, 1, 1], [], []>} : vector<256x4xf32>, vector<4x4xf32>, vector<256x4xf32> -> vector<256x4xf32>
    %165 = arith.addf %160, %164 : vector<256x4xf32>
    %c0_173 = arith.constant 0 : index
    %c0_174 = arith.constant 0 : index
    %166 = vector.load %arg5[%c0_173, %c0_174] : memref<1x4xf32, #tpu.memory_space<vmem>>, vector<1x4xf32>
    %167 = vector.broadcast %166 : vector<1x4xf32> to vector<256x4xf32>
    %168 = arith.addf %165, %167 : vector<256x4xf32>
    %169 = vector.shape_cast %168 : vector<256x4xf32> to vector<16x16x4xf32>
    %170 = arith.addf %1, %169 : vector<16x16x4xf32>
    %c0_175 = arith.constant 0 : index
    %c0_176 = arith.constant 0 : index
    %c0_177 = arith.constant 0 : index
    %c0_178 = arith.constant 0 : index
    %171 = vector.load %arg6[%c0_175, %c0_176, %c0_177, %c0_178] : memref<1x16x16x4xf32, #tpu.memory_space<vmem>>, vector<1x16x16x4xf32>
    %172 = vector.shape_cast %171 : vector<1x16x16x4xf32> to vector<16x16x4xf32>
    %173 = vector.shape_cast %170 : vector<16x16x4xf32> to vector<1x16x16x4xf32>
    tpu.vector_store %arg6[%c0_175, %c0_176, %c0_177, %c0_178], %173 {strides = array<i32>} : memref<1x16x16x4xf32, #tpu.memory_space<vmem>>, vector<1x16x16x4xf32>,
    return
  }
  func.func @transform_0(%arg0: i32) -> (i32, i32, i32, i32) {
    %c0_i32 = arith.constant 0 : i32
    %c0_i32_0 = arith.constant 0 : i32
    %c0_i32_1 = arith.constant 0 : i32
    %c0_i32_2 = arith.constant 0 : i32
    return %arg0, %c0_i32, %c0_i32_0, %c0_i32_1 : i32, i32, i32, i32
  }
  func.func @transform_1(%arg0: i32) -> (i32, i32, i32, i32) {
    %c0_i32 = arith.constant 0 : i32
    %c0_i32_0 = arith.constant 0 : i32
    %c0_i32_1 = arith.constant 0 : i32
    %c0_i32_2 = arith.constant 0 : i32
    %c0_i32_3 = arith.constant 0 : i32
    return %c0_i32, %c0_i32_0, %c0_i32_1, %c0_i32_2 : i32, i32, i32, i32
  }
  func.func @transform_2(%arg0: i32) -> (i32, i32) {
    %c0_i32 = arith.constant 0 : i32
    %c0_i32_0 = arith.constant 0 : i32
    %c0_i32_1 = arith.constant 0 : i32
    return %c0_i32, %c0_i32_0 : i32, i32
  }
  func.func @transform_3(%arg0: i32) -> (i32, i32, i32, i32) {
    %c0_i32 = arith.constant 0 : i32
    %c0_i32_0 = arith.constant 0 : i32
    %c0_i32_1 = arith.constant 0 : i32
    %c0_i32_2 = arith.constant 0 : i32
    %c0_i32_3 = arith.constant 0 : i32
    return %c0_i32, %c0_i32_0, %c0_i32_1, %c0_i32_2 : i32, i32, i32, i32
  }
  func.func @transform_4(%arg0: i32) -> (i32, i32) {
    %c0_i32 = arith.constant 0 : i32
    %c0_i32_0 = arith.constant 0 : i32
    %c0_i32_1 = arith.constant 0 : i32
    return %c0_i32, %c0_i32_0 : i32, i32
  }
  func.func @transform_5(%arg0: i32) -> (i32, i32, i32, i32) {
    %c0_i32 = arith.constant 0 : i32
    %c0_i32_0 = arith.constant 0 : i32
    %c0_i32_1 = arith.constant 0 : i32
    %c0_i32_2 = arith.constant 0 : i32
    return %arg0, %c0_i32, %c0_i32_0, %c0_i32_1 : i32, i32, i32, i32
  }
}

</mosaic_0001>

<llo_original>
// kernel: tpu_custom_call.1
$region0: #{tpu_custom_call.1}
  #allocation0 [shape = 'u32[]', space=smem, size = 0x4, offset = 0x4, fixed_abs, tag = 'smem constant byte address 0x4 - core index']
  #allocation1 [shape = 'u32[144,128]{1,0:T(1,128)}', space=vmem, size = 0x12000, scoped, tag = 'internal scratch']
  #allocation2 [shape = 'f32[18,18,4]{2,1,0:T(8,128)}', space=vmem, size = 0x36000, scoped, tag = 'scratch operand']
  %s0 = inlined_call_operand.vmem [shape: f32[2,16,16,4], index: 0, kind: input, shape index: {}]
  %s1 = inlined_call_operand.vmem [shape: f32[3,3,4,4], index: 1, kind: input, shape index: {}]
  %s2 = inlined_call_operand.vmem [shape: f32[1,4], index: 2, kind: input, shape index: {}]
  %s3 = inlined_call_operand.vmem [shape: f32[3,3,4,4], index: 3, kind: input, shape index: {}]
  %s4 = inlined_call_operand.vmem [shape: f32[1,4], index: 4, kind: input, shape index: {}]
  %s5 = inlined_call_operand.vmem [shape: f32[2,16,16,4], index: 5, kind: output, shape index: {}]
  %s6 = sld [smem:[#allocation0]]
  $region53: #{tpu_custom_call.1} parent=0
    _
  %s8 = ssub.s32 1, %s6
  %s9 = scalar_select 0, %s8, %s6
  loop: start=0, step=1, limit=4
  $region2: #{tpu_custom_call.1} parent=0 // loop_pre_header
    _
  $region3: #{tpu_custom_call.1} parent=0 // loop_header
    %s11 = sphi 0, %s15
    %p12 = scmp.ge.s32.totalorder %s11, 4
    %s21 = sphi 0, %s23
    %s24 = sphi 0, %s21
    %s25 = sphi 0, %s24
    %s41 = sphi 0, %s25
    %s45 = sphi 0, %s45
    %s47 = sphi 0, %s45
    %s48 = sphi 0, %s47
    %s62 = sphi 0, %s48
    %s66 = sphi 0, %s66
    %s68 = sphi 0, %s66
    %s69 = sphi 0, %s68
    %s83 = sphi 0, %s69
    %s87 = sphi 0, %s87
    %s89 = sphi 0, %s87
    %s90 = sphi 0, %s89
    %s104 = sphi 0, %s90
    %s108 = sphi 0, %s108
    %s110 = sphi 0, %s108
    %s111 = sphi 0, %s110
    %s125 = sphi 0, %s111
    %s131 = sphi 0, %s133
    %s134 = sphi 0, %s131
    %s135 = sphi 0, %s134
    %s151 = sphi 0, %s135
  $region4: #{tpu_custom_call.1} parent=0 // loop_header_branch
    %14 = sbr.rel (%p12) target = $region8
  $region5: #{tpu_custom_call.1} parent=0 // loop_body
    %s16 = ssub.s32 %s11, 1
    %s17 = ssub.s32 %s11, 2
    %s18 = sadd.s32 %s11, 1
    %s19 = ssub.s32 %s11, %s18
    %p20 = scmp.eq.s32.totalorder %s19, 0
    %s22 = sadd.s32 %s21, 1
    %s23 = scalar_select %p20, %s21, %s22
    %p26 = pneg %p20
    %p27 = scmp.eq.s32.totalorder %s11, 1
    %p28 = por %p26, %p27
    %p29 = scmp.ne.s32.totalorder %s21, %s24
    %p30 = scmp.eq.s32.totalorder %s11, 0
    %p31 = por %p29, %p30
    %p32 = scmp.ne.s32.totalorder %s21, %s24
    %p33 = scmp.eq.s32.totalorder %s16, 1
    %p34 = por %p32, %p33
    %p35 = scmp.ne.s32.totalorder %s24, %s25
    %p36 = scmp.eq.s32.totalorder %s16, 0
    %p37 = por %p35, %p36
    %p38 = scmp.ne.s32.totalorder %s24, %s25
    %p39 = scmp.eq.s32.totalorder %s17, 1
    %p40 = por %p38, %p39
    %p42 = scmp.ne.s32.totalorder %s25, %s41
    %p43 = scmp.eq.s32.totalorder %s17, 0
    %p44 = por %p42, %p43
    %s46 = sadd.s32 %s45, 1
    %p49 = scmp.eq.s32.totalorder %s11, 1
    %p50 = scmp.ne.s32.totalorder %s45, %s47
    %p51 = scmp.eq.s32.totalorder %s11, 0
    %p52 = por %p50, %p51
    %p53 = scmp.ne.s32.totalorder %s45, %s47
    %p54 = scmp.eq.s32.totalorder %s16, 1
    %p55 = por %p53, %p54
    %p56 = scmp.ne.s32.totalorder %s47, %s48
    %p57 = scmp.eq.s32.totalorder %s16, 0
    %p58 = por %p56, %p57
    %p59 = scmp.ne.s32.totalorder %s47, %s48
    %p60 = scmp.eq.s32.totalorder %s17, 1
    %p61 = por %p59, %p60
    %p63 = scmp.ne.s32.totalorder %s48, %s62
    %p64 = scmp.eq.s32.totalorder %s17, 0
    %p65 = por %p63, %p64
    %s67 = sadd.s32 %s66, 1
    %p70 = scmp.eq.s32.totalorder %s11, 1
    %p71 = scmp.ne.s32.totalorder %s66, %s68
    %p72 = scmp.eq.s32.totalorder %s11, 0
    %p73 = por %p71, %p72
    %p74 = scmp.ne.s32.totalorder %s66, %s68
    %p75 = scmp.eq.s32.totalorder %s16, 1
    %p76 = por %p74, %p75
    %p77 = scmp.ne.s32.totalorder %s68, %s69
    %p78 = scmp.eq.s32.totalorder %s16, 0
    %p79 = por %p77, %p78
    %p80 = scmp.ne.s32.totalorder %s68, %s69
    %p81 = scmp.eq.s32.totalorder %s17, 1
    %p82 = por %p80, %p81
    %p84 = scmp.ne.s32.totalorder %s69, %s83
    %p85 = scmp.eq.s32.totalorder %s17, 0
    %p86 = por %p84, %p85
    %s88 = sadd.s32 %s87, 1
    %p91 = scmp.eq.s32.totalorder %s11, 1
    %p92 = scmp.ne.s32.totalorder %s87, %s89
    %p93 = scmp.eq.s32.totalorder %s11, 0
    %p94 = por %p92, %p93
    %p95 = scmp.ne.s32.totalorder %s87, %s89
    %p96 = scmp.eq.s32.totalorder %s16, 1
    %p97 = por %p95, %p96
    %p98 = scmp.ne.s32.totalorder %s89, %s90
    %p99 = scmp.eq.s32.totalorder %s16, 0
    %p100 = por %p98, %p99
    %p101 = scmp.ne.s32.totalorder %s89, %s90
    %p102 = scmp.eq.s32.totalorder %s17, 1
    %p103 = por %p101, %p102
    %p105 = scmp.ne.s32.totalorder %s90, %s104
    %p106 = scmp.eq.s32.totalorder %s17, 0
    %p107 = por %p105, %p106
    %s109 = sadd.s32 %s108, 1
    %p112 = scmp.eq.s32.totalorder %s11, 1
    %p113 = scmp.ne.s32.totalorder %s108, %s110
    %p114 = scmp.eq.s32.totalorder %s11, 0
    %p115 = por %p113, %p114
    %p116 = scmp.ne.s32.totalorder %s108, %s110
    %p117 = scmp.eq.s32.totalorder %s16, 1
    %p118 = por %p116, %p117
    %p119 = scmp.ne.s32.totalorder %s110, %s111
    %p120 = scmp.eq.s32.totalorder %s16, 0
    %p121 = por %p119, %p120
    %p122 = scmp.ne.s32.totalorder %s110, %s111
    %p123 = scmp.eq.s32.totalorder %s17, 1
    %p124 = por %p122, %p123
    %p126 = scmp.ne.s32.totalorder %s111, %s125
    %p127 = scmp.eq.s32.totalorder %s17, 0
    %p128 = por %p126, %p127
    %s129 = ssub.s32 %s11, %s18
    %p130 = scmp.eq.s32.totalorder %s129, 0
    %s132 = sadd.s32 %s131, 1
    %s133 = scalar_select %p130, %s131, %s132
    %p136 = pneg %p130
    %p137 = scmp.eq.s32.totalorder %s11, 1
    %p138 = por %p136, %p137
    %p139 = scmp.ne.s32.totalorder %s131, %s134
    %p140 = scmp.eq.s32.totalorder %s11, 0
    %p141 = por %p139, %p140
    %p142 = scmp.ne.s32.totalorder %s131, %s134
    %p143 = scmp.eq.s32.totalorder %s16, 1
    %p144 = por %p142, %p143
    %p145 = scmp.ne.s32.totalorder %s134, %s135
    %p146 = scmp.eq.s32.totalorder %s16, 0
    %p147 = por %p145, %p146
    %p148 = scmp.ne.s32.totalorder %s134, %s135
    %p149 = scmp.eq.s32.totalorder %s17, 1
    %p150 = por %p148, %p149
    %p152 = scmp.ne.s32.totalorder %s135, %s151
    %p153 = scmp.eq.s32.totalorder %s17, 0
    %p154 = por %p152, %p153
    %p155 = scmp.le.s32.totalorder 1, %s11
    %p156 = scmp.lt.s32.totalorder %s11, 3
    %p157 = pnand %p155, %p156
    %p158 = pneg %p157
    // Predicated region
    $region9: #{tpu_custom_call.1} parent=5 // pred_check
      _
    $region10: #{tpu_custom_call.1} parent=5 // pred_check_branch
      %160 = sbr.rel (%p157) target = $region12
    $region11: #{tpu_custom_call.1} parent=5 // pred_region
      %s161 = ssub.s32 %s11, 1
      // Predicated region
      $region13: #{tpu_custom_call.1} parent=11 // pred_check
        %p162 = pneg %p58
      $region14: #{tpu_custom_call.1} parent=11 // pred_check_branch
        %164 = sbr.rel (%p162) target = $region16
      $region15: #{tpu_custom_call.1} parent=11 // pred_region
        _
      $region16: #{tpu_custom_call.1} parent=11 // pred_fallthru
        _
      // Predicated region
      $region17: #{tpu_custom_call.1} parent=11 // pred_check
        %p165 = pneg %p79
      $region18: #{tpu_custom_call.1} parent=11 // pred_check_branch
        %167 = sbr.rel (%p165) target = $region20
      $region19: #{tpu_custom_call.1} parent=11 // pred_region
        _
      $region20: #{tpu_custom_call.1} parent=11 // pred_fallthru
        _
      // Predicated region
      $region21: #{tpu_custom_call.1} parent=11 // pred_check
        %p168 = pneg %p100
      $region22: #{tpu_custom_call.1} parent=11 // pred_check_branch
        %170 = sbr.rel (%p168) target = $region24
      $region23: #{tpu_custom_call.1} parent=11 // pred_region
        _
      $region24: #{tpu_custom_call.1} parent=11 // pred_fallthru
        _
      // Predicated region
      $region25: #{tpu_custom_call.1} parent=11 // pred_check
        %p171 = pneg %p121
      $region26: #{tpu_custom_call.1} parent=11 // pred_check_branch
        %173 = sbr.rel (%p171) target = $region28
      $region27: #{tpu_custom_call.1} parent=11 // pred_region
        _
      $region28: #{tpu_custom_call.1} parent=11 // pred_fallthru
        _
    $region12: #{tpu_custom_call.1} parent=5 // pred_fallthru
      _
    %p174 = scmp.lt.s32.totalorder %s11, 2
    // Predicated region
    $region29: #{tpu_custom_call.1} parent=5 // pred_check
      %p175 = pneg %p174
    $region30: #{tpu_custom_call.1} parent=5 // pred_check_branch
      %177 = sbr.rel (%p175) target = $region32
    $region31: #{tpu_custom_call.1} parent=5 // pred_region
      // Predicated region
      $region33: #{tpu_custom_call.1} parent=31 // pred_check
        %p178 = pneg %p31
      $region34: #{tpu_custom_call.1} parent=31 // pred_check_branch
        %180 = sbr.rel (%p178) target = $region36
      $region35: #{tpu_custom_call.1} parent=31 // pred_region
        %p181 = scmp.lt.s32.totalorder %s11, 1
        %s182 = scalar_select %p181, %s11, 1
        %s183 = smul.addr %s182, 32
        %s184 = smul.addr %s183, 8
        %s185 = scalar_lea.vmem %s0, %s184
      $region36: #{tpu_custom_call.1} parent=31 // pred_fallthru
        _
    $region32: #{tpu_custom_call.1} parent=5 // pred_fallthru
      _
    %p186 = scmp.le.s32.totalorder 1, %s11
    %p187 = scmp.lt.s32.totalorder %s11, 3
    %p188 = pnand %p186, %p187
    %p189 = pneg %p188
    // Predicated region
    $region37: #{tpu_custom_call.1} parent=5 // pred_check
      _
    $region38: #{tpu_custom_call.1} parent=5 // pred_check_branch
      %191 = sbr.rel (%p188) target = $region40
    $region39: #{tpu_custom_call.1} parent=5 // pred_region
      %s192 = ssub.s32 %s11, 1
      %p193 = scmp.lt.s32.totalorder %s16, 1
      %s194 = scalar_select %p193, %s16, 1
      %s195 = smul.addr %s194, 32
      %s196 = smul.addr %s195, 8
      %s197 = scalar_lea.vmem %s0, %s196
      %p198 = pneg %p37
      %p199 = pneg %p34
      %p200 = pneg %p58
      %p201 = pneg %p55
      %p202 = pneg %p79
      %p203 = pneg %p76
      %p204 = pneg %p100
      %p205 = pneg %p97
      %p206 = pneg %p121
      %p207 = pneg %p118
      %p208 = pneg %p147
      %p209 = pneg %p144
      %p210 = scmp.lt.s32.totalorder %s16, 1
      %s211 = scalar_select %p210, %s16, 1
      %s212 = smul.addr %s211, 32
      %s213 = smul.addr %s212, 8
      %s214 = scalar_lea.vmem %s5, %s213
      %p215 = scmp.lt.s32.totalorder %s16, 1
      %s216 = scalar_select %p215, %s16, 1
      %s217 = smul.addr %s216, 32
      %s218 = smul.addr %s217, 8
      %s219 = scalar_lea.vmem %s0, %s218
      %p220 = scmp.lt.s32.totalorder %s16, 1
      %s221 = scalar_select %p220, %s16, 1
      %s222 = smul.addr %s221, 32
      %s223 = smul.addr %s222, 8
      %s224 = scalar_lea.vmem %s5, %s223
      %v225 = vld [vmem:[%s219] sm:$0xff]
      %v226 = vld [vmem:[%s219 + $0x8] sm:$0xff]
      %v227 = vld [vmem:[%s219 + $0x10] sm:$0xff]
      %v228 = vld [vmem:[%s219 + $0x18] sm:$0xff]
      %v229 = vld [vmem:[%s219 + $0x20] sm:$0xff]
      %v230 = vld [vmem:[%s219 + $0x28] sm:$0xff]
      %v231 = vld [vmem:[%s219 + $0x30] sm:$0xff]
      %v232 = vld [vmem:[%s219 + $0x38] sm:$0xff]
      %v233 = vld [vmem:[%s219 + $0x40] sm:$0xff]
      %v234 = vld [vmem:[%s219 + $0x48] sm:$0xff]
      %v235 = vld [vmem:[%s219 + $0x50] sm:$0xff]
      %v236 = vld [vmem:[%s219 + $0x58] sm:$0xff]
      %v237 = vld [vmem:[%s219 + $0x60] sm:$0xff]
      %v238 = vld [vmem:[%s219 + $0x68] sm:$0xff]
      %v239 = vld [vmem:[%s219 + $0x70] sm:$0xff]
      %v240 = vld [vmem:[%s219 + $0x78] sm:$0xff]
      %v241 = vld [vmem:[%s219 + $0x80] sm:$0xff]
      %v242 = vld [vmem:[%s219 + $0x88] sm:$0xff]
      %v243 = vld [vmem:[%s219 + $0x90] sm:$0xff]
      %v244 = vld [vmem:[%s219 + $0x98] sm:$0xff]
      %v245 = vld [vmem:[%s219 + $0xa0] sm:$0xff]
      %v246 = vld [vmem:[%s219 + $0xa8] sm:$0xff]
      %v247 = vld [vmem:[%s219 + $0xb0] sm:$0xff]
      %v248 = vld [vmem:[%s219 + $0xb8] sm:$0xff]
      %v249 = vld [vmem:[%s219 + $0xc0] sm:$0xff]
      %v250 = vld [vmem:[%s219 + $0xc8] sm:$0xff]
      %v251 = vld [vmem:[%s219 + $0xd0] sm:$0xff]
      %v252 = vld [vmem:[%s219 + $0xd8] sm:$0xff]
      %v253 = vld [vmem:[%s219 + $0xe0] sm:$0xff]
      %v254 = vld [vmem:[%s219 + $0xe8] sm:$0xff]
      %v255 = vld [vmem:[%s219 + $0xf0] sm:$0xff]
      %v256 = vld [vmem:[%s219 + $0xf8] sm:$0xff]
      %s257 = scalar_lea.vmem [#allocation2], 24
      %vm258 = vcmask 31744
      %259 = vst.msk [vmem:[%s257 + $0x1] sm:$0xff] %vm258, %v225
      %260 = vst.msk [vmem:[%s257 + $0x9] sm:$0xff] %vm258, %v226
      %261 = vst.msk [vmem:[%s257 + $0x19] sm:$0xff] %vm258, %v227
      %262 = vst.msk [vmem:[%s257 + $0x21] sm:$0xff] %vm258, %v228
      %263 = vst.msk [vmem:[%s257 + $0x31] sm:$0xff] %vm258, %v229
      %264 = vst.msk [vmem:[%s257 + $0x39] sm:$0xff] %vm258, %v230
      %265 = vst.msk [vmem:[%s257 + $0x49] sm:$0xff] %vm258, %v231
      %266 = vst.msk [vmem:[%s257 + $0x51] sm:$0xff] %vm258, %v232
      %267 = vst.msk [vmem:[%s257 + $0x61] sm:$0xff] %vm258, %v233
      %268 = vst.msk [vmem:[%s257 + $0x69] sm:$0xff] %vm258, %v234
      %269 = vst.msk [vmem:[%s257 + $0x79] sm:$0xff] %vm258, %v235
      %270 = vst.msk [vmem:[%s257 + $0x81] sm:$0xff] %vm258, %v236
      %271 = vst.msk [vmem:[%s257 + $0x91] sm:$0xff] %vm258, %v237
      %272 = vst.msk [vmem:[%s257 + $0x99] sm:$0xff] %vm258, %v238
      %273 = vst.msk [vmem:[%s257 + $0xa9] sm:$0xff] %vm258, %v239
      %274 = vst.msk [vmem:[%s257 + $0xb1] sm:$0xff] %vm258, %v240
      %275 = vst.msk [vmem:[%s257 + $0xc1] sm:$0xff] %vm258, %v241
      %276 = vst.msk [vmem:[%s257 + $0xc9] sm:$0xff] %vm258, %v242
      %277 = vst.msk [vmem:[%s257 + $0xd9] sm:$0xff] %vm258, %v243
      %278 = vst.msk [vmem:[%s257 + $0xe1] sm:$0xff] %vm258, %v244
      %279 = vst.msk [vmem:[%s257 + $0xf1] sm:$0xff] %vm258, %v245
      %280 = vst.msk [vmem:[%s257 + $0xf9] sm:$0xff] %vm258, %v246
      %281 = vst.msk [vmem:[%s257 + $0x109] sm:$0xff] %vm258, %v247
      %282 = vst.msk [vmem:[%s257 + $0x111] sm:$0xff] %vm258, %v248
      %283 = vst.msk [vmem:[%s257 + $0x121] sm:$0xff] %vm258, %v249
      %284 = vst.msk [vmem:[%s257 + $0x129] sm:$0xff] %vm258, %v250
      %285 = vst.msk [vmem:[%s257 + $0x139] sm:$0xff] %vm258, %v251
      %286 = vst.msk [vmem:[%s257 + $0x141] sm:$0xff] %vm258, %v252
      %287 = vst.msk [vmem:[%s257 + $0x151] sm:$0xff] %vm258, %v253
      %288 = vst.msk [vmem:[%s257 + $0x159] sm:$0xff] %vm258, %v254
      %289 = vst.msk [vmem:[%s257 + $0x169] sm:$0xff] %vm258, %v255
      %290 = vst.msk [vmem:[%s257 + $0x171] sm:$0xff] %vm258, %v256
      %291 = vst.msk [vmem:[#allocation2 + $0x1] sm:$0xff] %vm258, %v227
      %292 = vst.msk [vmem:[#allocation2 + $0x9] sm:$0xff] %vm258, %v228
      %s293 = scalar_lea.vmem [#allocation2], 408
      %294 = vst.msk [vmem:[%s293 + $0x1] sm:$0xff] %vm258, %v253
      %295 = vst.msk [vmem:[%s293 + $0x9] sm:$0xff] %vm258, %v254
      %v296 = vld [vmem:[#allocation2 + $0x2] sm:$0x1]
      %v297 = vld [vmem:[#allocation2 + $0x1a] sm:$0x1]
      %v298 = vld [vmem:[#allocation2 + $0x32] sm:$0x1]
      %v299 = vld [vmem:[#allocation2 + $0x4a] sm:$0x1]
      %v300 = vld [vmem:[#allocation2 + $0x62] sm:$0x1]
      %v301 = vld [vmem:[#allocation2 + $0x7a] sm:$0x1]
      %v302 = vld [vmem:[#allocation2 + $0x92] sm:$0x1]
      %v303 = vld [vmem:[#allocation2 + $0xaa] sm:$0x1]
      %v304 = vld [vmem:[#allocation2 + $0xc2] sm:$0x1]
      %v305 = vld [vmem:[#allocation2 + $0xda] sm:$0x1]
      %v306 = vld [vmem:[#allocation2 + $0xf2] sm:$0x1]
      %v307 = vld [vmem:[#allocation2 + $0x10a] sm:$0x1]
      %v308 = vld [vmem:[#allocation2 + $0x122] sm:$0x1]
      %v309 = vld [vmem:[#allocation2 + $0x13a] sm:$0x1]
      %v310 = vld [vmem:[#allocation2 + $0x152] sm:$0x1]
      %v311 = vld [vmem:[#allocation2 + $0x16a] sm:$0x1]
      %v312 = vld [vmem:[#allocation2 + $0x182] sm:$0x1]
      %v313 = vld [vmem:[#allocation2 + $0x19a] sm:$0x1]
      %vm314 = vcmask 24576
      %315 = vst.msk [vmem:[#allocation2] sm:$0x1] %vm314, %v296
      %316 = vst.msk [vmem:[#allocation2 + $0x18] sm:$0x1] %vm314, %v297
      %317 = vst.msk [vmem:[#allocation2 + $0x30] sm:$0x1] %vm314, %v298
      %318 = vst.msk [vmem:[#allocation2 + $0x48] sm:$0x1] %vm314, %v299
      %319 = vst.msk [vmem:[#allocation2 + $0x60] sm:$0x1] %vm314, %v300
      %320 = vst.msk [vmem:[#allocation2 + $0x78] sm:$0x1] %vm314, %v301
      %321 = vst.msk [vmem:[#allocation2 + $0x90] sm:$0x1] %vm314, %v302
      %322 = vst.msk [vmem:[#allocation2 + $0xa8] sm:$0x1] %vm314, %v303
      %323 = vst.msk [vmem:[#allocation2 + $0xc0] sm:$0x1] %vm314, %v304
      %324 = vst.msk [vmem:[#allocation2 + $0xd8] sm:$0x1] %vm314, %v305
      %325 = vst.msk [vmem:[#allocation2 + $0xf0] sm:$0x1] %vm314, %v306
      %326 = vst.msk [vmem:[#allocation2 + $0x108] sm:$0x1] %vm314, %v307
      %327 = vst.msk [vmem:[#allocation2 + $0x120] sm:$0x1] %vm314, %v308
      %328 = vst.msk [vmem:[#allocation2 + $0x138] sm:$0x1] %vm314, %v309
      %329 = vst.msk [vmem:[#allocation2 + $0x150] sm:$0x1] %vm314, %v310
      %330 = vst.msk [vmem:[#allocation2 + $0x168] sm:$0x1] %vm314, %v311
      %331 = vst.msk [vmem:[#allocation2 + $0x180] sm:$0x1] %vm314, %v312
      %332 = vst.msk [vmem:[#allocation2 + $0x198] sm:$0x1] %vm314, %v313
      %v333 = vld [vmem:[#allocation2 + $0xf] sm:$0x1]
      %v334 = vld [vmem:[#allocation2 + $0x27] sm:$0x1]
      %v335 = vld [vmem:[#allocation2 + $0x3f] sm:$0x1]
      %v336 = vld [vmem:[#allocation2 + $0x57] sm:$0x1]
      %v337 = vld [vmem:[#allocation2 + $0x6f] sm:$0x1]
      %v338 = vld [vmem:[#allocation2 + $0x87] sm:$0x1]
      %v339 = vld [vmem:[#allocation2 + $0x9f] sm:$0x1]
      %v340 = vld [vmem:[#allocation2 + $0xb7] sm:$0x1]
      %v341 = vld [vmem:[#allocation2 + $0xcf] sm:$0x1]
      %v342 = vld [vmem:[#allocation2 + $0xe7] sm:$0x1]
      %v343 = vld [vmem:[#allocation2 + $0xff] sm:$0x1]
      %v344 = vld [vmem:[#allocation2 + $0x117] sm:$0x1]
      %v345 = vld [vmem:[#allocation2 + $0x12f] sm:$0x1]
      %v346 = vld [vmem:[#allocation2 + $0x147] sm:$0x1]
      %v347 = vld [vmem:[#allocation2 + $0x15f] sm:$0x1]
      %v348 = vld [vmem:[#allocation2 + $0x177] sm:$0x1]
      %v349 = vld [vmem:[#allocation2 + $0x18f] sm:$0x1]
      %v350 = vld [vmem:[#allocation2 + $0x1a7] sm:$0x1]
      %351 = vst.msk [vmem:[#allocation2 + $0x11] sm:$0x1] %vm314, %v333
      %352 = vst.msk [vmem:[#allocation2 + $0x29] sm:$0x1] %vm314, %v334
      %353 = vst.msk [vmem:[#allocation2 + $0x41] sm:$0x1] %vm314, %v335
      %354 = vst.msk [vmem:[#allocation2 + $0x59] sm:$0x1] %vm314, %v336
      %355 = vst.msk [vmem:[#allocation2 + $0x71] sm:$0x1] %vm314, %v337
      %356 = vst.msk [vmem:[#allocation2 + $0x89] sm:$0x1] %vm314, %v338
      %357 = vst.msk [vmem:[#allocation2 + $0xa1] sm:$0x1] %vm314, %v339
      %358 = vst.msk [vmem:[#allocation2 + $0xb9] sm:$0x1] %vm314, %v340
      %359 = vst.msk [vmem:[#allocation2 + $0xd1] sm:$0x1] %vm314, %v341
      %360 = vst.msk [vmem:[#allocation2 + $0xe9] sm:$0x1] %vm314, %v342
      %361 = vst.msk [vmem:[#allocation2 + $0x101] sm:$0x1] %vm314, %v343
      %362 = vst.msk [vmem:[#allocation2 + $0x119] sm:$0x1] %vm314, %v344
      %363 = vst.msk [vmem:[#allocation2 + $0x131] sm:$0x1] %vm314, %v345
      %364 = vst.msk [vmem:[#allocation2 + $0x149] sm:$0x1] %vm314, %v346
      %365 = vst.msk [vmem:[#allocation2 + $0x161] sm:$0x1] %vm314, %v347
      %366 = vst.msk [vmem:[#allocation2 + $0x179] sm:$0x1] %vm314, %v348
      %367 = vst.msk [vmem:[#allocation2 + $0x191] sm:$0x1] %vm314, %v349
      %368 = vst.msk [vmem:[#allocation2 + $0x1a9] sm:$0x1] %vm314, %v350
      %v369 = vld [vmem:[#allocation2] sm:$0xff]
      %v370 = vld [vmem:[#allocation2 + $0x8] sm:$0xff]
      %v371 = vld [vmem:[#allocation2 + $0x10] sm:$0x3]
      %v372 = vld [vmem:[#allocation2 + $0x18] sm:$0xff]
      %v373 = vld [vmem:[#allocation2 + $0x20] sm:$0xff]
      %v374 = vld [vmem:[#allocation2 + $0x28] sm:$0x3]
      %v375 = vld [vmem:[#allocation2 + $0x30] sm:$0xff]
      %v376 = vld [vmem:[#allocation2 + $0x38] sm:$0xff]
      %v377 = vld [vmem:[#allocation2 + $0x40] sm:$0x3]
      %v378 = vld [vmem:[#allocation2 + $0x48] sm:$0xff]
      %v379 = vld [vmem:[#allocation2 + $0x50] sm:$0xff]
      %v380 = vld [vmem:[#allocation2 + $0x58] sm:$0x3]
      %v381 = vld [vmem:[#allocation2 + $0x60] sm:$0xff]
      %v382 = vld [vmem:[#allocation2 + $0x68] sm:$0xff]
      %v383 = vld [vmem:[#allocation2 + $0x70] sm:$0x3]
      %v384 = vld [vmem:[#allocation2 + $0x78] sm:$0xff]
      %v385 = vld [vmem:[#allocation2 + $0x80] sm:$0xff]
      %v386 = vld [vmem:[#allocation2 + $0x88] sm:$0x3]
      %v387 = vld [vmem:[#allocation2 + $0x90] sm:$0xff]
      %v388 = vld [vmem:[#allocation2 + $0x98] sm:$0xff]
      %v389 = vld [vmem:[#allocation2 + $0xa0] sm:$0x3]
      %v390 = vld [vmem:[#allocation2 + $0xa8] sm:$0xff]
      %v391 = vld [vmem:[#allocation2 + $0xb0] sm:$0xff]
      %v392 = vld [vmem:[#allocation2 + $0xb8] sm:$0x3]
      %v393 = vld [vmem:[#allocation2 + $0xc0] sm:$0xff]
      %v394 = vld [vmem:[#allocation2 + $0xc8] sm:$0xff]
      %v395 = vld [vmem:[#allocation2 + $0xd0] sm:$0x3]
      %v396 = vld [vmem:[#allocation2 + $0xd8] sm:$0xff]
      %v397 = vld [vmem:[#allocation2 + $0xe0] sm:$0xff]
      %v398 = vld [vmem:[#allocation2 + $0xe8] sm:$0x3]
      %v399 = vld [vmem:[#allocation2 + $0xf0] sm:$0xff]
      %v400 = vld [vmem:[#allocation2 + $0xf8] sm:$0xff]
      %v401 = vld [vmem:[#allocation2 + $0x100] sm:$0x3]
      %v402 = vld [vmem:[#allocation2 + $0x108] sm:$0xff]
      %v403 = vld [vmem:[#allocation2 + $0x110] sm:$0xff]
      %v404 = vld [vmem:[#allocation2 + $0x118] sm:$0x3]
      %v405 = vld [vmem:[#allocation2 + $0x120] sm:$0xff]
      %v406 = vld [vmem:[#allocation2 + $0x128] sm:$0xff]
      %v407 = vld [vmem:[#allocation2 + $0x130] sm:$0x3]
      %v408 = vld [vmem:[#allocation2 + $0x138] sm:$0xff]
      %v409 = vld [vmem:[#allocation2 + $0x140] sm:$0xff]
      %v410 = vld [vmem:[#allocation2 + $0x148] sm:$0x3]
      %v411 = vld [vmem:[#allocation2 + $0x150] sm:$0xff]
      %v412 = vld [vmem:[#allocation2 + $0x158] sm:$0xff]
      %v413 = vld [vmem:[#allocation2 + $0x160] sm:$0x3]
      %v414 = vld [vmem:[#allocation2 + $0x168] sm:$0xff]
      %v415 = vld [vmem:[#allocation2 + $0x170] sm:$0xff]
      %v416 = vld [vmem:[#allocation2 + $0x178] sm:$0x3]
      %v417 = vld [vmem:[#allocation2 + $0x180] sm:$0xff]
      %v418 = vld [vmem:[#allocation2 + $0x188] sm:$0xff]
      %v419 = vld [vmem:[#allocation2 + $0x190] sm:$0x3]
      %v420 = vld [vmem:[#allocation2 + $0x198] sm:$0xff]
      %v421 = vld [vmem:[#allocation2 + $0x1a0] sm:$0xff]
      %v422 = vld [vmem:[#allocation2 + $0x1a8] sm:$0x3]
      %v423 = vsel %vm258, %v369, 0.0
      %v424 = vsel %vm258, %v370, 0.0
      %v425 = vadd.f32 %v423, %v424
      %vm426 = vcmask 25600
      %v427 = vsel %vm426, %v371, 0.0
      %v428 = vadd.f32 %v425, %v427
      %v429 = vsel %vm258, %v372, 0.0
      %v430 = vadd.f32 %v428, %v429
      %v431 = vsel %vm258, %v373, 0.0
      %v432 = vadd.f32 %v430, %v431
      %v433 = vsel %vm426, %v374, 0.0
      %v434 = vadd.f32 %v432, %v433
      %v435 = vsel %vm258, %v375, 0.0
      %v436 = vadd.f32 %v434, %v435
      %v437 = vsel %vm258, %v376, 0.0
      %v438 = vadd.f32 %v436, %v437
      %v439 = vsel %vm426, %v377, 0.0
      %v440 = vadd.f32 %v438, %v439
      %v441 = vsel %vm258, %v378, 0.0
      %v442 = vadd.f32 %v440, %v441
      %v443 = vsel %vm258, %v379, 0.0
      %v444 = vadd.f32 %v442, %v443
      %v445 = vsel %vm426, %v380, 0.0
      %v446 = vadd.f32 %v444, %v445
      %v447 = vsel %vm258, %v381, 0.0
      %v448 = vadd.f32 %v446, %v447
      %v449 = vsel %vm258, %v382, 0.0
      %v450 = vadd.f32 %v448, %v449
      %v451 = vsel %vm426, %v383, 0.0
      %v452 = vadd.f32 %v450, %v451
      %v453 = vsel %vm258, %v384, 0.0
      %v454 = vadd.f32 %v452, %v453
      %v455 = vsel %vm258, %v385, 0.0
      %v456 = vadd.f32 %v454, %v455
      %v457 = vsel %vm426, %v386, 0.0
      %v458 = vadd.f32 %v456, %v457
      %v459 = vsel %vm258, %v387, 0.0
      %v460 = vadd.f32 %v458, %v459
      %v461 = vsel %vm258, %v388, 0.0
      %v462 = vadd.f32 %v460, %v461
      %v463 = vsel %vm426, %v389, 0.0
      %v464 = vadd.f32 %v462, %v463
      %v465 = vsel %vm258, %v390, 0.0
      %v466 = vadd.f32 %v464, %v465
      %v467 = vsel %vm258, %v391, 0.0
      %v468 = vadd.f32 %v466, %v467
      %v469 = vsel %vm426, %v392, 0.0
      %v470 = vadd.f32 %v468, %v469
      %v471 = vsel %vm258, %v393, 0.0
      %v472 = vadd.f32 %v470, %v471
      %v473 = vsel %vm258, %v394, 0.0
      %v474 = vadd.f32 %v472, %v473
      %v475 = vsel %vm426, %v395, 0.0
      %v476 = vadd.f32 %v474, %v475
      %v477 = vsel %vm258, %v396, 0.0
      %v478 = vadd.f32 %v476, %v477
      %v479 = vsel %vm258, %v397, 0.0
      %v480 = vadd.f32 %v478, %v479
      %v481 = vsel %vm426, %v398, 0.0
      %v482 = vadd.f32 %v480, %v481
      %v483 = vsel %vm258, %v399, 0.0
      %v484 = vadd.f32 %v482, %v483
      %v485 = vsel %vm258, %v400, 0.0
      %v486 = vadd.f32 %v484, %v485
      %v487 = vsel %vm426, %v401, 0.0
      %v488 = vadd.f32 %v486, %v487
      %v489 = vsel %vm258, %v402, 0.0
      %v490 = vadd.f32 %v488, %v489
      %v491 = vsel %vm258, %v403, 0.0
      %v492 = vadd.f32 %v490, %v491
      %v493 = vsel %vm426, %v404, 0.0
      %v494 = vadd.f32 %v492, %v493
      %v495 = vsel %vm258, %v405, 0.0
      %v496 = vadd.f32 %v494, %v495
      %v497 = vsel %vm258, %v406, 0.0
      %v498 = vadd.f32 %v496, %v497
      %v499 = vsel %vm426, %v407, 0.0
      %v500 = vadd.f32 %v498, %v499
      %v501 = vsel %vm258, %v408, 0.0
      %v502 = vadd.f32 %v500, %v501
      %v503 = vsel %vm258, %v409, 0.0
      %v504 = vadd.f32 %v502, %v503
      %v505 = vsel %vm426, %v410, 0.0
      %v506 = vadd.f32 %v504, %v505
      %v507 = vsel %vm258, %v411, 0.0
      %v508 = vadd.f32 %v506, %v507
      %v509 = vsel %vm258, %v412, 0.0
      %v510 = vadd.f32 %v508, %v509
      %v511 = vsel %vm426, %v413, 0.0
      %v512 = vadd.f32 %v510, %v511
      %v513 = vsel %vm258, %v414, 0.0
      %v514 = vadd.f32 %v512, %v513
      %v515 = vsel %vm258, %v415, 0.0
      %v516 = vadd.f32 %v514, %v515
      %v517 = vsel %vm426, %v416, 0.0
      %v518 = vadd.f32 %v516, %v517
      %v519 = vsel %vm258, %v417, 0.0
      %v520 = vadd.f32 %v518, %v519
      %v521 = vsel %vm258, %v418, 0.0
      %v522 = vadd.f32 %v520, %v521
      %v523 = vsel %vm426, %v419, 0.0
      %v524 = vadd.f32 %v522, %v523
      %v525 = vsel %vm258, %v420, 0.0
      %v526 = vadd.f32 %v524, %v525
      %v527 = vsel %vm258, %v421, 0.0
      %v528 = vadd.f32 %v526, %v527
      %v529 = vsel %vm426, %v422, 0.0
      %v530 = vadd.f32 %v528, %v529
      %v531 = vrot.slane %v530, 4
      %v532 = vadd.f32 %v530, %v531
      %v533 = vrot.slane %v532, 2
      %v534 = vadd.f32 %v532, %v533
      %v535 = vrot.slane %v534, 1
      %v536 = vadd.f32 %v534, %v535
      %v537 = vrcp.pop 324.0
      %v538 = vmul.f32 %v536, %v537
      %v539 = vsub.f32 %v369, %v538
      %v540 = vsub.f32 %v370, %v538
      %v541 = vsub.f32 %v371, %v538
      %v542 = vsub.f32 %v372, %v538
      %v543 = vsub.f32 %v373, %v538
      %v544 = vsub.f32 %v374, %v538
      %v545 = vsub.f32 %v375, %v538
      %v546 = vsub.f32 %v376, %v538
      %v547 = vsub.f32 %v377, %v538
      %v548 = vsub.f32 %v378, %v538
      %v549 = vsub.f32 %v379, %v538
      %v550 = vsub.f32 %v380, %v538
      %v551 = vsub.f32 %v381, %v538
      %v552 = vsub.f32 %v382, %v538
      %v553 = vsub.f32 %v383, %v538
      %v554 = vsub.f32 %v384, %v538
      %v555 = vsub.f32 %v385, %v538
      %v556 = vsub.f32 %v386, %v538
      %v557 = vsub.f32 %v387, %v538
      %v558 = vsub.f32 %v388, %v538
      %v559 = vsub.f32 %v389, %v538
      %v560 = vsub.f32 %v390, %v538
      %v561 = vsub.f32 %v391, %v538
      %v562 = vsub.f32 %v392, %v538
      %v563 = vsub.f32 %v393, %v538
      %v564 = vsub.f32 %v394, %v538
      %v565 = vsub.f32 %v395, %v538
      %v566 = vsub.f32 %v396, %v538
      %v567 = vsub.f32 %v397, %v538
      %v568 = vsub.f32 %v398, %v538
      %v569 = vsub.f32 %v399, %v538
      %v570 = vsub.f32 %v400, %v538
      %v571 = vsub.f32 %v401, %v538
      %v572 = vsub.f32 %v402, %v538
      %v573 = vsub.f32 %v403, %v538
      %v574 = vsub.f32 %v404, %v538
      %v575 = vsub.f32 %v405, %v538
      %v576 = vsub.f32 %v406, %v538
      %v577 = vsub.f32 %v407, %v538
      %v578 = vsub.f32 %v408, %v538
      %v579 = vsub.f32 %v409, %v538
      %v580 = vsub.f32 %v410, %v538
      %v581 = vsub.f32 %v411, %v538
      %v582 = vsub.f32 %v412, %v538
      %v583 = vsub.f32 %v413, %v538
      %v584 = vsub.f32 %v414, %v538
      %v585 = vsub.f32 %v415, %v538
      %v586 = vsub.f32 %v416, %v538
      %v587 = vsub.f32 %v417, %v538
      %v588 = vsub.f32 %v418, %v538
      %v589 = vsub.f32 %v419, %v538
      %v590 = vsub.f32 %v420, %v538
      %v591 = vsub.f32 %v421, %v538
      %v592 = vsub.f32 %v422, %v538
      %v593 = vmul.f32 %v539, %v539
      %v594 = vmul.f32 %v540, %v540
      %v595 = vmul.f32 %v541, %v541
      %v596 = vmul.f32 %v542, %v542
      %v597 = vmul.f32 %v543, %v543
      %v598 = vmul.f32 %v544, %v544
      %v599 = vmul.f32 %v545, %v545
      %v600 = vmul.f32 %v546, %v546
      %v601 = vmul.f32 %v547, %v547
      %v602 = vmul.f32 %v548, %v548
      %v603 = vmul.f32 %v549, %v549
      %v604 = vmul.f32 %v550, %v550
      %v605 = vmul.f32 %v551, %v551
      %v606 = vmul.f32 %v552, %v552
      %v607 = vmul.f32 %v553, %v553
      %v608 = vmul.f32 %v554, %v554
      %v609 = vmul.f32 %v555, %v555
      %v610 = vmul.f32 %v556, %v556
      %v611 = vmul.f32 %v557, %v557
      %v612 = vmul.f32 %v558, %v558
      %v613 = vmul.f32 %v559, %v559
      %v614 = vmul.f32 %v560, %v560
      %v615 = vmul.f32 %v561, %v561
      %v616 = vmul.f32 %v562, %v562
      %v617 = vmul.f32 %v563, %v563
      %v618 = vmul.f32 %v564, %v564
      %v619 = vmul.f32 %v565, %v565
      %v620 = vmul.f32 %v566, %v566
      %v621 = vmul.f32 %v567, %v567
      %v622 = vmul.f32 %v568, %v568
      %v623 = vmul.f32 %v569, %v569
      %v624 = vmul.f32 %v570, %v570
      %v625 = vmul.f32 %v571, %v571
      %v626 = vmul.f32 %v572, %v572
      %v627 = vmul.f32 %v573, %v573
      %v628 = vmul.f32 %v574, %v574
      %v629 = vmul.f32 %v575, %v575
      %v630 = vmul.f32 %v576, %v576
      %v631 = vmul.f32 %v577, %v577
      %v632 = vmul.f32 %v578, %v578
      %v633 = vmul.f32 %v579, %v579
      %v634 = vmul.f32 %v580, %v580
      %v635 = vmul.f32 %v581, %v581
      %v636 = vmul.f32 %v582, %v582
      %v637 = vmul.f32 %v583, %v583
      %v638 = vmul.f32 %v584, %v584
      %v639 = vmul.f32 %v585, %v585
      %v640 = vmul.f32 %v586, %v586
      %v641 = vmul.f32 %v587, %v587
      %v642 = vmul.f32 %v588, %v588
      %v643 = vmul.f32 %v589, %v589
      %v644 = vmul.f32 %v590, %v590
      %v645 = vmul.f32 %v591, %v591
      %v646 = vmul.f32 %v592, %v592
      %v647 = vsel %vm258, %v593, 0.0
      %v648 = vsel %vm258, %v594, 0.0
      %v649 = vadd.f32 %v647, %v648
      %v650 = vsel %vm426, %v595, 0.0
      %v651 = vadd.f32 %v649, %v650
      %v652 = vsel %vm258, %v596, 0.0
      %v653 = vadd.f32 %v651, %v652
      %v654 = vsel %vm258, %v597, 0.0
      %v655 = vadd.f32 %v653, %v654
      %v656 = vsel %vm426, %v598, 0.0
      %v657 = vadd.f32 %v655, %v656
      %v658 = vsel %vm258, %v599, 0.0
      %v659 = vadd.f32 %v657, %v658
      %v660 = vsel %vm258, %v600, 0.0
      %v661 = vadd.f32 %v659, %v660
      %v662 = vsel %vm426, %v601, 0.0
      %v663 = vadd.f32 %v661, %v662
      %v664 = vsel %vm258, %v602, 0.0
      %v665 = vadd.f32 %v663, %v664
      %v666 = vsel %vm258, %v603, 0.0
      %v667 = vadd.f32 %v665, %v666
      %v668 = vsel %vm426, %v604, 0.0
      %v669 = vadd.f32 %v667, %v668
      %v670 = vsel %vm258, %v605, 0.0
      %v671 = vadd.f32 %v669, %v670
      %v672 = vsel %vm258, %v606, 0.0
      %v673 = vadd.f32 %v671, %v672
      %v674 = vsel %vm426, %v607, 0.0
      %v675 = vadd.f32 %v673, %v674
      %v676 = vsel %vm258, %v608, 0.0
      %v677 = vadd.f32 %v675, %v676
      %v678 = vsel %vm258, %v609, 0.0
      %v679 = vadd.f32 %v677, %v678
      %v680 = vsel %vm426, %v610, 0.0
      %v681 = vadd.f32 %v679, %v680
      %v682 = vsel %vm258, %v611, 0.0
      %v683 = vadd.f32 %v681, %v682
      %v684 = vsel %vm258, %v612, 0.0
      %v685 = vadd.f32 %v683, %v684
      %v686 = vsel %vm426, %v613, 0.0
      %v687 = vadd.f32 %v685, %v686
      %v688 = vsel %vm258, %v614, 0.0
      %v689 = vadd.f32 %v687, %v688
      %v690 = vsel %vm258, %v615, 0.0
      %v691 = vadd.f32 %v689, %v690
      %v692 = vsel %vm426, %v616, 0.0
      %v693 = vadd.f32 %v691, %v692
      %v694 = vsel %vm258, %v617, 0.0
      %v695 = vadd.f32 %v693, %v694
      %v696 = vsel %vm258, %v618, 0.0
      %v697 = vadd.f32 %v695, %v696
      %v698 = vsel %vm426, %v619, 0.0
      %v699 = vadd.f32 %v697, %v698
      %v700 = vsel %vm258, %v620, 0.0
      %v701 = vadd.f32 %v699, %v700
      %v702 = vsel %vm258, %v621, 0.0
      %v703 = vadd.f32 %v701, %v702
      %v704 = vsel %vm426, %v622, 0.0
      %v705 = vadd.f32 %v703, %v704
      %v706 = vsel %vm258, %v623, 0.0
      %v707 = vadd.f32 %v705, %v706
      %v708 = vsel %vm258, %v624, 0.0
      %v709 = vadd.f32 %v707, %v708
      %v710 = vsel %vm426, %v625, 0.0
      %v711 = vadd.f32 %v709, %v710
      %v712 = vsel %vm258, %v626, 0.0
      %v713 = vadd.f32 %v711, %v712
      %v714 = vsel %vm258, %v627, 0.0
      %v715 = vadd.f32 %v713, %v714
      %v716 = vsel %vm426, %v628, 0.0
      %v717 = vadd.f32 %v715, %v716
      %v718 = vsel %vm258, %v629, 0.0
      %v719 = vadd.f32 %v717, %v718
      %v720 = vsel %vm258, %v630, 0.0
      %v721 = vadd.f32 %v719, %v720
      %v722 = vsel %vm426, %v631, 0.0
      %v723 = vadd.f32 %v721, %v722
      %v724 = vsel %vm258, %v632, 0.0
      %v725 = vadd.f32 %v723, %v724
      %v726 = vsel %vm258, %v633, 0.0
      %v727 = vadd.f32 %v725, %v726
      %v728 = vsel %vm426, %v634, 0.0
      %v729 = vadd.f32 %v727, %v728
      %v730 = vsel %vm258, %v635, 0.0
      %v731 = vadd.f32 %v729, %v730
      %v732 = vsel %vm258, %v636, 0.0
      %v733 = vadd.f32 %v731, %v732
      %v734 = vsel %vm426, %v637, 0.0
      %v735 = vadd.f32 %v733, %v734
      %v736 = vsel %vm258, %v638, 0.0
      %v737 = vadd.f32 %v735, %v736
      %v738 = vsel %vm258, %v639, 0.0
      %v739 = vadd.f32 %v737, %v738
      %v740 = vsel %vm426, %v640, 0.0
      %v741 = vadd.f32 %v739, %v740
      %v742 = vsel %vm258, %v641, 0.0
      %v743 = vadd.f32 %v741, %v742
      %v744 = vsel %vm258, %v642, 0.0
      %v745 = vadd.f32 %v743, %v744
      %v746 = vsel %vm426, %v643, 0.0
      %v747 = vadd.f32 %v745, %v746
      %v748 = vsel %vm258, %v644, 0.0
      %v749 = vadd.f32 %v747, %v748
      %v750 = vsel %vm258, %v645, 0.0
      %v751 = vadd.f32 %v749, %v750
      %v752 = vsel %vm426, %v646, 0.0
      %v753 = vadd.f32 %v751, %v752
      %v754 = vrot.slane %v753, 4
      %v755 = vadd.f32 %v753, %v754
      %v756 = vrot.slane %v755, 2
      %v757 = vadd.f32 %v755, %v756
      %v758 = vrot.slane %v757, 1
      %v759 = vadd.f32 %v757, %v758
      %v760 = vmul.f32 %v759, %v537
      %v761 = vadd.f32 %v760, 1e-05
      %v762 = vrsqrt.pop %v761
      %v763 = vmul.f32 %v539, %v762
      %v764 = vmul.f32 %v540, %v762
      %v765 = vmul.f32 %v541, %v762
      %v766 = vmul.f32 %v542, %v762
      %v767 = vmul.f32 %v543, %v762
      %v768 = vmul.f32 %v544, %v762
      %v769 = vmul.f32 %v545, %v762
      %v770 = vmul.f32 %v546, %v762
      %v771 = vmul.f32 %v547, %v762
      %v772 = vmul.f32 %v548, %v762
      %v773 = vmul.f32 %v549, %v762
      %v774 = vmul.f32 %v550, %v762
      %v775 = vmul.f32 %v551, %v762
      %v776 = vmul.f32 %v552, %v762
      %v777 = vmul.f32 %v553, %v762
      %v778 = vmul.f32 %v554, %v762
      %v779 = vmul.f32 %v555, %v762
      %v780 = vmul.f32 %v556, %v762
      %v781 = vmul.f32 %v557, %v762
      %v782 = vmul.f32 %v558, %v762
      %v783 = vmul.f32 %v559, %v762
      %v784 = vmul.f32 %v560, %v762
      %v785 = vmul.f32 %v561, %v762
      %v786 = vmul.f32 %v562, %v762
      %v787 = vmul.f32 %v563, %v762
      %v788 = vmul.f32 %v564, %v762
      %v789 = vmul.f32 %v565, %v762
      %v790 = vmul.f32 %v566, %v762
      %v791 = vmul.f32 %v567, %v762
      %v792 = vmul.f32 %v568, %v762
      %v793 = vmul.f32 %v569, %v762
      %v794 = vmul.f32 %v570, %v762
      %v795 = vmul.f32 %v571, %v762
      %v796 = vmul.f32 %v572, %v762
      %v797 = vmul.f32 %v573, %v762
      %v798 = vmul.f32 %v574, %v762
      %v799 = vmul.f32 %v575, %v762
      %v800 = vmul.f32 %v576, %v762
      %v801 = vmul.f32 %v577, %v762
      %v802 = vmul.f32 %v578, %v762
      %v803 = vmul.f32 %v579, %v762
      %v804 = vmul.f32 %v580, %v762
      %v805 = vmul.f32 %v581, %v762
      %v806 = vmul.f32 %v582, %v762
      %v807 = vmul.f32 %v583, %v762
      %v808 = vmul.f32 %v584, %v762
      %v809 = vmul.f32 %v585, %v762
      %v810 = vmul.f32 %v586, %v762
      %v811 = vmul.f32 %v587, %v762
      %v812 = vmul.f32 %v588, %v762
      %v813 = vmul.f32 %v589, %v762
      %v814 = vmul.f32 %v590, %v762
      %v815 = vmul.f32 %v591, %v762
      %v816 = vmul.f32 %v592, %v762
      %817 = vst.msk [vmem:[#allocation2] sm:$0xff] %vm258, %v763
      %818 = vst.msk [vmem:[#allocation2 + $0x8] sm:$0xff] %vm258, %v764
      %819 = vst.msk [vmem:[#allocation2 + $0x10] sm:$0x3] %vm426, %v765
      %820 = vst.msk [vmem:[#allocation2 + $0x18] sm:$0xff] %vm258, %v766
      %821 = vst.msk [vmem:[#allocation2 + $0x20] sm:$0xff] %vm258, %v767
      %822 = vst.msk [vmem:[#allocation2 + $0x28] sm:$0x3] %vm426, %v768
      %823 = vst.msk [vmem:[#allocation2 + $0x30] sm:$0xff] %vm258, %v769
      %824 = vst.msk [vmem:[#allocation2 + $0x38] sm:$0xff] %vm258, %v770
      %825 = vst.msk [vmem:[#allocation2 + $0x40] sm:$0x3] %vm426, %v771
      %826 = vst.msk [vmem:[#allocation2 + $0x48] sm:$0xff] %vm258, %v772
      %827 = vst.msk [vmem:[#allocation2 + $0x50] sm:$0xff] %vm258, %v773
      %828 = vst.msk [vmem:[#allocation2 + $0x58] sm:$0x3] %vm426, %v774
      %829 = vst.msk [vmem:[#allocation2 + $0x60] sm:$0xff] %vm258, %v775
      %830 = vst.msk [vmem:[#allocation2 + $0x68] sm:$0xff] %vm258, %v776
      %831 = vst.msk [vmem:[#allocation2 + $0x70] sm:$0x3] %vm426, %v777
      %832 = vst.msk [vmem:[#allocation2 + $0x78] sm:$0xff] %vm258, %v778
      %833 = vst.msk [vmem:[#allocation2 + $0x80] sm:$0xff] %vm258, %v779
      %834 = vst.msk [vmem:[#allocation2 + $0x88] sm:$0x3] %vm426, %v780
      %835 = vst.msk [vmem:[#allocation2 + $0x90] sm:$0xff] %vm258, %v781
      %836 = vst.msk [vmem:[#allocation2 + $0x98] sm:$0xff] %vm258, %v782
      %837 = vst.msk [vmem:[#allocation2 + $0xa0] sm:$0x3] %vm426, %v783
      %838 = vst.msk [vmem:[#allocation2 + $0xa8] sm:$0xff] %vm258, %v784
      %839 = vst.msk [vmem:[#allocation2 + $0xb0] sm:$0xff] %vm258, %v785
      %840 = vst.msk [vmem:[#allocation2 + $0xb8] sm:$0x3] %vm426, %v786
      %841 = vst.msk [vmem:[#allocation2 + $0xc0] sm:$0xff] %vm258, %v787
      %842 = vst.msk [vmem:[#allocation2 + $0xc8] sm:$0xff] %vm258, %v788
      %843 = vst.msk [vmem:[#allocation2 + $0xd0] sm:$0x3] %vm426, %v789
      %844 = vst.msk [vmem:[#allocation2 + $0xd8] sm:$0xff] %vm258, %v790
      %845 = vst.msk [vmem:[#allocation2 + $0xe0] sm:$0xff] %vm258, %v791
      %846 = vst.msk [vmem:[#allocation2 + $0xe8] sm:$0x3] %vm426, %v792
      %847 = vst.msk [vmem:[#allocation2 + $0xf0] sm:$0xff] %vm258, %v793
      %848 = vst.msk [vmem:[#allocation2 + $0xf8] sm:$0xff] %vm258, %v794
      %849 = vst.msk [vmem:[#allocation2 + $0x100] sm:$0x3] %vm426, %v795
      %850 = vst.msk [vmem:[#allocation2 + $0x108] sm:$0xff] %vm258, %v796
      %851 = vst.msk [vmem:[#allocation2 + $0x110] sm:$0xff] %vm258, %v797
      %852 = vst.msk [vmem:[#allocation2 + $0x118] sm:$0x3] %vm426, %v798
      %853 = vst.msk [vmem:[#allocation2 + $0x120] sm:$0xff] %vm258, %v799
      %854 = vst.msk [vmem:[#allocation2 + $0x128] sm:$0xff] %vm258, %v800
      %855 = vst.msk [vmem:[#allocation2 + $0x130] sm:$0x3] %vm426, %v801
      %856 = vst.msk [vmem:[#allocation2 + $0x138] sm:$0xff] %vm258, %v802
      %857 = vst.msk [vmem:[#allocation2 + $0x140] sm:$0xff] %vm258, %v803
      %858 = vst.msk [vmem:[#allocation2 + $0x148] sm:$0x3] %vm426, %v804
      %859 = vst.msk [vmem:[#allocation2 + $0x150] sm:$0xff] %vm258, %v805
      %860 = vst.msk [vmem:[#allocation2 + $0x158] sm:$0xff] %vm258, %v806
      %861 = vst.msk [vmem:[#allocation2 + $0x160] sm:$0x3] %vm426, %v807
      %862 = vst.msk [vmem:[#allocation2 + $0x168] sm:$0xff] %vm258, %v808
      %863 = vst.msk [vmem:[#allocation2 + $0x170] sm:$0xff] %vm258, %v809
      %864 = vst.msk [vmem:[#allocation2 + $0x178] sm:$0x3] %vm426, %v810
      %865 = vst.msk [vmem:[#allocation2 + $0x180] sm:$0xff] %vm258, %v811
      %866 = vst.msk [vmem:[#allocation2 + $0x188] sm:$0xff] %vm258, %v812
      %867 = vst.msk [vmem:[#allocation2 + $0x190] sm:$0x3] %vm426, %v813
      %868 = vst.msk [vmem:[#allocation2 + $0x198] sm:$0xff] %vm258, %v814
      %869 = vst.msk [vmem:[#allocation2 + $0x1a0] sm:$0xff] %vm258, %v815
      %870 = vst.msk [vmem:[#allocation2 + $0x1a8] sm:$0x3] %vm426, %v816
      %v871 = vld [vmem:[#allocation2] sm:$0xff]
      %v872 = vld [vmem:[#allocation2 + $0x8] sm:$0xff]
      %v873 = vld [vmem:[#allocation2 + $0x18] sm:$0xff]
      %v874 = vld [vmem:[#allocation2 + $0x20] sm:$0xff]
      %v875 = vld [vmem:[#allocation2 + $0x30] sm:$0xff]
      %v876 = vld [vmem:[#allocation2 + $0x38] sm:$0xff]
      %v877 = vld [vmem:[#allocation2 + $0x48] sm:$0xff]
      %v878 = vld [vmem:[#allocation2 + $0x50] sm:$0xff]
      %v879 = vld [vmem:[#allocation2 + $0x60] sm:$0xff]
      %v880 = vld [vmem:[#allocation2 + $0x68] sm:$0xff]
      %v881 = vld [vmem:[#allocation2 + $0x78] sm:$0xff]
      %v882 = vld [vmem:[#allocation2 + $0x80] sm:$0xff]
      %v883 = vld [vmem:[#allocation2 + $0x90] sm:$0xff]
      %v884 = vld [vmem:[#allocation2 + $0x98] sm:$0xff]
      %v885 = vld [vmem:[#allocation2 + $0xa8] sm:$0xff]
      %v886 = vld [vmem:[#allocation2 + $0xb0] sm:$0xff]
      %v887 = vld [vmem:[#allocation2 + $0xc0] sm:$0xff]
      %v888 = vld [vmem:[#allocation2 + $0xc8] sm:$0xff]
      %v889 = vld [vmem:[#allocation2 + $0xd8] sm:$0xff]
      %v890 = vld [vmem:[#allocation2 + $0xe0] sm:$0xff]
      %v891 = vld [vmem:[#allocation2 + $0xf0] sm:$0xff]
      %v892 = vld [vmem:[#allocation2 + $0xf8] sm:$0xff]
      %v893 = vld [vmem:[#allocation2 + $0x108] sm:$0xff]
      %v894 = vld [vmem:[#allocation2 + $0x110] sm:$0xff]
      %v895 = vld [vmem:[#allocation2 + $0x120] sm:$0xff]
      %v896 = vld [vmem:[#allocation2 + $0x128] sm:$0xff]
      %v897 = vld [vmem:[#allocation2 + $0x138] sm:$0xff]
      %v898 = vld [vmem:[#allocation2 + $0x140] sm:$0xff]
      %v899 = vld [vmem:[#allocation2 + $0x150] sm:$0xff]
      %v900 = vld [vmem:[#allocation2 + $0x158] sm:$0xff]
      %v901 = vld [vmem:[#allocation2 + $0x168] sm:$0xff]
      %v902 = vld [vmem:[#allocation2 + $0x170] sm:$0xff]
      %v903 = vld [vmem:[#allocation2 + $0x180] sm:$0xff]
      %v904 = vld [vmem:[#allocation2 + $0x188] sm:$0xff]
      %v905 = vld [vmem:[#allocation2 + $0x198] sm:$0xff]
      %v906 = vld [vmem:[#allocation2 + $0x1a0] sm:$0xff]
      %v907 = vld [vmem:[%s1] sm:$0xf]
      %s908 = scalar_lea.vmem %s1, 12
      %v909 = vld [vmem:[%s908] sm:$0xf]
      %v911 = vsel %vm258, %v873, 0
      %v914 = vsel %vm258, %v874, 0
      %v917 = vsel %vm258, %v875, 0
      %v920 = vsel %vm258, %v876, 0
      %v923 = vsel %vm258, %v877, 0
      %v926 = vsel %vm258, %v878, 0
      %v929 = vsel %vm258, %v879, 0
      %v932 = vsel %vm258, %v880, 0
      %v935 = vsel %vm258, %v881, 0
      %v938 = vsel %vm258, %v882, 0
      %v941 = vsel %vm258, %v883, 0
      %v944 = vsel %vm258, %v884, 0
      %v947 = vsel %vm258, %v885, 0
      %v950 = vsel %vm258, %v886, 0
      %v953 = vsel %vm258, %v887, 0
      %v956 = vsel %vm258, %v888, 0
      %v959 = vsel %vm258, %v889, 0
      %v962 = vsel %vm258, %v890, 0
      %v965 = vsel %vm258, %v891, 0
      %v968 = vsel %vm258, %v892, 0
      %v971 = vsel %vm258, %v893, 0
      %v974 = vsel %vm258, %v894, 0
      %v977 = vsel %vm258, %v895, 0
      %v980 = vsel %vm258, %v896, 0
      %v983 = vsel %vm258, %v897, 0
      %v986 = vsel %vm258, %v898, 0
      %v989 = vsel %vm258, %v899, 0
      %v992 = vsel %vm258, %v900, 0
      %v995 = vsel %vm258, %v901, 0
      %v998 = vsel %vm258, %v902, 0
      %v1001 = vsel %vm258, %v903, 0
      %v1004 = vsel %vm258, %v904, 0
      %vm1006 = vcmask 1043456
      %v1008 = vsel %vm1006, %v909, 0
      %1010 = vmatprep.subr.mxu0 0.0
      %1011 = vmatpush1.msra.mxu0 0.0
      %1012 = vmatprep.subr.mxu0 0.0
      %1013 = vmatpush1.msra.mxu0 0.0
      %1014 = vmatprep.subr.mxu0 0.0
      %1015 = vmatpush1.msra.mxu0 0.0
      %1016 = vmatprep.subr.mxu0 0.0
      %1017 = vmatpush1.msra.mxu0 0.0
      %1018 = vmatprep.subr.mxu0 0.0
      %1019 = vmatpush1.msra.mxu0 0.0
      %1020 = vmatprep.subr.mxu0 0.0
      %1021 = vmatpush1.msra.mxu0 0.0
      %1022 = vmatprep.subr.mxu0 0.0
      %1023 = vmatpush1.msra.mxu0 0.0
      %1024 = vmatprep.subr.mxu0 0.0
      %1025 = vmatpush1.msra.mxu0 0.0
      %1026 = vmatprep.subr.mxu0 0.0
      %1027 = vmatpush1.msra.mxu0 0.0
      %1028 = vmatprep.subr.mxu0 0.0
      %1029 = vmatpush1.msra.mxu0 0.0
      %1030 = vmatprep.subr.mxu0 0.0
      %1031 = vmatpush1.msra.mxu0 0.0
      %1032 = vmatprep.subr.mxu0 0.0
      %1033 = vmatpush1.msra.mxu0 0.0
      %1034 = vmatprep.subr.mxu0 0.0
      %1035 = vmatpush1.msra.mxu0 0.0
      %1036 = vmatprep.subr.mxu0 0.0
      %1037 = vmatpush1.msra.mxu0 0.0
      %1038 = vmatprep.subr.mxu0 0.0
      %1039 = vmatpush1.msra.mxu0 0.0
      %1040 = vmatprep.subr.mxu0 0.0
      %1041 = vmatpush1.msra.mxu0 %v1008
      %1042 = vmatprep.subr.mxu0 0.0
      %1043 = vmatpush2.msra.mxu0 0.0
      %1044 = vmatprep.subr.mxu0 0.0
      %1045 = vmatpush2.msra.mxu0 0.0
      %1046 = vmatprep.subr.mxu0 0.0
      %1047 = vmatpush2.msra.mxu0 0.0
      %1048 = vmatprep.subr.mxu0 0.0
      %1049 = vmatpush2.msra.mxu0 0.0
      %1050 = vmatprep.subr.mxu0 0.0
      %1051 = vmatpush2.msra.mxu0 0.0
      %1052 = vmatprep.subr.mxu0 0.0
      %1053 = vmatpush2.msra.mxu0 0.0
      %1054 = vmatprep.subr.mxu0 0.0
      %1055 = vmatpush2.msra.mxu0 0.0
      %1056 = vmatprep.subr.mxu0 0.0
      %1057 = vmatpush2.msra.mxu0 0.0
      %1058 = vmatprep.subr.mxu0 0.0
      %1059 = vmatpush2.msra.mxu0 0.0
      %1060 = vmatprep.subr.mxu0 0.0
      %1061 = vmatpush2.msra.mxu0 0.0
      %1062 = vmatprep.subr.mxu0 0.0
      %1063 = vmatpush2.msra.mxu0 0.0
      %1064 = vmatprep.subr.mxu0 0.0
      %1065 = vmatpush2.msra.mxu0 0.0
      %1066 = vmatprep.subr.mxu0 0.0
      %1067 = vmatpush2.msra.mxu0 0.0
      %1068 = vmatprep.subr.mxu0 0.0
      %1069 = vmatpush2.msra.mxu0 0.0
      %1070 = vmatprep.subr.mxu0 0.0
      %1071 = vmatpush2.msra.mxu0 0.0
      %1072 = vmatprep.subr.mxu0 0.0
      %1073 = vmatpush2.msra.mxu0 0.0
      %1074 = vmatprep.mubr.f32.mxu0 0.0
      %1075 = vmatmul.mubr.f32.gmra.mxu0 %v911
      %v1076 = vpop.f32.mrf.mxu0
      %v1077 = vadd.f32 0.0, %v1076
      %v1078 = vpop.f32.mrf.mxu0
      %1079 = vmatprep.mubr.f32.mxu0 0.0
      %1080 = vmatmul.mubr.f32.gmra.mxu0 %v914
      %v1081 = vpop.f32.mrf.mxu0
      %v1082 = vadd.f32 0.0, %v1081
      %v1083 = vpop.f32.mrf.mxu0
      %1084 = vmatprep.mubr.f32.mxu0 0.0
      %1085 = vmatmul.mubr.f32.gmra.mxu0 %v917
      %v1086 = vpop.f32.mrf.mxu0
      %v1087 = vadd.f32 0.0, %v1086
      %v1088 = vpop.f32.mrf.mxu0
      %1089 = vmatprep.mubr.f32.mxu0 0.0
      %1090 = vmatmul.mubr.f32.gmra.mxu0 %v920
      %v1091 = vpop.f32.mrf.mxu0
      %v1092 = vadd.f32 0.0, %v1091
      %v1093 = vpop.f32.mrf.mxu0
      %1094 = vmatprep.mubr.f32.mxu0 0.0
      %1095 = vmatmul.mubr.f32.gmra.mxu0 %v923
      %v1096 = vpop.f32.mrf.mxu0
      %v1097 = vadd.f32 0.0, %v1096
      %v1098 = vpop.f32.mrf.mxu0
      %1099 = vmatprep.mubr.f32.mxu0 0.0
      %1100 = vmatmul.mubr.f32.gmra.mxu0 %v926
      %v1101 = vpop.f32.mrf.mxu0
      %v1102 = vadd.f32 0.0, %v1101
      %v1103 = vpop.f32.mrf.mxu0
      %1104 = vmatprep.mubr.f32.mxu0 0.0
      %1105 = vmatmul.mubr.f32.gmra.mxu0 %v929
      %v1106 = vpop.f32.mrf.mxu0
      %v1107 = vadd.f32 0.0, %v1106
      %v1108 = vpop.f32.mrf.mxu0
      %1109 = vmatprep.mubr.f32.mxu0 0.0
      %1110 = vmatmul.mubr.f32.gmra.mxu0 %v932
      %v1111 = vpop.f32.mrf.mxu0
      %v1112 = vadd.f32 0.0, %v1111
      %v1113 = vpop.f32.mrf.mxu0
      %1114 = vmatprep.mubr.f32.mxu0 0.0
      %1115 = vmatmul.mubr.f32.gmra.mxu0 %v935
      %v1116 = vpop.f32.mrf.mxu0
      %v1117 = vadd.f32 0.0, %v1116
      %v1118 = vpop.f32.mrf.mxu0
      %1119 = vmatprep.mubr.f32.mxu0 0.0
      %1120 = vmatmul.mubr.f32.gmra.mxu0 %v938
      %v1121 = vpop.f32.mrf.mxu0
      %v1122 = vadd.f32 0.0, %v1121
      %v1123 = vpop.f32.mrf.mxu0
      %1124 = vmatprep.mubr.f32.mxu0 0.0
      %1125 = vmatmul.mubr.f32.gmra.mxu0 %v941
      %v1126 = vpop.f32.mrf.mxu0
      %v1127 = vadd.f32 0.0, %v1126
      %v1128 = vpop.f32.mrf.mxu0
      %1129 = vmatprep.mubr.f32.mxu0 0.0
      %1130 = vmatmul.mubr.f32.gmra.mxu0 %v944
      %v1131 = vpop.f32.mrf.mxu0
      %v1132 = vadd.f32 0.0, %v1131
      %v1133 = vpop.f32.mrf.mxu0
      %1134 = vmatprep.mubr.f32.mxu0 0.0
      %1135 = vmatmul.mubr.f32.gmra.mxu0 %v947
      %v1136 = vpop.f32.mrf.mxu0
      %v1137 = vadd.f32 0.0, %v1136
      %v1138 = vpop.f32.mrf.mxu0
      %1139 = vmatprep.mubr.f32.mxu0 0.0
      %1140 = vmatmul.mubr.f32.gmra.mxu0 %v950
      %v1141 = vpop.f32.mrf.mxu0
      %v1142 = vadd.f32 0.0, %v1141
      %v1143 = vpop.f32.mrf.mxu0
      %1144 = vmatprep.mubr.f32.mxu0 0.0
      %1145 = vmatmul.mubr.f32.gmra.mxu0 %v953
      %v1146 = vpop.f32.mrf.mxu0
      %v1147 = vadd.f32 0.0, %v1146
      %v1148 = vpop.f32.mrf.mxu0
      %1149 = vmatprep.mubr.f32.mxu0 0.0
      %1150 = vmatmul.mubr.f32.gmra.mxu0 %v956
      %v1151 = vpop.f32.mrf.mxu0
      %v1152 = vadd.f32 0.0, %v1151
      %v1153 = vpop.f32.mrf.mxu0
      %1154 = vmatprep.mubr.f32.mxu0 0.0
      %1155 = vmatmul.mubr.f32.gmra.mxu0 %v959
      %v1156 = vpop.f32.mrf.mxu0
      %v1157 = vadd.f32 0.0, %v1156
      %v1158 = vpop.f32.mrf.mxu0
      %1159 = vmatprep.mubr.f32.mxu0 0.0
      %1160 = vmatmul.mubr.f32.gmra.mxu0 %v962
      %v1161 = vpop.f32.mrf.mxu0
      %v1162 = vadd.f32 0.0, %v1161
      %v1163 = vpop.f32.mrf.mxu0
      %1164 = vmatprep.mubr.f32.mxu0 0.0
      %1165 = vmatmul.mubr.f32.gmra.mxu0 %v965
      %v1166 = vpop.f32.mrf.mxu0
      %v1167 = vadd.f32 0.0, %v1166
      %v1168 = vpop.f32.mrf.mxu0
      %1169 = vmatprep.mubr.f32.mxu0 0.0
      %1170 = vmatmul.mubr.f32.gmra.mxu0 %v968
      %v1171 = vpop.f32.mrf.mxu0
      %v1172 = vadd.f32 0.0, %v1171
      %v1173 = vpop.f32.mrf.mxu0
      %1174 = vmatprep.mubr.f32.mxu0 0.0
      %1175 = vmatmul.mubr.f32.gmra.mxu0 %v971
      %v1176 = vpop.f32.mrf.mxu0
      %v1177 = vadd.f32 0.0, %v1176
      %v1178 = vpop.f32.mrf.mxu0
      %1179 = vmatprep.mubr.f32.mxu0 0.0
      %1180 = vmatmul.mubr.f32.gmra.mxu0 %v974
      %v1181 = vpop.f32.mrf.mxu0
      %v1182 = vadd.f32 0.0, %v1181
      %v1183 = vpop.f32.mrf.mxu0
      %1184 = vmatprep.mubr.f32.mxu0 0.0
      %1185 = vmatmul.mubr.f32.gmra.mxu0 %v977
      %v1186 = vpop.f32.mrf.mxu0
      %v1187 = vadd.f32 0.0, %v1186
      %v1188 = vpop.f32.mrf.mxu0
      %1189 = vmatprep.mubr.f32.mxu0 0.0
      %1190 = vmatmul.mubr.f32.gmra.mxu0 %v980
      %v1191 = vpop.f32.mrf.mxu0
      %v1192 = vadd.f32 0.0, %v1191
      %v1193 = vpop.f32.mrf.mxu0
      %1194 = vmatprep.mubr.f32.mxu0 0.0
      %1195 = vmatmul.mubr.f32.gmra.mxu0 %v983
      %v1196 = vpop.f32.mrf.mxu0
      %v1197 = vadd.f32 0.0, %v1196
      %v1198 = vpop.f32.mrf.mxu0
      %1199 = vmatprep.mubr.f32.mxu0 0.0
      %1200 = vmatmul.mubr.f32.gmra.mxu0 %v986
      %v1201 = vpop.f32.mrf.mxu0
      %v1202 = vadd.f32 0.0, %v1201
      %v1203 = vpop.f32.mrf.mxu0
      %1204 = vmatprep.mubr.f32.mxu0 0.0
      %1205 = vmatmul.mubr.f32.gmra.mxu0 %v989
      %v1206 = vpop.f32.mrf.mxu0
      %v1207 = vadd.f32 0.0, %v1206
      %v1208 = vpop.f32.mrf.mxu0
      %1209 = vmatprep.mubr.f32.mxu0 0.0
      %1210 = vmatmul.mubr.f32.gmra.mxu0 %v992
      %v1211 = vpop.f32.mrf.mxu0
      %v1212 = vadd.f32 0.0, %v1211
      %v1213 = vpop.f32.mrf.mxu0
      %1214 = vmatprep.mubr.f32.mxu0 0.0
      %1215 = vmatmul.mubr.f32.gmra.mxu0 %v995
      %v1216 = vpop.f32.mrf.mxu0
      %v1217 = vadd.f32 0.0, %v1216
      %v1218 = vpop.f32.mrf.mxu0
      %1219 = vmatprep.mubr.f32.mxu0 0.0
      %1220 = vmatmul.mubr.f32.gmra.mxu0 %v998
      %v1221 = vpop.f32.mrf.mxu0
      %v1222 = vadd.f32 0.0, %v1221
      %v1223 = vpop.f32.mrf.mxu0
      %1224 = vmatprep.mubr.f32.mxu0 0.0
      %1225 = vmatmul.mubr.f32.gmra.mxu0 %v1001
      %v1226 = vpop.f32.mrf.mxu0
      %v1227 = vadd.f32 0.0, %v1226
      %v1228 = vpop.f32.mrf.mxu0
      %1229 = vmatprep.mubr.f32.mxu0 0.0
      %1230 = vmatmul.mubr.f32.gmra.mxu0 %v1004
      %v1231 = vpop.f32.mrf.mxu0
      %v1232 = vadd.f32 0.0, %v1231
      %v1233 = vpop.f32.mrf.mxu0
      %1234 = vdwg.mxu0
      %v1236 = vsel %vm258, %v871, 0
      %v1239 = vsel %vm258, %v872, 0
      %v1242 = vsel %vm1006, %v907, 0
      %1244 = vmatprep.subr.mxu0 0.0
      %1245 = vmatpush1.msra.mxu0 0.0
      %1246 = vmatprep.subr.mxu0 0.0
      %1247 = vmatpush1.msra.mxu0 0.0
      %1248 = vmatprep.subr.mxu0 0.0
      %1249 = vmatpush1.msra.mxu0 0.0
      %1250 = vmatprep.subr.mxu0 0.0
      %1251 = vmatpush1.msra.mxu0 0.0
      %1252 = vmatprep.subr.mxu0 0.0
      %1253 = vmatpush1.msra.mxu0 0.0
      %1254 = vmatprep.subr.mxu0 0.0
      %1255 = vmatpush1.msra.mxu0 0.0
      %1256 = vmatprep.subr.mxu0 0.0
      %1257 = vmatpush1.msra.mxu0 0.0
      %1258 = vmatprep.subr.mxu0 0.0
      %1259 = vmatpush1.msra.mxu0 0.0
      %1260 = vmatprep.subr.mxu0 0.0
      %1261 = vmatpush1.msra.mxu0 0.0
      %1262 = vmatprep.subr.mxu0 0.0
      %1263 = vmatpush1.msra.mxu0 0.0
      %1264 = vmatprep.subr.mxu0 0.0
      %1265 = vmatpush1.msra.mxu0 0.0
      %1266 = vmatprep.subr.mxu0 0.0
      %1267 = vmatpush1.msra.mxu0 0.0
      %1268 = vmatprep.subr.mxu0 0.0
      %1269 = vmatpush1.msra.mxu0 0.0
      %1270 = vmatprep.subr.mxu0 0.0
      %1271 = vmatpush1.msra.mxu0 0.0
      %1272 = vmatprep.subr.mxu0 0.0
      %1273 = vmatpush1.msra.mxu0 0.0
      %1274 = vmatprep.subr.mxu0 0.0
      %1275 = vmatpush1.msra.mxu0 %v1242
      %1276 = vmatprep.subr.mxu0 0.0
      %1277 = vmatpush2.msra.mxu0 0.0
      %1278 = vmatprep.subr.mxu0 0.0
      %1279 = vmatpush2.msra.mxu0 0.0
      %1280 = vmatprep.subr.mxu0 0.0
      %1281 = vmatpush2.msra.mxu0 0.0
      %1282 = vmatprep.subr.mxu0 0.0
      %1283 = vmatpush2.msra.mxu0 0.0
      %1284 = vmatprep.subr.mxu0 0.0
      %1285 = vmatpush2.msra.mxu0 0.0
      %1286 = vmatprep.subr.mxu0 0.0
      %1287 = vmatpush2.msra.mxu0 0.0
      %1288 = vmatprep.subr.mxu0 0.0
      %1289 = vmatpush2.msra.mxu0 0.0
      %1290 = vmatprep.subr.mxu0 0.0
      %1291 = vmatpush2.msra.mxu0 0.0
      %1292 = vmatprep.subr.mxu0 0.0
      %1293 = vmatpush2.msra.mxu0 0.0
      %1294 = vmatprep.subr.mxu0 0.0
      %1295 = vmatpush2.msra.mxu0 0.0
      %1296 = vmatprep.subr.mxu0 0.0
      %1297 = vmatpush2.msra.mxu0 0.0
      %1298 = vmatprep.subr.mxu0 0.0
      %1299 = vmatpush2.msra.mxu0 0.0
      %1300 = vmatprep.subr.mxu0 0.0
      %1301 = vmatpush2.msra.mxu0 0.0
      %1302 = vmatprep.subr.mxu0 0.0
      %1303 = vmatpush2.msra.mxu0 0.0
      %1304 = vmatprep.subr.mxu0 0.0
      %1305 = vmatpush2.msra.mxu0 0.0
      %1306 = vmatprep.subr.mxu0 0.0
      %1307 = vmatpush2.msra.mxu0 0.0
      %1308 = vmatprep.mubr.f32.mxu0 0.0
      %1309 = vmatmul.mubr.f32.gmra.mxu0 %v1236
      %v1310 = vpop.f32.mrf.mxu0
      %v1311 = vadd.f32 %v1077, %v1310
      %v1312 = vpop.f32.mrf.mxu0
      %1313 = vmatprep.mubr.f32.mxu0 0.0
      %1314 = vmatmul.mubr.f32.gmra.mxu0 %v1239
      %v1315 = vpop.f32.mrf.mxu0
      %v1316 = vadd.f32 %v1082, %v1315
      %v1317 = vpop.f32.mrf.mxu0
      %1318 = vmatprep.mubr.f32.mxu0 0.0
      %1319 = vmatmul.mubr.f32.gmra.mxu0 %v911
      %v1320 = vpop.f32.mrf.mxu0
      %v1321 = vadd.f32 %v1087, %v1320
      %v1322 = vpop.f32.mrf.mxu0
      %1323 = vmatprep.mubr.f32.mxu0 0.0
      %1324 = vmatmul.mubr.f32.gmra.mxu0 %v914
      %v1325 = vpop.f32.mrf.mxu0
      %v1326 = vadd.f32 %v1092, %v1325
      %v1327 = vpop.f32.mrf.mxu0
      %1328 = vmatprep.mubr.f32.mxu0 0.0
      %1329 = vmatmul.mubr.f32.gmra.mxu0 %v917
      %v1330 = vpop.f32.mrf.mxu0
      %v1331 = vadd.f32 %v1097, %v1330
      %v1332 = vpop.f32.mrf.mxu0
      %1333 = vmatprep.mubr.f32.mxu0 0.0
      %1334 = vmatmul.mubr.f32.gmra.mxu0 %v920
      %v1335 = vpop.f32.mrf.mxu0
      %v1336 = vadd.f32 %v1102, %v1335
      %v1337 = vpop.f32.mrf.mxu0
      %1338 = vmatprep.mubr.f32.mxu0 0.0
      %1339 = vmatmul.mubr.f32.gmra.mxu0 %v923
      %v1340 = vpop.f32.mrf.mxu0
      %v1341 = vadd.f32 %v1107, %v1340
      %v1342 = vpop.f32.mrf.mxu0
      %1343 = vmatprep.mubr.f32.mxu0 0.0
      %1344 = vmatmul.mubr.f32.gmra.mxu0 %v926
      %v1345 = vpop.f32.mrf.mxu0
      %v1346 = vadd.f32 %v1112, %v1345
      %v1347 = vpop.f32.mrf.mxu0
      %1348 = vmatprep.mubr.f32.mxu0 0.0
      %1349 = vmatmul.mubr.f32.gmra.mxu0 %v929
      %v1350 = vpop.f32.mrf.mxu0
      %v1351 = vadd.f32 %v1117, %v1350
      %v1352 = vpop.f32.mrf.mxu0
      %1353 = vmatprep.mubr.f32.mxu0 0.0
      %1354 = vmatmul.mubr.f32.gmra.mxu0 %v932
      %v1355 = vpop.f32.mrf.mxu0
      %v1356 = vadd.f32 %v1122, %v1355
      %v1357 = vpop.f32.mrf.mxu0
      %1358 = vmatprep.mubr.f32.mxu0 0.0
      %1359 = vmatmul.mubr.f32.gmra.mxu0 %v935
      %v1360 = vpop.f32.mrf.mxu0
      %v1361 = vadd.f32 %v1127, %v1360
      %v1362 = vpop.f32.mrf.mxu0
      %1363 = vmatprep.mubr.f32.mxu0 0.0
      %1364 = vmatmul.mubr.f32.gmra.mxu0 %v938
      %v1365 = vpop.f32.mrf.mxu0
      %v1366 = vadd.f32 %v1132, %v1365
      %v1367 = vpop.f32.mrf.mxu0
      %1368 = vmatprep.mubr.f32.mxu0 0.0
      %1369 = vmatmul.mubr.f32.gmra.mxu0 %v941
      %v1370 = vpop.f32.mrf.mxu0
      %v1371 = vadd.f32 %v1137, %v1370
      %v1372 = vpop.f32.mrf.mxu0
      %1373 = vmatprep.mubr.f32.mxu0 0.0
      %1374 = vmatmul.mubr.f32.gmra.mxu0 %v944
      %v1375 = vpop.f32.mrf.mxu0
      %v1376 = vadd.f32 %v1142, %v1375
      %v1377 = vpop.f32.mrf.mxu0
      %1378 = vmatprep.mubr.f32.mxu0 0.0
      %1379 = vmatmul.mubr.f32.gmra.mxu0 %v947
      %v1380 = vpop.f32.mrf.mxu0
      %v1381 = vadd.f32 %v1147, %v1380
      %v1382 = vpop.f32.mrf.mxu0
      %1383 = vmatprep.mubr.f32.mxu0 0.0
      %1384 = vmatmul.mubr.f32.gmra.mxu0 %v950
      %v1385 = vpop.f32.mrf.mxu0
      %v1386 = vadd.f32 %v1152, %v1385
      %v1387 = vpop.f32.mrf.mxu0
      %1388 = vmatprep.mubr.f32.mxu0 0.0
      %1389 = vmatmul.mubr.f32.gmra.mxu0 %v953
      %v1390 = vpop.f32.mrf.mxu0
      %v1391 = vadd.f32 %v1157, %v1390
      %v1392 = vpop.f32.mrf.mxu0
      %1393 = vmatprep.mubr.f32.mxu0 0.0
      %1394 = vmatmul.mubr.f32.gmra.mxu0 %v956
      %v1395 = vpop.f32.mrf.mxu0
      %v1396 = vadd.f32 %v1162, %v1395
      %v1397 = vpop.f32.mrf.mxu0
      %1398 = vmatprep.mubr.f32.mxu0 0.0
      %1399 = vmatmul.mubr.f32.gmra.mxu0 %v959
      %v1400 = vpop.f32.mrf.mxu0
      %v1401 = vadd.f32 %v1167, %v1400
      %v1402 = vpop.f32.mrf.mxu0
      %1403 = vmatprep.mubr.f32.mxu0 0.0
      %1404 = vmatmul.mubr.f32.gmra.mxu0 %v962
      %v1405 = vpop.f32.mrf.mxu0
      %v1406 = vadd.f32 %v1172, %v1405
      %v1407 = vpop.f32.mrf.mxu0
      %1408 = vmatprep.mubr.f32.mxu0 0.0
      %1409 = vmatmul.mubr.f32.gmra.mxu0 %v965
      %v1410 = vpop.f32.mrf.mxu0
      %v1411 = vadd.f32 %v1177, %v1410
      %v1412 = vpop.f32.mrf.mxu0
      %1413 = vmatprep.mubr.f32.mxu0 0.0
      %1414 = vmatmul.mubr.f32.gmra.mxu0 %v968
      %v1415 = vpop.f32.mrf.mxu0
      %v1416 = vadd.f32 %v1182, %v1415
      %v1417 = vpop.f32.mrf.mxu0
      %1418 = vmatprep.mubr.f32.mxu0 0.0
      %1419 = vmatmul.mubr.f32.gmra.mxu0 %v971
      %v1420 = vpop.f32.mrf.mxu0
      %v1421 = vadd.f32 %v1187, %v1420
      %v1422 = vpop.f32.mrf.mxu0
      %1423 = vmatprep.mubr.f32.mxu0 0.0
      %1424 = vmatmul.mubr.f32.gmra.mxu0 %v974
      %v1425 = vpop.f32.mrf.mxu0
      %v1426 = vadd.f32 %v1192, %v1425
      %v1427 = vpop.f32.mrf.mxu0
      %1428 = vmatprep.mubr.f32.mxu0 0.0
      %1429 = vmatmul.mubr.f32.gmra.mxu0 %v977
      %v1430 = vpop.f32.mrf.mxu0
      %v1431 = vadd.f32 %v1197, %v1430
      %v1432 = vpop.f32.mrf.mxu0
      %1433 = vmatprep.mubr.f32.mxu0 0.0
      %1434 = vmatmul.mubr.f32.gmra.mxu0 %v980
      %v1435 = vpop.f32.mrf.mxu0
      %v1436 = vadd.f32 %v1202, %v1435
      %v1437 = vpop.f32.mrf.mxu0
      %1438 = vmatprep.mubr.f32.mxu0 0.0
      %1439 = vmatmul.mubr.f32.gmra.mxu0 %v983
      %v1440 = vpop.f32.mrf.mxu0
      %v1441 = vadd.f32 %v1207, %v1440
      %v1442 = vpop.f32.mrf.mxu0
      %1443 = vmatprep.mubr.f32.mxu0 0.0
      %1444 = vmatmul.mubr.f32.gmra.mxu0 %v986
      %v1445 = vpop.f32.mrf.mxu0
      %v1446 = vadd.f32 %v1212, %v1445
      %v1447 = vpop.f32.mrf.mxu0
      %1448 = vmatprep.mubr.f32.mxu0 0.0
      %1449 = vmatmul.mubr.f32.gmra.mxu0 %v989
      %v1450 = vpop.f32.mrf.mxu0
      %v1451 = vadd.f32 %v1217, %v1450
      %v1452 = vpop.f32.mrf.mxu0
      %1453 = vmatprep.mubr.f32.mxu0 0.0
      %1454 = vmatmul.mubr.f32.gmra.mxu0 %v992
      %v1455 = vpop.f32.mrf.mxu0
      %v1456 = vadd.f32 %v1222, %v1455
      %v1457 = vpop.f32.mrf.mxu0
      %1458 = vmatprep.mubr.f32.mxu0 0.0
      %1459 = vmatmul.mubr.f32.gmra.mxu0 %v995
      %v1460 = vpop.f32.mrf.mxu0
      %v1461 = vadd.f32 %v1227, %v1460
      %v1462 = vpop.f32.mrf.mxu0
      %1463 = vmatprep.mubr.f32.mxu0 0.0
      %1464 = vmatmul.mubr.f32.gmra.mxu0 %v998
      %v1465 = vpop.f32.mrf.mxu0
      %v1466 = vadd.f32 %v1232, %v1465
      %v1467 = vpop.f32.mrf.mxu0
      %1468 = vdwg.mxu0
      %s1469 = scalar_lea.vmem %s1, 24
      %v1470 = vld [vmem:[%s1469] sm:$0xf]
      %v1472 = vsel %vm258, %v905, 0
      %v1475 = vsel %vm258, %v906, 0
      %v1478 = vsel %vm1006, %v1470, 0
      %1480 = vmatprep.subr.mxu0 0.0
      %1481 = vmatpush1.msra.mxu0 0.0
      %1482 = vmatprep.subr.mxu0 0.0
      %1483 = vmatpush1.msra.mxu0 0.0
      %1484 = vmatprep.subr.mxu0 0.0
      %1485 = vmatpush1.msra.mxu0 0.0
      %1486 = vmatprep.subr.mxu0 0.0
      %1487 = vmatpush1.msra.mxu0 0.0
      %1488 = vmatprep.subr.mxu0 0.0
      %1489 = vmatpush1.msra.mxu0 0.0
      %1490 = vmatprep.subr.mxu0 0.0
      %1491 = vmatpush1.msra.mxu0 0.0
      %1492 = vmatprep.subr.mxu0 0.0
      %1493 = vmatpush1.msra.mxu0 0.0
      %1494 = vmatprep.subr.mxu0 0.0
      %1495 = vmatpush1.msra.mxu0 0.0
      %1496 = vmatprep.subr.mxu0 0.0
      %1497 = vmatpush1.msra.mxu0 0.0
      %1498 = vmatprep.subr.mxu0 0.0
      %1499 = vmatpush1.msra.mxu0 0.0
      %1500 = vmatprep.subr.mxu0 0.0
      %1501 = vmatpush1.msra.mxu0 0.0
      %1502 = vmatprep.subr.mxu0 0.0
      %1503 = vmatpush1.msra.mxu0 0.0
      %1504 = vmatprep.subr.mxu0 0.0
      %1505 = vmatpush1.msra.mxu0 0.0
      %1506 = vmatprep.subr.mxu0 0.0
      %1507 = vmatpush1.msra.mxu0 0.0
      %1508 = vmatprep.subr.mxu0 0.0
      %1509 = vmatpush1.msra.mxu0 0.0
      %1510 = vmatprep.subr.mxu0 0.0
      %1511 = vmatpush1.msra.mxu0 %v1478
      %1512 = vmatprep.subr.mxu0 0.0
      %1513 = vmatpush2.msra.mxu0 0.0
      %1514 = vmatprep.subr.mxu0 0.0
      %1515 = vmatpush2.msra.mxu0 0.0
      %1516 = vmatprep.subr.mxu0 0.0
      %1517 = vmatpush2.msra.mxu0 0.0
      %1518 = vmatprep.subr.mxu0 0.0
      %1519 = vmatpush2.msra.mxu0 0.0
      %1520 = vmatprep.subr.mxu0 0.0
      %1521 = vmatpush2.msra.mxu0 0.0
      %1522 = vmatprep.subr.mxu0 0.0
      %1523 = vmatpush2.msra.mxu0 0.0
      %1524 = vmatprep.subr.mxu0 0.0
      %1525 = vmatpush2.msra.mxu0 0.0
      %1526 = vmatprep.subr.mxu0 0.0
      %1527 = vmatpush2.msra.mxu0 0.0
      %1528 = vmatprep.subr.mxu0 0.0
      %1529 = vmatpush2.msra.mxu0 0.0
      %1530 = vmatprep.subr.mxu0 0.0
      %1531 = vmatpush2.msra.mxu0 0.0
      %1532 = vmatprep.subr.mxu0 0.0
      %1533 = vmatpush2.msra.mxu0 0.0
      %1534 = vmatprep.subr.mxu0 0.0
      %1535 = vmatpush2.msra.mxu0 0.0
      %1536 = vmatprep.subr.mxu0 0.0
      %1537 = vmatpush2.msra.mxu0 0.0
      %1538 = vmatprep.subr.mxu0 0.0
      %1539 = vmatpush2.msra.mxu0 0.0
      %1540 = vmatprep.subr.mxu0 0.0
      %1541 = vmatpush2.msra.mxu0 0.0
      %1542 = vmatprep.subr.mxu0 0.0
      %1543 = vmatpush2.msra.mxu0 0.0
      %1544 = vmatprep.mubr.f32.mxu0 0.0
      %1545 = vmatmul.mubr.f32.gmra.mxu0 %v917
      %v1546 = vpop.f32.mrf.mxu0
      %v1547 = vadd.f32 0.0, %v1546
      %v1548 = vpop.f32.mrf.mxu0
      %1549 = vmatprep.mubr.f32.mxu0 0.0
      %1550 = vmatmul.mubr.f32.gmra.mxu0 %v920
      %v1551 = vpop.f32.mrf.mxu0
      %v1552 = vadd.f32 0.0, %v1551
      %v1553 = vpop.f32.mrf.mxu0
      %1554 = vmatprep.mubr.f32.mxu0 0.0
      %1555 = vmatmul.mubr.f32.gmra.mxu0 %v923
      %v1556 = vpop.f32.mrf.mxu0
      %v1557 = vadd.f32 0.0, %v1556
      %v1558 = vpop.f32.mrf.mxu0
      %1559 = vmatprep.mubr.f32.mxu0 0.0
      %1560 = vmatmul.mubr.f32.gmra.mxu0 %v926
      %v1561 = vpop.f32.mrf.mxu0
      %v1562 = vadd.f32 0.0, %v1561
      %v1563 = vpop.f32.mrf.mxu0
      %1564 = vmatprep.mubr.f32.mxu0 0.0
      %1565 = vmatmul.mubr.f32.gmra.mxu0 %v929
      %v1566 = vpop.f32.mrf.mxu0
      %v1567 = vadd.f32 0.0, %v1566
      %v1568 = vpop.f32.mrf.mxu0
      %1569 = vmatprep.mubr.f32.mxu0 0.0
      %1570 = vmatmul.mubr.f32.gmra.mxu0 %v932
      %v1571 = vpop.f32.mrf.mxu0
      %v1572 = vadd.f32 0.0, %v1571
      %v1573 = vpop.f32.mrf.mxu0
      %1574 = vmatprep.mubr.f32.mxu0 0.0
      %1575 = vmatmul.mubr.f32.gmra.mxu0 %v935
      %v1576 = vpop.f32.mrf.mxu0
      %v1577 = vadd.f32 0.0, %v1576
      %v1578 = vpop.f32.mrf.mxu0
      %1579 = vmatprep.mubr.f32.mxu0 0.0
      %1580 = vmatmul.mubr.f32.gmra.mxu0 %v938
      %v1581 = vpop.f32.mrf.mxu0
      %v1582 = vadd.f32 0.0, %v1581
      %v1583 = vpop.f32.mrf.mxu0
      %1584 = vmatprep.mubr.f32.mxu0 0.0
      %1585 = vmatmul.mubr.f32.gmra.mxu0 %v941
      %v1586 = vpop.f32.mrf.mxu0
      %v1587 = vadd.f32 0.0, %v1586
      %v1588 = vpop.f32.mrf.mxu0
      %1589 = vmatprep.mubr.f32.mxu0 0.0
      %1590 = vmatmul.mubr.f32.gmra.mxu0 %v944
      %v1591 = vpop.f32.mrf.mxu0
      %v1592 = vadd.f32 0.0, %v1591
      %v1593 = vpop.f32.mrf.mxu0
      %1594 = vmatprep.mubr.f32.mxu0 0.0
      %1595 = vmatmul.mubr.f32.gmra.mxu0 %v947
      %v1596 = vpop.f32.mrf.mxu0
      %v1597 = vadd.f32 0.0, %v1596
      %v1598 = vpop.f32.mrf.mxu0
      %1599 = vmatprep.mubr.f32.mxu0 0.0
      %1600 = vmatmul.mubr.f32.gmra.mxu0 %v950
      %v1601 = vpop.f32.mrf.mxu0
      %v1602 = vadd.f32 0.0, %v1601
      %v1603 = vpop.f32.mrf.mxu0
      %1604 = vmatprep.mubr.f32.mxu0 0.0
      %1605 = vmatmul.mubr.f32.gmra.mxu0 %v953
      %v1606 = vpop.f32.mrf.mxu0
      %v1607 = vadd.f32 0.0, %v1606
      %v1608 = vpop.f32.mrf.mxu0
      %1609 = vmatprep.mubr.f32.mxu0 0.0
      %1610 = vmatmul.mubr.f32.gmra.mxu0 %v956
      %v1611 = vpop.f32.mrf.mxu0
      %v1612 = vadd.f32 0.0, %v1611
      %v1613 = vpop.f32.mrf.mxu0
      %1614 = vmatprep.mubr.f32.mxu0 0.0
      %1615 = vmatmul.mubr.f32.gmra.mxu0 %v959
      %v1616 = vpop.f32.mrf.mxu0
      %v1617 = vadd.f32 0.0, %v1616
      %v1618 = vpop.f32.mrf.mxu0
      %1619 = vmatprep.mubr.f32.mxu0 0.0
      %1620 = vmatmul.mubr.f32.gmra.mxu0 %v962
      %v1621 = vpop.f32.mrf.mxu0
      %v1622 = vadd.f32 0.0, %v1621
      %v1623 = vpop.f32.mrf.mxu0
      %1624 = vmatprep.mubr.f32.mxu0 0.0
      %1625 = vmatmul.mubr.f32.gmra.mxu0 %v965
      %v1626 = vpop.f32.mrf.mxu0
      %v1627 = vadd.f32 0.0, %v1626
      %v1628 = vpop.f32.mrf.mxu0
      %1629 = vmatprep.mubr.f32.mxu0 0.0
      %1630 = vmatmul.mubr.f32.gmra.mxu0 %v968
      %v1631 = vpop.f32.mrf.mxu0
      %v1632 = vadd.f32 0.0, %v1631
      %v1633 = vpop.f32.mrf.mxu0
      %1634 = vmatprep.mubr.f32.mxu0 0.0
      %1635 = vmatmul.mubr.f32.gmra.mxu0 %v971
      %v1636 = vpop.f32.mrf.mxu0
      %v1637 = vadd.f32 0.0, %v1636
      %v1638 = vpop.f32.mrf.mxu0
      %1639 = vmatprep.mubr.f32.mxu0 0.0
      %1640 = vmatmul.mubr.f32.gmra.mxu0 %v974
      %v1641 = vpop.f32.mrf.mxu0
      %v1642 = vadd.f32 0.0, %v1641
      %v1643 = vpop.f32.mrf.mxu0
      %1644 = vmatprep.mubr.f32.mxu0 0.0
      %1645 = vmatmul.mubr.f32.gmra.mxu0 %v977
      %v1646 = vpop.f32.mrf.mxu0
      %v1647 = vadd.f32 0.0, %v1646
      %v1648 = vpop.f32.mrf.mxu0
      %1649 = vmatprep.mubr.f32.mxu0 0.0
      %1650 = vmatmul.mubr.f32.gmra.mxu0 %v980
      %v1651 = vpop.f32.mrf.mxu0
      %v1652 = vadd.f32 0.0, %v1651
      %v1653 = vpop.f32.mrf.mxu0
      %1654 = vmatprep.mubr.f32.mxu0 0.0
      %1655 = vmatmul.mubr.f32.gmra.mxu0 %v983
      %v1656 = vpop.f32.mrf.mxu0
      %v1657 = vadd.f32 0.0, %v1656
      %v1658 = vpop.f32.mrf.mxu0
      %1659 = vmatprep.mubr.f32.mxu0 0.0
      %1660 = vmatmul.mubr.f32.gmra.mxu0 %v986
      %v1661 = vpop.f32.mrf.mxu0
      %v1662 = vadd.f32 0.0, %v1661
      %v1663 = vpop.f32.mrf.mxu0
      %1664 = vmatprep.mubr.f32.mxu0 0.0
      %1665 = vmatmul.mubr.f32.gmra.mxu0 %v989
      %v1666 = vpop.f32.mrf.mxu0
      %v1667 = vadd.f32 0.0, %v1666
      %v1668 = vpop.f32.mrf.mxu0
      %1669 = vmatprep.mubr.f32.mxu0 0.0
      %1670 = vmatmul.mubr.f32.gmra.mxu0 %v992
      %v1671 = vpop.f32.mrf.mxu0
      %v1672 = vadd.f32 0.0, %v1671
      %v1673 = vpop.f32.mrf.mxu0
      %1674 = vmatprep.mubr.f32.mxu0 0.0
      %1675 = vmatmul.mubr.f32.gmra.mxu0 %v995
      %v1676 = vpop.f32.mrf.mxu0
      %v1677 = vadd.f32 0.0, %v1676
      %v1678 = vpop.f32.mrf.mxu0
      %1679 = vmatprep.mubr.f32.mxu0 0.0
      %1680 = vmatmul.mubr.f32.gmra.mxu0 %v998
      %v1681 = vpop.f32.mrf.mxu0
      %v1682 = vadd.f32 0.0, %v1681
      %v1683 = vpop.f32.mrf.mxu0
      %1684 = vmatprep.mubr.f32.mxu0 0.0
      %1685 = vmatmul.mubr.f32.gmra.mxu0 %v1001
      %v1686 = vpop.f32.mrf.mxu0
      %v1687 = vadd.f32 0.0, %v1686
      %v1688 = vpop.f32.mrf.mxu0
      %1689 = vmatprep.mubr.f32.mxu0 0.0
      %1690 = vmatmul.mubr.f32.gmra.mxu0 %v1004
      %v1691 = vpop.f32.mrf.mxu0
      %v1692 = vadd.f32 0.0, %v1691
      %v1693 = vpop.f32.mrf.mxu0
      %1694 = vmatprep.mubr.f32.mxu0 0.0
      %1695 = vmatmul.mubr.f32.gmra.mxu0 %v1472
      %v1696 = vpop.f32.mrf.mxu0
      %v1697 = vadd.f32 0.0, %v1696
      %v1698 = vpop.f32.mrf.mxu0
      %1699 = vmatprep.mubr.f32.mxu0 0.0
      %1700 = vmatmul.mubr.f32.gmra.mxu0 %v1475
      %v1701 = vpop.f32.mrf.mxu0
      %v1702 = vadd.f32 0.0, %v1701
      %v1703 = vpop.f32.mrf.mxu0
      %1704 = vdwg.mxu0
      %v1705 = vadd.f32 %v1311, %v1547
      %v1706 = vadd.f32 %v1316, %v1552
      %v1707 = vadd.f32 %v1321, %v1557
      %v1708 = vadd.f32 %v1326, %v1562
      %v1709 = vadd.f32 %v1331, %v1567
      %v1710 = vadd.f32 %v1336, %v1572
      %v1711 = vadd.f32 %v1341, %v1577
      %v1712 = vadd.f32 %v1346, %v1582
      %v1713 = vadd.f32 %v1351, %v1587
      %v1714 = vadd.f32 %v1356, %v1592
      %v1715 = vadd.f32 %v1361, %v1597
      %v1716 = vadd.f32 %v1366, %v1602
      %v1717 = vadd.f32 %v1371, %v1607
      %v1718 = vadd.f32 %v1376, %v1612
      %v1719 = vadd.f32 %v1381, %v1617
      %v1720 = vadd.f32 %v1386, %v1622
      %v1721 = vadd.f32 %v1391, %v1627
      %v1722 = vadd.f32 %v1396, %v1632
      %v1723 = vadd.f32 %v1401, %v1637
      %v1724 = vadd.f32 %v1406, %v1642
      %v1725 = vadd.f32 %v1411, %v1647
      %v1726 = vadd.f32 %v1416, %v1652
      %v1727 = vadd.f32 %v1421, %v1657
      %v1728 = vadd.f32 %v1426, %v1662
      %v1729 = vadd.f32 %v1431, %v1667
      %v1730 = vadd.f32 %v1436, %v1672
      %v1731 = vadd.f32 %v1441, %v1677
      %v1732 = vadd.f32 %v1446, %v1682
      %v1733 = vadd.f32 %v1451, %v1687
      %v1734 = vadd.f32 %v1456, %v1692
      %v1735 = vadd.f32 %v1461, %v1697
      %v1736 = vadd.f32 %v1466, %v1702
      %v1737 = vld [vmem:[#allocation2 + $0x1] sm:$0xff]
      %v1738 = vld [vmem:[#allocation2 + $0x9] sm:$0xff]
      %v1739 = vld [vmem:[#allocation2 + $0x19] sm:$0xff]
      %v1740 = vld [vmem:[#allocation2 + $0x21] sm:$0xff]
      %v1741 = vld [vmem:[#allocation2 + $0x31] sm:$0xff]
      %v1742 = vld [vmem:[#allocation2 + $0x39] sm:$0xff]
      %v1743 = vld [vmem:[#allocation2 + $0x49] sm:$0xff]
      %v1744 = vld [vmem:[#allocation2 + $0x51] sm:$0xff]
      %v1745 = vld [vmem:[#allocation2 + $0x61] sm:$0xff]
      %v1746 = vld [vmem:[#allocation2 + $0x69] sm:$0xff]
      %v1747 = vld [vmem:[#allocation2 + $0x79] sm:$0xff]
      %v1748 = vld [vmem:[#allocation2 + $0x81] sm:$0xff]
      %v1749 = vld [vmem:[#allocation2 + $0x91] sm:$0xff]
      %v1750 = vld [vmem:[#allocation2 + $0x99] sm:$0xff]
      %v1751 = vld [vmem:[#allocation2 + $0xa9] sm:$0xff]
      %v1752 = vld [vmem:[#allocation2 + $0xb1] sm:$0xff]
      %v1753 = vld [vmem:[#allocation2 + $0xc1] sm:$0xff]
      %v1754 = vld [vmem:[#allocation2 + $0xc9] sm:$0xff]
      %v1755 = vld [vmem:[#allocation2 + $0xd9] sm:$0xff]
      %v1756 = vld [vmem:[#allocation2 + $0xe1] sm:$0xff]
      %v1757 = vld [vmem:[#allocation2 + $0xf1] sm:$0xff]
      %v1758 = vld [vmem:[#allocation2 + $0xf9] sm:$0xff]
      %v1759 = vld [vmem:[#allocation2 + $0x109] sm:$0xff]
      %v1760 = vld [vmem:[#allocation2 + $0x111] sm:$0xff]
      %v1761 = vld [vmem:[#allocation2 + $0x121] sm:$0xff]
      %v1762 = vld [vmem:[#allocation2 + $0x129] sm:$0xff]
      %v1763 = vld [vmem:[#allocation2 + $0x139] sm:$0xff]
      %v1764 = vld [vmem:[#allocation2 + $0x141] sm:$0xff]
      %v1765 = vld [vmem:[#allocation2 + $0x151] sm:$0xff]
      %v1766 = vld [vmem:[#allocation2 + $0x159] sm:$0xff]
      %v1767 = vld [vmem:[#allocation2 + $0x169] sm:$0xff]
      %v1768 = vld [vmem:[#allocation2 + $0x171] sm:$0xff]
      %v1769 = vld [vmem:[#allocation2 + $0x181] sm:$0xff]
      %v1770 = vld [vmem:[#allocation2 + $0x189] sm:$0xff]
      %v1771 = vld [vmem:[#allocation2 + $0x199] sm:$0xff]
      %v1772 = vld [vmem:[#allocation2 + $0x1a1] sm:$0xff]
      %s1773 = scalar_lea.vmem %s1, 4
      %v1774 = vld [vmem:[%s1773] sm:$0xf]
      %v1776 = vsel %vm258, %v1737, 0
      %v1779 = vsel %vm258, %v1738, 0
      %v1782 = vsel %vm258, %v1739, 0
      %v1785 = vsel %vm258, %v1740, 0
      %v1788 = vsel %vm258, %v1741, 0
      %v1791 = vsel %vm258, %v1742, 0
      %v1794 = vsel %vm258, %v1743, 0
      %v1797 = vsel %vm258, %v1744, 0
      %v1800 = vsel %vm258, %v1745, 0
      %v1803 = vsel %vm258, %v1746, 0
      %v1806 = vsel %vm258, %v1747, 0
      %v1809 = vsel %vm258, %v1748, 0
      %v1812 = vsel %vm258, %v1749, 0
      %v1815 = vsel %vm258, %v1750, 0
      %v1818 = vsel %vm258, %v1751, 0
      %v1821 = vsel %vm258, %v1752, 0
      %v1824 = vsel %vm258, %v1753, 0
      %v1827 = vsel %vm258, %v1754, 0
      %v1830 = vsel %vm258, %v1755, 0
      %v1833 = vsel %vm258, %v1756, 0
      %v1836 = vsel %vm258, %v1757, 0
      %v1839 = vsel %vm258, %v1758, 0
      %v1842 = vsel %vm258, %v1759, 0
      %v1845 = vsel %vm258, %v1760, 0
      %v1848 = vsel %vm258, %v1761, 0
      %v1851 = vsel %vm258, %v1762, 0
      %v1854 = vsel %vm258, %v1763, 0
      %v1857 = vsel %vm258, %v1764, 0
      %v1860 = vsel %vm258, %v1765, 0
      %v1863 = vsel %vm258, %v1766, 0
      %v1866 = vsel %vm258, %v1767, 0
      %v1869 = vsel %vm258, %v1768, 0
      %v1872 = vsel %vm1006, %v1774, 0
      %1874 = vmatprep.subr.mxu0 0.0
      %1875 = vmatpush1.msra.mxu0 0.0
      %1876 = vmatprep.subr.mxu0 0.0
      %1877 = vmatpush1.msra.mxu0 0.0
      %1878 = vmatprep.subr.mxu0 0.0
      %1879 = vmatpush1.msra.mxu0 0.0
      %1880 = vmatprep.subr.mxu0 0.0
      %1881 = vmatpush1.msra.mxu0 0.0
      %1882 = vmatprep.subr.mxu0 0.0
      %1883 = vmatpush1.msra.mxu0 0.0
      %1884 = vmatprep.subr.mxu0 0.0
      %1885 = vmatpush1.msra.mxu0 0.0
      %1886 = vmatprep.subr.mxu0 0.0
      %1887 = vmatpush1.msra.mxu0 0.0
      %1888 = vmatprep.subr.mxu0 0.0
      %1889 = vmatpush1.msra.mxu0 0.0
      %1890 = vmatprep.subr.mxu0 0.0
      %1891 = vmatpush1.msra.mxu0 0.0
      %1892 = vmatprep.subr.mxu0 0.0
      %1893 = vmatpush1.msra.mxu0 0.0
      %1894 = vmatprep.subr.mxu0 0.0
      %1895 = vmatpush1.msra.mxu0 0.0
      %1896 = vmatprep.subr.mxu0 0.0
      %1897 = vmatpush1.msra.mxu0 0.0
      %1898 = vmatprep.subr.mxu0 0.0
      %1899 = vmatpush1.msra.mxu0 0.0
      %1900 = vmatprep.subr.mxu0 0.0
      %1901 = vmatpush1.msra.mxu0 0.0
      %1902 = vmatprep.subr.mxu0 0.0
      %1903 = vmatpush1.msra.mxu0 0.0
      %1904 = vmatprep.subr.mxu0 0.0
      %1905 = vmatpush1.msra.mxu0 %v1872
      %1906 = vmatprep.subr.mxu0 0.0
      %1907 = vmatpush2.msra.mxu0 0.0
      %1908 = vmatprep.subr.mxu0 0.0
      %1909 = vmatpush2.msra.mxu0 0.0
      %1910 = vmatprep.subr.mxu0 0.0
      %1911 = vmatpush2.msra.mxu0 0.0
      %1912 = vmatprep.subr.mxu0 0.0
      %1913 = vmatpush2.msra.mxu0 0.0
      %1914 = vmatprep.subr.mxu0 0.0
      %1915 = vmatpush2.msra.mxu0 0.0
      %1916 = vmatprep.subr.mxu0 0.0
      %1917 = vmatpush2.msra.mxu0 0.0
      %1918 = vmatprep.subr.mxu0 0.0
      %1919 = vmatpush2.msra.mxu0 0.0
      %1920 = vmatprep.subr.mxu0 0.0
      %1921 = vmatpush2.msra.mxu0 0.0
      %1922 = vmatprep.subr.mxu0 0.0
      %1923 = vmatpush2.msra.mxu0 0.0
      %1924 = vmatprep.subr.mxu0 0.0
      %1925 = vmatpush2.msra.mxu0 0.0
      %1926 = vmatprep.subr.mxu0 0.0
      %1927 = vmatpush2.msra.mxu0 0.0
      %1928 = vmatprep.subr.mxu0 0.0
      %1929 = vmatpush2.msra.mxu0 0.0
      %1930 = vmatprep.subr.mxu0 0.0
      %1931 = vmatpush2.msra.mxu0 0.0
      %1932 = vmatprep.subr.mxu0 0.0
      %1933 = vmatpush2.msra.mxu0 0.0
      %1934 = vmatprep.subr.mxu0 0.0
      %1935 = vmatpush2.msra.mxu0 0.0
      %1936 = vmatprep.subr.mxu0 0.0
      %1937 = vmatpush2.msra.mxu0 0.0
      %1938 = vmatprep.mubr.f32.mxu0 0.0
      %1939 = vmatmul.mubr.f32.gmra.mxu0 %v1776
      %v1940 = vpop.f32.mrf.mxu0
      %v1941 = vadd.f32 0.0, %v1940
      %v1942 = vpop.f32.mrf.mxu0
      %1943 = vmatprep.mubr.f32.mxu0 0.0
      %1944 = vmatmul.mubr.f32.gmra.mxu0 %v1779
      %v1945 = vpop.f32.mrf.mxu0
      %v1946 = vadd.f32 0.0, %v1945
      %v1947 = vpop.f32.mrf.mxu0
      %1948 = vmatprep.mubr.f32.mxu0 0.0
      %1949 = vmatmul.mubr.f32.gmra.mxu0 %v1782
      %v1950 = vpop.f32.mrf.mxu0
      %v1951 = vadd.f32 0.0, %v1950
      %v1952 = vpop.f32.mrf.mxu0
      %1953 = vmatprep.mubr.f32.mxu0 0.0
      %1954 = vmatmul.mubr.f32.gmra.mxu0 %v1785
      %v1955 = vpop.f32.mrf.mxu0
      %v1956 = vadd.f32 0.0, %v1955
      %v1957 = vpop.f32.mrf.mxu0
      %1958 = vmatprep.mubr.f32.mxu0 0.0
      %1959 = vmatmul.mubr.f32.gmra.mxu0 %v1788
      %v1960 = vpop.f32.mrf.mxu0
      %v1961 = vadd.f32 0.0, %v1960
      %v1962 = vpop.f32.mrf.mxu0
      %1963 = vmatprep.mubr.f32.mxu0 0.0
      %1964 = vmatmul.mubr.f32.gmra.mxu0 %v1791
      %v1965 = vpop.f32.mrf.mxu0
      %v1966 = vadd.f32 0.0, %v1965
      %v1967 = vpop.f32.mrf.mxu0
      %1968 = vmatprep.mubr.f32.mxu0 0.0
      %1969 = vmatmul.mubr.f32.gmra.mxu0 %v1794
      %v1970 = vpop.f32.mrf.mxu0
      %v1971 = vadd.f32 0.0, %v1970
      %v1972 = vpop.f32.mrf.mxu0
      %1973 = vmatprep.mubr.f32.mxu0 0.0
      %1974 = vmatmul.mubr.f32.gmra.mxu0 %v1797
      %v1975 = vpop.f32.mrf.mxu0
      %v1976 = vadd.f32 0.0, %v1975
      %v1977 = vpop.f32.mrf.mxu0
      %1978 = vmatprep.mubr.f32.mxu0 0.0
      %1979 = vmatmul.mubr.f32.gmra.mxu0 %v1800
      %v1980 = vpop.f32.mrf.mxu0
      %v1981 = vadd.f32 0.0, %v1980
      %v1982 = vpop.f32.mrf.mxu0
      %1983 = vmatprep.mubr.f32.mxu0 0.0
      %1984 = vmatmul.mubr.f32.gmra.mxu0 %v1803
      %v1985 = vpop.f32.mrf.mxu0
      %v1986 = vadd.f32 0.0, %v1985
      %v1987 = vpop.f32.mrf.mxu0
      %1988 = vmatprep.mubr.f32.mxu0 0.0
      %1989 = vmatmul.mubr.f32.gmra.mxu0 %v1806
      %v1990 = vpop.f32.mrf.mxu0
      %v1991 = vadd.f32 0.0, %v1990
      %v1992 = vpop.f32.mrf.mxu0
      %1993 = vmatprep.mubr.f32.mxu0 0.0
      %1994 = vmatmul.mubr.f32.gmra.mxu0 %v1809
      %v1995 = vpop.f32.mrf.mxu0
      %v1996 = vadd.f32 0.0, %v1995
      %v1997 = vpop.f32.mrf.mxu0
      %1998 = vmatprep.mubr.f32.mxu0 0.0
      %1999 = vmatmul.mubr.f32.gmra.mxu0 %v1812
      %v2000 = vpop.f32.mrf.mxu0
      %v2001 = vadd.f32 0.0, %v2000
      %v2002 = vpop.f32.mrf.mxu0
      %2003 = vmatprep.mubr.f32.mxu0 0.0
      %2004 = vmatmul.mubr.f32.gmra.mxu0 %v1815
      %v2005 = vpop.f32.mrf.mxu0
      %v2006 = vadd.f32 0.0, %v2005
      %v2007 = vpop.f32.mrf.mxu0
      %2008 = vmatprep.mubr.f32.mxu0 0.0
      %2009 = vmatmul.mubr.f32.gmra.mxu0 %v1818
      %v2010 = vpop.f32.mrf.mxu0
      %v2011 = vadd.f32 0.0, %v2010
      %v2012 = vpop.f32.mrf.mxu0
      %2013 = vmatprep.mubr.f32.mxu0 0.0
      %2014 = vmatmul.mubr.f32.gmra.mxu0 %v1821
      %v2015 = vpop.f32.mrf.mxu0
      %v2016 = vadd.f32 0.0, %v2015
      %v2017 = vpop.f32.mrf.mxu0
      %2018 = vmatprep.mubr.f32.mxu0 0.0
      %2019 = vmatmul.mubr.f32.gmra.mxu0 %v1824
      %v2020 = vpop.f32.mrf.mxu0
      %v2021 = vadd.f32 0.0, %v2020
      %v2022 = vpop.f32.mrf.mxu0
      %2023 = vmatprep.mubr.f32.mxu0 0.0
      %2024 = vmatmul.mubr.f32.gmra.mxu0 %v1827
      %v2025 = vpop.f32.mrf.mxu0
      %v2026 = vadd.f32 0.0, %v2025
      %v2027 = vpop.f32.mrf.mxu0
      %2028 = vmatprep.mubr.f32.mxu0 0.0
      %2029 = vmatmul.mubr.f32.gmra.mxu0 %v1830
      %v2030 = vpop.f32.mrf.mxu0
      %v2031 = vadd.f32 0.0, %v2030
      %v2032 = vpop.f32.mrf.mxu0
      %2033 = vmatprep.mubr.f32.mxu0 0.0
      %2034 = vmatmul.mubr.f32.gmra.mxu0 %v1833
      %v2035 = vpop.f32.mrf.mxu0
      %v2036 = vadd.f32 0.0, %v2035
      %v2037 = vpop.f32.mrf.mxu0
      %2038 = vmatprep.mubr.f32.mxu0 0.0
      %2039 = vmatmul.mubr.f32.gmra.mxu0 %v1836
      %v2040 = vpop.f32.mrf.mxu0
      %v2041 = vadd.f32 0.0, %v2040
      %v2042 = vpop.f32.mrf.mxu0
      %2043 = vmatprep.mubr.f32.mxu0 0.0
      %2044 = vmatmul.mubr.f32.gmra.mxu0 %v1839
      %v2045 = vpop.f32.mrf.mxu0
      %v2046 = vadd.f32 0.0, %v2045
      %v2047 = vpop.f32.mrf.mxu0
      %2048 = vmatprep.mubr.f32.mxu0 0.0
      %2049 = vmatmul.mubr.f32.gmra.mxu0 %v1842
      %v2050 = vpop.f32.mrf.mxu0
      %v2051 = vadd.f32 0.0, %v2050
      %v2052 = vpop.f32.mrf.mxu0
      %2053 = vmatprep.mubr.f32.mxu0 0.0
      %2054 = vmatmul.mubr.f32.gmra.mxu0 %v1845
      %v2055 = vpop.f32.mrf.mxu0
      %v2056 = vadd.f32 0.0, %v2055
      %v2057 = vpop.f32.mrf.mxu0
      %2058 = vmatprep.mubr.f32.mxu0 0.0
      %2059 = vmatmul.mubr.f32.gmra.mxu0 %v1848
      %v2060 = vpop.f32.mrf.mxu0
      %v2061 = vadd.f32 0.0, %v2060
      %v2062 = vpop.f32.mrf.mxu0
      %2063 = vmatprep.mubr.f32.mxu0 0.0
      %2064 = vmatmul.mubr.f32.gmra.mxu0 %v1851
      %v2065 = vpop.f32.mrf.mxu0
      %v2066 = vadd.f32 0.0, %v2065
      %v2067 = vpop.f32.mrf.mxu0
      %2068 = vmatprep.mubr.f32.mxu0 0.0
      %2069 = vmatmul.mubr.f32.gmra.mxu0 %v1854
      %v2070 = vpop.f32.mrf.mxu0
      %v2071 = vadd.f32 0.0, %v2070
      %v2072 = vpop.f32.mrf.mxu0
      %2073 = vmatprep.mubr.f32.mxu0 0.0
      %2074 = vmatmul.mubr.f32.gmra.mxu0 %v1857
      %v2075 = vpop.f32.mrf.mxu0
      %v2076 = vadd.f32 0.0, %v2075
      %v2077 = vpop.f32.mrf.mxu0
      %2078 = vmatprep.mubr.f32.mxu0 0.0
      %2079 = vmatmul.mubr.f32.gmra.mxu0 %v1860
      %v2080 = vpop.f32.mrf.mxu0
      %v2081 = vadd.f32 0.0, %v2080
      %v2082 = vpop.f32.mrf.mxu0
      %2083 = vmatprep.mubr.f32.mxu0 0.0
      %2084 = vmatmul.mubr.f32.gmra.mxu0 %v1863
      %v2085 = vpop.f32.mrf.mxu0
      %v2086 = vadd.f32 0.0, %v2085
      %v2087 = vpop.f32.mrf.mxu0
      %2088 = vmatprep.mubr.f32.mxu0 0.0
      %2089 = vmatmul.mubr.f32.gmra.mxu0 %v1866
      %v2090 = vpop.f32.mrf.mxu0
      %v2091 = vadd.f32 0.0, %v2090
      %v2092 = vpop.f32.mrf.mxu0
      %2093 = vmatprep.mubr.f32.mxu0 0.0
      %2094 = vmatmul.mubr.f32.gmra.mxu0 %v1869
      %v2095 = vpop.f32.mrf.mxu0
      %v2096 = vadd.f32 0.0, %v2095
      %v2097 = vpop.f32.mrf.mxu0
      %2098 = vdwg.mxu0
      %v2099 = vadd.f32 %v1705, %v1941
      %v2100 = vadd.f32 %v1706, %v1946
      %v2101 = vadd.f32 %v1707, %v1951
      %v2102 = vadd.f32 %v1708, %v1956
      %v2103 = vadd.f32 %v1709, %v1961
      %v2104 = vadd.f32 %v1710, %v1966
      %v2105 = vadd.f32 %v1711, %v1971
      %v2106 = vadd.f32 %v1712, %v1976
      %v2107 = vadd.f32 %v1713, %v1981
      %v2108 = vadd.f32 %v1714, %v1986
      %v2109 = vadd.f32 %v1715, %v1991
      %v2110 = vadd.f32 %v1716, %v1996
      %v2111 = vadd.f32 %v1717, %v2001
      %v2112 = vadd.f32 %v1718, %v2006
      %v2113 = vadd.f32 %v1719, %v2011
      %v2114 = vadd.f32 %v1720, %v2016
      %v2115 = vadd.f32 %v1721, %v2021
      %v2116 = vadd.f32 %v1722, %v2026
      %v2117 = vadd.f32 %v1723, %v2031
      %v2118 = vadd.f32 %v1724, %v2036
      %v2119 = vadd.f32 %v1725, %v2041
      %v2120 = vadd.f32 %v1726, %v2046
      %v2121 = vadd.f32 %v1727, %v2051
      %v2122 = vadd.f32 %v1728, %v2056
      %v2123 = vadd.f32 %v1729, %v2061
      %v2124 = vadd.f32 %v1730, %v2066
      %v2125 = vadd.f32 %v1731, %v2071
      %v2126 = vadd.f32 %v1732, %v2076
      %v2127 = vadd.f32 %v1733, %v2081
      %v2128 = vadd.f32 %v1734, %v2086
      %v2129 = vadd.f32 %v1735, %v2091
      %v2130 = vadd.f32 %v1736, %v2096
      %s2131 = scalar_lea.vmem %s1, 16
      %v2132 = vld [vmem:[%s2131] sm:$0xf]
      %v2134 = vsel %vm258, %v1769, 0
      %v2137 = vsel %vm258, %v1770, 0
      %v2140 = vsel %vm1006, %v2132, 0
      %2142 = vmatprep.subr.mxu0 0.0
      %2143 = vmatpush1.msra.mxu0 0.0
      %2144 = vmatprep.subr.mxu0 0.0
      %2145 = vmatpush1.msra.mxu0 0.0
      %2146 = vmatprep.subr.mxu0 0.0
      %2147 = vmatpush1.msra.mxu0 0.0
      %2148 = vmatprep.subr.mxu0 0.0
      %2149 = vmatpush1.msra.mxu0 0.0
      %2150 = vmatprep.subr.mxu0 0.0
      %2151 = vmatpush1.msra.mxu0 0.0
      %2152 = vmatprep.subr.mxu0 0.0
      %2153 = vmatpush1.msra.mxu0 0.0
      %2154 = vmatprep.subr.mxu0 0.0
      %2155 = vmatpush1.msra.mxu0 0.0
      %2156 = vmatprep.subr.mxu0 0.0
      %2157 = vmatpush1.msra.mxu0 0.0
      %2158 = vmatprep.subr.mxu0 0.0
      %2159 = vmatpush1.msra.mxu0 0.0
      %2160 = vmatprep.subr.mxu0 0.0
      %2161 = vmatpush1.msra.mxu0 0.0
      %2162 = vmatprep.subr.mxu0 0.0
      %2163 = vmatpush1.msra.mxu0 0.0
      %2164 = vmatprep.subr.mxu0 0.0
      %2165 = vmatpush1.msra.mxu0 0.0
      %2166 = vmatprep.subr.mxu0 0.0
      %2167 = vmatpush1.msra.mxu0 0.0
      %2168 = vmatprep.subr.mxu0 0.0
      %2169 = vmatpush1.msra.mxu0 0.0
      %2170 = vmatprep.subr.mxu0 0.0
      %2171 = vmatpush1.msra.mxu0 0.0
      %2172 = vmatprep.subr.mxu0 0.0
      %2173 = vmatpush1.msra.mxu0 %v2140
      %2174 = vmatprep.subr.mxu0 0.0
      %2175 = vmatpush2.msra.mxu0 0.0
      %2176 = vmatprep.subr.mxu0 0.0
      %2177 = vmatpush2.msra.mxu0 0.0
      %2178 = vmatprep.subr.mxu0 0.0
      %2179 = vmatpush2.msra.mxu0 0.0
      %2180 = vmatprep.subr.mxu0 0.0
      %2181 = vmatpush2.msra.mxu0 0.0
      %2182 = vmatprep.subr.mxu0 0.0
      %2183 = vmatpush2.msra.mxu0 0.0
      %2184 = vmatprep.subr.mxu0 0.0
      %2185 = vmatpush2.msra.mxu0 0.0
      %2186 = vmatprep.subr.mxu0 0.0
      %2187 = vmatpush2.msra.mxu0 0.0
      %2188 = vmatprep.subr.mxu0 0.0
      %2189 = vmatpush2.msra.mxu0 0.0
      %2190 = vmatprep.subr.mxu0 0.0
      %2191 = vmatpush2.msra.mxu0 0.0
      %2192 = vmatprep.subr.mxu0 0.0
      %2193 = vmatpush2.msra.mxu0 0.0
      %2194 = vmatprep.subr.mxu0 0.0
      %2195 = vmatpush2.msra.mxu0 0.0
      %2196 = vmatprep.subr.mxu0 0.0
      %2197 = vmatpush2.msra.mxu0 0.0
      %2198 = vmatprep.subr.mxu0 0.0
      %2199 = vmatpush2.msra.mxu0 0.0
      %2200 = vmatprep.subr.mxu0 0.0
      %2201 = vmatpush2.msra.mxu0 0.0
      %2202 = vmatprep.subr.mxu0 0.0
      %2203 = vmatpush2.msra.mxu0 0.0
      %2204 = vmatprep.subr.mxu0 0.0
      %2205 = vmatpush2.msra.mxu0 0.0
      %2206 = vmatprep.mubr.f32.mxu0 0.0
      %2207 = vmatmul.mubr.f32.gmra.mxu0 %v1782
      %v2208 = vpop.f32.mrf.mxu0
      %v2209 = vadd.f32 0.0, %v2208
      %v2210 = vpop.f32.mrf.mxu0
      %2211 = vmatprep.mubr.f32.mxu0 0.0
      %2212 = vmatmul.mubr.f32.gmra.mxu0 %v1785
      %v2213 = vpop.f32.mrf.mxu0
      %v2214 = vadd.f32 0.0, %v2213
      %v2215 = vpop.f32.mrf.mxu0
      %2216 = vmatprep.mubr.f32.mxu0 0.0
      %2217 = vmatmul.mubr.f32.gmra.mxu0 %v1788
      %v2218 = vpop.f32.mrf.mxu0
      %v2219 = vadd.f32 0.0, %v2218
      %v2220 = vpop.f32.mrf.mxu0
      %2221 = vmatprep.mubr.f32.mxu0 0.0
      %2222 = vmatmul.mubr.f32.gmra.mxu0 %v1791
      %v2223 = vpop.f32.mrf.mxu0
      %v2224 = vadd.f32 0.0, %v2223
      %v2225 = vpop.f32.mrf.mxu0
      %2226 = vmatprep.mubr.f32.mxu0 0.0
      %2227 = vmatmul.mubr.f32.gmra.mxu0 %v1794
      %v2228 = vpop.f32.mrf.mxu0
      %v2229 = vadd.f32 0.0, %v2228
      %v2230 = vpop.f32.mrf.mxu0
      %2231 = vmatprep.mubr.f32.mxu0 0.0
      %2232 = vmatmul.mubr.f32.gmra.mxu0 %v1797
      %v2233 = vpop.f32.mrf.mxu0
      %v2234 = vadd.f32 0.0, %v2233
      %v2235 = vpop.f32.mrf.mxu0
      %2236 = vmatprep.mubr.f32.mxu0 0.0
      %2237 = vmatmul.mubr.f32.gmra.mxu0 %v1800
      %v2238 = vpop.f32.mrf.mxu0
      %v2239 = vadd.f32 0.0, %v2238
      %v2240 = vpop.f32.mrf.mxu0
      %2241 = vmatprep.mubr.f32.mxu0 0.0
      %2242 = vmatmul.mubr.f32.gmra.mxu0 %v1803
      %v2243 = vpop.f32.mrf.mxu0
      %v2244 = vadd.f32 0.0, %v2243
      %v2245 = vpop.f32.mrf.mxu0
      %2246 = vmatprep.mubr.f32.mxu0 0.0
      %2247 = vmatmul.mubr.f32.gmra.mxu0 %v1806
      %v2248 = vpop.f32.mrf.mxu0
      %v2249 = vadd.f32 0.0, %v2248
      %v2250 = vpop.f32.mrf.mxu0
      %2251 = vmatprep.mubr.f32.mxu0 0.0
      %2252 = vmatmul.mubr.f32.gmra.mxu0 %v1809
      %v2253 = vpop.f32.mrf.mxu0
      %v2254 = vadd.f32 0.0, %v2253
      %v2255 = vpop.f32.mrf.mxu0
      %2256 = vmatprep.mubr.f32.mxu0 0.0
      %2257 = vmatmul.mubr.f32.gmra.mxu0 %v1812
      %v2258 = vpop.f32.mrf.mxu0
      %v2259 = vadd.f32 0.0, %v2258
      %v2260 = vpop.f32.mrf.mxu0
      %2261 = vmatprep.mubr.f32.mxu0 0.0
      %2262 = vmatmul.mubr.f32.gmra.mxu0 %v1815
      %v2263 = vpop.f32.mrf.mxu0
      %v2264 = vadd.f32 0.0, %v2263
      %v2265 = vpop.f32.mrf.mxu0
      %2266 = vmatprep.mubr.f32.mxu0 0.0
      %2267 = vmatmul.mubr.f32.gmra.mxu0 %v1818
      %v2268 = vpop.f32.mrf.mxu0
      %v2269 = vadd.f32 0.0, %v2268
      %v2270 = vpop.f32.mrf.mxu0
      %2271 = vmatprep.mubr.f32.mxu0 0.0
      %2272 = vmatmul.mubr.f32.gmra.mxu0 %v1821
      %v2273 = vpop.f32.mrf.mxu0
      %v2274 = vadd.f32 0.0, %v2273
      %v2275 = vpop.f32.mrf.mxu0
      %2276 = vmatprep.mubr.f32.mxu0 0.0
      %2277 = vmatmul.mubr.f32.gmra.mxu0 %v1824
      %v2278 = vpop.f32.mrf.mxu0
      %v2279 = vadd.f32 0.0, %v2278
      %v2280 = vpop.f32.mrf.mxu0
      %2281 = vmatprep.mubr.f32.mxu0 0.0
      %2282 = vmatmul.mubr.f32.gmra.mxu0 %v1827
      %v2283 = vpop.f32.mrf.mxu0
      %v2284 = vadd.f32 0.0, %v2283
      %v2285 = vpop.f32.mrf.mxu0
      %2286 = vmatprep.mubr.f32.mxu0 0.0
      %2287 = vmatmul.mubr.f32.gmra.mxu0 %v1830
      %v2288 = vpop.f32.mrf.mxu0
      %v2289 = vadd.f32 0.0, %v2288
      %v2290 = vpop.f32.mrf.mxu0
      %2291 = vmatprep.mubr.f32.mxu0 0.0
      %2292 = vmatmul.mubr.f32.gmra.mxu0 %v1833
      %v2293 = vpop.f32.mrf.mxu0
      %v2294 = vadd.f32 0.0, %v2293
      %v2295 = vpop.f32.mrf.mxu0
      %2296 = vmatprep.mubr.f32.mxu0 0.0
      %2297 = vmatmul.mubr.f32.gmra.mxu0 %v1836
      %v2298 = vpop.f32.mrf.mxu0
      %v2299 = vadd.f32 0.0, %v2298
      %v2300 = vpop.f32.mrf.mxu0
      %2301 = vmatprep.mubr.f32.mxu0 0.0
      %2302 = vmatmul.mubr.f32.gmra.mxu0 %v1839
      %v2303 = vpop.f32.mrf.mxu0
      %v2304 = vadd.f32 0.0, %v2303
      %v2305 = vpop.f32.mrf.mxu0
      %2306 = vmatprep.mubr.f32.mxu0 0.0
      %2307 = vmatmul.mubr.f32.gmra.mxu0 %v1842
      %v2308 = vpop.f32.mrf.mxu0
      %v2309 = vadd.f32 0.0, %v2308
      %v2310 = vpop.f32.mrf.mxu0
      %2311 = vmatprep.mubr.f32.mxu0 0.0
      %2312 = vmatmul.mubr.f32.gmra.mxu0 %v1845
      %v2313 = vpop.f32.mrf.mxu0
      %v2314 = vadd.f32 0.0, %v2313
      %v2315 = vpop.f32.mrf.mxu0
      %2316 = vmatprep.mubr.f32.mxu0 0.0
      %2317 = vmatmul.mubr.f32.gmra.mxu0 %v1848
      %v2318 = vpop.f32.mrf.mxu0
      %v2319 = vadd.f32 0.0, %v2318
      %v2320 = vpop.f32.mrf.mxu0
      %2321 = vmatprep.mubr.f32.mxu0 0.0
      %2322 = vmatmul.mubr.f32.gmra.mxu0 %v1851
      %v2323 = vpop.f32.mrf.mxu0
      %v2324 = vadd.f32 0.0, %v2323
      %v2325 = vpop.f32.mrf.mxu0
      %2326 = vmatprep.mubr.f32.mxu0 0.0
      %2327 = vmatmul.mubr.f32.gmra.mxu0 %v1854
      %v2328 = vpop.f32.mrf.mxu0
      %v2329 = vadd.f32 0.0, %v2328
      %v2330 = vpop.f32.mrf.mxu0
      %2331 = vmatprep.mubr.f32.mxu0 0.0
      %2332 = vmatmul.mubr.f32.gmra.mxu0 %v1857
      %v2333 = vpop.f32.mrf.mxu0
      %v2334 = vadd.f32 0.0, %v2333
      %v2335 = vpop.f32.mrf.mxu0
      %2336 = vmatprep.mubr.f32.mxu0 0.0
      %2337 = vmatmul.mubr.f32.gmra.mxu0 %v1860
      %v2338 = vpop.f32.mrf.mxu0
      %v2339 = vadd.f32 0.0, %v2338
      %v2340 = vpop.f32.mrf.mxu0
      %2341 = vmatprep.mubr.f32.mxu0 0.0
      %2342 = vmatmul.mubr.f32.gmra.mxu0 %v1863
      %v2343 = vpop.f32.mrf.mxu0
      %v2344 = vadd.f32 0.0, %v2343
      %v2345 = vpop.f32.mrf.mxu0
      %2346 = vmatprep.mubr.f32.mxu0 0.0
      %2347 = vmatmul.mubr.f32.gmra.mxu0 %v1866
      %v2348 = vpop.f32.mrf.mxu0
      %v2349 = vadd.f32 0.0, %v2348
      %v2350 = vpop.f32.mrf.mxu0
      %2351 = vmatprep.mubr.f32.mxu0 0.0
      %2352 = vmatmul.mubr.f32.gmra.mxu0 %v1869
      %v2353 = vpop.f32.mrf.mxu0
      %v2354 = vadd.f32 0.0, %v2353
      %v2355 = vpop.f32.mrf.mxu0
      %2356 = vmatprep.mubr.f32.mxu0 0.0
      %2357 = vmatmul.mubr.f32.gmra.mxu0 %v2134
      %v2358 = vpop.f32.mrf.mxu0
      %v2359 = vadd.f32 0.0, %v2358
      %v2360 = vpop.f32.mrf.mxu0
      %2361 = vmatprep.mubr.f32.mxu0 0.0
      %2362 = vmatmul.mubr.f32.gmra.mxu0 %v2137
      %v2363 = vpop.f32.mrf.mxu0
      %v2364 = vadd.f32 0.0, %v2363
      %v2365 = vpop.f32.mrf.mxu0
      %2366 = vdwg.mxu0
      %v2367 = vadd.f32 %v2099, %v2209
      %v2368 = vadd.f32 %v2100, %v2214
      %v2369 = vadd.f32 %v2101, %v2219
      %v2370 = vadd.f32 %v2102, %v2224
      %v2371 = vadd.f32 %v2103, %v2229
      %v2372 = vadd.f32 %v2104, %v2234
      %v2373 = vadd.f32 %v2105, %v2239
      %v2374 = vadd.f32 %v2106, %v2244
      %v2375 = vadd.f32 %v2107, %v2249
      %v2376 = vadd.f32 %v2108, %v2254
      %v2377 = vadd.f32 %v2109, %v2259
      %v2378 = vadd.f32 %v2110, %v2264
      %v2379 = vadd.f32 %v2111, %v2269
      %v2380 = vadd.f32 %v2112, %v2274
      %v2381 = vadd.f32 %v2113, %v2279
      %v2382 = vadd.f32 %v2114, %v2284
      %v2383 = vadd.f32 %v2115, %v2289
      %v2384 = vadd.f32 %v2116, %v2294
      %v2385 = vadd.f32 %v2117, %v2299
      %v2386 = vadd.f32 %v2118, %v2304
      %v2387 = vadd.f32 %v2119, %v2309
      %v2388 = vadd.f32 %v2120, %v2314
      %v2389 = vadd.f32 %v2121, %v2319
      %v2390 = vadd.f32 %v2122, %v2324
      %v2391 = vadd.f32 %v2123, %v2329
      %v2392 = vadd.f32 %v2124, %v2334
      %v2393 = vadd.f32 %v2125, %v2339
      %v2394 = vadd.f32 %v2126, %v2344
      %v2395 = vadd.f32 %v2127, %v2349
      %v2396 = vadd.f32 %v2128, %v2354
      %v2397 = vadd.f32 %v2129, %v2359
      %v2398 = vadd.f32 %v2130, %v2364
      %s2399 = scalar_lea.vmem %s1, 28
      %v2400 = vld [vmem:[%s2399] sm:$0xf]
      %v2402 = vsel %vm258, %v1771, 0
      %v2405 = vsel %vm258, %v1772, 0
      %v2408 = vsel %vm1006, %v2400, 0
      %2410 = vmatprep.subr.mxu0 0.0
      %2411 = vmatpush1.msra.mxu0 0.0
      %2412 = vmatprep.subr.mxu0 0.0
      %2413 = vmatpush1.msra.mxu0 0.0
      %2414 = vmatprep.subr.mxu0 0.0
      %2415 = vmatpush1.msra.mxu0 0.0
      %2416 = vmatprep.subr.mxu0 0.0
      %2417 = vmatpush1.msra.mxu0 0.0
      %2418 = vmatprep.subr.mxu0 0.0
      %2419 = vmatpush1.msra.mxu0 0.0
      %2420 = vmatprep.subr.mxu0 0.0
      %2421 = vmatpush1.msra.mxu0 0.0
      %2422 = vmatprep.subr.mxu0 0.0
      %2423 = vmatpush1.msra.mxu0 0.0
      %2424 = vmatprep.subr.mxu0 0.0
      %2425 = vmatpush1.msra.mxu0 0.0
      %2426 = vmatprep.subr.mxu0 0.0
      %2427 = vmatpush1.msra.mxu0 0.0
      %2428 = vmatprep.subr.mxu0 0.0
      %2429 = vmatpush1.msra.mxu0 0.0
      %2430 = vmatprep.subr.mxu0 0.0
      %2431 = vmatpush1.msra.mxu0 0.0
      %2432 = vmatprep.subr.mxu0 0.0
      %2433 = vmatpush1.msra.mxu0 0.0
      %2434 = vmatprep.subr.mxu0 0.0
      %2435 = vmatpush1.msra.mxu0 0.0
      %2436 = vmatprep.subr.mxu0 0.0
      %2437 = vmatpush1.msra.mxu0 0.0
      %2438 = vmatprep.subr.mxu0 0.0
      %2439 = vmatpush1.msra.mxu0 0.0
      %2440 = vmatprep.subr.mxu0 0.0
      %2441 = vmatpush1.msra.mxu0 %v2408
      %2442 = vmatprep.subr.mxu0 0.0
      %2443 = vmatpush2.msra.mxu0 0.0
      %2444 = vmatprep.subr.mxu0 0.0
      %2445 = vmatpush2.msra.mxu0 0.0
      %2446 = vmatprep.subr.mxu0 0.0
      %2447 = vmatpush2.msra.mxu0 0.0
      %2448 = vmatprep.subr.mxu0 0.0
      %2449 = vmatpush2.msra.mxu0 0.0
      %2450 = vmatprep.subr.mxu0 0.0
      %2451 = vmatpush2.msra.mxu0 0.0
      %2452 = vmatprep.subr.mxu0 0.0
      %2453 = vmatpush2.msra.mxu0 0.0
      %2454 = vmatprep.subr.mxu0 0.0
      %2455 = vmatpush2.msra.mxu0 0.0
      %2456 = vmatprep.subr.mxu0 0.0
      %2457 = vmatpush2.msra.mxu0 0.0
      %2458 = vmatprep.subr.mxu0 0.0
      %2459 = vmatpush2.msra.mxu0 0.0
      %2460 = vmatprep.subr.mxu0 0.0
      %2461 = vmatpush2.msra.mxu0 0.0
      %2462 = vmatprep.subr.mxu0 0.0
      %2463 = vmatpush2.msra.mxu0 0.0
      %2464 = vmatprep.subr.mxu0 0.0
      %2465 = vmatpush2.msra.mxu0 0.0
      %2466 = vmatprep.subr.mxu0 0.0
      %2467 = vmatpush2.msra.mxu0 0.0
      %2468 = vmatprep.subr.mxu0 0.0
      %2469 = vmatpush2.msra.mxu0 0.0
      %2470 = vmatprep.subr.mxu0 0.0
      %2471 = vmatpush2.msra.mxu0 0.0
      %2472 = vmatprep.subr.mxu0 0.0
      %2473 = vmatpush2.msra.mxu0 0.0
      %2474 = vmatprep.mubr.f32.mxu0 0.0
      %2475 = vmatmul.mubr.f32.gmra.mxu0 %v1788
      %v2476 = vpop.f32.mrf.mxu0
      %v2477 = vadd.f32 0.0, %v2476
      %v2478 = vpop.f32.mrf.mxu0
      %2479 = vmatprep.mubr.f32.mxu0 0.0
      %2480 = vmatmul.mubr.f32.gmra.mxu0 %v1791
      %v2481 = vpop.f32.mrf.mxu0
      %v2482 = vadd.f32 0.0, %v2481
      %v2483 = vpop.f32.mrf.mxu0
      %2484 = vmatprep.mubr.f32.mxu0 0.0
      %2485 = vmatmul.mubr.f32.gmra.mxu0 %v1794
      %v2486 = vpop.f32.mrf.mxu0
      %v2487 = vadd.f32 0.0, %v2486
      %v2488 = vpop.f32.mrf.mxu0
      %2489 = vmatprep.mubr.f32.mxu0 0.0
      %2490 = vmatmul.mubr.f32.gmra.mxu0 %v1797
      %v2491 = vpop.f32.mrf.mxu0
      %v2492 = vadd.f32 0.0, %v2491
      %v2493 = vpop.f32.mrf.mxu0
      %2494 = vmatprep.mubr.f32.mxu0 0.0
      %2495 = vmatmul.mubr.f32.gmra.mxu0 %v1800
      %v2496 = vpop.f32.mrf.mxu0
      %v2497 = vadd.f32 0.0, %v2496
      %v2498 = vpop.f32.mrf.mxu0
      %2499 = vmatprep.mubr.f32.mxu0 0.0
      %2500 = vmatmul.mubr.f32.gmra.mxu0 %v1803
      %v2501 = vpop.f32.mrf.mxu0
      %v2502 = vadd.f32 0.0, %v2501
      %v2503 = vpop.f32.mrf.mxu0
      %2504 = vmatprep.mubr.f32.mxu0 0.0
      %2505 = vmatmul.mubr.f32.gmra.mxu0 %v1806
      %v2506 = vpop.f32.mrf.mxu0
      %v2507 = vadd.f32 0.0, %v2506
      %v2508 = vpop.f32.mrf.mxu0
      %2509 = vmatprep.mubr.f32.mxu0 0.0
      %2510 = vmatmul.mubr.f32.gmra.mxu0 %v1809
      %v2511 = vpop.f32.mrf.mxu0
      %v2512 = vadd.f32 0.0, %v2511
      %v2513 = vpop.f32.mrf.mxu0
      %2514 = vmatprep.mubr.f32.mxu0 0.0
      %2515 = vmatmul.mubr.f32.gmra.mxu0 %v1812
      %v2516 = vpop.f32.mrf.mxu0
      %v2517 = vadd.f32 0.0, %v2516
      %v2518 = vpop.f32.mrf.mxu0
      %2519 = vmatprep.mubr.f32.mxu0 0.0
      %2520 = vmatmul.mubr.f32.gmra.mxu0 %v1815
      %v2521 = vpop.f32.mrf.mxu0
      %v2522 = vadd.f32 0.0, %v2521
      %v2523 = vpop.f32.mrf.mxu0
      %2524 = vmatprep.mubr.f32.mxu0 0.0
      %2525 = vmatmul.mubr.f32.gmra.mxu0 %v1818
      %v2526 = vpop.f32.mrf.mxu0
      %v2527 = vadd.f32 0.0, %v2526
      %v2528 = vpop.f32.mrf.mxu0
      %2529 = vmatprep.mubr.f32.mxu0 0.0
      %2530 = vmatmul.mubr.f32.gmra.mxu0 %v1821
      %v2531 = vpop.f32.mrf.mxu0
      %v2532 = vadd.f32 0.0, %v2531
      %v2533 = vpop.f32.mrf.mxu0
      %2534 = vmatprep.mubr.f32.mxu0 0.0
      %2535 = vmatmul.mubr.f32.gmra.mxu0 %v1824
      %v2536 = vpop.f32.mrf.mxu0
      %v2537 = vadd.f32 0.0, %v2536
      %v2538 = vpop.f32.mrf.mxu0
      %2539 = vmatprep.mubr.f32.mxu0 0.0
      %2540 = vmatmul.mubr.f32.gmra.mxu0 %v1827
      %v2541 = vpop.f32.mrf.mxu0
      %v2542 = vadd.f32 0.0, %v2541
      %v2543 = vpop.f32.mrf.mxu0
      %2544 = vmatprep.mubr.f32.mxu0 0.0
      %2545 = vmatmul.mubr.f32.gmra.mxu0 %v1830
      %v2546 = vpop.f32.mrf.mxu0
      %v2547 = vadd.f32 0.0, %v2546
      %v2548 = vpop.f32.mrf.mxu0
      %2549 = vmatprep.mubr.f32.mxu0 0.0
      %2550 = vmatmul.mubr.f32.gmra.mxu0 %v1833
      %v2551 = vpop.f32.mrf.mxu0
      %v2552 = vadd.f32 0.0, %v2551
      %v2553 = vpop.f32.mrf.mxu0
      %2554 = vmatprep.mubr.f32.mxu0 0.0
      %2555 = vmatmul.mubr.f32.gmra.mxu0 %v1836
      %v2556 = vpop.f32.mrf.mxu0
      %v2557 = vadd.f32 0.0, %v2556
      %v2558 = vpop.f32.mrf.mxu0
      %2559 = vmatprep.mubr.f32.mxu0 0.0
      %2560 = vmatmul.mubr.f32.gmra.mxu0 %v1839
      %v2561 = vpop.f32.mrf.mxu0
      %v2562 = vadd.f32 0.0, %v2561
      %v2563 = vpop.f32.mrf.mxu0
      %2564 = vmatprep.mubr.f32.mxu0 0.0
      %2565 = vmatmul.mubr.f32.gmra.mxu0 %v1842
      %v2566 = vpop.f32.mrf.mxu0
      %v2567 = vadd.f32 0.0, %v2566
      %v2568 = vpop.f32.mrf.mxu0
      %2569 = vmatprep.mubr.f32.mxu0 0.0
      %2570 = vmatmul.mubr.f32.gmra.mxu0 %v1845
      %v2571 = vpop.f32.mrf.mxu0
      %v2572 = vadd.f32 0.0, %v2571
      %v2573 = vpop.f32.mrf.mxu0
      %2574 = vmatprep.mubr.f32.mxu0 0.0
      %2575 = vmatmul.mubr.f32.gmra.mxu0 %v1848
      %v2576 = vpop.f32.mrf.mxu0
      %v2577 = vadd.f32 0.0, %v2576
      %v2578 = vpop.f32.mrf.mxu0
      %2579 = vmatprep.mubr.f32.mxu0 0.0
      %2580 = vmatmul.mubr.f32.gmra.mxu0 %v1851
      %v2581 = vpop.f32.mrf.mxu0
      %v2582 = vadd.f32 0.0, %v2581
      %v2583 = vpop.f32.mrf.mxu0
      %2584 = vmatprep.mubr.f32.mxu0 0.0
      %2585 = vmatmul.mubr.f32.gmra.mxu0 %v1854
      %v2586 = vpop.f32.mrf.mxu0
      %v2587 = vadd.f32 0.0, %v2586
      %v2588 = vpop.f32.mrf.mxu0
      %2589 = vmatprep.mubr.f32.mxu0 0.0
      %2590 = vmatmul.mubr.f32.gmra.mxu0 %v1857
      %v2591 = vpop.f32.mrf.mxu0
      %v2592 = vadd.f32 0.0, %v2591
      %v2593 = vpop.f32.mrf.mxu0
      %2594 = vmatprep.mubr.f32.mxu0 0.0
      %2595 = vmatmul.mubr.f32.gmra.mxu0 %v1860
      %v2596 = vpop.f32.mrf.mxu0
      %v2597 = vadd.f32 0.0, %v2596
      %v2598 = vpop.f32.mrf.mxu0
      %2599 = vmatprep.mubr.f32.mxu0 0.0
      %2600 = vmatmul.mubr.f32.gmra.mxu0 %v1863
      %v2601 = vpop.f32.mrf.mxu0
      %v2602 = vadd.f32 0.0, %v2601
      %v2603 = vpop.f32.mrf.mxu0
      %2604 = vmatprep.mubr.f32.mxu0 0.0
      %2605 = vmatmul.mubr.f32.gmra.mxu0 %v1866
      %v2606 = vpop.f32.mrf.mxu0
      %v2607 = vadd.f32 0.0, %v2606
      %v2608 = vpop.f32.mrf.mxu0
      %2609 = vmatprep.mubr.f32.mxu0 0.0
      %2610 = vmatmul.mubr.f32.gmra.mxu0 %v1869
      %v2611 = vpop.f32.mrf.mxu0
      %v2612 = vadd.f32 0.0, %v2611
      %v2613 = vpop.f32.mrf.mxu0
      %2614 = vmatprep.mubr.f32.mxu0 0.0
      %2615 = vmatmul.mubr.f32.gmra.mxu0 %v2134
      %v2616 = vpop.f32.mrf.mxu0
      %v2617 = vadd.f32 0.0, %v2616
      %v2618 = vpop.f32.mrf.mxu0
      %2619 = vmatprep.mubr.f32.mxu0 0.0
      %2620 = vmatmul.mubr.f32.gmra.mxu0 %v2137
      %v2621 = vpop.f32.mrf.mxu0
      %v2622 = vadd.f32 0.0, %v2621
      %v2623 = vpop.f32.mrf.mxu0
      %2624 = vmatprep.mubr.f32.mxu0 0.0
      %2625 = vmatmul.mubr.f32.gmra.mxu0 %v2402
      %v2626 = vpop.f32.mrf.mxu0
      %v2627 = vadd.f32 0.0, %v2626
      %v2628 = vpop.f32.mrf.mxu0
      %2629 = vmatprep.mubr.f32.mxu0 0.0
      %2630 = vmatmul.mubr.f32.gmra.mxu0 %v2405
      %v2631 = vpop.f32.mrf.mxu0
      %v2632 = vadd.f32 0.0, %v2631
      %v2633 = vpop.f32.mrf.mxu0
      %2634 = vdwg.mxu0
      %v2635 = vadd.f32 %v2367, %v2477
      %v2636 = vadd.f32 %v2368, %v2482
      %v2637 = vadd.f32 %v2369, %v2487
      %v2638 = vadd.f32 %v2370, %v2492
      %v2639 = vadd.f32 %v2371, %v2497
      %v2640 = vadd.f32 %v2372, %v2502
      %v2641 = vadd.f32 %v2373, %v2507
      %v2642 = vadd.f32 %v2374, %v2512
      %v2643 = vadd.f32 %v2375, %v2517
      %v2644 = vadd.f32 %v2376, %v2522
      %v2645 = vadd.f32 %v2377, %v2527
      %v2646 = vadd.f32 %v2378, %v2532
      %v2647 = vadd.f32 %v2379, %v2537
      %v2648 = vadd.f32 %v2380, %v2542
      %v2649 = vadd.f32 %v2381, %v2547
      %v2650 = vadd.f32 %v2382, %v2552
      %v2651 = vadd.f32 %v2383, %v2557
      %v2652 = vadd.f32 %v2384, %v2562
      %v2653 = vadd.f32 %v2385, %v2567
      %v2654 = vadd.f32 %v2386, %v2572
      %v2655 = vadd.f32 %v2387, %v2577
      %v2656 = vadd.f32 %v2388, %v2582
      %v2657 = vadd.f32 %v2389, %v2587
      %v2658 = vadd.f32 %v2390, %v2592
      %v2659 = vadd.f32 %v2391, %v2597
      %v2660 = vadd.f32 %v2392, %v2602
      %v2661 = vadd.f32 %v2393, %v2607
      %v2662 = vadd.f32 %v2394, %v2612
      %v2663 = vadd.f32 %v2395, %v2617
      %v2664 = vadd.f32 %v2396, %v2622
      %v2665 = vadd.f32 %v2397, %v2627
      %v2666 = vadd.f32 %v2398, %v2632
      %v2667 = vld [vmem:[#allocation2 + $0x2] sm:$0xff]
      %v2668 = vld [vmem:[#allocation2 + $0xa] sm:$0xff]
      %v2669 = vld [vmem:[#allocation2 + $0x1a] sm:$0xff]
      %v2670 = vld [vmem:[#allocation2 + $0x22] sm:$0xff]
      %v2671 = vld [vmem:[#allocation2 + $0x32] sm:$0xff]
      %v2672 = vld [vmem:[#allocation2 + $0x3a] sm:$0xff]
      %v2673 = vld [vmem:[#allocation2 + $0x4a] sm:$0xff]
      %v2674 = vld [vmem:[#allocation2 + $0x52] sm:$0xff]
      %v2675 = vld [vmem:[#allocation2 + $0x62] sm:$0xff]
      %v2676 = vld [vmem:[#allocation2 + $0x6a] sm:$0xff]
      %v2677 = vld [vmem:[#allocation2 + $0x7a] sm:$0xff]
      %v2678 = vld [vmem:[#allocation2 + $0x82] sm:$0xff]
      %v2679 = vld [vmem:[#allocation2 + $0x92] sm:$0xff]
      %v2680 = vld [vmem:[#allocation2 + $0x9a] sm:$0xff]
      %v2681 = vld [vmem:[#allocation2 + $0xaa] sm:$0xff]
      %v2682 = vld [vmem:[#allocation2 + $0xb2] sm:$0xff]
      %v2683 = vld [vmem:[#allocation2 + $0xc2] sm:$0xff]
      %v2684 = vld [vmem:[#allocation2 + $0xca] sm:$0xff]
      %v2685 = vld [vmem:[#allocation2 + $0xda] sm:$0xff]
      %v2686 = vld [vmem:[#allocation2 + $0xe2] sm:$0xff]
      %v2687 = vld [vmem:[#allocation2 + $0xf2] sm:$0xff]
      %v2688 = vld [vmem:[#allocation2 + $0xfa] sm:$0xff]
      %v2689 = vld [vmem:[#allocation2 + $0x10a] sm:$0xff]
      %v2690 = vld [vmem:[#allocation2 + $0x112] sm:$0xff]
      %v2691 = vld [vmem:[#allocation2 + $0x122] sm:$0xff]
      %v2692 = vld [vmem:[#allocation2 + $0x12a] sm:$0xff]
      %v2693 = vld [vmem:[#allocation2 + $0x13a] sm:$0xff]
      %v2694 = vld [vmem:[#allocation2 + $0x142] sm:$0xff]
      %v2695 = vld [vmem:[#allocation2 + $0x152] sm:$0xff]
      %v2696 = vld [vmem:[#allocation2 + $0x15a] sm:$0xff]
      %v2697 = vld [vmem:[#allocation2 + $0x16a] sm:$0xff]
      %v2698 = vld [vmem:[#allocation2 + $0x172] sm:$0xff]
      %v2699 = vld [vmem:[#allocation2 + $0x182] sm:$0xff]
      %v2700 = vld [vmem:[#allocation2 + $0x18a] sm:$0xff]
      %v2701 = vld [vmem:[#allocation2 + $0x19a] sm:$0xff]
      %v2702 = vld [vmem:[#allocation2 + $0x1a2] sm:$0xff]
      %s2703 = scalar_lea.vmem %s1, 8
      %v2704 = vld [vmem:[%s2703] sm:$0xf]
      %v2706 = vsel %vm258, %v2667, 0
      %v2709 = vsel %vm258, %v2668, 0
      %v2712 = vsel %vm258, %v2669, 0
      %v2715 = vsel %vm258, %v2670, 0
      %v2718 = vsel %vm258, %v2671, 0
      %v2721 = vsel %vm258, %v2672, 0
      %v2724 = vsel %vm258, %v2673, 0
      %v2727 = vsel %vm258, %v2674, 0
      %v2730 = vsel %vm258, %v2675, 0
      %v2733 = vsel %vm258, %v2676, 0
      %v2736 = vsel %vm258, %v2677, 0
      %v2739 = vsel %vm258, %v2678, 0
      %v2742 = vsel %vm258, %v2679, 0
      %v2745 = vsel %vm258, %v2680, 0
      %v2748 = vsel %vm258, %v2681, 0
      %v2751 = vsel %vm258, %v2682, 0
      %v2754 = vsel %vm258, %v2683, 0
      %v2757 = vsel %vm258, %v2684, 0
      %v2760 = vsel %vm258, %v2685, 0
      %v2763 = vsel %vm258, %v2686, 0
      %v2766 = vsel %vm258, %v2687, 0
      %v2769 = vsel %vm258, %v2688, 0
      %v2772 = vsel %vm258, %v2689, 0
      %v2775 = vsel %vm258, %v2690, 0
      %v2778 = vsel %vm258, %v2691, 0
      %v2781 = vsel %vm258, %v2692, 0
      %v2784 = vsel %vm258, %v2693, 0
      %v2787 = vsel %vm258, %v2694, 0
      %v2790 = vsel %vm258, %v2695, 0
      %v2793 = vsel %vm258, %v2696, 0
      %v2796 = vsel %vm258, %v2697, 0
      %v2799 = vsel %vm258, %v2698, 0
      %v2802 = vsel %vm1006, %v2704, 0
      %2804 = vmatprep.subr.mxu0 0.0
      %2805 = vmatpush1.msra.mxu0 0.0
      %2806 = vmatprep.subr.mxu0 0.0
      %2807 = vmatpush1.msra.mxu0 0.0
      %2808 = vmatprep.subr.mxu0 0.0
      %2809 = vmatpush1.msra.mxu0 0.0
      %2810 = vmatprep.subr.mxu0 0.0
      %2811 = vmatpush1.msra.mxu0 0.0
      %2812 = vmatprep.subr.mxu0 0.0
      %2813 = vmatpush1.msra.mxu0 0.0
      %2814 = vmatprep.subr.mxu0 0.0
      %2815 = vmatpush1.msra.mxu0 0.0
      %2816 = vmatprep.subr.mxu0 0.0
      %2817 = vmatpush1.msra.mxu0 0.0
      %2818 = vmatprep.subr.mxu0 0.0
      %2819 = vmatpush1.msra.mxu0 0.0
      %2820 = vmatprep.subr.mxu0 0.0
      %2821 = vmatpush1.msra.mxu0 0.0
      %2822 = vmatprep.subr.mxu0 0.0
      %2823 = vmatpush1.msra.mxu0 0.0
      %2824 = vmatprep.subr.mxu0 0.0
      %2825 = vmatpush1.msra.mxu0 0.0
      %2826 = vmatprep.subr.mxu0 0.0
      %2827 = vmatpush1.msra.mxu0 0.0
      %2828 = vmatprep.subr.mxu0 0.0
      %2829 = vmatpush1.msra.mxu0 0.0
      %2830 = vmatprep.subr.mxu0 0.0
      %2831 = vmatpush1.msra.mxu0 0.0
      %2832 = vmatprep.subr.mxu0 0.0
      %2833 = vmatpush1.msra.mxu0 0.0
      %2834 = vmatprep.subr.mxu0 0.0
      %2835 = vmatpush1.msra.mxu0 %v2802
      %2836 = vmatprep.subr.mxu0 0.0
      %2837 = vmatpush2.msra.mxu0 0.0
      %2838 = vmatprep.subr.mxu0 0.0
      %2839 = vmatpush2.msra.mxu0 0.0
      %2840 = vmatprep.subr.mxu0 0.0
      %2841 = vmatpush2.msra.mxu0 0.0
      %2842 = vmatprep.subr.mxu0 0.0
      %2843 = vmatpush2.msra.mxu0 0.0
      %2844 = vmatprep.subr.mxu0 0.0
      %2845 = vmatpush2.msra.mxu0 0.0
      %2846 = vmatprep.subr.mxu0 0.0
      %2847 = vmatpush2.msra.mxu0 0.0
      %2848 = vmatprep.subr.mxu0 0.0
      %2849 = vmatpush2.msra.mxu0 0.0
      %2850 = vmatprep.subr.mxu0 0.0
      %2851 = vmatpush2.msra.mxu0 0.0
      %2852 = vmatprep.subr.mxu0 0.0
      %2853 = vmatpush2.msra.mxu0 0.0
      %2854 = vmatprep.subr.mxu0 0.0
      %2855 = vmatpush2.msra.mxu0 0.0
      %2856 = vmatprep.subr.mxu0 0.0
      %2857 = vmatpush2.msra.mxu0 0.0
      %2858 = vmatprep.subr.mxu0 0.0
      %2859 = vmatpush2.msra.mxu0 0.0
      %2860 = vmatprep.subr.mxu0 0.0
      %2861 = vmatpush2.msra.mxu0 0.0
      %2862 = vmatprep.subr.mxu0 0.0
      %2863 = vmatpush2.msra.mxu0 0.0
      %2864 = vmatprep.subr.mxu0 0.0
      %2865 = vmatpush2.msra.mxu0 0.0
      %2866 = vmatprep.subr.mxu0 0.0
      %2867 = vmatpush2.msra.mxu0 0.0
      %2868 = vmatprep.mubr.f32.mxu0 0.0
      %2869 = vmatmul.mubr.f32.gmra.mxu0 %v2706
      %v2870 = vpop.f32.mrf.mxu0
      %v2871 = vadd.f32 0.0, %v2870
      %v2872 = vpop.f32.mrf.mxu0
      %2873 = vmatprep.mubr.f32.mxu0 0.0
      %2874 = vmatmul.mubr.f32.gmra.mxu0 %v2709
      %v2875 = vpop.f32.mrf.mxu0
      %v2876 = vadd.f32 0.0, %v2875
      %v2877 = vpop.f32.mrf.mxu0
      %2878 = vmatprep.mubr.f32.mxu0 0.0
      %2879 = vmatmul.mubr.f32.gmra.mxu0 %v2712
      %v2880 = vpop.f32.mrf.mxu0
      %v2881 = vadd.f32 0.0, %v2880
      %v2882 = vpop.f32.mrf.mxu0
      %2883 = vmatprep.mubr.f32.mxu0 0.0
      %2884 = vmatmul.mubr.f32.gmra.mxu0 %v2715
      %v2885 = vpop.f32.mrf.mxu0
      %v2886 = vadd.f32 0.0, %v2885
      %v2887 = vpop.f32.mrf.mxu0
      %2888 = vmatprep.mubr.f32.mxu0 0.0
      %2889 = vmatmul.mubr.f32.gmra.mxu0 %v2718
      %v2890 = vpop.f32.mrf.mxu0
      %v2891 = vadd.f32 0.0, %v2890
      %v2892 = vpop.f32.mrf.mxu0
      %2893 = vmatprep.mubr.f32.mxu0 0.0
      %2894 = vmatmul.mubr.f32.gmra.mxu0 %v2721
      %v2895 = vpop.f32.mrf.mxu0
      %v2896 = vadd.f32 0.0, %v2895
      %v2897 = vpop.f32.mrf.mxu0
      %2898 = vmatprep.mubr.f32.mxu0 0.0
      %2899 = vmatmul.mubr.f32.gmra.mxu0 %v2724
      %v2900 = vpop.f32.mrf.mxu0
      %v2901 = vadd.f32 0.0, %v2900
      %v2902 = vpop.f32.mrf.mxu0
      %2903 = vmatprep.mubr.f32.mxu0 0.0
      %2904 = vmatmul.mubr.f32.gmra.mxu0 %v2727
      %v2905 = vpop.f32.mrf.mxu0
      %v2906 = vadd.f32 0.0, %v2905
      %v2907 = vpop.f32.mrf.mxu0
      %2908 = vmatprep.mubr.f32.mxu0 0.0
      %2909 = vmatmul.mubr.f32.gmra.mxu0 %v2730
      %v2910 = vpop.f32.mrf.mxu0
      %v2911 = vadd.f32 0.0, %v2910
      %v2912 = vpop.f32.mrf.mxu0
      %2913 = vmatprep.mubr.f32.mxu0 0.0
      %2914 = vmatmul.mubr.f32.gmra.mxu0 %v2733
      %v2915 = vpop.f32.mrf.mxu0
      %v2916 = vadd.f32 0.0, %v2915
      %v2917 = vpop.f32.mrf.mxu0
      %2918 = vmatprep.mubr.f32.mxu0 0.0
      %2919 = vmatmul.mubr.f32.gmra.mxu0 %v2736
      %v2920 = vpop.f32.mrf.mxu0
      %v2921 = vadd.f32 0.0, %v2920
      %v2922 = vpop.f32.mrf.mxu0
      %2923 = vmatprep.mubr.f32.mxu0 0.0
      %2924 = vmatmul.mubr.f32.gmra.mxu0 %v2739
      %v2925 = vpop.f32.mrf.mxu0
      %v2926 = vadd.f32 0.0, %v2925
      %v2927 = vpop.f32.mrf.mxu0
      %2928 = vmatprep.mubr.f32.mxu0 0.0
      %2929 = vmatmul.mubr.f32.gmra.mxu0 %v2742
      %v2930 = vpop.f32.mrf.mxu0
      %v2931 = vadd.f32 0.0, %v2930
      %v2932 = vpop.f32.mrf.mxu0
      %2933 = vmatprep.mubr.f32.mxu0 0.0
      %2934 = vmatmul.mubr.f32.gmra.mxu0 %v2745
      %v2935 = vpop.f32.mrf.mxu0
      %v2936 = vadd.f32 0.0, %v2935
      %v2937 = vpop.f32.mrf.mxu0
      %2938 = vmatprep.mubr.f32.mxu0 0.0
      %2939 = vmatmul.mubr.f32.gmra.mxu0 %v2748
      %v2940 = vpop.f32.mrf.mxu0
      %v2941 = vadd.f32 0.0, %v2940
      %v2942 = vpop.f32.mrf.mxu0
      %2943 = vmatprep.mubr.f32.mxu0 0.0
      %2944 = vmatmul.mubr.f32.gmra.mxu0 %v2751
      %v2945 = vpop.f32.mrf.mxu0
      %v2946 = vadd.f32 0.0, %v2945
      %v2947 = vpop.f32.mrf.mxu0
      %2948 = vmatprep.mubr.f32.mxu0 0.0
      %2949 = vmatmul.mubr.f32.gmra.mxu0 %v2754
      %v2950 = vpop.f32.mrf.mxu0
      %v2951 = vadd.f32 0.0, %v2950
      %v2952 = vpop.f32.mrf.mxu0
      %2953 = vmatprep.mubr.f32.mxu0 0.0
      %2954 = vmatmul.mubr.f32.gmra.mxu0 %v2757
      %v2955 = vpop.f32.mrf.mxu0
      %v2956 = vadd.f32 0.0, %v2955
      %v2957 = vpop.f32.mrf.mxu0
      %2958 = vmatprep.mubr.f32.mxu0 0.0
      %2959 = vmatmul.mubr.f32.gmra.mxu0 %v2760
      %v2960 = vpop.f32.mrf.mxu0
      %v2961 = vadd.f32 0.0, %v2960
      %v2962 = vpop.f32.mrf.mxu0
      %2963 = vmatprep.mubr.f32.mxu0 0.0
      %2964 = vmatmul.mubr.f32.gmra.mxu0 %v2763
      %v2965 = vpop.f32.mrf.mxu0
      %v2966 = vadd.f32 0.0, %v2965
      %v2967 = vpop.f32.mrf.mxu0
      %2968 = vmatprep.mubr.f32.mxu0 0.0
      %2969 = vmatmul.mubr.f32.gmra.mxu0 %v2766
      %v2970 = vpop.f32.mrf.mxu0
      %v2971 = vadd.f32 0.0, %v2970
      %v2972 = vpop.f32.mrf.mxu0
      %2973 = vmatprep.mubr.f32.mxu0 0.0
      %2974 = vmatmul.mubr.f32.gmra.mxu0 %v2769
      %v2975 = vpop.f32.mrf.mxu0
      %v2976 = vadd.f32 0.0, %v2975
      %v2977 = vpop.f32.mrf.mxu0
      %2978 = vmatprep.mubr.f32.mxu0 0.0
      %2979 = vmatmul.mubr.f32.gmra.mxu0 %v2772
      %v2980 = vpop.f32.mrf.mxu0
      %v2981 = vadd.f32 0.0, %v2980
      %v2982 = vpop.f32.mrf.mxu0
      %2983 = vmatprep.mubr.f32.mxu0 0.0
      %2984 = vmatmul.mubr.f32.gmra.mxu0 %v2775
      %v2985 = vpop.f32.mrf.mxu0
      %v2986 = vadd.f32 0.0, %v2985
      %v2987 = vpop.f32.mrf.mxu0
      %2988 = vmatprep.mubr.f32.mxu0 0.0
      %2989 = vmatmul.mubr.f32.gmra.mxu0 %v2778
      %v2990 = vpop.f32.mrf.mxu0
      %v2991 = vadd.f32 0.0, %v2990
      %v2992 = vpop.f32.mrf.mxu0
      %2993 = vmatprep.mubr.f32.mxu0 0.0
      %2994 = vmatmul.mubr.f32.gmra.mxu0 %v2781
      %v2995 = vpop.f32.mrf.mxu0
      %v2996 = vadd.f32 0.0, %v2995
      %v2997 = vpop.f32.mrf.mxu0
      %2998 = vmatprep.mubr.f32.mxu0 0.0
      %2999 = vmatmul.mubr.f32.gmra.mxu0 %v2784
      %v3000 = vpop.f32.mrf.mxu0
      %v3001 = vadd.f32 0.0, %v3000
      %v3002 = vpop.f32.mrf.mxu0
      %3003 = vmatprep.mubr.f32.mxu0 0.0
      %3004 = vmatmul.mubr.f32.gmra.mxu0 %v2787
      %v3005 = vpop.f32.mrf.mxu0
      %v3006 = vadd.f32 0.0, %v3005
      %v3007 = vpop.f32.mrf.mxu0
      %3008 = vmatprep.mubr.f32.mxu0 0.0
      %3009 = vmatmul.mubr.f32.gmra.mxu0 %v2790
      %v3010 = vpop.f32.mrf.mxu0
      %v3011 = vadd.f32 0.0, %v3010
      %v3012 = vpop.f32.mrf.mxu0
      %3013 = vmatprep.mubr.f32.mxu0 0.0
      %3014 = vmatmul.mubr.f32.gmra.mxu0 %v2793
      %v3015 = vpop.f32.mrf.mxu0
      %v3016 = vadd.f32 0.0, %v3015
      %v3017 = vpop.f32.mrf.mxu0
      %3018 = vmatprep.mubr.f32.mxu0 0.0
      %3019 = vmatmul.mubr.f32.gmra.mxu0 %v2796
      %v3020 = vpop.f32.mrf.mxu0
      %v3021 = vadd.f32 0.0, %v3020
      %v3022 = vpop.f32.mrf.mxu0
      %3023 = vmatprep.mubr.f32.mxu0 0.0
      %3024 = vmatmul.mubr.f32.gmra.mxu0 %v2799
      %v3025 = vpop.f32.mrf.mxu0
      %v3026 = vadd.f32 0.0, %v3025
      %v3027 = vpop.f32.mrf.mxu0
      %3028 = vdwg.mxu0
      %v3029 = vadd.f32 %v2635, %v2871
      %v3030 = vadd.f32 %v2636, %v2876
      %v3031 = vadd.f32 %v2637, %v2881
      %v3032 = vadd.f32 %v2638, %v2886
      %v3033 = vadd.f32 %v2639, %v2891
      %v3034 = vadd.f32 %v2640, %v2896
      %v3035 = vadd.f32 %v2641, %v2901
      %v3036 = vadd.f32 %v2642, %v2906
      %v3037 = vadd.f32 %v2643, %v2911
      %v3038 = vadd.f32 %v2644, %v2916
      %v3039 = vadd.f32 %v2645, %v2921
      %v3040 = vadd.f32 %v2646, %v2926
      %v3041 = vadd.f32 %v2647, %v2931
      %v3042 = vadd.f32 %v2648, %v2936
      %v3043 = vadd.f32 %v2649, %v2941
      %v3044 = vadd.f32 %v2650, %v2946
      %v3045 = vadd.f32 %v2651, %v2951
      %v3046 = vadd.f32 %v2652, %v2956
      %v3047 = vadd.f32 %v2653, %v2961
      %v3048 = vadd.f32 %v2654, %v2966
      %v3049 = vadd.f32 %v2655, %v2971
      %v3050 = vadd.f32 %v2656, %v2976
      %v3051 = vadd.f32 %v2657, %v2981
      %v3052 = vadd.f32 %v2658, %v2986
      %v3053 = vadd.f32 %v2659, %v2991
      %v3054 = vadd.f32 %v2660, %v2996
      %v3055 = vadd.f32 %v2661, %v3001
      %v3056 = vadd.f32 %v2662, %v3006
      %v3057 = vadd.f32 %v2663, %v3011
      %v3058 = vadd.f32 %v2664, %v3016
      %v3059 = vadd.f32 %v2665, %v3021
      %v3060 = vadd.f32 %v2666, %v3026
      %s3061 = scalar_lea.vmem %s1, 20
      %v3062 = vld [vmem:[%s3061] sm:$0xf]
      %v3064 = vsel %vm258, %v2699, 0
      %v3067 = vsel %vm258, %v2700, 0
      %v3070 = vsel %vm1006, %v3062, 0
      %3072 = vmatprep.subr.mxu0 0.0
      %3073 = vmatpush1.msra.mxu0 0.0
      %3074 = vmatprep.subr.mxu0 0.0
      %3075 = vmatpush1.msra.mxu0 0.0
      %3076 = vmatprep.subr.mxu0 0.0
      %3077 = vmatpush1.msra.mxu0 0.0
      %3078 = vmatprep.subr.mxu0 0.0
      %3079 = vmatpush1.msra.mxu0 0.0
      %3080 = vmatprep.subr.mxu0 0.0
      %3081 = vmatpush1.msra.mxu0 0.0
      %3082 = vmatprep.subr.mxu0 0.0
      %3083 = vmatpush1.msra.mxu0 0.0
      %3084 = vmatprep.subr.mxu0 0.0
      %3085 = vmatpush1.msra.mxu0 0.0
      %3086 = vmatprep.subr.mxu0 0.0
      %3087 = vmatpush1.msra.mxu0 0.0
      %3088 = vmatprep.subr.mxu0 0.0
      %3089 = vmatpush1.msra.mxu0 0.0
      %3090 = vmatprep.subr.mxu0 0.0
      %3091 = vmatpush1.msra.mxu0 0.0
      %3092 = vmatprep.subr.mxu0 0.0
      %3093 = vmatpush1.msra.mxu0 0.0
      %3094 = vmatprep.subr.mxu0 0.0
      %3095 = vmatpush1.msra.mxu0 0.0
      %3096 = vmatprep.subr.mxu0 0.0
      %3097 = vmatpush1.msra.mxu0 0.0
      %3098 = vmatprep.subr.mxu0 0.0
      %3099 = vmatpush1.msra.mxu0 0.0
      %3100 = vmatprep.subr.mxu0 0.0
      %3101 = vmatpush1.msra.mxu0 0.0
      %3102 = vmatprep.subr.mxu0 0.0
      %3103 = vmatpush1.msra.mxu0 %v3070
      %3104 = vmatprep.subr.mxu0 0.0
      %3105 = vmatpush2.msra.mxu0 0.0
      %3106 = vmatprep.subr.mxu0 0.0
      %3107 = vmatpush2.msra.mxu0 0.0
      %3108 = vmatprep.subr.mxu0 0.0
      %3109 = vmatpush2.msra.mxu0 0.0
      %3110 = vmatprep.subr.mxu0 0.0
      %3111 = vmatpush2.msra.mxu0 0.0
      %3112 = vmatprep.subr.mxu0 0.0
      %3113 = vmatpush2.msra.mxu0 0.0
      %3114 = vmatprep.subr.mxu0 0.0
      %3115 = vmatpush2.msra.mxu0 0.0
      %3116 = vmatprep.subr.mxu0 0.0
      %3117 = vmatpush2.msra.mxu0 0.0
      %3118 = vmatprep.subr.mxu0 0.0
      %3119 = vmatpush2.msra.mxu0 0.0
      %3120 = vmatprep.subr.mxu0 0.0
      %3121 = vmatpush2.msra.mxu0 0.0
      %3122 = vmatprep.subr.mxu0 0.0
      %3123 = vmatpush2.msra.mxu0 0.0
      %3124 = vmatprep.subr.mxu0 0.0
      %3125 = vmatpush2.msra.mxu0 0.0
      %3126 = vmatprep.subr.mxu0 0.0
      %3127 = vmatpush2.msra.mxu0 0.0
      %3128 = vmatprep.subr.mxu0 0.0
      %3129 = vmatpush2.msra.mxu0 0.0
      %3130 = vmatprep.subr.mxu0 0.0
      %3131 = vmatpush2.msra.mxu0 0.0
      %3132 = vmatprep.subr.mxu0 0.0
      %3133 = vmatpush2.msra.mxu0 0.0
      %3134 = vmatprep.subr.mxu0 0.0
      %3135 = vmatpush2.msra.mxu0 0.0
      %3136 = vmatprep.mubr.f32.mxu0 0.0
      %3137 = vmatmul.mubr.f32.gmra.mxu0 %v2712
      %v3138 = vpop.f32.mrf.mxu0
      %v3139 = vadd.f32 0.0, %v3138
      %v3140 = vpop.f32.mrf.mxu0
      %3141 = vmatprep.mubr.f32.mxu0 0.0
      %3142 = vmatmul.mubr.f32.gmra.mxu0 %v2715
      %v3143 = vpop.f32.mrf.mxu0
      %v3144 = vadd.f32 0.0, %v3143
      %v3145 = vpop.f32.mrf.mxu0
      %3146 = vmatprep.mubr.f32.mxu0 0.0
      %3147 = vmatmul.mubr.f32.gmra.mxu0 %v2718
      %v3148 = vpop.f32.mrf.mxu0
      %v3149 = vadd.f32 0.0, %v3148
      %v3150 = vpop.f32.mrf.mxu0
      %3151 = vmatprep.mubr.f32.mxu0 0.0
      %3152 = vmatmul.mubr.f32.gmra.mxu0 %v2721
      %v3153 = vpop.f32.mrf.mxu0
      %v3154 = vadd.f32 0.0, %v3153
      %v3155 = vpop.f32.mrf.mxu0
      %3156 = vmatprep.mubr.f32.mxu0 0.0
      %3157 = vmatmul.mubr.f32.gmra.mxu0 %v2724
      %v3158 = vpop.f32.mrf.mxu0
      %v3159 = vadd.f32 0.0, %v3158
      %v3160 = vpop.f32.mrf.mxu0
      %3161 = vmatprep.mubr.f32.mxu0 0.0
      %3162 = vmatmul.mubr.f32.gmra.mxu0 %v2727
      %v3163 = vpop.f32.mrf.mxu0
      %v3164 = vadd.f32 0.0, %v3163
      %v3165 = vpop.f32.mrf.mxu0
      %3166 = vmatprep.mubr.f32.mxu0 0.0
      %3167 = vmatmul.mubr.f32.gmra.mxu0 %v2730
      %v3168 = vpop.f32.mrf.mxu0
      %v3169 = vadd.f32 0.0, %v3168
      %v3170 = vpop.f32.mrf.mxu0
      %3171 = vmatprep.mubr.f32.mxu0 0.0
      %3172 = vmatmul.mubr.f32.gmra.mxu0 %v2733
      %v3173 = vpop.f32.mrf.mxu0
      %v3174 = vadd.f32 0.0, %v3173
      %v3175 = vpop.f32.mrf.mxu0
      %3176 = vmatprep.mubr.f32.mxu0 0.0
      %3177 = vmatmul.mubr.f32.gmra.mxu0 %v2736
      %v3178 = vpop.f32.mrf.mxu0
      %v3179 = vadd.f32 0.0, %v3178
      %v3180 = vpop.f32.mrf.mxu0
      %3181 = vmatprep.mubr.f32.mxu0 0.0
      %3182 = vmatmul.mubr.f32.gmra.mxu0 %v2739
      %v3183 = vpop.f32.mrf.mxu0
      %v3184 = vadd.f32 0.0, %v3183
      %v3185 = vpop.f32.mrf.mxu0
      %3186 = vmatprep.mubr.f32.mxu0 0.0
      %3187 = vmatmul.mubr.f32.gmra.mxu0 %v2742
      %v3188 = vpop.f32.mrf.mxu0
      %v3189 = vadd.f32 0.0, %v3188
      %v3190 = vpop.f32.mrf.mxu0
      %3191 = vmatprep.mubr.f32.mxu0 0.0
      %3192 = vmatmul.mubr.f32.gmra.mxu0 %v2745
      %v3193 = vpop.f32.mrf.mxu0
      %v3194 = vadd.f32 0.0, %v3193
      %v3195 = vpop.f32.mrf.mxu0
      %3196 = vmatprep.mubr.f32.mxu0 0.0
      %3197 = vmatmul.mubr.f32.gmra.mxu0 %v2748
      %v3198 = vpop.f32.mrf.mxu0
      %v3199 = vadd.f32 0.0, %v3198
      %v3200 = vpop.f32.mrf.mxu0
      %3201 = vmatprep.mubr.f32.mxu0 0.0
      %3202 = vmatmul.mubr.f32.gmra.mxu0 %v2751
      %v3203 = vpop.f32.mrf.mxu0
      %v3204 = vadd.f32 0.0, %v3203
      %v3205 = vpop.f32.mrf.mxu0
      %3206 = vmatprep.mubr.f32.mxu0 0.0
      %3207 = vmatmul.mubr.f32.gmra.mxu0 %v2754
      %v3208 = vpop.f32.mrf.mxu0
      %v3209 = vadd.f32 0.0, %v3208
      %v3210 = vpop.f32.mrf.mxu0
      %3211 = vmatprep.mubr.f32.mxu0 0.0
      %3212 = vmatmul.mubr.f32.gmra.mxu0 %v2757
      %v3213 = vpop.f32.mrf.mxu0
      %v3214 = vadd.f32 0.0, %v3213
      %v3215 = vpop.f32.mrf.mxu0
      %3216 = vmatprep.mubr.f32.mxu0 0.0
      %3217 = vmatmul.mubr.f32.gmra.mxu0 %v2760
      %v3218 = vpop.f32.mrf.mxu0
      %v3219 = vadd.f32 0.0, %v3218
      %v3220 = vpop.f32.mrf.mxu0
      %3221 = vmatprep.mubr.f32.mxu0 0.0
      %3222 = vmatmul.mubr.f32.gmra.mxu0 %v2763
      %v3223 = vpop.f32.mrf.mxu0
      %v3224 = vadd.f32 0.0, %v3223
      %v3225 = vpop.f32.mrf.mxu0
      %3226 = vmatprep.mubr.f32.mxu0 0.0
      %3227 = vmatmul.mubr.f32.gmra.mxu0 %v2766
      %v3228 = vpop.f32.mrf.mxu0
      %v3229 = vadd.f32 0.0, %v3228
      %v3230 = vpop.f32.mrf.mxu0
      %3231 = vmatprep.mubr.f32.mxu0 0.0
      %3232 = vmatmul.mubr.f32.gmra.mxu0 %v2769
      %v3233 = vpop.f32.mrf.mxu0
      %v3234 = vadd.f32 0.0, %v3233
      %v3235 = vpop.f32.mrf.mxu0
      %3236 = vmatprep.mubr.f32.mxu0 0.0
      %3237 = vmatmul.mubr.f32.gmra.mxu0 %v2772
      %v3238 = vpop.f32.mrf.mxu0
      %v3239 = vadd.f32 0.0, %v3238
      %v3240 = vpop.f32.mrf.mxu0
      %3241 = vmatprep.mubr.f32.mxu0 0.0
      %3242 = vmatmul.mubr.f32.gmra.mxu0 %v2775
      %v3243 = vpop.f32.mrf.mxu0
      %v3244 = vadd.f32 0.0, %v3243
      %v3245 = vpop.f32.mrf.mxu0
      %3246 = vmatprep.mubr.f32.mxu0 0.0
      %3247 = vmatmul.mubr.f32.gmra.mxu0 %v2778
      %v3248 = vpop.f32.mrf.mxu0
      %v3249 = vadd.f32 0.0, %v3248
      %v3250 = vpop.f32.mrf.mxu0
      %3251 = vmatprep.mubr.f32.mxu0 0.0
      %3252 = vmatmul.mubr.f32.gmra.mxu0 %v2781
      %v3253 = vpop.f32.mrf.mxu0
      %v3254 = vadd.f32 0.0, %v3253
      %v3255 = vpop.f32.mrf.mxu0
      %3256 = vmatprep.mubr.f32.mxu0 0.0
      %3257 = vmatmul.mubr.f32.gmra.mxu0 %v2784
      %v3258 = vpop.f32.mrf.mxu0
      %v3259 = vadd.f32 0.0, %v3258
      %v3260 = vpop.f32.mrf.mxu0
      %3261 = vmatprep.mubr.f32.mxu0 0.0
      %3262 = vmatmul.mubr.f32.gmra.mxu0 %v2787
      %v3263 = vpop.f32.mrf.mxu0
      %v3264 = vadd.f32 0.0, %v3263
      %v3265 = vpop.f32.mrf.mxu0
      %3266 = vmatprep.mubr.f32.mxu0 0.0
      %3267 = vmatmul.mubr.f32.gmra.mxu0 %v2790
      %v3268 = vpop.f32.mrf.mxu0
      %v3269 = vadd.f32 0.0, %v3268
      %v3270 = vpop.f32.mrf.mxu0
      %3271 = vmatprep.mubr.f32.mxu0 0.0
      %3272 = vmatmul.mubr.f32.gmra.mxu0 %v2793
      %v3273 = vpop.f32.mrf.mxu0
      %v3274 = vadd.f32 0.0, %v3273
      %v3275 = vpop.f32.mrf.mxu0
      %3276 = vmatprep.mubr.f32.mxu0 0.0
      %3277 = vmatmul.mubr.f32.gmra.mxu0 %v2796
      %v3278 = vpop.f32.mrf.mxu0
      %v3279 = vadd.f32 0.0, %v3278
      %v3280 = vpop.f32.mrf.mxu0
      %3281 = vmatprep.mubr.f32.mxu0 0.0
      %3282 = vmatmul.mubr.f32.gmra.mxu0 %v2799
      %v3283 = vpop.f32.mrf.mxu0
      %v3284 = vadd.f32 0.0, %v3283
      %v3285 = vpop.f32.mrf.mxu0
      %3286 = vmatprep.mubr.f32.mxu0 0.0
      %3287 = vmatmul.mubr.f32.gmra.mxu0 %v3064
      %v3288 = vpop.f32.mrf.mxu0
      %v3289 = vadd.f32 0.0, %v3288
      %v3290 = vpop.f32.mrf.mxu0
      %3291 = vmatprep.mubr.f32.mxu0 0.0
      %3292 = vmatmul.mubr.f32.gmra.mxu0 %v3067
      %v3293 = vpop.f32.mrf.mxu0
      %v3294 = vadd.f32 0.0, %v3293
      %v3295 = vpop.f32.mrf.mxu0
      %3296 = vdwg.mxu0
      %v3297 = vadd.f32 %v3029, %v3139
      %v3298 = vadd.f32 %v3030, %v3144
      %v3299 = vadd.f32 %v3031, %v3149
      %v3300 = vadd.f32 %v3032, %v3154
      %v3301 = vadd.f32 %v3033, %v3159
      %v3302 = vadd.f32 %v3034, %v3164
      %v3303 = vadd.f32 %v3035, %v3169
      %v3304 = vadd.f32 %v3036, %v3174
      %v3305 = vadd.f32 %v3037, %v3179
      %v3306 = vadd.f32 %v3038, %v3184
      %v3307 = vadd.f32 %v3039, %v3189
      %v3308 = vadd.f32 %v3040, %v3194
      %v3309 = vadd.f32 %v3041, %v3199
      %v3310 = vadd.f32 %v3042, %v3204
      %v3311 = vadd.f32 %v3043, %v3209
      %v3312 = vadd.f32 %v3044, %v3214
      %v3313 = vadd.f32 %v3045, %v3219
      %v3314 = vadd.f32 %v3046, %v3224
      %v3315 = vadd.f32 %v3047, %v3229
      %v3316 = vadd.f32 %v3048, %v3234
      %v3317 = vadd.f32 %v3049, %v3239
      %v3318 = vadd.f32 %v3050, %v3244
      %v3319 = vadd.f32 %v3051, %v3249
      %v3320 = vadd.f32 %v3052, %v3254
      %v3321 = vadd.f32 %v3053, %v3259
      %v3322 = vadd.f32 %v3054, %v3264
      %v3323 = vadd.f32 %v3055, %v3269
      %v3324 = vadd.f32 %v3056, %v3274
      %v3325 = vadd.f32 %v3057, %v3279
      %v3326 = vadd.f32 %v3058, %v3284
      %v3327 = vadd.f32 %v3059, %v3289
      %v3328 = vadd.f32 %v3060, %v3294
      %s3329 = scalar_lea.vmem %s1, 32
      %v3330 = vld [vmem:[%s3329] sm:$0xf]
      %v3332 = vsel %vm258, %v2701, 0
      %v3335 = vsel %vm258, %v2702, 0
      %v3338 = vsel %vm1006, %v3330, 0
      %3340 = vmatprep.subr.mxu0 0.0
      %3341 = vmatpush1.msra.mxu0 0.0
      %3342 = vmatprep.subr.mxu0 0.0
      %3343 = vmatpush1.msra.mxu0 0.0
      %3344 = vmatprep.subr.mxu0 0.0
      %3345 = vmatpush1.msra.mxu0 0.0
      %3346 = vmatprep.subr.mxu0 0.0
      %3347 = vmatpush1.msra.mxu0 0.0
      %3348 = vmatprep.subr.mxu0 0.0
      %3349 = vmatpush1.msra.mxu0 0.0
      %3350 = vmatprep.subr.mxu0 0.0
      %3351 = vmatpush1.msra.mxu0 0.0
      %3352 = vmatprep.subr.mxu0 0.0
      %3353 = vmatpush1.msra.mxu0 0.0
      %3354 = vmatprep.subr.mxu0 0.0
      %3355 = vmatpush1.msra.mxu0 0.0
      %3356 = vmatprep.subr.mxu0 0.0
      %3357 = vmatpush1.msra.mxu0 0.0
      %3358 = vmatprep.subr.mxu0 0.0
      %3359 = vmatpush1.msra.mxu0 0.0
      %3360 = vmatprep.subr.mxu0 0.0
      %3361 = vmatpush1.msra.mxu0 0.0
      %3362 = vmatprep.subr.mxu0 0.0
      %3363 = vmatpush1.msra.mxu0 0.0
      %3364 = vmatprep.subr.mxu0 0.0
      %3365 = vmatpush1.msra.mxu0 0.0
      %3366 = vmatprep.subr.mxu0 0.0
      %3367 = vmatpush1.msra.mxu0 0.0
      %3368 = vmatprep.subr.mxu0 0.0
      %3369 = vmatpush1.msra.mxu0 0.0
      %3370 = vmatprep.subr.mxu0 0.0
      %3371 = vmatpush1.msra.mxu0 %v3338
      %3372 = vmatprep.subr.mxu0 0.0
      %3373 = vmatpush2.msra.mxu0 0.0
      %3374 = vmatprep.subr.mxu0 0.0
      %3375 = vmatpush2.msra.mxu0 0.0
      %3376 = vmatprep.subr.mxu0 0.0
      %3377 = vmatpush2.msra.mxu0 0.0
      %3378 = vmatprep.subr.mxu0 0.0
      %3379 = vmatpush2.msra.mxu0 0.0
      %3380 = vmatprep.subr.mxu0 0.0
      %3381 = vmatpush2.msra.mxu0 0.0
      %3382 = vmatprep.subr.mxu0 0.0
      %3383 = vmatpush2.msra.mxu0 0.0
      %3384 = vmatprep.subr.mxu0 0.0
      %3385 = vmatpush2.msra.mxu0 0.0
      %3386 = vmatprep.subr.mxu0 0.0
      %3387 = vmatpush2.msra.mxu0 0.0
      %3388 = vmatprep.subr.mxu0 0.0
      %3389 = vmatpush2.msra.mxu0 0.0
      %3390 = vmatprep.subr.mxu0 0.0
      %3391 = vmatpush2.msra.mxu0 0.0
      %3392 = vmatprep.subr.mxu0 0.0
      %3393 = vmatpush2.msra.mxu0 0.0
      %3394 = vmatprep.subr.mxu0 0.0
      %3395 = vmatpush2.msra.mxu0 0.0
      %3396 = vmatprep.subr.mxu0 0.0
      %3397 = vmatpush2.msra.mxu0 0.0
      %3398 = vmatprep.subr.mxu0 0.0
      %3399 = vmatpush2.msra.mxu0 0.0
      %3400 = vmatprep.subr.mxu0 0.0
      %3401 = vmatpush2.msra.mxu0 0.0
      %3402 = vmatprep.subr.mxu0 0.0
      %3403 = vmatpush2.msra.mxu0 0.0
      %3404 = vmatprep.mubr.f32.mxu0 0.0
      %3405 = vmatmul.mubr.f32.gmra.mxu0 %v2718
      %v3406 = vpop.f32.mrf.mxu0
      %v3407 = vadd.f32 0.0, %v3406
      %v3408 = vpop.f32.mrf.mxu0
      %3409 = vmatprep.mubr.f32.mxu0 0.0
      %3410 = vmatmul.mubr.f32.gmra.mxu0 %v2721
      %v3411 = vpop.f32.mrf.mxu0
      %v3412 = vadd.f32 0.0, %v3411
      %v3413 = vpop.f32.mrf.mxu0
      %3414 = vmatprep.mubr.f32.mxu0 0.0
      %3415 = vmatmul.mubr.f32.gmra.mxu0 %v2724
      %v3416 = vpop.f32.mrf.mxu0
      %v3417 = vadd.f32 0.0, %v3416
      %v3418 = vpop.f32.mrf.mxu0
      %3419 = vmatprep.mubr.f32.mxu0 0.0
      %3420 = vmatmul.mubr.f32.gmra.mxu0 %v2727
      %v3421 = vpop.f32.mrf.mxu0
      %v3422 = vadd.f32 0.0, %v3421
      %v3423 = vpop.f32.mrf.mxu0
      %3424 = vmatprep.mubr.f32.mxu0 0.0
      %3425 = vmatmul.mubr.f32.gmra.mxu0 %v2730
      %v3426 = vpop.f32.mrf.mxu0
      %v3427 = vadd.f32 0.0, %v3426
      %v3428 = vpop.f32.mrf.mxu0
      %3429 = vmatprep.mubr.f32.mxu0 0.0
      %3430 = vmatmul.mubr.f32.gmra.mxu0 %v2733
      %v3431 = vpop.f32.mrf.mxu0
      %v3432 = vadd.f32 0.0, %v3431
      %v3433 = vpop.f32.mrf.mxu0
      %3434 = vmatprep.mubr.f32.mxu0 0.0
      %3435 = vmatmul.mubr.f32.gmra.mxu0 %v2736
      %v3436 = vpop.f32.mrf.mxu0
      %v3437 = vadd.f32 0.0, %v3436
      %v3438 = vpop.f32.mrf.mxu0
      %3439 = vmatprep.mubr.f32.mxu0 0.0
      %3440 = vmatmul.mubr.f32.gmra.mxu0 %v2739
      %v3441 = vpop.f32.mrf.mxu0
      %v3442 = vadd.f32 0.0, %v3441
      %v3443 = vpop.f32.mrf.mxu0
      %3444 = vmatprep.mubr.f32.mxu0 0.0
      %3445 = vmatmul.mubr.f32.gmra.mxu0 %v2742
      %v3446 = vpop.f32.mrf.mxu0
      %v3447 = vadd.f32 0.0, %v3446
      %v3448 = vpop.f32.mrf.mxu0
      %3449 = vmatprep.mubr.f32.mxu0 0.0
      %3450 = vmatmul.mubr.f32.gmra.mxu0 %v2745
      %v3451 = vpop.f32.mrf.mxu0
      %v3452 = vadd.f32 0.0, %v3451
      %v3453 = vpop.f32.mrf.mxu0
      %3454 = vmatprep.mubr.f32.mxu0 0.0
      %3455 = vmatmul.mubr.f32.gmra.mxu0 %v2748
      %v3456 = vpop.f32.mrf.mxu0
      %v3457 = vadd.f32 0.0, %v3456
      %v3458 = vpop.f32.mrf.mxu0
      %3459 = vmatprep.mubr.f32.mxu0 0.0
      %3460 = vmatmul.mubr.f32.gmra.mxu0 %v2751
      %v3461 = vpop.f32.mrf.mxu0
      %v3462 = vadd.f32 0.0, %v3461
      %v3463 = vpop.f32.mrf.mxu0
      %3464 = vmatprep.mubr.f32.mxu0 0.0
      %3465 = vmatmul.mubr.f32.gmra.mxu0 %v2754
      %v3466 = vpop.f32.mrf.mxu0
      %v3467 = vadd.f32 0.0, %v3466
      %v3468 = vpop.f32.mrf.mxu0
      %3469 = vmatprep.mubr.f32.mxu0 0.0
      %3470 = vmatmul.mubr.f32.gmra.mxu0 %v2757
      %v3471 = vpop.f32.mrf.mxu0
      %v3472 = vadd.f32 0.0, %v3471
      %v3473 = vpop.f32.mrf.mxu0
      %3474 = vmatprep.mubr.f32.mxu0 0.0
      %3475 = vmatmul.mubr.f32.gmra.mxu0 %v2760
      %v3476 = vpop.f32.mrf.mxu0
      %v3477 = vadd.f32 0.0, %v3476
      %v3478 = vpop.f32.mrf.mxu0
      %3479 = vmatprep.mubr.f32.mxu0 0.0
      %3480 = vmatmul.mubr.f32.gmra.mxu0 %v2763
      %v3481 = vpop.f32.mrf.mxu0
      %v3482 = vadd.f32 0.0, %v3481
      %v3483 = vpop.f32.mrf.mxu0
      %3484 = vmatprep.mubr.f32.mxu0 0.0
      %3485 = vmatmul.mubr.f32.gmra.mxu0 %v2766
      %v3486 = vpop.f32.mrf.mxu0
      %v3487 = vadd.f32 0.0, %v3486
      %v3488 = vpop.f32.mrf.mxu0
      %3489 = vmatprep.mubr.f32.mxu0 0.0
      %3490 = vmatmul.mubr.f32.gmra.mxu0 %v2769
      %v3491 = vpop.f32.mrf.mxu0
      %v3492 = vadd.f32 0.0, %v3491
      %v3493 = vpop.f32.mrf.mxu0
      %3494 = vmatprep.mubr.f32.mxu0 0.0
      %3495 = vmatmul.mubr.f32.gmra.mxu0 %v2772
      %v3496 = vpop.f32.mrf.mxu0
      %v3497 = vadd.f32 0.0, %v3496
      %v3498 = vpop.f32.mrf.mxu0
      %3499 = vmatprep.mubr.f32.mxu0 0.0
      %3500 = vmatmul.mubr.f32.gmra.mxu0 %v2775
      %v3501 = vpop.f32.mrf.mxu0
      %v3502 = vadd.f32 0.0, %v3501
      %v3503 = vpop.f32.mrf.mxu0
      %3504 = vmatprep.mubr.f32.mxu0 0.0
      %3505 = vmatmul.mubr.f32.gmra.mxu0 %v2778
      %v3506 = vpop.f32.mrf.mxu0
      %v3507 = vadd.f32 0.0, %v3506
      %v3508 = vpop.f32.mrf.mxu0
      %3509 = vmatprep.mubr.f32.mxu0 0.0
      %3510 = vmatmul.mubr.f32.gmra.mxu0 %v2781
      %v3511 = vpop.f32.mrf.mxu0
      %v3512 = vadd.f32 0.0, %v3511
      %v3513 = vpop.f32.mrf.mxu0
      %3514 = vmatprep.mubr.f32.mxu0 0.0
      %3515 = vmatmul.mubr.f32.gmra.mxu0 %v2784
      %v3516 = vpop.f32.mrf.mxu0
      %v3517 = vadd.f32 0.0, %v3516
      %v3518 = vpop.f32.mrf.mxu0
      %3519 = vmatprep.mubr.f32.mxu0 0.0
      %3520 = vmatmul.mubr.f32.gmra.mxu0 %v2787
      %v3521 = vpop.f32.mrf.mxu0
      %v3522 = vadd.f32 0.0, %v3521
      %v3523 = vpop.f32.mrf.mxu0
      %3524 = vmatprep.mubr.f32.mxu0 0.0
      %3525 = vmatmul.mubr.f32.gmra.mxu0 %v2790
      %v3526 = vpop.f32.mrf.mxu0
      %v3527 = vadd.f32 0.0, %v3526
      %v3528 = vpop.f32.mrf.mxu0
      %3529 = vmatprep.mubr.f32.mxu0 0.0
      %3530 = vmatmul.mubr.f32.gmra.mxu0 %v2793
      %v3531 = vpop.f32.mrf.mxu0
      %v3532 = vadd.f32 0.0, %v3531
      %v3533 = vpop.f32.mrf.mxu0
      %3534 = vmatprep.mubr.f32.mxu0 0.0
      %3535 = vmatmul.mubr.f32.gmra.mxu0 %v2796
      %v3536 = vpop.f32.mrf.mxu0
      %v3537 = vadd.f32 0.0, %v3536
      %v3538 = vpop.f32.mrf.mxu0
      %3539 = vmatprep.mubr.f32.mxu0 0.0
      %3540 = vmatmul.mubr.f32.gmra.mxu0 %v2799
      %v3541 = vpop.f32.mrf.mxu0
      %v3542 = vadd.f32 0.0, %v3541
      %v3543 = vpop.f32.mrf.mxu0
      %3544 = vmatprep.mubr.f32.mxu0 0.0
      %3545 = vmatmul.mubr.f32.gmra.mxu0 %v3064
      %v3546 = vpop.f32.mrf.mxu0
      %v3547 = vadd.f32 0.0, %v3546
      %v3548 = vpop.f32.mrf.mxu0
      %3549 = vmatprep.mubr.f32.mxu0 0.0
      %3550 = vmatmul.mubr.f32.gmra.mxu0 %v3067
      %v3551 = vpop.f32.mrf.mxu0
      %v3552 = vadd.f32 0.0, %v3551
      %v3553 = vpop.f32.mrf.mxu0
      %3554 = vmatprep.mubr.f32.mxu0 0.0
      %3555 = vmatmul.mubr.f32.gmra.mxu0 %v3332
      %v3556 = vpop.f32.mrf.mxu0
      %v3557 = vadd.f32 0.0, %v3556
      %v3558 = vpop.f32.mrf.mxu0
      %3559 = vmatprep.mubr.f32.mxu0 0.0
      %3560 = vmatmul.mubr.f32.gmra.mxu0 %v3335
      %v3561 = vpop.f32.mrf.mxu0
      %v3562 = vadd.f32 0.0, %v3561
      %v3563 = vpop.f32.mrf.mxu0
      %3564 = vdwg.mxu0
      %v3565 = vadd.f32 %v3297, %v3407
      %v3566 = vadd.f32 %v3298, %v3412
      %v3567 = vadd.f32 %v3299, %v3417
      %v3568 = vadd.f32 %v3300, %v3422
      %v3569 = vadd.f32 %v3301, %v3427
      %v3570 = vadd.f32 %v3302, %v3432
      %v3571 = vadd.f32 %v3303, %v3437
      %v3572 = vadd.f32 %v3304, %v3442
      %v3573 = vadd.f32 %v3305, %v3447
      %v3574 = vadd.f32 %v3306, %v3452
      %v3575 = vadd.f32 %v3307, %v3457
      %v3576 = vadd.f32 %v3308, %v3462
      %v3577 = vadd.f32 %v3309, %v3467
      %v3578 = vadd.f32 %v3310, %v3472
      %v3579 = vadd.f32 %v3311, %v3477
      %v3580 = vadd.f32 %v3312, %v3482
      %v3581 = vadd.f32 %v3313, %v3487
      %v3582 = vadd.f32 %v3314, %v3492
      %v3583 = vadd.f32 %v3315, %v3497
      %v3584 = vadd.f32 %v3316, %v3502
      %v3585 = vadd.f32 %v3317, %v3507
      %v3586 = vadd.f32 %v3318, %v3512
      %v3587 = vadd.f32 %v3319, %v3517
      %v3588 = vadd.f32 %v3320, %v3522
      %v3589 = vadd.f32 %v3321, %v3527
      %v3590 = vadd.f32 %v3322, %v3532
      %v3591 = vadd.f32 %v3323, %v3537
      %v3592 = vadd.f32 %v3324, %v3542
      %v3593 = vadd.f32 %v3325, %v3547
      %v3594 = vadd.f32 %v3326, %v3552
      %v3595 = vadd.f32 %v3327, %v3557
      %v3596 = vadd.f32 %v3328, %v3562
      %v3597 = vld [vmem:[%s2] sm:$0x1]
      %v3599 = vlaneseq
      %v3600 = vshrl.u32 %v3599, 7
      %v3601 = vsub.s32 0, %v3600
      %v3602 = vrot.slane %v3597, %v3601
      %v3604 = vadd.f32 %v3565, %v3602
      %v3605 = vadd.f32 %v3566, %v3602
      %v3606 = vadd.f32 %v3567, %v3602
      %v3607 = vadd.f32 %v3568, %v3602
      %v3608 = vadd.f32 %v3569, %v3602
      %v3609 = vadd.f32 %v3570, %v3602
      %v3610 = vadd.f32 %v3571, %v3602
      %v3611 = vadd.f32 %v3572, %v3602
      %v3612 = vadd.f32 %v3573, %v3602
      %v3613 = vadd.f32 %v3574, %v3602
      %v3614 = vadd.f32 %v3575, %v3602
      %v3615 = vadd.f32 %v3576, %v3602
      %v3616 = vadd.f32 %v3577, %v3602
      %v3617 = vadd.f32 %v3578, %v3602
      %v3618 = vadd.f32 %v3579, %v3602
      %v3619 = vadd.f32 %v3580, %v3602
      %v3620 = vadd.f32 %v3581, %v3602
      %v3621 = vadd.f32 %v3582, %v3602
      %v3622 = vadd.f32 %v3583, %v3602
      %v3623 = vadd.f32 %v3584, %v3602
      %v3624 = vadd.f32 %v3585, %v3602
      %v3625 = vadd.f32 %v3586, %v3602
      %v3626 = vadd.f32 %v3587, %v3602
      %v3627 = vadd.f32 %v3588, %v3602
      %v3628 = vadd.f32 %v3589, %v3602
      %v3629 = vadd.f32 %v3590, %v3602
      %v3630 = vadd.f32 %v3591, %v3602
      %v3631 = vadd.f32 %v3592, %v3602
      %v3632 = vadd.f32 %v3593, %v3602
      %v3633 = vadd.f32 %v3594, %v3602
      %v3634 = vadd.f32 %v3595, %v3602
      %v3635 = vadd.f32 %v3596, %v3602
      %v3636 = vmax.f32 %v3604, 0.0
      %v3637 = vmax.f32 %v3605, 0.0
      %v3638 = vmax.f32 %v3606, 0.0
      %v3639 = vmax.f32 %v3607, 0.0
      %v3640 = vmax.f32 %v3608, 0.0
      %v3641 = vmax.f32 %v3609, 0.0
      %v3642 = vmax.f32 %v3610, 0.0
      %v3643 = vmax.f32 %v3611, 0.0
      %v3644 = vmax.f32 %v3612, 0.0
      %v3645 = vmax.f32 %v3613, 0.0
      %v3646 = vmax.f32 %v3614, 0.0
      %v3647 = vmax.f32 %v3615, 0.0
      %v3648 = vmax.f32 %v3616, 0.0
      %v3649 = vmax.f32 %v3617, 0.0
      %v3650 = vmax.f32 %v3618, 0.0
      %v3651 = vmax.f32 %v3619, 0.0
      %v3652 = vmax.f32 %v3620, 0.0
      %v3653 = vmax.f32 %v3621, 0.0
      %v3654 = vmax.f32 %v3622, 0.0
      %v3655 = vmax.f32 %v3623, 0.0
      %v3656 = vmax.f32 %v3624, 0.0
      %v3657 = vmax.f32 %v3625, 0.0
      %v3658 = vmax.f32 %v3626, 0.0
      %v3659 = vmax.f32 %v3627, 0.0
      %v3660 = vmax.f32 %v3628, 0.0
      %v3661 = vmax.f32 %v3629, 0.0
      %v3662 = vmax.f32 %v3630, 0.0
      %v3663 = vmax.f32 %v3631, 0.0
      %v3664 = vmax.f32 %v3632, 0.0
      %v3665 = vmax.f32 %v3633, 0.0
      %v3666 = vmax.f32 %v3634, 0.0
      %v3667 = vmax.f32 %v3635, 0.0
      %3668 = vst.msk [vmem:[%s257 + $0x1] sm:$0xff] %vm258, %v3636
      %3669 = vst.msk [vmem:[%s257 + $0x9] sm:$0xff] %vm258, %v3637
      %3670 = vst.msk [vmem:[%s257 + $0x19] sm:$0xff] %vm258, %v3638
      %3671 = vst.msk [vmem:[%s257 + $0x21] sm:$0xff] %vm258, %v3639
      %3672 = vst.msk [vmem:[%s257 + $0x31] sm:$0xff] %vm258, %v3640
      %3673 = vst.msk [vmem:[%s257 + $0x39] sm:$0xff] %vm258, %v3641
      %3674 = vst.msk [vmem:[%s257 + $0x49] sm:$0xff] %vm258, %v3642
      %3675 = vst.msk [vmem:[%s257 + $0x51] sm:$0xff] %vm258, %v3643
      %3676 = vst.msk [vmem:[%s257 + $0x61] sm:$0xff] %vm258, %v3644
      %3677 = vst.msk [vmem:[%s257 + $0x69] sm:$0xff] %vm258, %v3645
      %3678 = vst.msk [vmem:[%s257 + $0x79] sm:$0xff] %vm258, %v3646
      %3679 = vst.msk [vmem:[%s257 + $0x81] sm:$0xff] %vm258, %v3647
      %3680 = vst.msk [vmem:[%s257 + $0x91] sm:$0xff] %vm258, %v3648
      %3681 = vst.msk [vmem:[%s257 + $0x99] sm:$0xff] %vm258, %v3649
      %3682 = vst.msk [vmem:[%s257 + $0xa9] sm:$0xff] %vm258, %v3650
      %3683 = vst.msk [vmem:[%s257 + $0xb1] sm:$0xff] %vm258, %v3651
      %3684 = vst.msk [vmem:[%s257 + $0xc1] sm:$0xff] %vm258, %v3652
      %3685 = vst.msk [vmem:[%s257 + $0xc9] sm:$0xff] %vm258, %v3653
      %3686 = vst.msk [vmem:[%s257 + $0xd9] sm:$0xff] %vm258, %v3654
      %3687 = vst.msk [vmem:[%s257 + $0xe1] sm:$0xff] %vm258, %v3655
      %3688 = vst.msk [vmem:[%s257 + $0xf1] sm:$0xff] %vm258, %v3656
      %3689 = vst.msk [vmem:[%s257 + $0xf9] sm:$0xff] %vm258, %v3657
      %3690 = vst.msk [vmem:[%s257 + $0x109] sm:$0xff] %vm258, %v3658
      %3691 = vst.msk [vmem:[%s257 + $0x111] sm:$0xff] %vm258, %v3659
      %3692 = vst.msk [vmem:[%s257 + $0x121] sm:$0xff] %vm258, %v3660
      %3693 = vst.msk [vmem:[%s257 + $0x129] sm:$0xff] %vm258, %v3661
      %3694 = vst.msk [vmem:[%s257 + $0x139] sm:$0xff] %vm258, %v3662
      %3695 = vst.msk [vmem:[%s257 + $0x141] sm:$0xff] %vm258, %v3663
      %3696 = vst.msk [vmem:[%s257 + $0x151] sm:$0xff] %vm258, %v3664
      %3697 = vst.msk [vmem:[%s257 + $0x159] sm:$0xff] %vm258, %v3665
      %3698 = vst.msk [vmem:[%s257 + $0x169] sm:$0xff] %vm258, %v3666
      %3699 = vst.msk [vmem:[%s257 + $0x171] sm:$0xff] %vm258, %v3667
      %3700 = vst.msk [vmem:[#allocation2 + $0x1] sm:$0xff] %vm258, %v3638
      %3701 = vst.msk [vmem:[#allocation2 + $0x9] sm:$0xff] %vm258, %v3639
      %3702 = vst.msk [vmem:[%s293 + $0x1] sm:$0xff] %vm258, %v3664
      %3703 = vst.msk [vmem:[%s293 + $0x9] sm:$0xff] %vm258, %v3665
      %v3704 = vld [vmem:[#allocation2 + $0x2] sm:$0x1]
      %v3705 = vld [vmem:[#allocation2 + $0x1a] sm:$0x1]
      %v3706 = vld [vmem:[#allocation2 + $0x32] sm:$0x1]
      %v3707 = vld [vmem:[#allocation2 + $0x4a] sm:$0x1]
      %v3708 = vld [vmem:[#allocation2 + $0x62] sm:$0x1]
      %v3709 = vld [vmem:[#allocation2 + $0x7a] sm:$0x1]
      %v3710 = vld [vmem:[#allocation2 + $0x92] sm:$0x1]
      %v3711 = vld [vmem:[#allocation2 + $0xaa] sm:$0x1]
      %v3712 = vld [vmem:[#allocation2 + $0xc2] sm:$0x1]
      %v3713 = vld [vmem:[#allocation2 + $0xda] sm:$0x1]
      %v3714 = vld [vmem:[#allocation2 + $0xf2] sm:$0x1]
      %v3715 = vld [vmem:[#allocation2 + $0x10a] sm:$0x1]
      %v3716 = vld [vmem:[#allocation2 + $0x122] sm:$0x1]
      %v3717 = vld [vmem:[#allocation2 + $0x13a] sm:$0x1]
      %v3718 = vld [vmem:[#allocation2 + $0x152] sm:$0x1]
      %v3719 = vld [vmem:[#allocation2 + $0x16a] sm:$0x1]
      %v3720 = vld [vmem:[#allocation2 + $0x182] sm:$0x1]
      %v3721 = vld [vmem:[#allocation2 + $0x19a] sm:$0x1]
      %3722 = vst.msk [vmem:[#allocation2] sm:$0x1] %vm314, %v3704
      %3723 = vst.msk [vmem:[#allocation2 + $0x18] sm:$0x1] %vm314, %v3705
      %3724 = vst.msk [vmem:[#allocation2 + $0x30] sm:$0x1] %vm314, %v3706
      %3725 = vst.msk [vmem:[#allocation2 + $0x48] sm:$0x1] %vm314, %v3707
      %3726 = vst.msk [vmem:[#allocation2 + $0x60] sm:$0x1] %vm314, %v3708
      %3727 = vst.msk [vmem:[#allocation2 + $0x78] sm:$0x1] %vm314, %v3709
      %3728 = vst.msk [vmem:[#allocation2 + $0x90] sm:$0x1] %vm314, %v3710
      %3729 = vst.msk [vmem:[#allocation2 + $0xa8] sm:$0x1] %vm314, %v3711
      %3730 = vst.msk [vmem:[#allocation2 + $0xc0] sm:$0x1] %vm314, %v3712
      %3731 = vst.msk [vmem:[#allocation2 + $0xd8] sm:$0x1] %vm314, %v3713
      %3732 = vst.msk [vmem:[#allocation2 + $0xf0] sm:$0x1] %vm314, %v3714
      %3733 = vst.msk [vmem:[#allocation2 + $0x108] sm:$0x1] %vm314, %v3715
      %3734 = vst.msk [vmem:[#allocation2 + $0x120] sm:$0x1] %vm314, %v3716
      %3735 = vst.msk [vmem:[#allocation2 + $0x138] sm:$0x1] %vm314, %v3717
      %3736 = vst.msk [vmem:[#allocation2 + $0x150] sm:$0x1] %vm314, %v3718
      %3737 = vst.msk [vmem:[#allocation2 + $0x168] sm:$0x1] %vm314, %v3719
      %3738 = vst.msk [vmem:[#allocation2 + $0x180] sm:$0x1] %vm314, %v3720
      %3739 = vst.msk [vmem:[#allocation2 + $0x198] sm:$0x1] %vm314, %v3721
      %v3740 = vld [vmem:[#allocation2 + $0xf] sm:$0x1]
      %v3741 = vld [vmem:[#allocation2 + $0x27] sm:$0x1]
      %v3742 = vld [vmem:[#allocation2 + $0x3f] sm:$0x1]
      %v3743 = vld [vmem:[#allocation2 + $0x57] sm:$0x1]
      %v3744 = vld [vmem:[#allocation2 + $0x6f] sm:$0x1]
      %v3745 = vld [vmem:[#allocation2 + $0x87] sm:$0x1]
      %v3746 = vld [vmem:[#allocation2 + $0x9f] sm:$0x1]
      %v3747 = vld [vmem:[#allocation2 + $0xb7] sm:$0x1]
      %v3748 = vld [vmem:[#allocation2 + $0xcf] sm:$0x1]
      %v3749 = vld [vmem:[#allocation2 + $0xe7] sm:$0x1]
      %v3750 = vld [vmem:[#allocation2 + $0xff] sm:$0x1]
      %v3751 = vld [vmem:[#allocation2 + $0x117] sm:$0x1]
      %v3752 = vld [vmem:[#allocation2 + $0x12f] sm:$0x1]
      %v3753 = vld [vmem:[#allocation2 + $0x147] sm:$0x1]
      %v3754 = vld [vmem:[#allocation2 + $0x15f] sm:$0x1]
      %v3755 = vld [vmem:[#allocation2 + $0x177] sm:$0x1]
      %v3756 = vld [vmem:[#allocation2 + $0x18f] sm:$0x1]
      %v3757 = vld [vmem:[#allocation2 + $0x1a7] sm:$0x1]
      %3758 = vst.msk [vmem:[#allocation2 + $0x11] sm:$0x1] %vm314, %v3740
      %3759 = vst.msk [vmem:[#allocation2 + $0x29] sm:$0x1] %vm314, %v3741
      %3760 = vst.msk [vmem:[#allocation2 + $0x41] sm:$0x1] %vm314, %v3742
      %3761 = vst.msk [vmem:[#allocation2 + $0x59] sm:$0x1] %vm314, %v3743
      %3762 = vst.msk [vmem:[#allocation2 + $0x71] sm:$0x1] %vm314, %v3744
      %3763 = vst.msk [vmem:[#allocation2 + $0x89] sm:$0x1] %vm314, %v3745
      %3764 = vst.msk [vmem:[#allocation2 + $0xa1] sm:$0x1] %vm314, %v3746
      %3765 = vst.msk [vmem:[#allocation2 + $0xb9] sm:$0x1] %vm314, %v3747
      %3766 = vst.msk [vmem:[#allocation2 + $0xd1] sm:$0x1] %vm314, %v3748
      %3767 = vst.msk [vmem:[#allocation2 + $0xe9] sm:$0x1] %vm314, %v3749
      %3768 = vst.msk [vmem:[#allocation2 + $0x101] sm:$0x1] %vm314, %v3750
      %3769 = vst.msk [vmem:[#allocation2 + $0x119] sm:$0x1] %vm314, %v3751
      %3770 = vst.msk [vmem:[#allocation2 + $0x131] sm:$0x1] %vm314, %v3752
      %3771 = vst.msk [vmem:[#allocation2 + $0x149] sm:$0x1] %vm314, %v3753
      %3772 = vst.msk [vmem:[#allocation2 + $0x161] sm:$0x1] %vm314, %v3754
      %3773 = vst.msk [vmem:[#allocation2 + $0x179] sm:$0x1] %vm314, %v3755
      %3774 = vst.msk [vmem:[#allocation2 + $0x191] sm:$0x1] %vm314, %v3756
      %3775 = vst.msk [vmem:[#allocation2 + $0x1a9] sm:$0x1] %vm314, %v3757
      %v3776 = vld [vmem:[#allocation2] sm:$0xff]
      %v3777 = vld [vmem:[#allocation2 + $0x8] sm:$0xff]
      %v3778 = vld [vmem:[#allocation2 + $0x10] sm:$0x3]
      %v3779 = vld [vmem:[#allocation2 + $0x18] sm:$0xff]
      %v3780 = vld [vmem:[#allocation2 + $0x20] sm:$0xff]
      %v3781 = vld [vmem:[#allocation2 + $0x28] sm:$0x3]
      %v3782 = vld [vmem:[#allocation2 + $0x30] sm:$0xff]
      %v3783 = vld [vmem:[#allocation2 + $0x38] sm:$0xff]
      %v3784 = vld [vmem:[#allocation2 + $0x40] sm:$0x3]
      %v3785 = vld [vmem:[#allocation2 + $0x48] sm:$0xff]
      %v3786 = vld [vmem:[#allocation2 + $0x50] sm:$0xff]
      %v3787 = vld [vmem:[#allocation2 + $0x58] sm:$0x3]
      %v3788 = vld [vmem:[#allocation2 + $0x60] sm:$0xff]
      %v3789 = vld [vmem:[#allocation2 + $0x68] sm:$0xff]
      %v3790 = vld [vmem:[#allocation2 + $0x70] sm:$0x3]
      %v3791 = vld [vmem:[#allocation2 + $0x78] sm:$0xff]
      %v3792 = vld [vmem:[#allocation2 + $0x80] sm:$0xff]
      %v3793 = vld [vmem:[#allocation2 + $0x88] sm:$0x3]
      %v3794 = vld [vmem:[#allocation2 + $0x90] sm:$0xff]
      %v3795 = vld [vmem:[#allocation2 + $0x98] sm:$0xff]
      %v3796 = vld [vmem:[#allocation2 + $0xa0] sm:$0x3]
      %v3797 = vld [vmem:[#allocation2 + $0xa8] sm:$0xff]
      %v3798 = vld [vmem:[#allocation2 + $0xb0] sm:$0xff]
      %v3799 = vld [vmem:[#allocation2 + $0xb8] sm:$0x3]
      %v3800 = vld [vmem:[#allocation2 + $0xc0] sm:$0xff]
      %v3801 = vld [vmem:[#allocation2 + $0xc8] sm:$0xff]
      %v3802 = vld [vmem:[#allocation2 + $0xd0] sm:$0x3]
      %v3803 = vld [vmem:[#allocation2 + $0xd8] sm:$0xff]
      %v3804 = vld [vmem:[#allocation2 + $0xe0] sm:$0xff]
      %v3805 = vld [vmem:[#allocation2 + $0xe8] sm:$0x3]
      %v3806 = vld [vmem:[#allocation2 + $0xf0] sm:$0xff]
      %v3807 = vld [vmem:[#allocation2 + $0xf8] sm:$0xff]
      %v3808 = vld [vmem:[#allocation2 + $0x100] sm:$0x3]
      %v3809 = vld [vmem:[#allocation2 + $0x108] sm:$0xff]
      %v3810 = vld [vmem:[#allocation2 + $0x110] sm:$0xff]
      %v3811 = vld [vmem:[#allocation2 + $0x118] sm:$0x3]
      %v3812 = vld [vmem:[#allocation2 + $0x120] sm:$0xff]
      %v3813 = vld [vmem:[#allocation2 + $0x128] sm:$0xff]
      %v3814 = vld [vmem:[#allocation2 + $0x130] sm:$0x3]
      %v3815 = vld [vmem:[#allocation2 + $0x138] sm:$0xff]
      %v3816 = vld [vmem:[#allocation2 + $0x140] sm:$0xff]
      %v3817 = vld [vmem:[#allocation2 + $0x148] sm:$0x3]
      %v3818 = vld [vmem:[#allocation2 + $0x150] sm:$0xff]
      %v3819 = vld [vmem:[#allocation2 + $0x158] sm:$0xff]
      %v3820 = vld [vmem:[#allocation2 + $0x160] sm:$0x3]
      %v3821 = vld [vmem:[#allocation2 + $0x168] sm:$0xff]
      %v3822 = vld [vmem:[#allocation2 + $0x170] sm:$0xff]
      %v3823 = vld [vmem:[#allocation2 + $0x178] sm:$0x3]
      %v3824 = vld [vmem:[#allocation2 + $0x180] sm:$0xff]
      %v3825 = vld [vmem:[#allocation2 + $0x188] sm:$0xff]
      %v3826 = vld [vmem:[#allocation2 + $0x190] sm:$0x3]
      %v3827 = vld [vmem:[#allocation2 + $0x198] sm:$0xff]
      %v3828 = vld [vmem:[#allocation2 + $0x1a0] sm:$0xff]
      %v3829 = vld [vmem:[#allocation2 + $0x1a8] sm:$0x3]
      %v3830 = vsel %vm258, %v3776, 0.0
      %v3831 = vsel %vm258, %v3777, 0.0
      %v3832 = vadd.f32 %v3830, %v3831
      %v3833 = vsel %vm426, %v3778, 0.0
      %v3834 = vadd.f32 %v3832, %v3833
      %v3835 = vsel %vm258, %v3779, 0.0
      %v3836 = vadd.f32 %v3834, %v3835
      %v3837 = vsel %vm258, %v3780, 0.0
      %v3838 = vadd.f32 %v3836, %v3837
      %v3839 = vsel %vm426, %v3781, 0.0
      %v3840 = vadd.f32 %v3838, %v3839
      %v3841 = vsel %vm258, %v3782, 0.0
      %v3842 = vadd.f32 %v3840, %v3841
      %v3843 = vsel %vm258, %v3783, 0.0
      %v3844 = vadd.f32 %v3842, %v3843
      %v3845 = vsel %vm426, %v3784, 0.0
      %v3846 = vadd.f32 %v3844, %v3845
      %v3847 = vsel %vm258, %v3785, 0.0
      %v3848 = vadd.f32 %v3846, %v3847
      %v3849 = vsel %vm258, %v3786, 0.0
      %v3850 = vadd.f32 %v3848, %v3849
      %v3851 = vsel %vm426, %v3787, 0.0
      %v3852 = vadd.f32 %v3850, %v3851
      %v3853 = vsel %vm258, %v3788, 0.0
      %v3854 = vadd.f32 %v3852, %v3853
      %v3855 = vsel %vm258, %v3789, 0.0
      %v3856 = vadd.f32 %v3854, %v3855
      %v3857 = vsel %vm426, %v3790, 0.0
      %v3858 = vadd.f32 %v3856, %v3857
      %v3859 = vsel %vm258, %v3791, 0.0
      %v3860 = vadd.f32 %v3858, %v3859
      %v3861 = vsel %vm258, %v3792, 0.0
      %v3862 = vadd.f32 %v3860, %v3861
      %v3863 = vsel %vm426, %v3793, 0.0
      %v3864 = vadd.f32 %v3862, %v3863
      %v3865 = vsel %vm258, %v3794, 0.0
      %v3866 = vadd.f32 %v3864, %v3865
      %v3867 = vsel %vm258, %v3795, 0.0
      %v3868 = vadd.f32 %v3866, %v3867
      %v3869 = vsel %vm426, %v3796, 0.0
      %v3870 = vadd.f32 %v3868, %v3869
      %v3871 = vsel %vm258, %v3797, 0.0
      %v3872 = vadd.f32 %v3870, %v3871
      %v3873 = vsel %vm258, %v3798, 0.0
      %v3874 = vadd.f32 %v3872, %v3873
      %v3875 = vsel %vm426, %v3799, 0.0
      %v3876 = vadd.f32 %v3874, %v3875
      %v3877 = vsel %vm258, %v3800, 0.0
      %v3878 = vadd.f32 %v3876, %v3877
      %v3879 = vsel %vm258, %v3801, 0.0
      %v3880 = vadd.f32 %v3878, %v3879
      %v3881 = vsel %vm426, %v3802, 0.0
      %v3882 = vadd.f32 %v3880, %v3881
      %v3883 = vsel %vm258, %v3803, 0.0
      %v3884 = vadd.f32 %v3882, %v3883
      %v3885 = vsel %vm258, %v3804, 0.0
      %v3886 = vadd.f32 %v3884, %v3885
      %v3887 = vsel %vm426, %v3805, 0.0
      %v3888 = vadd.f32 %v3886, %v3887
      %v3889 = vsel %vm258, %v3806, 0.0
      %v3890 = vadd.f32 %v3888, %v3889
      %v3891 = vsel %vm258, %v3807, 0.0
      %v3892 = vadd.f32 %v3890, %v3891
      %v3893 = vsel %vm426, %v3808, 0.0
      %v3894 = vadd.f32 %v3892, %v3893
      %v3895 = vsel %vm258, %v3809, 0.0
      %v3896 = vadd.f32 %v3894, %v3895
      %v3897 = vsel %vm258, %v3810, 0.0
      %v3898 = vadd.f32 %v3896, %v3897
      %v3899 = vsel %vm426, %v3811, 0.0
      %v3900 = vadd.f32 %v3898, %v3899
      %v3901 = vsel %vm258, %v3812, 0.0
      %v3902 = vadd.f32 %v3900, %v3901
      %v3903 = vsel %vm258, %v3813, 0.0
      %v3904 = vadd.f32 %v3902, %v3903
      %v3905 = vsel %vm426, %v3814, 0.0
      %v3906 = vadd.f32 %v3904, %v3905
      %v3907 = vsel %vm258, %v3815, 0.0
      %v3908 = vadd.f32 %v3906, %v3907
      %v3909 = vsel %vm258, %v3816, 0.0
      %v3910 = vadd.f32 %v3908, %v3909
      %v3911 = vsel %vm426, %v3817, 0.0
      %v3912 = vadd.f32 %v3910, %v3911
      %v3913 = vsel %vm258, %v3818, 0.0
      %v3914 = vadd.f32 %v3912, %v3913
      %v3915 = vsel %vm258, %v3819, 0.0
      %v3916 = vadd.f32 %v3914, %v3915
      %v3917 = vsel %vm426, %v3820, 0.0
      %v3918 = vadd.f32 %v3916, %v3917
      %v3919 = vsel %vm258, %v3821, 0.0
      %v3920 = vadd.f32 %v3918, %v3919
      %v3921 = vsel %vm258, %v3822, 0.0
      %v3922 = vadd.f32 %v3920, %v3921
      %v3923 = vsel %vm426, %v3823, 0.0
      %v3924 = vadd.f32 %v3922, %v3923
      %v3925 = vsel %vm258, %v3824, 0.0
      %v3926 = vadd.f32 %v3924, %v3925
      %v3927 = vsel %vm258, %v3825, 0.0
      %v3928 = vadd.f32 %v3926, %v3927
      %v3929 = vsel %vm426, %v3826, 0.0
      %v3930 = vadd.f32 %v3928, %v3929
      %v3931 = vsel %vm258, %v3827, 0.0
      %v3932 = vadd.f32 %v3930, %v3931
      %v3933 = vsel %vm258, %v3828, 0.0
      %v3934 = vadd.f32 %v3932, %v3933
      %v3935 = vsel %vm426, %v3829, 0.0
      %v3936 = vadd.f32 %v3934, %v3935
      %v3937 = vrot.slane %v3936, 4
      %v3938 = vadd.f32 %v3936, %v3937
      %v3939 = vrot.slane %v3938, 2
      %v3940 = vadd.f32 %v3938, %v3939
      %v3941 = vrot.slane %v3940, 1
      %v3942 = vadd.f32 %v3940, %v3941
      %v3943 = vmul.f32 %v3942, %v537
      %v3944 = vsub.f32 %v3776, %v3943
      %v3945 = vsub.f32 %v3777, %v3943
      %v3946 = vsub.f32 %v3778, %v3943
      %v3947 = vsub.f32 %v3779, %v3943
      %v3948 = vsub.f32 %v3780, %v3943
      %v3949 = vsub.f32 %v3781, %v3943
      %v3950 = vsub.f32 %v3782, %v3943
      %v3951 = vsub.f32 %v3783, %v3943
      %v3952 = vsub.f32 %v3784, %v3943
      %v3953 = vsub.f32 %v3785, %v3943
      %v3954 = vsub.f32 %v3786, %v3943
      %v3955 = vsub.f32 %v3787, %v3943
      %v3956 = vsub.f32 %v3788, %v3943
      %v3957 = vsub.f32 %v3789, %v3943
      %v3958 = vsub.f32 %v3790, %v3943
      %v3959 = vsub.f32 %v3791, %v3943
      %v3960 = vsub.f32 %v3792, %v3943
      %v3961 = vsub.f32 %v3793, %v3943
      %v3962 = vsub.f32 %v3794, %v3943
      %v3963 = vsub.f32 %v3795, %v3943
      %v3964 = vsub.f32 %v3796, %v3943
      %v3965 = vsub.f32 %v3797, %v3943
      %v3966 = vsub.f32 %v3798, %v3943
      %v3967 = vsub.f32 %v3799, %v3943
      %v3968 = vsub.f32 %v3800, %v3943
      %v3969 = vsub.f32 %v3801, %v3943
      %v3970 = vsub.f32 %v3802, %v3943
      %v3971 = vsub.f32 %v3803, %v3943
      %v3972 = vsub.f32 %v3804, %v3943
      %v3973 = vsub.f32 %v3805, %v3943
      %v3974 = vsub.f32 %v3806, %v3943
      %v3975 = vsub.f32 %v3807, %v3943
      %v3976 = vsub.f32 %v3808, %v3943
      %v3977 = vsub.f32 %v3809, %v3943
      %v3978 = vsub.f32 %v3810, %v3943
      %v3979 = vsub.f32 %v3811, %v3943
      %v3980 = vsub.f32 %v3812, %v3943
      %v3981 = vsub.f32 %v3813, %v3943
      %v3982 = vsub.f32 %v3814, %v3943
      %v3983 = vsub.f32 %v3815, %v3943
      %v3984 = vsub.f32 %v3816, %v3943
      %v3985 = vsub.f32 %v3817, %v3943
      %v3986 = vsub.f32 %v3818, %v3943
      %v3987 = vsub.f32 %v3819, %v3943
      %v3988 = vsub.f32 %v3820, %v3943
      %v3989 = vsub.f32 %v3821, %v3943
      %v3990 = vsub.f32 %v3822, %v3943
      %v3991 = vsub.f32 %v3823, %v3943
      %v3992 = vsub.f32 %v3824, %v3943
      %v3993 = vsub.f32 %v3825, %v3943
      %v3994 = vsub.f32 %v3826, %v3943
      %v3995 = vsub.f32 %v3827, %v3943
      %v3996 = vsub.f32 %v3828, %v3943
      %v3997 = vsub.f32 %v3829, %v3943
      %v3998 = vmul.f32 %v3944, %v3944
      %v3999 = vmul.f32 %v3945, %v3945
      %v4000 = vmul.f32 %v3946, %v3946
      %v4001 = vmul.f32 %v3947, %v3947
      %v4002 = vmul.f32 %v3948, %v3948
      %v4003 = vmul.f32 %v3949, %v3949
      %v4004 = vmul.f32 %v3950, %v3950
      %v4005 = vmul.f32 %v3951, %v3951
      %v4006 = vmul.f32 %v3952, %v3952
      %v4007 = vmul.f32 %v3953, %v3953
      %v4008 = vmul.f32 %v3954, %v3954
      %v4009 = vmul.f32 %v3955, %v3955
      %v4010 = vmul.f32 %v3956, %v3956
      %v4011 = vmul.f32 %v3957, %v3957
      %v4012 = vmul.f32 %v3958, %v3958
      %v4013 = vmul.f32 %v3959, %v3959
      %v4014 = vmul.f32 %v3960, %v3960
      %v4015 = vmul.f32 %v3961, %v3961
      %v4016 = vmul.f32 %v3962, %v3962
      %v4017 = vmul.f32 %v3963, %v3963
      %v4018 = vmul.f32 %v3964, %v3964
      %v4019 = vmul.f32 %v3965, %v3965
      %v4020 = vmul.f32 %v3966, %v3966
      %v4021 = vmul.f32 %v3967, %v3967
      %v4022 = vmul.f32 %v3968, %v3968
      %v4023 = vmul.f32 %v3969, %v3969
      %v4024 = vmul.f32 %v3970, %v3970
      %v4025 = vmul.f32 %v3971, %v3971
      %v4026 = vmul.f32 %v3972, %v3972
      %v4027 = vmul.f32 %v3973, %v3973
      %v4028 = vmul.f32 %v3974, %v3974
      %v4029 = vmul.f32 %v3975, %v3975
      %v4030 = vmul.f32 %v3976, %v3976
      %v4031 = vmul.f32 %v3977, %v3977
      %v4032 = vmul.f32 %v3978, %v3978
      %v4033 = vmul.f32 %v3979, %v3979
      %v4034 = vmul.f32 %v3980, %v3980
      %v4035 = vmul.f32 %v3981, %v3981
      %v4036 = vmul.f32 %v3982, %v3982
      %v4037 = vmul.f32 %v3983, %v3983
      %v4038 = vmul.f32 %v3984, %v3984
      %v4039 = vmul.f32 %v3985, %v3985
      %v4040 = vmul.f32 %v3986, %v3986
      %v4041 = vmul.f32 %v3987, %v3987
      %v4042 = vmul.f32 %v3988, %v3988
      %v4043 = vmul.f32 %v3989, %v3989
      %v4044 = vmul.f32 %v3990, %v3990
      %v4045 = vmul.f32 %v3991, %v3991
      %v4046 = vmul.f32 %v3992, %v3992
      %v4047 = vmul.f32 %v3993, %v3993
      %v4048 = vmul.f32 %v3994, %v3994
      %v4049 = vmul.f32 %v3995, %v3995
      %v4050 = vmul.f32 %v3996, %v3996
      %v4051 = vmul.f32 %v3997, %v3997
      %v4052 = vsel %vm258, %v3998, 0.0
      %v4053 = vsel %vm258, %v3999, 0.0
      %v4054 = vadd.f32 %v4052, %v4053
      %v4055 = vsel %vm426, %v4000, 0.0
      %v4056 = vadd.f32 %v4054, %v4055
      %v4057 = vsel %vm258, %v4001, 0.0
      %v4058 = vadd.f32 %v4056, %v4057
      %v4059 = vsel %vm258, %v4002, 0.0
      %v4060 = vadd.f32 %v4058, %v4059
      %v4061 = vsel %vm426, %v4003, 0.0
      %v4062 = vadd.f32 %v4060, %v4061
      %v4063 = vsel %vm258, %v4004, 0.0
      %v4064 = vadd.f32 %v4062, %v4063
      %v4065 = vsel %vm258, %v4005, 0.0
      %v4066 = vadd.f32 %v4064, %v4065
      %v4067 = vsel %vm426, %v4006, 0.0
      %v4068 = vadd.f32 %v4066, %v4067
      %v4069 = vsel %vm258, %v4007, 0.0
      %v4070 = vadd.f32 %v4068, %v4069
      %v4071 = vsel %vm258, %v4008, 0.0
      %v4072 = vadd.f32 %v4070, %v4071
      %v4073 = vsel %vm426, %v4009, 0.0
      %v4074 = vadd.f32 %v4072, %v4073
      %v4075 = vsel %vm258, %v4010, 0.0
      %v4076 = vadd.f32 %v4074, %v4075
      %v4077 = vsel %vm258, %v4011, 0.0
      %v4078 = vadd.f32 %v4076, %v4077
      %v4079 = vsel %vm426, %v4012, 0.0
      %v4080 = vadd.f32 %v4078, %v4079
      %v4081 = vsel %vm258, %v4013, 0.0
      %v4082 = vadd.f32 %v4080, %v4081
      %v4083 = vsel %vm258, %v4014, 0.0
      %v4084 = vadd.f32 %v4082, %v4083
      %v4085 = vsel %vm426, %v4015, 0.0
      %v4086 = vadd.f32 %v4084, %v4085
      %v4087 = vsel %vm258, %v4016, 0.0
      %v4088 = vadd.f32 %v4086, %v4087
      %v4089 = vsel %vm258, %v4017, 0.0
      %v4090 = vadd.f32 %v4088, %v4089
      %v4091 = vsel %vm426, %v4018, 0.0
      %v4092 = vadd.f32 %v4090, %v4091
      %v4093 = vsel %vm258, %v4019, 0.0
      %v4094 = vadd.f32 %v4092, %v4093
      %v4095 = vsel %vm258, %v4020, 0.0
      %v4096 = vadd.f32 %v4094, %v4095
      %v4097 = vsel %vm426, %v4021, 0.0
      %v4098 = vadd.f32 %v4096, %v4097
      %v4099 = vsel %vm258, %v4022, 0.0
      %v4100 = vadd.f32 %v4098, %v4099
      %v4101 = vsel %vm258, %v4023, 0.0
      %v4102 = vadd.f32 %v4100, %v4101
      %v4103 = vsel %vm426, %v4024, 0.0
      %v4104 = vadd.f32 %v4102, %v4103
      %v4105 = vsel %vm258, %v4025, 0.0
      %v4106 = vadd.f32 %v4104, %v4105
      %v4107 = vsel %vm258, %v4026, 0.0
      %v4108 = vadd.f32 %v4106, %v4107
      %v4109 = vsel %vm426, %v4027, 0.0
      %v4110 = vadd.f32 %v4108, %v4109
      %v4111 = vsel %vm258, %v4028, 0.0
      %v4112 = vadd.f32 %v4110, %v4111
      %v4113 = vsel %vm258, %v4029, 0.0
      %v4114 = vadd.f32 %v4112, %v4113
      %v4115 = vsel %vm426, %v4030, 0.0
      %v4116 = vadd.f32 %v4114, %v4115
      %v4117 = vsel %vm258, %v4031, 0.0
      %v4118 = vadd.f32 %v4116, %v4117
      %v4119 = vsel %vm258, %v4032, 0.0
      %v4120 = vadd.f32 %v4118, %v4119
      %v4121 = vsel %vm426, %v4033, 0.0
      %v4122 = vadd.f32 %v4120, %v4121
      %v4123 = vsel %vm258, %v4034, 0.0
      %v4124 = vadd.f32 %v4122, %v4123
      %v4125 = vsel %vm258, %v4035, 0.0
      %v4126 = vadd.f32 %v4124, %v4125
      %v4127 = vsel %vm426, %v4036, 0.0
      %v4128 = vadd.f32 %v4126, %v4127
      %v4129 = vsel %vm258, %v4037, 0.0
      %v4130 = vadd.f32 %v4128, %v4129
      %v4131 = vsel %vm258, %v4038, 0.0
      %v4132 = vadd.f32 %v4130, %v4131
      %v4133 = vsel %vm426, %v4039, 0.0
      %v4134 = vadd.f32 %v4132, %v4133
      %v4135 = vsel %vm258, %v4040, 0.0
      %v4136 = vadd.f32 %v4134, %v4135
      %v4137 = vsel %vm258, %v4041, 0.0
      %v4138 = vadd.f32 %v4136, %v4137
      %v4139 = vsel %vm426, %v4042, 0.0
      %v4140 = vadd.f32 %v4138, %v4139
      %v4141 = vsel %vm258, %v4043, 0.0
      %v4142 = vadd.f32 %v4140, %v4141
      %v4143 = vsel %vm258, %v4044, 0.0
      %v4144 = vadd.f32 %v4142, %v4143
      %v4145 = vsel %vm426, %v4045, 0.0
      %v4146 = vadd.f32 %v4144, %v4145
      %v4147 = vsel %vm258, %v4046, 0.0
      %v4148 = vadd.f32 %v4146, %v4147
      %v4149 = vsel %vm258, %v4047, 0.0
      %v4150 = vadd.f32 %v4148, %v4149
      %v4151 = vsel %vm426, %v4048, 0.0
      %v4152 = vadd.f32 %v4150, %v4151
      %v4153 = vsel %vm258, %v4049, 0.0
      %v4154 = vadd.f32 %v4152, %v4153
      %v4155 = vsel %vm258, %v4050, 0.0
      %v4156 = vadd.f32 %v4154, %v4155
      %v4157 = vsel %vm426, %v4051, 0.0
      %v4158 = vadd.f32 %v4156, %v4157
      %v4159 = vrot.slane %v4158, 4
      %v4160 = vadd.f32 %v4158, %v4159
      %v4161 = vrot.slane %v4160, 2
      %v4162 = vadd.f32 %v4160, %v4161
      %v4163 = vrot.slane %v4162, 1
      %v4164 = vadd.f32 %v4162, %v4163
      %v4165 = vmul.f32 %v4164, %v537
      %v4166 = vadd.f32 %v4165, 1e-05
      %v4167 = vrsqrt.pop %v4166
      %v4168 = vmul.f32 %v3944, %v4167
      %v4169 = vmul.f32 %v3945, %v4167
      %v4170 = vmul.f32 %v3946, %v4167
      %v4171 = vmul.f32 %v3947, %v4167
      %v4172 = vmul.f32 %v3948, %v4167
      %v4173 = vmul.f32 %v3949, %v4167
      %v4174 = vmul.f32 %v3950, %v4167
      %v4175 = vmul.f32 %v3951, %v4167
      %v4176 = vmul.f32 %v3952, %v4167
      %v4177 = vmul.f32 %v3953, %v4167
      %v4178 = vmul.f32 %v3954, %v4167
      %v4179 = vmul.f32 %v3955, %v4167
      %v4180 = vmul.f32 %v3956, %v4167
      %v4181 = vmul.f32 %v3957, %v4167
      %v4182 = vmul.f32 %v3958, %v4167
      %v4183 = vmul.f32 %v3959, %v4167
      %v4184 = vmul.f32 %v3960, %v4167
      %v4185 = vmul.f32 %v3961, %v4167
      %v4186 = vmul.f32 %v3962, %v4167
      %v4187 = vmul.f32 %v3963, %v4167
      %v4188 = vmul.f32 %v3964, %v4167
      %v4189 = vmul.f32 %v3965, %v4167
      %v4190 = vmul.f32 %v3966, %v4167
      %v4191 = vmul.f32 %v3967, %v4167
      %v4192 = vmul.f32 %v3968, %v4167
      %v4193 = vmul.f32 %v3969, %v4167
      %v4194 = vmul.f32 %v3970, %v4167
      %v4195 = vmul.f32 %v3971, %v4167
      %v4196 = vmul.f32 %v3972, %v4167
      %v4197 = vmul.f32 %v3973, %v4167
      %v4198 = vmul.f32 %v3974, %v4167
      %v4199 = vmul.f32 %v3975, %v4167
      %v4200 = vmul.f32 %v3976, %v4167
      %v4201 = vmul.f32 %v3977, %v4167
      %v4202 = vmul.f32 %v3978, %v4167
      %v4203 = vmul.f32 %v3979, %v4167
      %v4204 = vmul.f32 %v3980, %v4167
      %v4205 = vmul.f32 %v3981, %v4167
      %v4206 = vmul.f32 %v3982, %v4167
      %v4207 = vmul.f32 %v3983, %v4167
      %v4208 = vmul.f32 %v3984, %v4167
      %v4209 = vmul.f32 %v3985, %v4167
      %v4210 = vmul.f32 %v3986, %v4167
      %v4211 = vmul.f32 %v3987, %v4167
      %v4212 = vmul.f32 %v3988, %v4167
      %v4213 = vmul.f32 %v3989, %v4167
      %v4214 = vmul.f32 %v3990, %v4167
      %v4215 = vmul.f32 %v3991, %v4167
      %v4216 = vmul.f32 %v3992, %v4167
      %v4217 = vmul.f32 %v3993, %v4167
      %v4218 = vmul.f32 %v3994, %v4167
      %v4219 = vmul.f32 %v3995, %v4167
      %v4220 = vmul.f32 %v3996, %v4167
      %v4221 = vmul.f32 %v3997, %v4167
      %4222 = vst.msk [vmem:[#allocation2] sm:$0xff] %vm258, %v4168
      %4223 = vst.msk [vmem:[#allocation2 + $0x8] sm:$0xff] %vm258, %v4169
      %4224 = vst.msk [vmem:[#allocation2 + $0x10] sm:$0x3] %vm426, %v4170
      %4225 = vst.msk [vmem:[#allocation2 + $0x18] sm:$0xff] %vm258, %v4171
      %4226 = vst.msk [vmem:[#allocation2 + $0x20] sm:$0xff] %vm258, %v4172
      %4227 = vst.msk [vmem:[#allocation2 + $0x28] sm:$0x3] %vm426, %v4173
      %4228 = vst.msk [vmem:[#allocation2 + $0x30] sm:$0xff] %vm258, %v4174
      %4229 = vst.msk [vmem:[#allocation2 + $0x38] sm:$0xff] %vm258, %v4175
      %4230 = vst.msk [vmem:[#allocation2 + $0x40] sm:$0x3] %vm426, %v4176
      %4231 = vst.msk [vmem:[#allocation2 + $0x48] sm:$0xff] %vm258, %v4177
      %4232 = vst.msk [vmem:[#allocation2 + $0x50] sm:$0xff] %vm258, %v4178
      %4233 = vst.msk [vmem:[#allocation2 + $0x58] sm:$0x3] %vm426, %v4179
      %4234 = vst.msk [vmem:[#allocation2 + $0x60] sm:$0xff] %vm258, %v4180
      %4235 = vst.msk [vmem:[#allocation2 + $0x68] sm:$0xff] %vm258, %v4181
      %4236 = vst.msk [vmem:[#allocation2 + $0x70] sm:$0x3] %vm426, %v4182
      %4237 = vst.msk [vmem:[#allocation2 + $0x78] sm:$0xff] %vm258, %v4183
      %4238 = vst.msk [vmem:[#allocation2 + $0x80] sm:$0xff] %vm258, %v4184
      %4239 = vst.msk [vmem:[#allocation2 + $0x88] sm:$0x3] %vm426, %v4185
      %4240 = vst.msk [vmem:[#allocation2 + $0x90] sm:$0xff] %vm258, %v4186
      %4241 = vst.msk [vmem:[#allocation2 + $0x98] sm:$0xff] %vm258, %v4187
      %4242 = vst.msk [vmem:[#allocation2 + $0xa0] sm:$0x3] %vm426, %v4188
      %4243 = vst.msk [vmem:[#allocation2 + $0xa8] sm:$0xff] %vm258, %v4189
      %4244 = vst.msk [vmem:[#allocation2 + $0xb0] sm:$0xff] %vm258, %v4190
      %4245 = vst.msk [vmem:[#allocation2 + $0xb8] sm:$0x3] %vm426, %v4191
      %4246 = vst.msk [vmem:[#allocation2 + $0xc0] sm:$0xff] %vm258, %v4192
      %4247 = vst.msk [vmem:[#allocation2 + $0xc8] sm:$0xff] %vm258, %v4193
      %4248 = vst.msk [vmem:[#allocation2 + $0xd0] sm:$0x3] %vm426, %v4194
      %4249 = vst.msk [vmem:[#allocation2 + $0xd8] sm:$0xff] %vm258, %v4195
      %4250 = vst.msk [vmem:[#allocation2 + $0xe0] sm:$0xff] %vm258, %v4196
      %4251 = vst.msk [vmem:[#allocation2 + $0xe8] sm:$0x3] %vm426, %v4197
      %4252 = vst.msk [vmem:[#allocation2 + $0xf0] sm:$0xff] %vm258, %v4198
      %4253 = vst.msk [vmem:[#allocation2 + $0xf8] sm:$0xff] %vm258, %v4199
      %4254 = vst.msk [vmem:[#allocation2 + $0x100] sm:$0x3] %vm426, %v4200
      %4255 = vst.msk [vmem:[#allocation2 + $0x108] sm:$0xff] %vm258, %v4201
      %4256 = vst.msk [vmem:[#allocation2 + $0x110] sm:$0xff] %vm258, %v4202
      %4257 = vst.msk [vmem:[#allocation2 + $0x118] sm:$0x3] %vm426, %v4203
      %4258 = vst.msk [vmem:[#allocation2 + $0x120] sm:$0xff] %vm258, %v4204
      %4259 = vst.msk [vmem:[#allocation2 + $0x128] sm:$0xff] %vm258, %v4205
      %4260 = vst.msk [vmem:[#allocation2 + $0x130] sm:$0x3] %vm426, %v4206
      %4261 = vst.msk [vmem:[#allocation2 + $0x138] sm:$0xff] %vm258, %v4207
      %4262 = vst.msk [vmem:[#allocation2 + $0x140] sm:$0xff] %vm258, %v4208
      %4263 = vst.msk [vmem:[#allocation2 + $0x148] sm:$0x3] %vm426, %v4209
      %4264 = vst.msk [vmem:[#allocation2 + $0x150] sm:$0xff] %vm258, %v4210
      %4265 = vst.msk [vmem:[#allocation2 + $0x158] sm:$0xff] %vm258, %v4211
      %4266 = vst.msk [vmem:[#allocation2 + $0x160] sm:$0x3] %vm426, %v4212
      %4267 = vst.msk [vmem:[#allocation2 + $0x168] sm:$0xff] %vm258, %v4213
      %4268 = vst.msk [vmem:[#allocation2 + $0x170] sm:$0xff] %vm258, %v4214
      %4269 = vst.msk [vmem:[#allocation2 + $0x178] sm:$0x3] %vm426, %v4215
      %4270 = vst.msk [vmem:[#allocation2 + $0x180] sm:$0xff] %vm258, %v4216
      %4271 = vst.msk [vmem:[#allocation2 + $0x188] sm:$0xff] %vm258, %v4217
      %4272 = vst.msk [vmem:[#allocation2 + $0x190] sm:$0x3] %vm426, %v4218
      %4273 = vst.msk [vmem:[#allocation2 + $0x198] sm:$0xff] %vm258, %v4219
      %4274 = vst.msk [vmem:[#allocation2 + $0x1a0] sm:$0xff] %vm258, %v4220
      %4275 = vst.msk [vmem:[#allocation2 + $0x1a8] sm:$0x3] %vm426, %v4221
      %v4276 = vld [vmem:[#allocation2] sm:$0xff]
      %v4277 = vld [vmem:[#allocation2 + $0x8] sm:$0xff]
      %v4278 = vld [vmem:[#allocation2 + $0x18] sm:$0xff]
      %v4279 = vld [vmem:[#allocation2 + $0x20] sm:$0xff]
      %v4280 = vld [vmem:[#allocation2 + $0x30] sm:$0xff]
      %v4281 = vld [vmem:[#allocation2 + $0x38] sm:$0xff]
      %v4282 = vld [vmem:[#allocation2 + $0x48] sm:$0xff]
      %v4283 = vld [vmem:[#allocation2 + $0x50] sm:$0xff]
      %v4284 = vld [vmem:[#allocation2 + $0x60] sm:$0xff]
      %v4285 = vld [vmem:[#allocation2 + $0x68] sm:$0xff]
      %v4286 = vld [vmem:[#allocation2 + $0x78] sm:$0xff]
      %v4287 = vld [vmem:[#allocation2 + $0x80] sm:$0xff]
      %v4288 = vld [vmem:[#allocation2 + $0x90] sm:$0xff]
      %v4289 = vld [vmem:[#allocation2 + $0x98] sm:$0xff]
      %v4290 = vld [vmem:[#allocation2 + $0xa8] sm:$0xff]
      %v4291 = vld [vmem:[#allocation2 + $0xb0] sm:$0xff]
      %v4292 = vld [vmem:[#allocation2 + $0xc0] sm:$0xff]
      %v4293 = vld [vmem:[#allocation2 + $0xc8] sm:$0xff]
      %v4294 = vld [vmem:[#allocation2 + $0xd8] sm:$0xff]
      %v4295 = vld [vmem:[#allocation2 + $0xe0] sm:$0xff]
      %v4296 = vld [vmem:[#allocation2 + $0xf0] sm:$0xff]
      %v4297 = vld [vmem:[#allocation2 + $0xf8] sm:$0xff]
      %v4298 = vld [vmem:[#allocation2 + $0x108] sm:$0xff]
      %v4299 = vld [vmem:[#allocation2 + $0x110] sm:$0xff]
      %v4300 = vld [vmem:[#allocation2 + $0x120] sm:$0xff]
      %v4301 = vld [vmem:[#allocation2 + $0x128] sm:$0xff]
      %v4302 = vld [vmem:[#allocation2 + $0x138] sm:$0xff]
      %v4303 = vld [vmem:[#allocation2 + $0x140] sm:$0xff]
      %v4304 = vld [vmem:[#allocation2 + $0x150] sm:$0xff]
      %v4305 = vld [vmem:[#allocation2 + $0x158] sm:$0xff]
      %v4306 = vld [vmem:[#allocation2 + $0x168] sm:$0xff]
      %v4307 = vld [vmem:[#allocation2 + $0x170] sm:$0xff]
      %v4308 = vld [vmem:[#allocation2 + $0x180] sm:$0xff]
      %v4309 = vld [vmem:[#allocation2 + $0x188] sm:$0xff]
      %v4310 = vld [vmem:[#allocation2 + $0x198] sm:$0xff]
      %v4311 = vld [vmem:[#allocation2 + $0x1a0] sm:$0xff]
      %v4312 = vld [vmem:[%s3] sm:$0xf]
      %s4313 = scalar_lea.vmem %s3, 12
      %v4314 = vld [vmem:[%s4313] sm:$0xf]
      %v4316 = vsel %vm258, %v4278, 0
      %v4319 = vsel %vm258, %v4279, 0
      %v4322 = vsel %vm258, %v4280, 0
      %v4325 = vsel %vm258, %v4281, 0
      %v4328 = vsel %vm258, %v4282, 0
      %v4331 = vsel %vm258, %v4283, 0
      %v4334 = vsel %vm258, %v4284, 0
      %v4337 = vsel %vm258, %v4285, 0
      %v4340 = vsel %vm258, %v4286, 0
      %v4343 = vsel %vm258, %v4287, 0
      %v4346 = vsel %vm258, %v4288, 0
      %v4349 = vsel %vm258, %v4289, 0
      %v4352 = vsel %vm258, %v4290, 0
      %v4355 = vsel %vm258, %v4291, 0
      %v4358 = vsel %vm258, %v4292, 0
      %v4361 = vsel %vm258, %v4293, 0
      %v4364 = vsel %vm258, %v4294, 0
      %v4367 = vsel %vm258, %v4295, 0
      %v4370 = vsel %vm258, %v4296, 0
      %v4373 = vsel %vm258, %v4297, 0
      %v4376 = vsel %vm258, %v4298, 0
      %v4379 = vsel %vm258, %v4299, 0
      %v4382 = vsel %vm258, %v4300, 0
      %v4385 = vsel %vm258, %v4301, 0
      %v4388 = vsel %vm258, %v4302, 0
      %v4391 = vsel %vm258, %v4303, 0
      %v4394 = vsel %vm258, %v4304, 0
      %v4397 = vsel %vm258, %v4305, 0
      %v4400 = vsel %vm258, %v4306, 0
      %v4403 = vsel %vm258, %v4307, 0
      %v4406 = vsel %vm258, %v4308, 0
      %v4409 = vsel %vm258, %v4309, 0
      %v4412 = vsel %vm1006, %v4314, 0
      %4414 = vmatprep.subr.mxu0 0.0
      %4415 = vmatpush1.msra.mxu0 0.0
      %4416 = vmatprep.subr.mxu0 0.0
      %4417 = vmatpush1.msra.mxu0 0.0
      %4418 = vmatprep.subr.mxu0 0.0
      %4419 = vmatpush1.msra.mxu0 0.0
      %4420 = vmatprep.subr.mxu0 0.0
      %4421 = vmatpush1.msra.mxu0 0.0
      %4422 = vmatprep.subr.mxu0 0.0
      %4423 = vmatpush1.msra.mxu0 0.0
      %4424 = vmatprep.subr.mxu0 0.0
      %4425 = vmatpush1.msra.mxu0 0.0
      %4426 = vmatprep.subr.mxu0 0.0
      %4427 = vmatpush1.msra.mxu0 0.0
      %4428 = vmatprep.subr.mxu0 0.0
      %4429 = vmatpush1.msra.mxu0 0.0
      %4430 = vmatprep.subr.mxu0 0.0
      %4431 = vmatpush1.msra.mxu0 0.0
      %4432 = vmatprep.subr.mxu0 0.0
      %4433 = vmatpush1.msra.mxu0 0.0
      %4434 = vmatprep.subr.mxu0 0.0
      %4435 = vmatpush1.msra.mxu0 0.0
      %4436 = vmatprep.subr.mxu0 0.0
      %4437 = vmatpush1.msra.mxu0 0.0
      %4438 = vmatprep.subr.mxu0 0.0
      %4439 = vmatpush1.msra.mxu0 0.0
      %4440 = vmatprep.subr.mxu0 0.0
      %4441 = vmatpush1.msra.mxu0 0.0
      %4442 = vmatprep.subr.mxu0 0.0
      %4443 = vmatpush1.msra.mxu0 0.0
      %4444 = vmatprep.subr.mxu0 0.0
      %4445 = vmatpush1.msra.mxu0 %v4412
      %4446 = vmatprep.subr.mxu0 0.0
      %4447 = vmatpush2.msra.mxu0 0.0
      %4448 = vmatprep.subr.mxu0 0.0
      %4449 = vmatpush2.msra.mxu0 0.0
      %4450 = vmatprep.subr.mxu0 0.0
      %4451 = vmatpush2.msra.mxu0 0.0
      %4452 = vmatprep.subr.mxu0 0.0
      %4453 = vmatpush2.msra.mxu0 0.0
      %4454 = vmatprep.subr.mxu0 0.0
      %4455 = vmatpush2.msra.mxu0 0.0
      %4456 = vmatprep.subr.mxu0 0.0
      %4457 = vmatpush2.msra.mxu0 0.0
      %4458 = vmatprep.subr.mxu0 0.0
      %4459 = vmatpush2.msra.mxu0 0.0
      %4460 = vmatprep.subr.mxu0 0.0
      %4461 = vmatpush2.msra.mxu0 0.0
      %4462 = vmatprep.subr.mxu0 0.0
      %4463 = vmatpush2.msra.mxu0 0.0
      %4464 = vmatprep.subr.mxu0 0.0
      %4465 = vmatpush2.msra.mxu0 0.0
      %4466 = vmatprep.subr.mxu0 0.0
      %4467 = vmatpush2.msra.mxu0 0.0
      %4468 = vmatprep.subr.mxu0 0.0
      %4469 = vmatpush2.msra.mxu0 0.0
      %4470 = vmatprep.subr.mxu0 0.0
      %4471 = vmatpush2.msra.mxu0 0.0
      %4472 = vmatprep.subr.mxu0 0.0
      %4473 = vmatpush2.msra.mxu0 0.0
      %4474 = vmatprep.subr.mxu0 0.0
      %4475 = vmatpush2.msra.mxu0 0.0
      %4476 = vmatprep.subr.mxu0 0.0
      %4477 = vmatpush2.msra.mxu0 0.0
      %4478 = vmatprep.mubr.f32.mxu0 0.0
      %4479 = vmatmul.mubr.f32.gmra.mxu0 %v4316
      %v4480 = vpop.f32.mrf.mxu0
      %v4481 = vadd.f32 0.0, %v4480
      %v4482 = vpop.f32.mrf.mxu0
      %4483 = vmatprep.mubr.f32.mxu0 0.0
      %4484 = vmatmul.mubr.f32.gmra.mxu0 %v4319
      %v4485 = vpop.f32.mrf.mxu0
      %v4486 = vadd.f32 0.0, %v4485
      %v4487 = vpop.f32.mrf.mxu0
      %4488 = vmatprep.mubr.f32.mxu0 0.0
      %4489 = vmatmul.mubr.f32.gmra.mxu0 %v4322
      %v4490 = vpop.f32.mrf.mxu0
      %v4491 = vadd.f32 0.0, %v4490
      %v4492 = vpop.f32.mrf.mxu0
      %4493 = vmatprep.mubr.f32.mxu0 0.0
      %4494 = vmatmul.mubr.f32.gmra.mxu0 %v4325
      %v4495 = vpop.f32.mrf.mxu0
      %v4496 = vadd.f32 0.0, %v4495
      %v4497 = vpop.f32.mrf.mxu0
      %4498 = vmatprep.mubr.f32.mxu0 0.0
      %4499 = vmatmul.mubr.f32.gmra.mxu0 %v4328
      %v4500 = vpop.f32.mrf.mxu0
      %v4501 = vadd.f32 0.0, %v4500
      %v4502 = vpop.f32.mrf.mxu0
      %4503 = vmatprep.mubr.f32.mxu0 0.0
      %4504 = vmatmul.mubr.f32.gmra.mxu0 %v4331
      %v4505 = vpop.f32.mrf.mxu0
      %v4506 = vadd.f32 0.0, %v4505
      %v4507 = vpop.f32.mrf.mxu0
      %4508 = vmatprep.mubr.f32.mxu0 0.0
      %4509 = vmatmul.mubr.f32.gmra.mxu0 %v4334
      %v4510 = vpop.f32.mrf.mxu0
      %v4511 = vadd.f32 0.0, %v4510
      %v4512 = vpop.f32.mrf.mxu0
      %4513 = vmatprep.mubr.f32.mxu0 0.0
      %4514 = vmatmul.mubr.f32.gmra.mxu0 %v4337
      %v4515 = vpop.f32.mrf.mxu0
      %v4516 = vadd.f32 0.0, %v4515
      %v4517 = vpop.f32.mrf.mxu0
      %4518 = vmatprep.mubr.f32.mxu0 0.0
      %4519 = vmatmul.mubr.f32.gmra.mxu0 %v4340
      %v4520 = vpop.f32.mrf.mxu0
      %v4521 = vadd.f32 0.0, %v4520
      %v4522 = vpop.f32.mrf.mxu0
      %4523 = vmatprep.mubr.f32.mxu0 0.0
      %4524 = vmatmul.mubr.f32.gmra.mxu0 %v4343
      %v4525 = vpop.f32.mrf.mxu0
      %v4526 = vadd.f32 0.0, %v4525
      %v4527 = vpop.f32.mrf.mxu0
      %4528 = vmatprep.mubr.f32.mxu0 0.0
      %4529 = vmatmul.mubr.f32.gmra.mxu0 %v4346
      %v4530 = vpop.f32.mrf.mxu0
      %v4531 = vadd.f32 0.0, %v4530
      %v4532 = vpop.f32.mrf.mxu0
      %4533 = vmatprep.mubr.f32.mxu0 0.0
      %4534 = vmatmul.mubr.f32.gmra.mxu0 %v4349
      %v4535 = vpop.f32.mrf.mxu0
      %v4536 = vadd.f32 0.0, %v4535
      %v4537 = vpop.f32.mrf.mxu0
      %4538 = vmatprep.mubr.f32.mxu0 0.0
      %4539 = vmatmul.mubr.f32.gmra.mxu0 %v4352
      %v4540 = vpop.f32.mrf.mxu0
      %v4541 = vadd.f32 0.0, %v4540
      %v4542 = vpop.f32.mrf.mxu0
      %4543 = vmatprep.mubr.f32.mxu0 0.0
      %4544 = vmatmul.mubr.f32.gmra.mxu0 %v4355
      %v4545 = vpop.f32.mrf.mxu0
      %v4546 = vadd.f32 0.0, %v4545
      %v4547 = vpop.f32.mrf.mxu0
      %4548 = vmatprep.mubr.f32.mxu0 0.0
      %4549 = vmatmul.mubr.f32.gmra.mxu0 %v4358
      %v4550 = vpop.f32.mrf.mxu0
      %v4551 = vadd.f32 0.0, %v4550
      %v4552 = vpop.f32.mrf.mxu0
      %4553 = vmatprep.mubr.f32.mxu0 0.0
      %4554 = vmatmul.mubr.f32.gmra.mxu0 %v4361
      %v4555 = vpop.f32.mrf.mxu0
      %v4556 = vadd.f32 0.0, %v4555
      %v4557 = vpop.f32.mrf.mxu0
      %4558 = vmatprep.mubr.f32.mxu0 0.0
      %4559 = vmatmul.mubr.f32.gmra.mxu0 %v4364
      %v4560 = vpop.f32.mrf.mxu0
      %v4561 = vadd.f32 0.0, %v4560
      %v4562 = vpop.f32.mrf.mxu0
      %4563 = vmatprep.mubr.f32.mxu0 0.0
      %4564 = vmatmul.mubr.f32.gmra.mxu0 %v4367
      %v4565 = vpop.f32.mrf.mxu0
      %v4566 = vadd.f32 0.0, %v4565
      %v4567 = vpop.f32.mrf.mxu0
      %4568 = vmatprep.mubr.f32.mxu0 0.0
      %4569 = vmatmul.mubr.f32.gmra.mxu0 %v4370
      %v4570 = vpop.f32.mrf.mxu0
      %v4571 = vadd.f32 0.0, %v4570
      %v4572 = vpop.f32.mrf.mxu0
      %4573 = vmatprep.mubr.f32.mxu0 0.0
      %4574 = vmatmul.mubr.f32.gmra.mxu0 %v4373
      %v4575 = vpop.f32.mrf.mxu0
      %v4576 = vadd.f32 0.0, %v4575
      %v4577 = vpop.f32.mrf.mxu0
      %4578 = vmatprep.mubr.f32.mxu0 0.0
      %4579 = vmatmul.mubr.f32.gmra.mxu0 %v4376
      %v4580 = vpop.f32.mrf.mxu0
      %v4581 = vadd.f32 0.0, %v4580
      %v4582 = vpop.f32.mrf.mxu0
      %4583 = vmatprep.mubr.f32.mxu0 0.0
      %4584 = vmatmul.mubr.f32.gmra.mxu0 %v4379
      %v4585 = vpop.f32.mrf.mxu0
      %v4586 = vadd.f32 0.0, %v4585
      %v4587 = vpop.f32.mrf.mxu0
      %4588 = vmatprep.mubr.f32.mxu0 0.0
      %4589 = vmatmul.mubr.f32.gmra.mxu0 %v4382
      %v4590 = vpop.f32.mrf.mxu0
      %v4591 = vadd.f32 0.0, %v4590
      %v4592 = vpop.f32.mrf.mxu0
      %4593 = vmatprep.mubr.f32.mxu0 0.0
      %4594 = vmatmul.mubr.f32.gmra.mxu0 %v4385
      %v4595 = vpop.f32.mrf.mxu0
      %v4596 = vadd.f32 0.0, %v4595
      %v4597 = vpop.f32.mrf.mxu0
      %4598 = vmatprep.mubr.f32.mxu0 0.0
      %4599 = vmatmul.mubr.f32.gmra.mxu0 %v4388
      %v4600 = vpop.f32.mrf.mxu0
      %v4601 = vadd.f32 0.0, %v4600
      %v4602 = vpop.f32.mrf.mxu0
      %4603 = vmatprep.mubr.f32.mxu0 0.0
      %4604 = vmatmul.mubr.f32.gmra.mxu0 %v4391
      %v4605 = vpop.f32.mrf.mxu0
      %v4606 = vadd.f32 0.0, %v4605
      %v4607 = vpop.f32.mrf.mxu0
      %4608 = vmatprep.mubr.f32.mxu0 0.0
      %4609 = vmatmul.mubr.f32.gmra.mxu0 %v4394
      %v4610 = vpop.f32.mrf.mxu0
      %v4611 = vadd.f32 0.0, %v4610
      %v4612 = vpop.f32.mrf.mxu0
      %4613 = vmatprep.mubr.f32.mxu0 0.0
      %4614 = vmatmul.mubr.f32.gmra.mxu0 %v4397
      %v4615 = vpop.f32.mrf.mxu0
      %v4616 = vadd.f32 0.0, %v4615
      %v4617 = vpop.f32.mrf.mxu0
      %4618 = vmatprep.mubr.f32.mxu0 0.0
      %4619 = vmatmul.mubr.f32.gmra.mxu0 %v4400
      %v4620 = vpop.f32.mrf.mxu0
      %v4621 = vadd.f32 0.0, %v4620
      %v4622 = vpop.f32.mrf.mxu0
      %4623 = vmatprep.mubr.f32.mxu0 0.0
      %4624 = vmatmul.mubr.f32.gmra.mxu0 %v4403
      %v4625 = vpop.f32.mrf.mxu0
      %v4626 = vadd.f32 0.0, %v4625
      %v4627 = vpop.f32.mrf.mxu0
      %4628 = vmatprep.mubr.f32.mxu0 0.0
      %4629 = vmatmul.mubr.f32.gmra.mxu0 %v4406
      %v4630 = vpop.f32.mrf.mxu0
      %v4631 = vadd.f32 0.0, %v4630
      %v4632 = vpop.f32.mrf.mxu0
      %4633 = vmatprep.mubr.f32.mxu0 0.0
      %4634 = vmatmul.mubr.f32.gmra.mxu0 %v4409
      %v4635 = vpop.f32.mrf.mxu0
      %v4636 = vadd.f32 0.0, %v4635
      %v4637 = vpop.f32.mrf.mxu0
      %4638 = vdwg.mxu0
      %v4640 = vsel %vm258, %v4276, 0
      %v4643 = vsel %vm258, %v4277, 0
      %v4646 = vsel %vm1006, %v4312, 0
      %4648 = vmatprep.subr.mxu0 0.0
      %4649 = vmatpush1.msra.mxu0 0.0
      %4650 = vmatprep.subr.mxu0 0.0
      %4651 = vmatpush1.msra.mxu0 0.0
      %4652 = vmatprep.subr.mxu0 0.0
      %4653 = vmatpush1.msra.mxu0 0.0
      %4654 = vmatprep.subr.mxu0 0.0
      %4655 = vmatpush1.msra.mxu0 0.0
      %4656 = vmatprep.subr.mxu0 0.0
      %4657 = vmatpush1.msra.mxu0 0.0
      %4658 = vmatprep.subr.mxu0 0.0
      %4659 = vmatpush1.msra.mxu0 0.0
      %4660 = vmatprep.subr.mxu0 0.0
      %4661 = vmatpush1.msra.mxu0 0.0
      %4662 = vmatprep.subr.mxu0 0.0
      %4663 = vmatpush1.msra.mxu0 0.0
      %4664 = vmatprep.subr.mxu0 0.0
      %4665 = vmatpush1.msra.mxu0 0.0
      %4666 = vmatprep.subr.mxu0 0.0
      %4667 = vmatpush1.msra.mxu0 0.0
      %4668 = vmatprep.subr.mxu0 0.0
      %4669 = vmatpush1.msra.mxu0 0.0
      %4670 = vmatprep.subr.mxu0 0.0
      %4671 = vmatpush1.msra.mxu0 0.0
      %4672 = vmatprep.subr.mxu0 0.0
      %4673 = vmatpush1.msra.mxu0 0.0
      %4674 = vmatprep.subr.mxu0 0.0
      %4675 = vmatpush1.msra.mxu0 0.0
      %4676 = vmatprep.subr.mxu0 0.0
      %4677 = vmatpush1.msra.mxu0 0.0
      %4678 = vmatprep.subr.mxu0 0.0
      %4679 = vmatpush1.msra.mxu0 %v4646
      %4680 = vmatprep.subr.mxu0 0.0
      %4681 = vmatpush2.msra.mxu0 0.0
      %4682 = vmatprep.subr.mxu0 0.0
      %4683 = vmatpush2.msra.mxu0 0.0
      %4684 = vmatprep.subr.mxu0 0.0
      %4685 = vmatpush2.msra.mxu0 0.0
      %4686 = vmatprep.subr.mxu0 0.0
      %4687 = vmatpush2.msra.mxu0 0.0
      %4688 = vmatprep.subr.mxu0 0.0
      %4689 = vmatpush2.msra.mxu0 0.0
      %4690 = vmatprep.subr.mxu0 0.0
      %4691 = vmatpush2.msra.mxu0 0.0
      %4692 = vmatprep.subr.mxu0 0.0
      %4693 = vmatpush2.msra.mxu0 0.0
      %4694 = vmatprep.subr.mxu0 0.0
      %4695 = vmatpush2.msra.mxu0 0.0
      %4696 = vmatprep.subr.mxu0 0.0
      %4697 = vmatpush2.msra.mxu0 0.0
      %4698 = vmatprep.subr.mxu0 0.0
      %4699 = vmatpush2.msra.mxu0 0.0
      %4700 = vmatprep.subr.mxu0 0.0
      %4701 = vmatpush2.msra.mxu0 0.0
      %4702 = vmatprep.subr.mxu0 0.0
      %4703 = vmatpush2.msra.mxu0 0.0
      %4704 = vmatprep.subr.mxu0 0.0
      %4705 = vmatpush2.msra.mxu0 0.0
      %4706 = vmatprep.subr.mxu0 0.0
      %4707 = vmatpush2.msra.mxu0 0.0
      %4708 = vmatprep.subr.mxu0 0.0
      %4709 = vmatpush2.msra.mxu0 0.0
      %4710 = vmatprep.subr.mxu0 0.0
      %4711 = vmatpush2.msra.mxu0 0.0
      %4712 = vmatprep.mubr.f32.mxu0 0.0
      %4713 = vmatmul.mubr.f32.gmra.mxu0 %v4640
      %v4714 = vpop.f32.mrf.mxu0
      %v4715 = vadd.f32 %v4481, %v4714
      %v4716 = vpop.f32.mrf.mxu0
      %4717 = vmatprep.mubr.f32.mxu0 0.0
      %4718 = vmatmul.mubr.f32.gmra.mxu0 %v4643
      %v4719 = vpop.f32.mrf.mxu0
      %v4720 = vadd.f32 %v4486, %v4719
      %v4721 = vpop.f32.mrf.mxu0
      %4722 = vmatprep.mubr.f32.mxu0 0.0
      %4723 = vmatmul.mubr.f32.gmra.mxu0 %v4316
      %v4724 = vpop.f32.mrf.mxu0
      %v4725 = vadd.f32 %v4491, %v4724
      %v4726 = vpop.f32.mrf.mxu0
      %4727 = vmatprep.mubr.f32.mxu0 0.0
      %4728 = vmatmul.mubr.f32.gmra.mxu0 %v4319
      %v4729 = vpop.f32.mrf.mxu0
      %v4730 = vadd.f32 %v4496, %v4729
      %v4731 = vpop.f32.mrf.mxu0
      %4732 = vmatprep.mubr.f32.mxu0 0.0
      %4733 = vmatmul.mubr.f32.gmra.mxu0 %v4322
      %v4734 = vpop.f32.mrf.mxu0
      %v4735 = vadd.f32 %v4501, %v4734
      %v4736 = vpop.f32.mrf.mxu0
      %4737 = vmatprep.mubr.f32.mxu0 0.0
      %4738 = vmatmul.mubr.f32.gmra.mxu0 %v4325
      %v4739 = vpop.f32.mrf.mxu0
      %v4740 = vadd.f32 %v4506, %v4739
      %v4741 = vpop.f32.mrf.mxu0
      %4742 = vmatprep.mubr.f32.mxu0 0.0
      %4743 = vmatmul.mubr.f32.gmra.mxu0 %v4328
      %v4744 = vpop.f32.mrf.mxu0
      %v4745 = vadd.f32 %v4511, %v4744
      %v4746 = vpop.f32.mrf.mxu0
      %4747 = vmatprep.mubr.f32.mxu0 0.0
      %4748 = vmatmul.mubr.f32.gmra.mxu0 %v4331
      %v4749 = vpop.f32.mrf.mxu0
      %v4750 = vadd.f32 %v4516, %v4749
      %v4751 = vpop.f32.mrf.mxu0
      %4752 = vmatprep.mubr.f32.mxu0 0.0
      %4753 = vmatmul.mubr.f32.gmra.mxu0 %v4334
      %v4754 = vpop.f32.mrf.mxu0
      %v4755 = vadd.f32 %v4521, %v4754
      %v4756 = vpop.f32.mrf.mxu0
      %4757 = vmatprep.mubr.f32.mxu0 0.0
      %4758 = vmatmul.mubr.f32.gmra.mxu0 %v4337
      %v4759 = vpop.f32.mrf.mxu0
      %v4760 = vadd.f32 %v4526, %v4759
      %v4761 = vpop.f32.mrf.mxu0
      %4762 = vmatprep.mubr.f32.mxu0 0.0
      %4763 = vmatmul.mubr.f32.gmra.mxu0 %v4340
      %v4764 = vpop.f32.mrf.mxu0
      %v4765 = vadd.f32 %v4531, %v4764
      %v4766 = vpop.f32.mrf.mxu0
      %4767 = vmatprep.mubr.f32.mxu0 0.0
      %4768 = vmatmul.mubr.f32.gmra.mxu0 %v4343
      %v4769 = vpop.f32.mrf.mxu0
      %v4770 = vadd.f32 %v4536, %v4769
      %v4771 = vpop.f32.mrf.mxu0
      %4772 = vmatprep.mubr.f32.mxu0 0.0
      %4773 = vmatmul.mubr.f32.gmra.mxu0 %v4346
      %v4774 = vpop.f32.mrf.mxu0
      %v4775 = vadd.f32 %v4541, %v4774
      %v4776 = vpop.f32.mrf.mxu0
      %4777 = vmatprep.mubr.f32.mxu0 0.0
      %4778 = vmatmul.mubr.f32.gmra.mxu0 %v4349
      %v4779 = vpop.f32.mrf.mxu0
      %v4780 = vadd.f32 %v4546, %v4779
      %v4781 = vpop.f32.mrf.mxu0
      %4782 = vmatprep.mubr.f32.mxu0 0.0
      %4783 = vmatmul.mubr.f32.gmra.mxu0 %v4352
      %v4784 = vpop.f32.mrf.mxu0
      %v4785 = vadd.f32 %v4551, %v4784
      %v4786 = vpop.f32.mrf.mxu0
      %4787 = vmatprep.mubr.f32.mxu0 0.0
      %4788 = vmatmul.mubr.f32.gmra.mxu0 %v4355
      %v4789 = vpop.f32.mrf.mxu0
      %v4790 = vadd.f32 %v4556, %v4789
      %v4791 = vpop.f32.mrf.mxu0
      %4792 = vmatprep.mubr.f32.mxu0 0.0
      %4793 = vmatmul.mubr.f32.gmra.mxu0 %v4358
      %v4794 = vpop.f32.mrf.mxu0
      %v4795 = vadd.f32 %v4561, %v4794
      %v4796 = vpop.f32.mrf.mxu0
      %4797 = vmatprep.mubr.f32.mxu0 0.0
      %4798 = vmatmul.mubr.f32.gmra.mxu0 %v4361
      %v4799 = vpop.f32.mrf.mxu0
      %v4800 = vadd.f32 %v4566, %v4799
      %v4801 = vpop.f32.mrf.mxu0
      %4802 = vmatprep.mubr.f32.mxu0 0.0
      %4803 = vmatmul.mubr.f32.gmra.mxu0 %v4364
      %v4804 = vpop.f32.mrf.mxu0
      %v4805 = vadd.f32 %v4571, %v4804
      %v4806 = vpop.f32.mrf.mxu0
      %4807 = vmatprep.mubr.f32.mxu0 0.0
      %4808 = vmatmul.mubr.f32.gmra.mxu0 %v4367
      %v4809 = vpop.f32.mrf.mxu0
      %v4810 = vadd.f32 %v4576, %v4809
      %v4811 = vpop.f32.mrf.mxu0
      %4812 = vmatprep.mubr.f32.mxu0 0.0
      %4813 = vmatmul.mubr.f32.gmra.mxu0 %v4370
      %v4814 = vpop.f32.mrf.mxu0
      %v4815 = vadd.f32 %v4581, %v4814
      %v4816 = vpop.f32.mrf.mxu0
      %4817 = vmatprep.mubr.f32.mxu0 0.0
      %4818 = vmatmul.mubr.f32.gmra.mxu0 %v4373
      %v4819 = vpop.f32.mrf.mxu0
      %v4820 = vadd.f32 %v4586, %v4819
      %v4821 = vpop.f32.mrf.mxu0
      %4822 = vmatprep.mubr.f32.mxu0 0.0
      %4823 = vmatmul.mubr.f32.gmra.mxu0 %v4376
      %v4824 = vpop.f32.mrf.mxu0
      %v4825 = vadd.f32 %v4591, %v4824
      %v4826 = vpop.f32.mrf.mxu0
      %4827 = vmatprep.mubr.f32.mxu0 0.0
      %4828 = vmatmul.mubr.f32.gmra.mxu0 %v4379
      %v4829 = vpop.f32.mrf.mxu0
      %v4830 = vadd.f32 %v4596, %v4829
      %v4831 = vpop.f32.mrf.mxu0
      %4832 = vmatprep.mubr.f32.mxu0 0.0
      %4833 = vmatmul.mubr.f32.gmra.mxu0 %v4382
      %v4834 = vpop.f32.mrf.mxu0
      %v4835 = vadd.f32 %v4601, %v4834
      %v4836 = vpop.f32.mrf.mxu0
      %4837 = vmatprep.mubr.f32.mxu0 0.0
      %4838 = vmatmul.mubr.f32.gmra.mxu0 %v4385
      %v4839 = vpop.f32.mrf.mxu0
      %v4840 = vadd.f32 %v4606, %v4839
      %v4841 = vpop.f32.mrf.mxu0
      %4842 = vmatprep.mubr.f32.mxu0 0.0
      %4843 = vmatmul.mubr.f32.gmra.mxu0 %v4388
      %v4844 = vpop.f32.mrf.mxu0
      %v4845 = vadd.f32 %v4611, %v4844
      %v4846 = vpop.f32.mrf.mxu0
      %4847 = vmatprep.mubr.f32.mxu0 0.0
      %4848 = vmatmul.mubr.f32.gmra.mxu0 %v4391
      %v4849 = vpop.f32.mrf.mxu0
      %v4850 = vadd.f32 %v4616, %v4849
      %v4851 = vpop.f32.mrf.mxu0
      %4852 = vmatprep.mubr.f32.mxu0 0.0
      %4853 = vmatmul.mubr.f32.gmra.mxu0 %v4394
      %v4854 = vpop.f32.mrf.mxu0
      %v4855 = vadd.f32 %v4621, %v4854
      %v4856 = vpop.f32.mrf.mxu0
      %4857 = vmatprep.mubr.f32.mxu0 0.0
      %4858 = vmatmul.mubr.f32.gmra.mxu0 %v4397
      %v4859 = vpop.f32.mrf.mxu0
      %v4860 = vadd.f32 %v4626, %v4859
      %v4861 = vpop.f32.mrf.mxu0
      %4862 = vmatprep.mubr.f32.mxu0 0.0
      %4863 = vmatmul.mubr.f32.gmra.mxu0 %v4400
      %v4864 = vpop.f32.mrf.mxu0
      %v4865 = vadd.f32 %v4631, %v4864
      %v4866 = vpop.f32.mrf.mxu0
      %4867 = vmatprep.mubr.f32.mxu0 0.0
      %4868 = vmatmul.mubr.f32.gmra.mxu0 %v4403
      %v4869 = vpop.f32.mrf.mxu0
      %v4870 = vadd.f32 %v4636, %v4869
      %v4871 = vpop.f32.mrf.mxu0
      %4872 = vdwg.mxu0
      %s4873 = scalar_lea.vmem %s3, 24
      %v4874 = vld [vmem:[%s4873] sm:$0xf]
      %v4876 = vsel %vm258, %v4310, 0
      %v4879 = vsel %vm258, %v4311, 0
      %v4882 = vsel %vm1006, %v4874, 0
      %4884 = vmatprep.subr.mxu0 0.0
      %4885 = vmatpush1.msra.mxu0 0.0
      %4886 = vmatprep.subr.mxu0 0.0
      %4887 = vmatpush1.msra.mxu0 0.0
      %4888 = vmatprep.subr.mxu0 0.0
      %4889 = vmatpush1.msra.mxu0 0.0
      %4890 = vmatprep.subr.mxu0 0.0
      %4891 = vmatpush1.msra.mxu0 0.0
      %4892 = vmatprep.subr.mxu0 0.0
      %4893 = vmatpush1.msra.mxu0 0.0
      %4894 = vmatprep.subr.mxu0 0.0
      %4895 = vmatpush1.msra.mxu0 0.0
      %4896 = vmatprep.subr.mxu0 0.0
      %4897 = vmatpush1.msra.mxu0 0.0
      %4898 = vmatprep.subr.mxu0 0.0
      %4899 = vmatpush1.msra.mxu0 0.0
      %4900 = vmatprep.subr.mxu0 0.0
      %4901 = vmatpush1.msra.mxu0 0.0
      %4902 = vmatprep.subr.mxu0 0.0
      %4903 = vmatpush1.msra.mxu0 0.0
      %4904 = vmatprep.subr.mxu0 0.0
      %4905 = vmatpush1.msra.mxu0 0.0
      %4906 = vmatprep.subr.mxu0 0.0
      %4907 = vmatpush1.msra.mxu0 0.0
      %4908 = vmatprep.subr.mxu0 0.0
      %4909 = vmatpush1.msra.mxu0 0.0
      %4910 = vmatprep.subr.mxu0 0.0
      %4911 = vmatpush1.msra.mxu0 0.0
      %4912 = vmatprep.subr.mxu0 0.0
      %4913 = vmatpush1.msra.mxu0 0.0
      %4914 = vmatprep.subr.mxu0 0.0
      %4915 = vmatpush1.msra.mxu0 %v4882
      %4916 = vmatprep.subr.mxu0 0.0
      %4917 = vmatpush2.msra.mxu0 0.0
      %4918 = vmatprep.subr.mxu0 0.0
      %4919 = vmatpush2.msra.mxu0 0.0
      %4920 = vmatprep.subr.mxu0 0.0
      %4921 = vmatpush2.msra.mxu0 0.0
      %4922 = vmatprep.subr.mxu0 0.0
      %4923 = vmatpush2.msra.mxu0 0.0
      %4924 = vmatprep.subr.mxu0 0.0
      %4925 = vmatpush2.msra.mxu0 0.0
      %4926 = vmatprep.subr.mxu0 0.0
      %4927 = vmatpush2.msra.mxu0 0.0
      %4928 = vmatprep.subr.mxu0 0.0
      %4929 = vmatpush2.msra.mxu0 0.0
      %4930 = vmatprep.subr.mxu0 0.0
      %4931 = vmatpush2.msra.mxu0 0.0
      %4932 = vmatprep.subr.mxu0 0.0
      %4933 = vmatpush2.msra.mxu0 0.0
      %4934 = vmatprep.subr.mxu0 0.0
      %4935 = vmatpush2.msra.mxu0 0.0
      %4936 = vmatprep.subr.mxu0 0.0
      %4937 = vmatpush2.msra.mxu0 0.0
      %4938 = vmatprep.subr.mxu0 0.0
      %4939 = vmatpush2.msra.mxu0 0.0
      %4940 = vmatprep.subr.mxu0 0.0
      %4941 = vmatpush2.msra.mxu0 0.0
      %4942 = vmatprep.subr.mxu0 0.0
      %4943 = vmatpush2.msra.mxu0 0.0
      %4944 = vmatprep.subr.mxu0 0.0
      %4945 = vmatpush2.msra.mxu0 0.0
      %4946 = vmatprep.subr.mxu0 0.0
      %4947 = vmatpush2.msra.mxu0 0.0
      %4948 = vmatprep.mubr.f32.mxu0 0.0
      %4949 = vmatmul.mubr.f32.gmra.mxu0 %v4322
      %v4950 = vpop.f32.mrf.mxu0
      %v4951 = vadd.f32 0.0, %v4950
      %v4952 = vpop.f32.mrf.mxu0
      %4953 = vmatprep.mubr.f32.mxu0 0.0
      %4954 = vmatmul.mubr.f32.gmra.mxu0 %v4325
      %v4955 = vpop.f32.mrf.mxu0
      %v4956 = vadd.f32 0.0, %v4955
      %v4957 = vpop.f32.mrf.mxu0
      %4958 = vmatprep.mubr.f32.mxu0 0.0
      %4959 = vmatmul.mubr.f32.gmra.mxu0 %v4328
      %v4960 = vpop.f32.mrf.mxu0
      %v4961 = vadd.f32 0.0, %v4960
      %v4962 = vpop.f32.mrf.mxu0
      %4963 = vmatprep.mubr.f32.mxu0 0.0
      %4964 = vmatmul.mubr.f32.gmra.mxu0 %v4331
      %v4965 = vpop.f32.mrf.mxu0
      %v4966 = vadd.f32 0.0, %v4965
      %v4967 = vpop.f32.mrf.mxu0
      %4968 = vmatprep.mubr.f32.mxu0 0.0
      %4969 = vmatmul.mubr.f32.gmra.mxu0 %v4334
      %v4970 = vpop.f32.mrf.mxu0
      %v4971 = vadd.f32 0.0, %v4970
      %v4972 = vpop.f32.mrf.mxu0
      %4973 = vmatprep.mubr.f32.mxu0 0.0
      %4974 = vmatmul.mubr.f32.gmra.mxu0 %v4337
      %v4975 = vpop.f32.mrf.mxu0
      %v4976 = vadd.f32 0.0, %v4975
      %v4977 = vpop.f32.mrf.mxu0
      %4978 = vmatprep.mubr.f32.mxu0 0.0
      %4979 = vmatmul.mubr.f32.gmra.mxu0 %v4340
      %v4980 = vpop.f32.mrf.mxu0
      %v4981 = vadd.f32 0.0, %v4980
      %v4982 = vpop.f32.mrf.mxu0
      %4983 = vmatprep.mubr.f32.mxu0 0.0
      %4984 = vmatmul.mubr.f32.gmra.mxu0 %v4343
      %v4985 = vpop.f32.mrf.mxu0
      %v4986 = vadd.f32 0.0, %v4985
      %v4987 = vpop.f32.mrf.mxu0
      %4988 = vmatprep.mubr.f32.mxu0 0.0
      %4989 = vmatmul.mubr.f32.gmra.mxu0 %v4346
      %v4990 = vpop.f32.mrf.mxu0
      %v4991 = vadd.f32 0.0, %v4990
      %v4992 = vpop.f32.mrf.mxu0
      %4993 = vmatprep.mubr.f32.mxu0 0.0
      %4994 = vmatmul.mubr.f32.gmra.mxu0 %v4349
      %v4995 = vpop.f32.mrf.mxu0
      %v4996 = vadd.f32 0.0, %v4995
      %v4997 = vpop.f32.mrf.mxu0
      %4998 = vmatprep.mubr.f32.mxu0 0.0
      %4999 = vmatmul.mubr.f32.gmra.mxu0 %v4352
      %v5000 = vpop.f32.mrf.mxu0
      %v5001 = vadd.f32 0.0, %v5000
      %v5002 = vpop.f32.mrf.mxu0
      %5003 = vmatprep.mubr.f32.mxu0 0.0
      %5004 = vmatmul.mubr.f32.gmra.mxu0 %v4355
      %v5005 = vpop.f32.mrf.mxu0
      %v5006 = vadd.f32 0.0, %v5005
      %v5007 = vpop.f32.mrf.mxu0
      %5008 = vmatprep.mubr.f32.mxu0 0.0
      %5009 = vmatmul.mubr.f32.gmra.mxu0 %v4358
      %v5010 = vpop.f32.mrf.mxu0
      %v5011 = vadd.f32 0.0, %v5010
      %v5012 = vpop.f32.mrf.mxu0
      %5013 = vmatprep.mubr.f32.mxu0 0.0
      %5014 = vmatmul.mubr.f32.gmra.mxu0 %v4361
      %v5015 = vpop.f32.mrf.mxu0
      %v5016 = vadd.f32 0.0, %v5015
      %v5017 = vpop.f32.mrf.mxu0
      %5018 = vmatprep.mubr.f32.mxu0 0.0
      %5019 = vmatmul.mubr.f32.gmra.mxu0 %v4364
      %v5020 = vpop.f32.mrf.mxu0
      %v5021 = vadd.f32 0.0, %v5020
      %v5022 = vpop.f32.mrf.mxu0
      %5023 = vmatprep.mubr.f32.mxu0 0.0
      %5024 = vmatmul.mubr.f32.gmra.mxu0 %v4367
      %v5025 = vpop.f32.mrf.mxu0
      %v5026 = vadd.f32 0.0, %v5025
      %v5027 = vpop.f32.mrf.mxu0
      %5028 = vmatprep.mubr.f32.mxu0 0.0
      %5029 = vmatmul.mubr.f32.gmra.mxu0 %v4370
      %v5030 = vpop.f32.mrf.mxu0
      %v5031 = vadd.f32 0.0, %v5030
      %v5032 = vpop.f32.mrf.mxu0
      %5033 = vmatprep.mubr.f32.mxu0 0.0
      %5034 = vmatmul.mubr.f32.gmra.mxu0 %v4373
      %v5035 = vpop.f32.mrf.mxu0
      %v5036 = vadd.f32 0.0, %v5035
      %v5037 = vpop.f32.mrf.mxu0
      %5038 = vmatprep.mubr.f32.mxu0 0.0
      %5039 = vmatmul.mubr.f32.gmra.mxu0 %v4376
      %v5040 = vpop.f32.mrf.mxu0
      %v5041 = vadd.f32 0.0, %v5040
      %v5042 = vpop.f32.mrf.mxu0
      %5043 = vmatprep.mubr.f32.mxu0 0.0
      %5044 = vmatmul.mubr.f32.gmra.mxu0 %v4379
      %v5045 = vpop.f32.mrf.mxu0
      %v5046 = vadd.f32 0.0, %v5045
      %v5047 = vpop.f32.mrf.mxu0
      %5048 = vmatprep.mubr.f32.mxu0 0.0
      %5049 = vmatmul.mubr.f32.gmra.mxu0 %v4382
      %v5050 = vpop.f32.mrf.mxu0
      %v5051 = vadd.f32 0.0, %v5050
      %v5052 = vpop.f32.mrf.mxu0
      %5053 = vmatprep.mubr.f32.mxu0 0.0
      %5054 = vmatmul.mubr.f32.gmra.mxu0 %v4385
      %v5055 = vpop.f32.mrf.mxu0
      %v5056 = vadd.f32 0.0, %v5055
      %v5057 = vpop.f32.mrf.mxu0
      %5058 = vmatprep.mubr.f32.mxu0 0.0
      %5059 = vmatmul.mubr.f32.gmra.mxu0 %v4388
      %v5060 = vpop.f32.mrf.mxu0
      %v5061 = vadd.f32 0.0, %v5060
      %v5062 = vpop.f32.mrf.mxu0
      %5063 = vmatprep.mubr.f32.mxu0 0.0
      %5064 = vmatmul.mubr.f32.gmra.mxu0 %v4391
      %v5065 = vpop.f32.mrf.mxu0
      %v5066 = vadd.f32 0.0, %v5065
      %v5067 = vpop.f32.mrf.mxu0
      %5068 = vmatprep.mubr.f32.mxu0 0.0
      %5069 = vmatmul.mubr.f32.gmra.mxu0 %v4394
      %v5070 = vpop.f32.mrf.mxu0
      %v5071 = vadd.f32 0.0, %v5070
      %v5072 = vpop.f32.mrf.mxu0
      %5073 = vmatprep.mubr.f32.mxu0 0.0
      %5074 = vmatmul.mubr.f32.gmra.mxu0 %v4397
      %v5075 = vpop.f32.mrf.mxu0
      %v5076 = vadd.f32 0.0, %v5075
      %v5077 = vpop.f32.mrf.mxu0
      %5078 = vmatprep.mubr.f32.mxu0 0.0
      %5079 = vmatmul.mubr.f32.gmra.mxu0 %v4400
      %v5080 = vpop.f32.mrf.mxu0
      %v5081 = vadd.f32 0.0, %v5080
      %v5082 = vpop.f32.mrf.mxu0
      %5083 = vmatprep.mubr.f32.mxu0 0.0
      %5084 = vmatmul.mubr.f32.gmra.mxu0 %v4403
      %v5085 = vpop.f32.mrf.mxu0
      %v5086 = vadd.f32 0.0, %v5085
      %v5087 = vpop.f32.mrf.mxu0
      %5088 = vmatprep.mubr.f32.mxu0 0.0
      %5089 = vmatmul.mubr.f32.gmra.mxu0 %v4406
      %v5090 = vpop.f32.mrf.mxu0
      %v5091 = vadd.f32 0.0, %v5090
      %v5092 = vpop.f32.mrf.mxu0
      %5093 = vmatprep.mubr.f32.mxu0 0.0
      %5094 = vmatmul.mubr.f32.gmra.mxu0 %v4409
      %v5095 = vpop.f32.mrf.mxu0
      %v5096 = vadd.f32 0.0, %v5095
      %v5097 = vpop.f32.mrf.mxu0
      %5098 = vmatprep.mubr.f32.mxu0 0.0
      %5099 = vmatmul.mubr.f32.gmra.mxu0 %v4876
      %v5100 = vpop.f32.mrf.mxu0
      %v5101 = vadd.f32 0.0, %v5100
      %v5102 = vpop.f32.mrf.mxu0
      %5103 = vmatprep.mubr.f32.mxu0 0.0
      %5104 = vmatmul.mubr.f32.gmra.mxu0 %v4879
      %v5105 = vpop.f32.mrf.mxu0
      %v5106 = vadd.f32 0.0, %v5105
      %v5107 = vpop.f32.mrf.mxu0
      %5108 = vdwg.mxu0
      %v5109 = vadd.f32 %v4715, %v4951
      %v5110 = vadd.f32 %v4720, %v4956
      %v5111 = vadd.f32 %v4725, %v4961
      %v5112 = vadd.f32 %v4730, %v4966
      %v5113 = vadd.f32 %v4735, %v4971
      %v5114 = vadd.f32 %v4740, %v4976
      %v5115 = vadd.f32 %v4745, %v4981
      %v5116 = vadd.f32 %v4750, %v4986
      %v5117 = vadd.f32 %v4755, %v4991
      %v5118 = vadd.f32 %v4760, %v4996
      %v5119 = vadd.f32 %v4765, %v5001
      %v5120 = vadd.f32 %v4770, %v5006
      %v5121 = vadd.f32 %v4775, %v5011
      %v5122 = vadd.f32 %v4780, %v5016
      %v5123 = vadd.f32 %v4785, %v5021
      %v5124 = vadd.f32 %v4790, %v5026
      %v5125 = vadd.f32 %v4795, %v5031
      %v5126 = vadd.f32 %v4800, %v5036
      %v5127 = vadd.f32 %v4805, %v5041
      %v5128 = vadd.f32 %v4810, %v5046
      %v5129 = vadd.f32 %v4815, %v5051
      %v5130 = vadd.f32 %v4820, %v5056
      %v5131 = vadd.f32 %v4825, %v5061
      %v5132 = vadd.f32 %v4830, %v5066
      %v5133 = vadd.f32 %v4835, %v5071
      %v5134 = vadd.f32 %v4840, %v5076
      %v5135 = vadd.f32 %v4845, %v5081
      %v5136 = vadd.f32 %v4850, %v5086
      %v5137 = vadd.f32 %v4855, %v5091
      %v5138 = vadd.f32 %v4860, %v5096
      %v5139 = vadd.f32 %v4865, %v5101
      %v5140 = vadd.f32 %v4870, %v5106
      %v5141 = vld [vmem:[#allocation2 + $0x1] sm:$0xff]
      %v5142 = vld [vmem:[#allocation2 + $0x9] sm:$0xff]
      %v5143 = vld [vmem:[#allocation2 + $0x19] sm:$0xff]
      %v5144 = vld [vmem:[#allocation2 + $0x21] sm:$0xff]
      %v5145 = vld [vmem:[#allocation2 + $0x31] sm:$0xff]
      %v5146 = vld [vmem:[#allocation2 + $0x39] sm:$0xff]
      %v5147 = vld [vmem:[#allocation2 + $0x49] sm:$0xff]
      %v5148 = vld [vmem:[#allocation2 + $0x51] sm:$0xff]
      %v5149 = vld [vmem:[#allocation2 + $0x61] sm:$0xff]
      %v5150 = vld [vmem:[#allocation2 + $0x69] sm:$0xff]
      %v5151 = vld [vmem:[#allocation2 + $0x79] sm:$0xff]
      %v5152 = vld [vmem:[#allocation2 + $0x81] sm:$0xff]
      %v5153 = vld [vmem:[#allocation2 + $0x91] sm:$0xff]
      %v5154 = vld [vmem:[#allocation2 + $0x99] sm:$0xff]
      %v5155 = vld [vmem:[#allocation2 + $0xa9] sm:$0xff]
      %v5156 = vld [vmem:[#allocation2 + $0xb1] sm:$0xff]
      %v5157 = vld [vmem:[#allocation2 + $0xc1] sm:$0xff]
      %v5158 = vld [vmem:[#allocation2 + $0xc9] sm:$0xff]
      %v5159 = vld [vmem:[#allocation2 + $0xd9] sm:$0xff]
      %v5160 = vld [vmem:[#allocation2 + $0xe1] sm:$0xff]
      %v5161 = vld [vmem:[#allocation2 + $0xf1] sm:$0xff]
      %v5162 = vld [vmem:[#allocation2 + $0xf9] sm:$0xff]
      %v5163 = vld [vmem:[#allocation2 + $0x109] sm:$0xff]
      %v5164 = vld [vmem:[#allocation2 + $0x111] sm:$0xff]
      %v5165 = vld [vmem:[#allocation2 + $0x121] sm:$0xff]
      %v5166 = vld [vmem:[#allocation2 + $0x129] sm:$0xff]
      %v5167 = vld [vmem:[#allocation2 + $0x139] sm:$0xff]
      %v5168 = vld [vmem:[#allocation2 + $0x141] sm:$0xff]
      %v5169 = vld [vmem:[#allocation2 + $0x151] sm:$0xff]
      %v5170 = vld [vmem:[#allocation2 + $0x159] sm:$0xff]
      %v5171 = vld [vmem:[#allocation2 + $0x169] sm:$0xff]
      %v5172 = vld [vmem:[#allocation2 + $0x171] sm:$0xff]
      %v5173 = vld [vmem:[#allocation2 + $0x181] sm:$0xff]
      %v5174 = vld [vmem:[#allocation2 + $0x189] sm:$0xff]
      %v5175 = vld [vmem:[#allocation2 + $0x199] sm:$0xff]
      %v5176 = vld [vmem:[#allocation2 + $0x1a1] sm:$0xff]
      %s5177 = scalar_lea.vmem %s3, 4
      %v5178 = vld [vmem:[%s5177] sm:$0xf]
      %v5180 = vsel %vm258, %v5141, 0
      %v5183 = vsel %vm258, %v5142, 0
      %v5186 = vsel %vm258, %v5143, 0
      %v5189 = vsel %vm258, %v5144, 0
      %v5192 = vsel %vm258, %v5145, 0
      %v5195 = vsel %vm258, %v5146, 0
      %v5198 = vsel %vm258, %v5147, 0
      %v5201 = vsel %vm258, %v5148, 0
      %v5204 = vsel %vm258, %v5149, 0
      %v5207 = vsel %vm258, %v5150, 0
      %v5210 = vsel %vm258, %v5151, 0
      %v5213 = vsel %vm258, %v5152, 0
      %v5216 = vsel %vm258, %v5153, 0
      %v5219 = vsel %vm258, %v5154, 0
      %v5222 = vsel %vm258, %v5155, 0
      %v5225 = vsel %vm258, %v5156, 0
      %v5228 = vsel %vm258, %v5157, 0
      %v5231 = vsel %vm258, %v5158, 0
      %v5234 = vsel %vm258, %v5159, 0
      %v5237 = vsel %vm258, %v5160, 0
      %v5240 = vsel %vm258, %v5161, 0
      %v5243 = vsel %vm258, %v5162, 0
      %v5246 = vsel %vm258, %v5163, 0
      %v5249 = vsel %vm258, %v5164, 0
      %v5252 = vsel %vm258, %v5165, 0
      %v5255 = vsel %vm258, %v5166, 0
      %v5258 = vsel %vm258, %v5167, 0
      %v5261 = vsel %vm258, %v5168, 0
      %v5264 = vsel %vm258, %v5169, 0
      %v5267 = vsel %vm258, %v5170, 0
      %v5270 = vsel %vm258, %v5171, 0
      %v5273 = vsel %vm258, %v5172, 0
      %v5276 = vsel %vm1006, %v5178, 0
      %5278 = vmatprep.subr.mxu0 0.0
      %5279 = vmatpush1.msra.mxu0 0.0
      %5280 = vmatprep.subr.mxu0 0.0
      %5281 = vmatpush1.msra.mxu0 0.0
      %5282 = vmatprep.subr.mxu0 0.0
      %5283 = vmatpush1.msra.mxu0 0.0
      %5284 = vmatprep.subr.mxu0 0.0
      %5285 = vmatpush1.msra.mxu0 0.0
      %5286 = vmatprep.subr.mxu0 0.0
      %5287 = vmatpush1.msra.mxu0 0.0
      %5288 = vmatprep.subr.mxu0 0.0
      %5289 = vmatpush1.msra.mxu0 0.0
      %5290 = vmatprep.subr.mxu0 0.0
      %5291 = vmatpush1.msra.mxu0 0.0
      %5292 = vmatprep.subr.mxu0 0.0
      %5293 = vmatpush1.msra.mxu0 0.0
      %5294 = vmatprep.subr.mxu0 0.0
      %5295 = vmatpush1.msra.mxu0 0.0
      %5296 = vmatprep.subr.mxu0 0.0
      %5297 = vmatpush1.msra.mxu0 0.0
      %5298 = vmatprep.subr.mxu0 0.0
      %5299 = vmatpush1.msra.mxu0 0.0
      %5300 = vmatprep.subr.mxu0 0.0
      %5301 = vmatpush1.msra.mxu0 0.0
      %5302 = vmatprep.subr.mxu0 0.0
      %5303 = vmatpush1.msra.mxu0 0.0
      %5304 = vmatprep.subr.mxu0 0.0
      %5305 = vmatpush1.msra.mxu0 0.0
      %5306 = vmatprep.subr.mxu0 0.0
      %5307 = vmatpush1.msra.mxu0 0.0
      %5308 = vmatprep.subr.mxu0 0.0
      %5309 = vmatpush1.msra.mxu0 %v5276
      %5310 = vmatprep.subr.mxu0 0.0
      %5311 = vmatpush2.msra.mxu0 0.0
      %5312 = vmatprep.subr.mxu0 0.0
      %5313 = vmatpush2.msra.mxu0 0.0
      %5314 = vmatprep.subr.mxu0 0.0
      %5315 = vmatpush2.msra.mxu0 0.0
      %5316 = vmatprep.subr.mxu0 0.0
      %5317 = vmatpush2.msra.mxu0 0.0
      %5318 = vmatprep.subr.mxu0 0.0
      %5319 = vmatpush2.msra.mxu0 0.0
      %5320 = vmatprep.subr.mxu0 0.0
      %5321 = vmatpush2.msra.mxu0 0.0
      %5322 = vmatprep.subr.mxu0 0.0
      %5323 = vmatpush2.msra.mxu0 0.0
      %5324 = vmatprep.subr.mxu0 0.0
      %5325 = vmatpush2.msra.mxu0 0.0
      %5326 = vmatprep.subr.mxu0 0.0
      %5327 = vmatpush2.msra.mxu0 0.0
      %5328 = vmatprep.subr.mxu0 0.0
      %5329 = vmatpush2.msra.mxu0 0.0
      %5330 = vmatprep.subr.mxu0 0.0
      %5331 = vmatpush2.msra.mxu0 0.0
      %5332 = vmatprep.subr.mxu0 0.0
      %5333 = vmatpush2.msra.mxu0 0.0
      %5334 = vmatprep.subr.mxu0 0.0
      %5335 = vmatpush2.msra.mxu0 0.0
      %5336 = vmatprep.subr.mxu0 0.0
      %5337 = vmatpush2.msra.mxu0 0.0
      %5338 = vmatprep.subr.mxu0 0.0
      %5339 = vmatpush2.msra.mxu0 0.0
      %5340 = vmatprep.subr.mxu0 0.0
      %5341 = vmatpush2.msra.mxu0 0.0
      %5342 = vmatprep.mubr.f32.mxu0 0.0
      %5343 = vmatmul.mubr.f32.gmra.mxu0 %v5180
      %v5344 = vpop.f32.mrf.mxu0
      %v5345 = vadd.f32 0.0, %v5344
      %v5346 = vpop.f32.mrf.mxu0
      %5347 = vmatprep.mubr.f32.mxu0 0.0
      %5348 = vmatmul.mubr.f32.gmra.mxu0 %v5183
      %v5349 = vpop.f32.mrf.mxu0
      %v5350 = vadd.f32 0.0, %v5349
      %v5351 = vpop.f32.mrf.mxu0
      %5352 = vmatprep.mubr.f32.mxu0 0.0
      %5353 = vmatmul.mubr.f32.gmra.mxu0 %v5186
      %v5354 = vpop.f32.mrf.mxu0
      %v5355 = vadd.f32 0.0, %v5354
      %v5356 = vpop.f32.mrf.mxu0
      %5357 = vmatprep.mubr.f32.mxu0 0.0
      %5358 = vmatmul.mubr.f32.gmra.mxu0 %v5189
      %v5359 = vpop.f32.mrf.mxu0
      %v5360 = vadd.f32 0.0, %v5359
      %v5361 = vpop.f32.mrf.mxu0
      %5362 = vmatprep.mubr.f32.mxu0 0.0
      %5363 = vmatmul.mubr.f32.gmra.mxu0 %v5192
      %v5364 = vpop.f32.mrf.mxu0
      %v5365 = vadd.f32 0.0, %v5364
      %v5366 = vpop.f32.mrf.mxu0
      %5367 = vmatprep.mubr.f32.mxu0 0.0
      %5368 = vmatmul.mubr.f32.gmra.mxu0 %v5195
      %v5369 = vpop.f32.mrf.mxu0
      %v5370 = vadd.f32 0.0, %v5369
      %v5371 = vpop.f32.mrf.mxu0
      %5372 = vmatprep.mubr.f32.mxu0 0.0
      %5373 = vmatmul.mubr.f32.gmra.mxu0 %v5198
      %v5374 = vpop.f32.mrf.mxu0
      %v5375 = vadd.f32 0.0, %v5374
      %v5376 = vpop.f32.mrf.mxu0
      %5377 = vmatprep.mubr.f32.mxu0 0.0
      %5378 = vmatmul.mubr.f32.gmra.mxu0 %v5201
      %v5379 = vpop.f32.mrf.mxu0
      %v5380 = vadd.f32 0.0, %v5379
      %v5381 = vpop.f32.mrf.mxu0
      %5382 = vmatprep.mubr.f32.mxu0 0.0
      %5383 = vmatmul.mubr.f32.gmra.mxu0 %v5204
      %v5384 = vpop.f32.mrf.mxu0
      %v5385 = vadd.f32 0.0, %v5384
      %v5386 = vpop.f32.mrf.mxu0
      %5387 = vmatprep.mubr.f32.mxu0 0.0
      %5388 = vmatmul.mubr.f32.gmra.mxu0 %v5207
      %v5389 = vpop.f32.mrf.mxu0
      %v5390 = vadd.f32 0.0, %v5389
      %v5391 = vpop.f32.mrf.mxu0
      %5392 = vmatprep.mubr.f32.mxu0 0.0
      %5393 = vmatmul.mubr.f32.gmra.mxu0 %v5210
      %v5394 = vpop.f32.mrf.mxu0
      %v5395 = vadd.f32 0.0, %v5394
      %v5396 = vpop.f32.mrf.mxu0
      %5397 = vmatprep.mubr.f32.mxu0 0.0
      %5398 = vmatmul.mubr.f32.gmra.mxu0 %v5213
      %v5399 = vpop.f32.mrf.mxu0
      %v5400 = vadd.f32 0.0, %v5399
      %v5401 = vpop.f32.mrf.mxu0
      %5402 = vmatprep.mubr.f32.mxu0 0.0
      %5403 = vmatmul.mubr.f32.gmra.mxu0 %v5216
      %v5404 = vpop.f32.mrf.mxu0
      %v5405 = vadd.f32 0.0, %v5404
      %v5406 = vpop.f32.mrf.mxu0
      %5407 = vmatprep.mubr.f32.mxu0 0.0
      %5408 = vmatmul.mubr.f32.gmra.mxu0 %v5219
      %v5409 = vpop.f32.mrf.mxu0
      %v5410 = vadd.f32 0.0, %v5409
      %v5411 = vpop.f32.mrf.mxu0
      %5412 = vmatprep.mubr.f32.mxu0 0.0
      %5413 = vmatmul.mubr.f32.gmra.mxu0 %v5222
      %v5414 = vpop.f32.mrf.mxu0
      %v5415 = vadd.f32 0.0, %v5414
      %v5416 = vpop.f32.mrf.mxu0
      %5417 = vmatprep.mubr.f32.mxu0 0.0
      %5418 = vmatmul.mubr.f32.gmra.mxu0 %v5225
      %v5419 = vpop.f32.mrf.mxu0
      %v5420 = vadd.f32 0.0, %v5419
      %v5421 = vpop.f32.mrf.mxu0
      %5422 = vmatprep.mubr.f32.mxu0 0.0
      %5423 = vmatmul.mubr.f32.gmra.mxu0 %v5228
      %v5424 = vpop.f32.mrf.mxu0
      %v5425 = vadd.f32 0.0, %v5424
      %v5426 = vpop.f32.mrf.mxu0
      %5427 = vmatprep.mubr.f32.mxu0 0.0
      %5428 = vmatmul.mubr.f32.gmra.mxu0 %v5231
      %v5429 = vpop.f32.mrf.mxu0
      %v5430 = vadd.f32 0.0, %v5429
      %v5431 = vpop.f32.mrf.mxu0
      %5432 = vmatprep.mubr.f32.mxu0 0.0
      %5433 = vmatmul.mubr.f32.gmra.mxu0 %v5234
      %v5434 = vpop.f32.mrf.mxu0
      %v5435 = vadd.f32 0.0, %v5434
      %v5436 = vpop.f32.mrf.mxu0
      %5437 = vmatprep.mubr.f32.mxu0 0.0
      %5438 = vmatmul.mubr.f32.gmra.mxu0 %v5237
      %v5439 = vpop.f32.mrf.mxu0
      %v5440 = vadd.f32 0.0, %v5439
      %v5441 = vpop.f32.mrf.mxu0
      %5442 = vmatprep.mubr.f32.mxu0 0.0
      %5443 = vmatmul.mubr.f32.gmra.mxu0 %v5240
      %v5444 = vpop.f32.mrf.mxu0
      %v5445 = vadd.f32 0.0, %v5444
      %v5446 = vpop.f32.mrf.mxu0
      %5447 = vmatprep.mubr.f32.mxu0 0.0
      %5448 = vmatmul.mubr.f32.gmra.mxu0 %v5243
      %v5449 = vpop.f32.mrf.mxu0
      %v5450 = vadd.f32 0.0, %v5449
      %v5451 = vpop.f32.mrf.mxu0
      %5452 = vmatprep.mubr.f32.mxu0 0.0
      %5453 = vmatmul.mubr.f32.gmra.mxu0 %v5246
      %v5454 = vpop.f32.mrf.mxu0
      %v5455 = vadd.f32 0.0, %v5454
      %v5456 = vpop.f32.mrf.mxu0
      %5457 = vmatprep.mubr.f32.mxu0 0.0
      %5458 = vmatmul.mubr.f32.gmra.mxu0 %v5249
      %v5459 = vpop.f32.mrf.mxu0
      %v5460 = vadd.f32 0.0, %v5459
      %v5461 = vpop.f32.mrf.mxu0
      %5462 = vmatprep.mubr.f32.mxu0 0.0
      %5463 = vmatmul.mubr.f32.gmra.mxu0 %v5252
      %v5464 = vpop.f32.mrf.mxu0
      %v5465 = vadd.f32 0.0, %v5464
      %v5466 = vpop.f32.mrf.mxu0
      %5467 = vmatprep.mubr.f32.mxu0 0.0
      %5468 = vmatmul.mubr.f32.gmra.mxu0 %v5255
      %v5469 = vpop.f32.mrf.mxu0
      %v5470 = vadd.f32 0.0, %v5469
      %v5471 = vpop.f32.mrf.mxu0
      %5472 = vmatprep.mubr.f32.mxu0 0.0
      %5473 = vmatmul.mubr.f32.gmra.mxu0 %v5258
      %v5474 = vpop.f32.mrf.mxu0
      %v5475 = vadd.f32 0.0, %v5474
      %v5476 = vpop.f32.mrf.mxu0
      %5477 = vmatprep.mubr.f32.mxu0 0.0
      %5478 = vmatmul.mubr.f32.gmra.mxu0 %v5261
      %v5479 = vpop.f32.mrf.mxu0
      %v5480 = vadd.f32 0.0, %v5479
      %v5481 = vpop.f32.mrf.mxu0
      %5482 = vmatprep.mubr.f32.mxu0 0.0
      %5483 = vmatmul.mubr.f32.gmra.mxu0 %v5264
      %v5484 = vpop.f32.mrf.mxu0
      %v5485 = vadd.f32 0.0, %v5484
      %v5486 = vpop.f32.mrf.mxu0
      %5487 = vmatprep.mubr.f32.mxu0 0.0
      %5488 = vmatmul.mubr.f32.gmra.mxu0 %v5267
      %v5489 = vpop.f32.mrf.mxu0
      %v5490 = vadd.f32 0.0, %v5489
      %v5491 = vpop.f32.mrf.mxu0
      %5492 = vmatprep.mubr.f32.mxu0 0.0
      %5493 = vmatmul.mubr.f32.gmra.mxu0 %v5270
      %v5494 = vpop.f32.mrf.mxu0
      %v5495 = vadd.f32 0.0, %v5494
      %v5496 = vpop.f32.mrf.mxu0
      %5497 = vmatprep.mubr.f32.mxu0 0.0
      %5498 = vmatmul.mubr.f32.gmra.mxu0 %v5273
      %v5499 = vpop.f32.mrf.mxu0
      %v5500 = vadd.f32 0.0, %v5499
      %v5501 = vpop.f32.mrf.mxu0
      %5502 = vdwg.mxu0
      %v5503 = vadd.f32 %v5109, %v5345
      %v5504 = vadd.f32 %v5110, %v5350
      %v5505 = vadd.f32 %v5111, %v5355
      %v5506 = vadd.f32 %v5112, %v5360
      %v5507 = vadd.f32 %v5113, %v5365
      %v5508 = vadd.f32 %v5114, %v5370
      %v5509 = vadd.f32 %v5115, %v5375
      %v5510 = vadd.f32 %v5116, %v5380
      %v5511 = vadd.f32 %v5117, %v5385
      %v5512 = vadd.f32 %v5118, %v5390
      %v5513 = vadd.f32 %v5119, %v5395
      %v5514 = vadd.f32 %v5120, %v5400
      %v5515 = vadd.f32 %v5121, %v5405
      %v5516 = vadd.f32 %v5122, %v5410
      %v5517 = vadd.f32 %v5123, %v5415
      %v5518 = vadd.f32 %v5124, %v5420
      %v5519 = vadd.f32 %v5125, %v5425
      %v5520 = vadd.f32 %v5126, %v5430
      %v5521 = vadd.f32 %v5127, %v5435
      %v5522 = vadd.f32 %v5128, %v5440
      %v5523 = vadd.f32 %v5129, %v5445
      %v5524 = vadd.f32 %v5130, %v5450
      %v5525 = vadd.f32 %v5131, %v5455
      %v5526 = vadd.f32 %v5132, %v5460
      %v5527 = vadd.f32 %v5133, %v5465
      %v5528 = vadd.f32 %v5134, %v5470
      %v5529 = vadd.f32 %v5135, %v5475
      %v5530 = vadd.f32 %v5136, %v5480
      %v5531 = vadd.f32 %v5137, %v5485
      %v5532 = vadd.f32 %v5138, %v5490
      %v5533 = vadd.f32 %v5139, %v5495
      %v5534 = vadd.f32 %v5140, %v5500
      %s5535 = scalar_lea.vmem %s3, 16
      %v5536 = vld [vmem:[%s5535] sm:$0xf]
      %v5538 = vsel %vm258, %v5173, 0
      %v5541 = vsel %vm258, %v5174, 0
      %v5544 = vsel %vm1006, %v5536, 0
      %5546 = vmatprep.subr.mxu0 0.0
      %5547 = vmatpush1.msra.mxu0 0.0
      %5548 = vmatprep.subr.mxu0 0.0
      %5549 = vmatpush1.msra.mxu0 0.0
      %5550 = vmatprep.subr.mxu0 0.0
      %5551 = vmatpush1.msra.mxu0 0.0
      %5552 = vmatprep.subr.mxu0 0.0
      %5553 = vmatpush1.msra.mxu0 0.0
      %5554 = vmatprep.subr.mxu0 0.0
      %5555 = vmatpush1.msra.mxu0 0.0
      %5556 = vmatprep.subr.mxu0 0.0
      %5557 = vmatpush1.msra.mxu0 0.0
      %5558 = vmatprep.subr.mxu0 0.0
      %5559 = vmatpush1.msra.mxu0 0.0
      %5560 = vmatprep.subr.mxu0 0.0
      %5561 = vmatpush1.msra.mxu0 0.0
      %5562 = vmatprep.subr.mxu0 0.0
      %5563 = vmatpush1.msra.mxu0 0.0
      %5564 = vmatprep.subr.mxu0 0.0
      %5565 = vmatpush1.msra.mxu0 0.0
      %5566 = vmatprep.subr.mxu0 0.0
      %5567 = vmatpush1.msra.mxu0 0.0
      %5568 = vmatprep.subr.mxu0 0.0
      %5569 = vmatpush1.msra.mxu0 0.0
      %5570 = vmatprep.subr.mxu0 0.0
      %5571 = vmatpush1.msra.mxu0 0.0
      %5572 = vmatprep.subr.mxu0 0.0
      %5573 = vmatpush1.msra.mxu0 0.0
      %5574 = vmatprep.subr.mxu0 0.0
      %5575 = vmatpush1.msra.mxu0 0.0
      %5576 = vmatprep.subr.mxu0 0.0
      %5577 = vmatpush1.msra.mxu0 %v5544
      %5578 = vmatprep.subr.mxu0 0.0
      %5579 = vmatpush2.msra.mxu0 0.0
      %5580 = vmatprep.subr.mxu0 0.0
      %5581 = vmatpush2.msra.mxu0 0.0
      %5582 = vmatprep.subr.mxu0 0.0
      %5583 = vmatpush2.msra.mxu0 0.0
      %5584 = vmatprep.subr.mxu0 0.0
      %5585 = vmatpush2.msra.mxu0 0.0
      %5586 = vmatprep.subr.mxu0 0.0
      %5587 = vmatpush2.msra.mxu0 0.0
      %5588 = vmatprep.subr.mxu0 0.0
      %5589 = vmatpush2.msra.mxu0 0.0
      %5590 = vmatprep.subr.mxu0 0.0
      %5591 = vmatpush2.msra.mxu0 0.0
      %5592 = vmatprep.subr.mxu0 0.0
      %5593 = vmatpush2.msra.mxu0 0.0
      %5594 = vmatprep.subr.mxu0 0.0
      %5595 = vmatpush2.msra.mxu0 0.0
      %5596 = vmatprep.subr.mxu0 0.0
      %5597 = vmatpush2.msra.mxu0 0.0
      %5598 = vmatprep.subr.mxu0 0.0
      %5599 = vmatpush2.msra.mxu0 0.0
      %5600 = vmatprep.subr.mxu0 0.0
      %5601 = vmatpush2.msra.mxu0 0.0
      %5602 = vmatprep.subr.mxu0 0.0
      %5603 = vmatpush2.msra.mxu0 0.0
      %5604 = vmatprep.subr.mxu0 0.0
      %5605 = vmatpush2.msra.mxu0 0.0
      %5606 = vmatprep.subr.mxu0 0.0
      %5607 = vmatpush2.msra.mxu0 0.0
      %5608 = vmatprep.subr.mxu0 0.0
      %5609 = vmatpush2.msra.mxu0 0.0
      %5610 = vmatprep.mubr.f32.mxu0 0.0
      %5611 = vmatmul.mubr.f32.gmra.mxu0 %v5186
      %v5612 = vpop.f32.mrf.mxu0
      %v5613 = vadd.f32 0.0, %v5612
      %v5614 = vpop.f32.mrf.mxu0
      %5615 = vmatprep.mubr.f32.mxu0 0.0
      %5616 = vmatmul.mubr.f32.gmra.mxu0 %v5189
      %v5617 = vpop.f32.mrf.mxu0
      %v5618 = vadd.f32 0.0, %v5617
      %v5619 = vpop.f32.mrf.mxu0
      %5620 = vmatprep.mubr.f32.mxu0 0.0
      %5621 = vmatmul.mubr.f32.gmra.mxu0 %v5192
      %v5622 = vpop.f32.mrf.mxu0
      %v5623 = vadd.f32 0.0, %v5622
      %v5624 = vpop.f32.mrf.mxu0
      %5625 = vmatprep.mubr.f32.mxu0 0.0
      %5626 = vmatmul.mubr.f32.gmra.mxu0 %v5195
      %v5627 = vpop.f32.mrf.mxu0
      %v5628 = vadd.f32 0.0, %v5627
      %v5629 = vpop.f32.mrf.mxu0
      %5630 = vmatprep.mubr.f32.mxu0 0.0
      %5631 = vmatmul.mubr.f32.gmra.mxu0 %v5198
      %v5632 = vpop.f32.mrf.mxu0
      %v5633 = vadd.f32 0.0, %v5632
      %v5634 = vpop.f32.mrf.mxu0
      %5635 = vmatprep.mubr.f32.mxu0 0.0
      %5636 = vmatmul.mubr.f32.gmra.mxu0 %v5201
      %v5637 = vpop.f32.mrf.mxu0
      %v5638 = vadd.f32 0.0, %v5637
      %v5639 = vpop.f32.mrf.mxu0
      %5640 = vmatprep.mubr.f32.mxu0 0.0
      %5641 = vmatmul.mubr.f32.gmra.mxu0 %v5204
      %v5642 = vpop.f32.mrf.mxu0
      %v5643 = vadd.f32 0.0, %v5642
      %v5644 = vpop.f32.mrf.mxu0
      %5645 = vmatprep.mubr.f32.mxu0 0.0
      %5646 = vmatmul.mubr.f32.gmra.mxu0 %v5207
      %v5647 = vpop.f32.mrf.mxu0
      %v5648 = vadd.f32 0.0, %v5647
      %v5649 = vpop.f32.mrf.mxu0
      %5650 = vmatprep.mubr.f32.mxu0 0.0
      %5651 = vmatmul.mubr.f32.gmra.mxu0 %v5210
      %v5652 = vpop.f32.mrf.mxu0
      %v5653 = vadd.f32 0.0, %v5652
      %v5654 = vpop.f32.mrf.mxu0
      %5655 = vmatprep.mubr.f32.mxu0 0.0
      %5656 = vmatmul.mubr.f32.gmra.mxu0 %v5213
      %v5657 = vpop.f32.mrf.mxu0
      %v5658 = vadd.f32 0.0, %v5657
      %v5659 = vpop.f32.mrf.mxu0
      %5660 = vmatprep.mubr.f32.mxu0 0.0
      %5661 = vmatmul.mubr.f32.gmra.mxu0 %v5216
      %v5662 = vpop.f32.mrf.mxu0
      %v5663 = vadd.f32 0.0, %v5662
      %v5664 = vpop.f32.mrf.mxu0
      %5665 = vmatprep.mubr.f32.mxu0 0.0
      %5666 = vmatmul.mubr.f32.gmra.mxu0 %v5219
      %v5667 = vpop.f32.mrf.mxu0
      %v5668 = vadd.f32 0.0, %v5667
      %v5669 = vpop.f32.mrf.mxu0
      %5670 = vmatprep.mubr.f32.mxu0 0.0
      %5671 = vmatmul.mubr.f32.gmra.mxu0 %v5222
      %v5672 = vpop.f32.mrf.mxu0
      %v5673 = vadd.f32 0.0, %v5672
      %v5674 = vpop.f32.mrf.mxu0
      %5675 = vmatprep.mubr.f32.mxu0 0.0
      %5676 = vmatmul.mubr.f32.gmra.mxu0 %v5225
      %v5677 = vpop.f32.mrf.mxu0
      %v5678 = vadd.f32 0.0, %v5677
      %v5679 = vpop.f32.mrf.mxu0
      %5680 = vmatprep.mubr.f32.mxu0 0.0
      %5681 = vmatmul.mubr.f32.gmra.mxu0 %v5228
      %v5682 = vpop.f32.mrf.mxu0
      %v5683 = vadd.f32 0.0, %v5682
      %v5684 = vpop.f32.mrf.mxu0
      %5685 = vmatprep.mubr.f32.mxu0 0.0
      %5686 = vmatmul.mubr.f32.gmra.mxu0 %v5231
      %v5687 = vpop.f32.mrf.mxu0
      %v5688 = vadd.f32 0.0, %v5687
      %v5689 = vpop.f32.mrf.mxu0
      %5690 = vmatprep.mubr.f32.mxu0 0.0
      %5691 = vmatmul.mubr.f32.gmra.mxu0 %v5234
      %v5692 = vpop.f32.mrf.mxu0
      %v5693 = vadd.f32 0.0, %v5692
      %v5694 = vpop.f32.mrf.mxu0
      %5695 = vmatprep.mubr.f32.mxu0 0.0
      %5696 = vmatmul.mubr.f32.gmra.mxu0 %v5237
      %v5697 = vpop.f32.mrf.mxu0
      %v5698 = vadd.f32 0.0, %v5697
      %v5699 = vpop.f32.mrf.mxu0
      %5700 = vmatprep.mubr.f32.mxu0 0.0
      %5701 = vmatmul.mubr.f32.gmra.mxu0 %v5240
      %v5702 = vpop.f32.mrf.mxu0
      %v5703 = vadd.f32 0.0, %v5702
      %v5704 = vpop.f32.mrf.mxu0
      %5705 = vmatprep.mubr.f32.mxu0 0.0
      %5706 = vmatmul.mubr.f32.gmra.mxu0 %v5243
      %v5707 = vpop.f32.mrf.mxu0
      %v5708 = vadd.f32 0.0, %v5707
      %v5709 = vpop.f32.mrf.mxu0
      %5710 = vmatprep.mubr.f32.mxu0 0.0
      %5711 = vmatmul.mubr.f32.gmra.mxu0 %v5246
      %v5712 = vpop.f32.mrf.mxu0
      %v5713 = vadd.f32 0.0, %v5712
      %v5714 = vpop.f32.mrf.mxu0
      %5715 = vmatprep.mubr.f32.mxu0 0.0
      %5716 = vmatmul.mubr.f32.gmra.mxu0 %v5249
      %v5717 = vpop.f32.mrf.mxu0
      %v5718 = vadd.f32 0.0, %v5717
      %v5719 = vpop.f32.mrf.mxu0
      %5720 = vmatprep.mubr.f32.mxu0 0.0
      %5721 = vmatmul.mubr.f32.gmra.mxu0 %v5252
      %v5722 = vpop.f32.mrf.mxu0
      %v5723 = vadd.f32 0.0, %v5722
      %v5724 = vpop.f32.mrf.mxu0
      %5725 = vmatprep.mubr.f32.mxu0 0.0
      %5726 = vmatmul.mubr.f32.gmra.mxu0 %v5255
      %v5727 = vpop.f32.mrf.mxu0
      %v5728 = vadd.f32 0.0, %v5727
      %v5729 = vpop.f32.mrf.mxu0
      %5730 = vmatprep.mubr.f32.mxu0 0.0
      %5731 = vmatmul.mubr.f32.gmra.mxu0 %v5258
      %v5732 = vpop.f32.mrf.mxu0
      %v5733 = vadd.f32 0.0, %v5732
      %v5734 = vpop.f32.mrf.mxu0
      %5735 = vmatprep.mubr.f32.mxu0 0.0
      %5736 = vmatmul.mubr.f32.gmra.mxu0 %v5261
      %v5737 = vpop.f32.mrf.mxu0
      %v5738 = vadd.f32 0.0, %v5737
      %v5739 = vpop.f32.mrf.mxu0
      %5740 = vmatprep.mubr.f32.mxu0 0.0
      %5741 = vmatmul.mubr.f32.gmra.mxu0 %v5264
      %v5742 = vpop.f32.mrf.mxu0
      %v5743 = vadd.f32 0.0, %v5742
      %v5744 = vpop.f32.mrf.mxu0
      %5745 = vmatprep.mubr.f32.mxu0 0.0
      %5746 = vmatmul.mubr.f32.gmra.mxu0 %v5267
      %v5747 = vpop.f32.mrf.mxu0
      %v5748 = vadd.f32 0.0, %v5747
      %v5749 = vpop.f32.mrf.mxu0
      %5750 = vmatprep.mubr.f32.mxu0 0.0
      %5751 = vmatmul.mubr.f32.gmra.mxu0 %v5270
      %v5752 = vpop.f32.mrf.mxu0
      %v5753 = vadd.f32 0.0, %v5752
      %v5754 = vpop.f32.mrf.mxu0
      %5755 = vmatprep.mubr.f32.mxu0 0.0
      %5756 = vmatmul.mubr.f32.gmra.mxu0 %v5273
      %v5757 = vpop.f32.mrf.mxu0
      %v5758 = vadd.f32 0.0, %v5757
      %v5759 = vpop.f32.mrf.mxu0
      %5760 = vmatprep.mubr.f32.mxu0 0.0
      %5761 = vmatmul.mubr.f32.gmra.mxu0 %v5538
      %v5762 = vpop.f32.mrf.mxu0
      %v5763 = vadd.f32 0.0, %v5762
      %v5764 = vpop.f32.mrf.mxu0
      %5765 = vmatprep.mubr.f32.mxu0 0.0
      %5766 = vmatmul.mubr.f32.gmra.mxu0 %v5541
      %v5767 = vpop.f32.mrf.mxu0
      %v5768 = vadd.f32 0.0, %v5767
      %v5769 = vpop.f32.mrf.mxu0
      %5770 = vdwg.mxu0
      %v5771 = vadd.f32 %v5503, %v5613
      %v5772 = vadd.f32 %v5504, %v5618
      %v5773 = vadd.f32 %v5505, %v5623
      %v5774 = vadd.f32 %v5506, %v5628
      %v5775 = vadd.f32 %v5507, %v5633
      %v5776 = vadd.f32 %v5508, %v5638
      %v5777 = vadd.f32 %v5509, %v5643
      %v5778 = vadd.f32 %v5510, %v5648
      %v5779 = vadd.f32 %v5511, %v5653
      %v5780 = vadd.f32 %v5512, %v5658
      %v5781 = vadd.f32 %v5513, %v5663
      %v5782 = vadd.f32 %v5514, %v5668
      %v5783 = vadd.f32 %v5515, %v5673
      %v5784 = vadd.f32 %v5516, %v5678
      %v5785 = vadd.f32 %v5517, %v5683
      %v5786 = vadd.f32 %v5518, %v5688
      %v5787 = vadd.f32 %v5519, %v5693
      %v5788 = vadd.f32 %v5520, %v5698
      %v5789 = vadd.f32 %v5521, %v5703
      %v5790 = vadd.f32 %v5522, %v5708
      %v5791 = vadd.f32 %v5523, %v5713
      %v5792 = vadd.f32 %v5524, %v5718
      %v5793 = vadd.f32 %v5525, %v5723
      %v5794 = vadd.f32 %v5526, %v5728
      %v5795 = vadd.f32 %v5527, %v5733
      %v5796 = vadd.f32 %v5528, %v5738
      %v5797 = vadd.f32 %v5529, %v5743
      %v5798 = vadd.f32 %v5530, %v5748
      %v5799 = vadd.f32 %v5531, %v5753
      %v5800 = vadd.f32 %v5532, %v5758
      %v5801 = vadd.f32 %v5533, %v5763
      %v5802 = vadd.f32 %v5534, %v5768
      %s5803 = scalar_lea.vmem %s3, 28
      %v5804 = vld [vmem:[%s5803] sm:$0xf]
      %v5806 = vsel %vm258, %v5175, 0
      %v5809 = vsel %vm258, %v5176, 0
      %v5812 = vsel %vm1006, %v5804, 0
      %5814 = vmatprep.subr.mxu0 0.0
      %5815 = vmatpush1.msra.mxu0 0.0
      %5816 = vmatprep.subr.mxu0 0.0
      %5817 = vmatpush1.msra.mxu0 0.0
      %5818 = vmatprep.subr.mxu0 0.0
      %5819 = vmatpush1.msra.mxu0 0.0
      %5820 = vmatprep.subr.mxu0 0.0
      %5821 = vmatpush1.msra.mxu0 0.0
      %5822 = vmatprep.subr.mxu0 0.0
      %5823 = vmatpush1.msra.mxu0 0.0
      %5824 = vmatprep.subr.mxu0 0.0
      %5825 = vmatpush1.msra.mxu0 0.0
      %5826 = vmatprep.subr.mxu0 0.0
      %5827 = vmatpush1.msra.mxu0 0.0
      %5828 = vmatprep.subr.mxu0 0.0
      %5829 = vmatpush1.msra.mxu0 0.0
      %5830 = vmatprep.subr.mxu0 0.0
      %5831 = vmatpush1.msra.mxu0 0.0
      %5832 = vmatprep.subr.mxu0 0.0
      %5833 = vmatpush1.msra.mxu0 0.0
      %5834 = vmatprep.subr.mxu0 0.0
      %5835 = vmatpush1.msra.mxu0 0.0
      %5836 = vmatprep.subr.mxu0 0.0
      %5837 = vmatpush1.msra.mxu0 0.0
      %5838 = vmatprep.subr.mxu0 0.0
      %5839 = vmatpush1.msra.mxu0 0.0
      %5840 = vmatprep.subr.mxu0 0.0
      %5841 = vmatpush1.msra.mxu0 0.0
      %5842 = vmatprep.subr.mxu0 0.0
      %5843 = vmatpush1.msra.mxu0 0.0
      %5844 = vmatprep.subr.mxu0 0.0
      %5845 = vmatpush1.msra.mxu0 %v5812
      %5846 = vmatprep.subr.mxu0 0.0
      %5847 = vmatpush2.msra.mxu0 0.0
      %5848 = vmatprep.subr.mxu0 0.0
      %5849 = vmatpush2.msra.mxu0 0.0
      %5850 = vmatprep.subr.mxu0 0.0
      %5851 = vmatpush2.msra.mxu0 0.0
      %5852 = vmatprep.subr.mxu0 0.0
      %5853 = vmatpush2.msra.mxu0 0.0
      %5854 = vmatprep.subr.mxu0 0.0
      %5855 = vmatpush2.msra.mxu0 0.0
      %5856 = vmatprep.subr.mxu0 0.0
      %5857 = vmatpush2.msra.mxu0 0.0
      %5858 = vmatprep.subr.mxu0 0.0
      %5859 = vmatpush2.msra.mxu0 0.0
      %5860 = vmatprep.subr.mxu0 0.0
      %5861 = vmatpush2.msra.mxu0 0.0
      %5862 = vmatprep.subr.mxu0 0.0
      %5863 = vmatpush2.msra.mxu0 0.0
      %5864 = vmatprep.subr.mxu0 0.0
      %5865 = vmatpush2.msra.mxu0 0.0
      %5866 = vmatprep.subr.mxu0 0.0
      %5867 = vmatpush2.msra.mxu0 0.0
      %5868 = vmatprep.subr.mxu0 0.0
      %5869 = vmatpush2.msra.mxu0 0.0
      %5870 = vmatprep.subr.mxu0 0.0
      %5871 = vmatpush2.msra.mxu0 0.0
      %5872 = vmatprep.subr.mxu0 0.0
      %5873 = vmatpush2.msra.mxu0 0.0
      %5874 = vmatprep.subr.mxu0 0.0
      %5875 = vmatpush2.msra.mxu0 0.0
      %5876 = vmatprep.subr.mxu0 0.0
      %5877 = vmatpush2.msra.mxu0 0.0
      %5878 = vmatprep.mubr.f32.mxu0 0.0
      %5879 = vmatmul.mubr.f32.gmra.mxu0 %v5192
      %v5880 = vpop.f32.mrf.mxu0
      %v5881 = vadd.f32 0.0, %v5880
      %v5882 = vpop.f32.mrf.mxu0
      %5883 = vmatprep.mubr.f32.mxu0 0.0
      %5884 = vmatmul.mubr.f32.gmra.mxu0 %v5195
      %v5885 = vpop.f32.mrf.mxu0
      %v5886 = vadd.f32 0.0, %v5885
      %v5887 = vpop.f32.mrf.mxu0
      %5888 = vmatprep.mubr.f32.mxu0 0.0
      %5889 = vmatmul.mubr.f32.gmra.mxu0 %v5198
      %v5890 = vpop.f32.mrf.mxu0
      %v5891 = vadd.f32 0.0, %v5890
      %v5892 = vpop.f32.mrf.mxu0
      %5893 = vmatprep.mubr.f32.mxu0 0.0
      %5894 = vmatmul.mubr.f32.gmra.mxu0 %v5201
      %v5895 = vpop.f32.mrf.mxu0
      %v5896 = vadd.f32 0.0, %v5895
      %v5897 = vpop.f32.mrf.mxu0
      %5898 = vmatprep.mubr.f32.mxu0 0.0
      %5899 = vmatmul.mubr.f32.gmra.mxu0 %v5204
      %v5900 = vpop.f32.mrf.mxu0
      %v5901 = vadd.f32 0.0, %v5900
      %v5902 = vpop.f32.mrf.mxu0
      %5903 = vmatprep.mubr.f32.mxu0 0.0
      %5904 = vmatmul.mubr.f32.gmra.mxu0 %v5207
      %v5905 = vpop.f32.mrf.mxu0
      %v5906 = vadd.f32 0.0, %v5905
      %v5907 = vpop.f32.mrf.mxu0
      %5908 = vmatprep.mubr.f32.mxu0 0.0
      %5909 = vmatmul.mubr.f32.gmra.mxu0 %v5210
      %v5910 = vpop.f32.mrf.mxu0
      %v5911 = vadd.f32 0.0, %v5910
      %v5912 = vpop.f32.mrf.mxu0
      %5913 = vmatprep.mubr.f32.mxu0 0.0
      %5914 = vmatmul.mubr.f32.gmra.mxu0 %v5213
      %v5915 = vpop.f32.mrf.mxu0
      %v5916 = vadd.f32 0.0, %v5915
      %v5917 = vpop.f32.mrf.mxu0
      %5918 = vmatprep.mubr.f32.mxu0 0.0
      %5919 = vmatmul.mubr.f32.gmra.mxu0 %v5216
      %v5920 = vpop.f32.mrf.mxu0
      %v5921 = vadd.f32 0.0, %v5920
      %v5922 = vpop.f32.mrf.mxu0
      %5923 = vmatprep.mubr.f32.mxu0 0.0
      %5924 = vmatmul.mubr.f32.gmra.mxu0 %v5219
      %v5925 = vpop.f32.mrf.mxu0
      %v5926 = vadd.f32 0.0, %v5925
      %v5927 = vpop.f32.mrf.mxu0
      %5928 = vmatprep.mubr.f32.mxu0 0.0
      %5929 = vmatmul.mubr.f32.gmra.mxu0 %v5222
      %v5930 = vpop.f32.mrf.mxu0
      %v5931 = vadd.f32 0.0, %v5930
      %v5932 = vpop.f32.mrf.mxu0
      %5933 = vmatprep.mubr.f32.mxu0 0.0
      %5934 = vmatmul.mubr.f32.gmra.mxu0 %v5225
      %v5935 = vpop.f32.mrf.mxu0
      %v5936 = vadd.f32 0.0, %v5935
      %v5937 = vpop.f32.mrf.mxu0
      %5938 = vmatprep.mubr.f32.mxu0 0.0
      %5939 = vmatmul.mubr.f32.gmra.mxu0 %v5228
      %v5940 = vpop.f32.mrf.mxu0
      %v5941 = vadd.f32 0.0, %v5940
      %v5942 = vpop.f32.mrf.mxu0
      %5943 = vmatprep.mubr.f32.mxu0 0.0
      %5944 = vmatmul.mubr.f32.gmra.mxu0 %v5231
      %v5945 = vpop.f32.mrf.mxu0
      %v5946 = vadd.f32 0.0, %v5945
      %v5947 = vpop.f32.mrf.mxu0
      %5948 = vmatprep.mubr.f32.mxu0 0.0
      %5949 = vmatmul.mubr.f32.gmra.mxu0 %v5234
      %v5950 = vpop.f32.mrf.mxu0
      %v5951 = vadd.f32 0.0, %v5950
      %v5952 = vpop.f32.mrf.mxu0
      %5953 = vmatprep.mubr.f32.mxu0 0.0
      %5954 = vmatmul.mubr.f32.gmra.mxu0 %v5237
      %v5955 = vpop.f32.mrf.mxu0
      %v5956 = vadd.f32 0.0, %v5955
      %v5957 = vpop.f32.mrf.mxu0
      %5958 = vmatprep.mubr.f32.mxu0 0.0
      %5959 = vmatmul.mubr.f32.gmra.mxu0 %v5240
      %v5960 = vpop.f32.mrf.mxu0
      %v5961 = vadd.f32 0.0, %v5960
      %v5962 = vpop.f32.mrf.mxu0
      %5963 = vmatprep.mubr.f32.mxu0 0.0
      %5964 = vmatmul.mubr.f32.gmra.mxu0 %v5243
      %v5965 = vpop.f32.mrf.mxu0
      %v5966 = vadd.f32 0.0, %v5965
      %v5967 = vpop.f32.mrf.mxu0
      %5968 = vmatprep.mubr.f32.mxu0 0.0
      %5969 = vmatmul.mubr.f32.gmra.mxu0 %v5246
      %v5970 = vpop.f32.mrf.mxu0
      %v5971 = vadd.f32 0.0, %v5970
      %v5972 = vpop.f32.mrf.mxu0
      %5973 = vmatprep.mubr.f32.mxu0 0.0
      %5974 = vmatmul.mubr.f32.gmra.mxu0 %v5249
      %v5975 = vpop.f32.mrf.mxu0
      %v5976 = vadd.f32 0.0, %v5975
      %v5977 = vpop.f32.mrf.mxu0
      %5978 = vmatprep.mubr.f32.mxu0 0.0
      %5979 = vmatmul.mubr.f32.gmra.mxu0 %v5252
      %v5980 = vpop.f32.mrf.mxu0
      %v5981 = vadd.f32 0.0, %v5980
      %v5982 = vpop.f32.mrf.mxu0
      %5983 = vmatprep.mubr.f32.mxu0 0.0
      %5984 = vmatmul.mubr.f32.gmra.mxu0 %v5255
      %v5985 = vpop.f32.mrf.mxu0
      %v5986 = vadd.f32 0.0, %v5985
      %v5987 = vpop.f32.mrf.mxu0
      %5988 = vmatprep.mubr.f32.mxu0 0.0
      %5989 = vmatmul.mubr.f32.gmra.mxu0 %v5258
      %v5990 = vpop.f32.mrf.mxu0
      %v5991 = vadd.f32 0.0, %v5990
      %v5992 = vpop.f32.mrf.mxu0
      %5993 = vmatprep.mubr.f32.mxu0 0.0
      %5994 = vmatmul.mubr.f32.gmra.mxu0 %v5261
      %v5995 = vpop.f32.mrf.mxu0
      %v5996 = vadd.f32 0.0, %v5995
      %v5997 = vpop.f32.mrf.mxu0
      %5998 = vmatprep.mubr.f32.mxu0 0.0
      %5999 = vmatmul.mubr.f32.gmra.mxu0 %v5264
      %v6000 = vpop.f32.mrf.mxu0
      %v6001 = vadd.f32 0.0, %v6000
      %v6002 = vpop.f32.mrf.mxu0
      %6003 = vmatprep.mubr.f32.mxu0 0.0
      %6004 = vmatmul.mubr.f32.gmra.mxu0 %v5267
      %v6005 = vpop.f32.mrf.mxu0
      %v6006 = vadd.f32 0.0, %v6005
      %v6007 = vpop.f32.mrf.mxu0
      %6008 = vmatprep.mubr.f32.mxu0 0.0
      %6009 = vmatmul.mubr.f32.gmra.mxu0 %v5270
      %v6010 = vpop.f32.mrf.mxu0
      %v6011 = vadd.f32 0.0, %v6010
      %v6012 = vpop.f32.mrf.mxu0
      %6013 = vmatprep.mubr.f32.mxu0 0.0
      %6014 = vmatmul.mubr.f32.gmra.mxu0 %v5273
      %v6015 = vpop.f32.mrf.mxu0
      %v6016 = vadd.f32 0.0, %v6015
      %v6017 = vpop.f32.mrf.mxu0
      %6018 = vmatprep.mubr.f32.mxu0 0.0
      %6019 = vmatmul.mubr.f32.gmra.mxu0 %v5538
      %v6020 = vpop.f32.mrf.mxu0
      %v6021 = vadd.f32 0.0, %v6020
      %v6022 = vpop.f32.mrf.mxu0
      %6023 = vmatprep.mubr.f32.mxu0 0.0
      %6024 = vmatmul.mubr.f32.gmra.mxu0 %v5541
      %v6025 = vpop.f32.mrf.mxu0
      %v6026 = vadd.f32 0.0, %v6025
      %v6027 = vpop.f32.mrf.mxu0
      %6028 = vmatprep.mubr.f32.mxu0 0.0
      %6029 = vmatmul.mubr.f32.gmra.mxu0 %v5806
      %v6030 = vpop.f32.mrf.mxu0
      %v6031 = vadd.f32 0.0, %v6030
      %v6032 = vpop.f32.mrf.mxu0
      %6033 = vmatprep.mubr.f32.mxu0 0.0
      %6034 = vmatmul.mubr.f32.gmra.mxu0 %v5809
      %v6035 = vpop.f32.mrf.mxu0
      %v6036 = vadd.f32 0.0, %v6035
      %v6037 = vpop.f32.mrf.mxu0
      %6038 = vdwg.mxu0
      %v6039 = vadd.f32 %v5771, %v5881
      %v6040 = vadd.f32 %v5772, %v5886
      %v6041 = vadd.f32 %v5773, %v5891
      %v6042 = vadd.f32 %v5774, %v5896
      %v6043 = vadd.f32 %v5775, %v5901
      %v6044 = vadd.f32 %v5776, %v5906
      %v6045 = vadd.f32 %v5777, %v5911
      %v6046 = vadd.f32 %v5778, %v5916
      %v6047 = vadd.f32 %v5779, %v5921
      %v6048 = vadd.f32 %v5780, %v5926
      %v6049 = vadd.f32 %v5781, %v5931
      %v6050 = vadd.f32 %v5782, %v5936
      %v6051 = vadd.f32 %v5783, %v5941
      %v6052 = vadd.f32 %v5784, %v5946
      %v6053 = vadd.f32 %v5785, %v5951
      %v6054 = vadd.f32 %v5786, %v5956
      %v6055 = vadd.f32 %v5787, %v5961
      %v6056 = vadd.f32 %v5788, %v5966
      %v6057 = vadd.f32 %v5789, %v5971
      %v6058 = vadd.f32 %v5790, %v5976
      %v6059 = vadd.f32 %v5791, %v5981
      %v6060 = vadd.f32 %v5792, %v5986
      %v6061 = vadd.f32 %v5793, %v5991
      %v6062 = vadd.f32 %v5794, %v5996
      %v6063 = vadd.f32 %v5795, %v6001
      %v6064 = vadd.f32 %v5796, %v6006
      %v6065 = vadd.f32 %v5797, %v6011
      %v6066 = vadd.f32 %v5798, %v6016
      %v6067 = vadd.f32 %v5799, %v6021
      %v6068 = vadd.f32 %v5800, %v6026
      %v6069 = vadd.f32 %v5801, %v6031
      %v6070 = vadd.f32 %v5802, %v6036
      %v6071 = vld [vmem:[#allocation2 + $0x2] sm:$0xff]
      %v6072 = vld [vmem:[#allocation2 + $0xa] sm:$0xff]
      %v6073 = vld [vmem:[#allocation2 + $0x1a] sm:$0xff]
      %v6074 = vld [vmem:[#allocation2 + $0x22] sm:$0xff]
      %v6075 = vld [vmem:[#allocation2 + $0x32] sm:$0xff]
      %v6076 = vld [vmem:[#allocation2 + $0x3a] sm:$0xff]
      %v6077 = vld [vmem:[#allocation2 + $0x4a] sm:$0xff]
      %v6078 = vld [vmem:[#allocation2 + $0x52] sm:$0xff]
      %v6079 = vld [vmem:[#allocation2 + $0x62] sm:$0xff]
      %v6080 = vld [vmem:[#allocation2 + $0x6a] sm:$0xff]
      %v6081 = vld [vmem:[#allocation2 + $0x7a] sm:$0xff]
      %v6082 = vld [vmem:[#allocation2 + $0x82] sm:$0xff]
      %v6083 = vld [vmem:[#allocation2 + $0x92] sm:$0xff]
      %v6084 = vld [vmem:[#allocation2 + $0x9a] sm:$0xff]
      %v6085 = vld [vmem:[#allocation2 + $0xaa] sm:$0xff]
      %v6086 = vld [vmem:[#allocation2 + $0xb2] sm:$0xff]
      %v6087 = vld [vmem:[#allocation2 + $0xc2] sm:$0xff]
      %v6088 = vld [vmem:[#allocation2 + $0xca] sm:$0xff]
      %v6089 = vld [vmem:[#allocation2 + $0xda] sm:$0xff]
      %v6090 = vld [vmem:[#allocation2 + $0xe2] sm:$0xff]
      %v6091 = vld [vmem:[#allocation2 + $0xf2] sm:$0xff]
      %v6092 = vld [vmem:[#allocation2 + $0xfa] sm:$0xff]
      %v6093 = vld [vmem:[#allocation2 + $0x10a] sm:$0xff]
      %v6094 = vld [vmem:[#allocation2 + $0x112] sm:$0xff]
      %v6095 = vld [vmem:[#allocation2 + $0x122] sm:$0xff]
      %v6096 = vld [vmem:[#allocation2 + $0x12a] sm:$0xff]
      %v6097 = vld [vmem:[#allocation2 + $0x13a] sm:$0xff]
      %v6098 = vld [vmem:[#allocation2 + $0x142] sm:$0xff]
      %v6099 = vld [vmem:[#allocation2 + $0x152] sm:$0xff]
      %v6100 = vld [vmem:[#allocation2 + $0x15a] sm:$0xff]
      %v6101 = vld [vmem:[#allocation2 + $0x16a] sm:$0xff]
      %v6102 = vld [vmem:[#allocation2 + $0x172] sm:$0xff]
      %v6103 = vld [vmem:[#allocation2 + $0x182] sm:$0xff]
      %v6104 = vld [vmem:[#allocation2 + $0x18a] sm:$0xff]
      %v6105 = vld [vmem:[#allocation2 + $0x19a] sm:$0xff]
      %v6106 = vld [vmem:[#allocation2 + $0x1a2] sm:$0xff]
      %s6107 = scalar_lea.vmem %s3, 8
      %v6108 = vld [vmem:[%s6107] sm:$0xf]
      %v6110 = vsel %vm258, %v6071, 0
      %v6113 = vsel %vm258, %v6072, 0
      %v6116 = vsel %vm258, %v6073, 0
      %v6119 = vsel %vm258, %v6074, 0
      %v6122 = vsel %vm258, %v6075, 0
      %v6125 = vsel %vm258, %v6076, 0
      %v6128 = vsel %vm258, %v6077, 0
      %v6131 = vsel %vm258, %v6078, 0
      %v6134 = vsel %vm258, %v6079, 0
      %v6137 = vsel %vm258, %v6080, 0
      %v6140 = vsel %vm258, %v6081, 0
      %v6143 = vsel %vm258, %v6082, 0
      %v6146 = vsel %vm258, %v6083, 0
      %v6149 = vsel %vm258, %v6084, 0
      %v6152 = vsel %vm258, %v6085, 0
      %v6155 = vsel %vm258, %v6086, 0
      %v6158 = vsel %vm258, %v6087, 0
      %v6161 = vsel %vm258, %v6088, 0
      %v6164 = vsel %vm258, %v6089, 0
      %v6167 = vsel %vm258, %v6090, 0
      %v6170 = vsel %vm258, %v6091, 0
      %v6173 = vsel %vm258, %v6092, 0
      %v6176 = vsel %vm258, %v6093, 0
      %v6179 = vsel %vm258, %v6094, 0
      %v6182 = vsel %vm258, %v6095, 0
      %v6185 = vsel %vm258, %v6096, 0
      %v6188 = vsel %vm258, %v6097, 0
      %v6191 = vsel %vm258, %v6098, 0
      %v6194 = vsel %vm258, %v6099, 0
      %v6197 = vsel %vm258, %v6100, 0
      %v6200 = vsel %vm258, %v6101, 0
      %v6203 = vsel %vm258, %v6102, 0
      %v6206 = vsel %vm1006, %v6108, 0
      %6208 = vmatprep.subr.mxu0 0.0
      %6209 = vmatpush1.msra.mxu0 0.0
      %6210 = vmatprep.subr.mxu0 0.0
      %6211 = vmatpush1.msra.mxu0 0.0
      %6212 = vmatprep.subr.mxu0 0.0
      %6213 = vmatpush1.msra.mxu0 0.0
      %6214 = vmatprep.subr.mxu0 0.0
      %6215 = vmatpush1.msra.mxu0 0.0
      %6216 = vmatprep.subr.mxu0 0.0
      %6217 = vmatpush1.msra.mxu0 0.0
      %6218 = vmatprep.subr.mxu0 0.0
      %6219 = vmatpush1.msra.mxu0 0.0
      %6220 = vmatprep.subr.mxu0 0.0
      %6221 = vmatpush1.msra.mxu0 0.0
      %6222 = vmatprep.subr.mxu0 0.0
      %6223 = vmatpush1.msra.mxu0 0.0
      %6224 = vmatprep.subr.mxu0 0.0
      %6225 = vmatpush1.msra.mxu0 0.0
      %6226 = vmatprep.subr.mxu0 0.0
      %6227 = vmatpush1.msra.mxu0 0.0
      %6228 = vmatprep.subr.mxu0 0.0
      %6229 = vmatpush1.msra.mxu0 0.0
      %6230 = vmatprep.subr.mxu0 0.0
      %6231 = vmatpush1.msra.mxu0 0.0
      %6232 = vmatprep.subr.mxu0 0.0
      %6233 = vmatpush1.msra.mxu0 0.0
      %6234 = vmatprep.subr.mxu0 0.0
      %6235 = vmatpush1.msra.mxu0 0.0
      %6236 = vmatprep.subr.mxu0 0.0
      %6237 = vmatpush1.msra.mxu0 0.0
      %6238 = vmatprep.subr.mxu0 0.0
      %6239 = vmatpush1.msra.mxu0 %v6206
      %6240 = vmatprep.subr.mxu0 0.0
      %6241 = vmatpush2.msra.mxu0 0.0
      %6242 = vmatprep.subr.mxu0 0.0
      %6243 = vmatpush2.msra.mxu0 0.0
      %6244 = vmatprep.subr.mxu0 0.0
      %6245 = vmatpush2.msra.mxu0 0.0
      %6246 = vmatprep.subr.mxu0 0.0
      %6247 = vmatpush2.msra.mxu0 0.0
      %6248 = vmatprep.subr.mxu0 0.0
      %6249 = vmatpush2.msra.mxu0 0.0
      %6250 = vmatprep.subr.mxu0 0.0
      %6251 = vmatpush2.msra.mxu0 0.0
      %6252 = vmatprep.subr.mxu0 0.0
      %6253 = vmatpush2.msra.mxu0 0.0
      %6254 = vmatprep.subr.mxu0 0.0
      %6255 = vmatpush2.msra.mxu0 0.0
      %6256 = vmatprep.subr.mxu0 0.0
      %6257 = vmatpush2.msra.mxu0 0.0
      %6258 = vmatprep.subr.mxu0 0.0
      %6259 = vmatpush2.msra.mxu0 0.0
      %6260 = vmatprep.subr.mxu0 0.0
      %6261 = vmatpush2.msra.mxu0 0.0
      %6262 = vmatprep.subr.mxu0 0.0
      %6263 = vmatpush2.msra.mxu0 0.0
      %6264 = vmatprep.subr.mxu0 0.0
      %6265 = vmatpush2.msra.mxu0 0.0
      %6266 = vmatprep.subr.mxu0 0.0
      %6267 = vmatpush2.msra.mxu0 0.0
      %6268 = vmatprep.subr.mxu0 0.0
      %6269 = vmatpush2.msra.mxu0 0.0
      %6270 = vmatprep.subr.mxu0 0.0
      %6271 = vmatpush2.msra.mxu0 0.0
      %6272 = vmatprep.mubr.f32.mxu0 0.0
      %6273 = vmatmul.mubr.f32.gmra.mxu0 %v6110
      %v6274 = vpop.f32.mrf.mxu0
      %v6275 = vadd.f32 0.0, %v6274
      %v6276 = vpop.f32.mrf.mxu0
      %6277 = vmatprep.mubr.f32.mxu0 0.0
      %6278 = vmatmul.mubr.f32.gmra.mxu0 %v6113
      %v6279 = vpop.f32.mrf.mxu0
      %v6280 = vadd.f32 0.0, %v6279
      %v6281 = vpop.f32.mrf.mxu0
      %6282 = vmatprep.mubr.f32.mxu0 0.0
      %6283 = vmatmul.mubr.f32.gmra.mxu0 %v6116
      %v6284 = vpop.f32.mrf.mxu0
      %v6285 = vadd.f32 0.0, %v6284
      %v6286 = vpop.f32.mrf.mxu0
      %6287 = vmatprep.mubr.f32.mxu0 0.0
      %6288 = vmatmul.mubr.f32.gmra.mxu0 %v6119
      %v6289 = vpop.f32.mrf.mxu0
      %v6290 = vadd.f32 0.0, %v6289
      %v6291 = vpop.f32.mrf.mxu0
      %6292 = vmatprep.mubr.f32.mxu0 0.0
      %6293 = vmatmul.mubr.f32.gmra.mxu0 %v6122
      %v6294 = vpop.f32.mrf.mxu0
      %v6295 = vadd.f32 0.0, %v6294
      %v6296 = vpop.f32.mrf.mxu0
      %6297 = vmatprep.mubr.f32.mxu0 0.0
      %6298 = vmatmul.mubr.f32.gmra.mxu0 %v6125
      %v6299 = vpop.f32.mrf.mxu0
      %v6300 = vadd.f32 0.0, %v6299
      %v6301 = vpop.f32.mrf.mxu0
      %6302 = vmatprep.mubr.f32.mxu0 0.0
      %6303 = vmatmul.mubr.f32.gmra.mxu0 %v6128
      %v6304 = vpop.f32.mrf.mxu0
      %v6305 = vadd.f32 0.0, %v6304
      %v6306 = vpop.f32.mrf.mxu0
      %6307 = vmatprep.mubr.f32.mxu0 0.0
      %6308 = vmatmul.mubr.f32.gmra.mxu0 %v6131
      %v6309 = vpop.f32.mrf.mxu0
      %v6310 = vadd.f32 0.0, %v6309
      %v6311 = vpop.f32.mrf.mxu0
      %6312 = vmatprep.mubr.f32.mxu0 0.0
      %6313 = vmatmul.mubr.f32.gmra.mxu0 %v6134
      %v6314 = vpop.f32.mrf.mxu0
      %v6315 = vadd.f32 0.0, %v6314
      %v6316 = vpop.f32.mrf.mxu0
      %6317 = vmatprep.mubr.f32.mxu0 0.0
      %6318 = vmatmul.mubr.f32.gmra.mxu0 %v6137
      %v6319 = vpop.f32.mrf.mxu0
      %v6320 = vadd.f32 0.0, %v6319
      %v6321 = vpop.f32.mrf.mxu0
      %6322 = vmatprep.mubr.f32.mxu0 0.0
      %6323 = vmatmul.mubr.f32.gmra.mxu0 %v6140
      %v6324 = vpop.f32.mrf.mxu0
      %v6325 = vadd.f32 0.0, %v6324
      %v6326 = vpop.f32.mrf.mxu0
      %6327 = vmatprep.mubr.f32.mxu0 0.0
      %6328 = vmatmul.mubr.f32.gmra.mxu0 %v6143
      %v6329 = vpop.f32.mrf.mxu0
      %v6330 = vadd.f32 0.0, %v6329
      %v6331 = vpop.f32.mrf.mxu0
      %6332 = vmatprep.mubr.f32.mxu0 0.0
      %6333 = vmatmul.mubr.f32.gmra.mxu0 %v6146
      %v6334 = vpop.f32.mrf.mxu0
      %v6335 = vadd.f32 0.0, %v6334
      %v6336 = vpop.f32.mrf.mxu0
      %6337 = vmatprep.mubr.f32.mxu0 0.0
      %6338 = vmatmul.mubr.f32.gmra.mxu0 %v6149
      %v6339 = vpop.f32.mrf.mxu0
      %v6340 = vadd.f32 0.0, %v6339
      %v6341 = vpop.f32.mrf.mxu0
      %6342 = vmatprep.mubr.f32.mxu0 0.0
      %6343 = vmatmul.mubr.f32.gmra.mxu0 %v6152
      %v6344 = vpop.f32.mrf.mxu0
      %v6345 = vadd.f32 0.0, %v6344
      %v6346 = vpop.f32.mrf.mxu0
      %6347 = vmatprep.mubr.f32.mxu0 0.0
      %6348 = vmatmul.mubr.f32.gmra.mxu0 %v6155
      %v6349 = vpop.f32.mrf.mxu0
      %v6350 = vadd.f32 0.0, %v6349
      %v6351 = vpop.f32.mrf.mxu0
      %6352 = vmatprep.mubr.f32.mxu0 0.0
      %6353 = vmatmul.mubr.f32.gmra.mxu0 %v6158
      %v6354 = vpop.f32.mrf.mxu0
      %v6355 = vadd.f32 0.0, %v6354
      %v6356 = vpop.f32.mrf.mxu0
      %6357 = vmatprep.mubr.f32.mxu0 0.0
      %6358 = vmatmul.mubr.f32.gmra.mxu0 %v6161
      %v6359 = vpop.f32.mrf.mxu0
      %v6360 = vadd.f32 0.0, %v6359
      %v6361 = vpop.f32.mrf.mxu0
      %6362 = vmatprep.mubr.f32.mxu0 0.0
      %6363 = vmatmul.mubr.f32.gmra.mxu0 %v6164
      %v6364 = vpop.f32.mrf.mxu0
      %v6365 = vadd.f32 0.0, %v6364
      %v6366 = vpop.f32.mrf.mxu0
      %6367 = vmatprep.mubr.f32.mxu0 0.0
      %6368 = vmatmul.mubr.f32.gmra.mxu0 %v6167
      %v6369 = vpop.f32.mrf.mxu0
      %v6370 = vadd.f32 0.0, %v6369
      %v6371 = vpop.f32.mrf.mxu0
      %6372 = vmatprep.mubr.f32.mxu0 0.0
      %6373 = vmatmul.mubr.f32.gmra.mxu0 %v6170
      %v6374 = vpop.f32.mrf.mxu0
      %v6375 = vadd.f32 0.0, %v6374
      %v6376 = vpop.f32.mrf.mxu0
      %6377 = vmatprep.mubr.f32.mxu0 0.0
      %6378 = vmatmul.mubr.f32.gmra.mxu0 %v6173
      %v6379 = vpop.f32.mrf.mxu0
      %v6380 = vadd.f32 0.0, %v6379
      %v6381 = vpop.f32.mrf.mxu0
      %6382 = vmatprep.mubr.f32.mxu0 0.0
      %6383 = vmatmul.mubr.f32.gmra.mxu0 %v6176
      %v6384 = vpop.f32.mrf.mxu0
      %v6385 = vadd.f32 0.0, %v6384
      %v6386 = vpop.f32.mrf.mxu0
      %6387 = vmatprep.mubr.f32.mxu0 0.0
      %6388 = vmatmul.mubr.f32.gmra.mxu0 %v6179
      %v6389 = vpop.f32.mrf.mxu0
      %v6390 = vadd.f32 0.0, %v6389
      %v6391 = vpop.f32.mrf.mxu0
      %6392 = vmatprep.mubr.f32.mxu0 0.0
      %6393 = vmatmul.mubr.f32.gmra.mxu0 %v6182
      %v6394 = vpop.f32.mrf.mxu0
      %v6395 = vadd.f32 0.0, %v6394
      %v6396 = vpop.f32.mrf.mxu0
      %6397 = vmatprep.mubr.f32.mxu0 0.0
      %6398 = vmatmul.mubr.f32.gmra.mxu0 %v6185
      %v6399 = vpop.f32.mrf.mxu0
      %v6400 = vadd.f32 0.0, %v6399
      %v6401 = vpop.f32.mrf.mxu0
      %6402 = vmatprep.mubr.f32.mxu0 0.0
      %6403 = vmatmul.mubr.f32.gmra.mxu0 %v6188
      %v6404 = vpop.f32.mrf.mxu0
      %v6405 = vadd.f32 0.0, %v6404
      %v6406 = vpop.f32.mrf.mxu0
      %6407 = vmatprep.mubr.f32.mxu0 0.0
      %6408 = vmatmul.mubr.f32.gmra.mxu0 %v6191
      %v6409 = vpop.f32.mrf.mxu0
      %v6410 = vadd.f32 0.0, %v6409
      %v6411 = vpop.f32.mrf.mxu0
      %6412 = vmatprep.mubr.f32.mxu0 0.0
      %6413 = vmatmul.mubr.f32.gmra.mxu0 %v6194
      %v6414 = vpop.f32.mrf.mxu0
      %v6415 = vadd.f32 0.0, %v6414
      %v6416 = vpop.f32.mrf.mxu0
      %6417 = vmatprep.mubr.f32.mxu0 0.0
      %6418 = vmatmul.mubr.f32.gmra.mxu0 %v6197
      %v6419 = vpop.f32.mrf.mxu0
      %v6420 = vadd.f32 0.0, %v6419
      %v6421 = vpop.f32.mrf.mxu0
      %6422 = vmatprep.mubr.f32.mxu0 0.0
      %6423 = vmatmul.mubr.f32.gmra.mxu0 %v6200
      %v6424 = vpop.f32.mrf.mxu0
      %v6425 = vadd.f32 0.0, %v6424
      %v6426 = vpop.f32.mrf.mxu0
      %6427 = vmatprep.mubr.f32.mxu0 0.0
      %6428 = vmatmul.mubr.f32.gmra.mxu0 %v6203
      %v6429 = vpop.f32.mrf.mxu0
      %v6430 = vadd.f32 0.0, %v6429
      %v6431 = vpop.f32.mrf.mxu0
      %6432 = vdwg.mxu0
      %v6433 = vadd.f32 %v6039, %v6275
      %v6434 = vadd.f32 %v6040, %v6280
      %v6435 = vadd.f32 %v6041, %v6285
      %v6436 = vadd.f32 %v6042, %v6290
      %v6437 = vadd.f32 %v6043, %v6295
      %v6438 = vadd.f32 %v6044, %v6300
      %v6439 = vadd.f32 %v6045, %v6305
      %v6440 = vadd.f32 %v6046, %v6310
      %v6441 = vadd.f32 %v6047, %v6315
      %v6442 = vadd.f32 %v6048, %v6320
      %v6443 = vadd.f32 %v6049, %v6325
      %v6444 = vadd.f32 %v6050, %v6330
      %v6445 = vadd.f32 %v6051, %v6335
      %v6446 = vadd.f32 %v6052, %v6340
      %v6447 = vadd.f32 %v6053, %v6345
      %v6448 = vadd.f32 %v6054, %v6350
      %v6449 = vadd.f32 %v6055, %v6355
      %v6450 = vadd.f32 %v6056, %v6360
      %v6451 = vadd.f32 %v6057, %v6365
      %v6452 = vadd.f32 %v6058, %v6370
      %v6453 = vadd.f32 %v6059, %v6375
      %v6454 = vadd.f32 %v6060, %v6380
      %v6455 = vadd.f32 %v6061, %v6385
      %v6456 = vadd.f32 %v6062, %v6390
      %v6457 = vadd.f32 %v6063, %v6395
      %v6458 = vadd.f32 %v6064, %v6400
      %v6459 = vadd.f32 %v6065, %v6405
      %v6460 = vadd.f32 %v6066, %v6410
      %v6461 = vadd.f32 %v6067, %v6415
      %v6462 = vadd.f32 %v6068, %v6420
      %v6463 = vadd.f32 %v6069, %v6425
      %v6464 = vadd.f32 %v6070, %v6430
      %s6465 = scalar_lea.vmem %s3, 20
      %v6466 = vld [vmem:[%s6465] sm:$0xf]
      %v6468 = vsel %vm258, %v6103, 0
      %v6471 = vsel %vm258, %v6104, 0
      %v6474 = vsel %vm1006, %v6466, 0
      %6476 = vmatprep.subr.mxu0 0.0
      %6477 = vmatpush1.msra.mxu0 0.0
      %6478 = vmatprep.subr.mxu0 0.0
      %6479 = vmatpush1.msra.mxu0 0.0
      %6480 = vmatprep.subr.mxu0 0.0
      %6481 = vmatpush1.msra.mxu0 0.0
      %6482 = vmatprep.subr.mxu0 0.0
      %6483 = vmatpush1.msra.mxu0 0.0
      %6484 = vmatprep.subr.mxu0 0.0
      %6485 = vmatpush1.msra.mxu0 0.0
      %6486 = vmatprep.subr.mxu0 0.0
      %6487 = vmatpush1.msra.mxu0 0.0
      %6488 = vmatprep.subr.mxu0 0.0
      %6489 = vmatpush1.msra.mxu0 0.0
      %6490 = vmatprep.subr.mxu0 0.0
      %6491 = vmatpush1.msra.mxu0 0.0
      %6492 = vmatprep.subr.mxu0 0.0
      %6493 = vmatpush1.msra.mxu0 0.0
      %6494 = vmatprep.subr.mxu0 0.0
      %6495 = vmatpush1.msra.mxu0 0.0
      %6496 = vmatprep.subr.mxu0 0.0
      %6497 = vmatpush1.msra.mxu0 0.0
      %6498 = vmatprep.subr.mxu0 0.0
      %6499 = vmatpush1.msra.mxu0 0.0
      %6500 = vmatprep.subr.mxu0 0.0
      %6501 = vmatpush1.msra.mxu0 0.0
      %6502 = vmatprep.subr.mxu0 0.0
      %6503 = vmatpush1.msra.mxu0 0.0
      %6504 = vmatprep.subr.mxu0 0.0
      %6505 = vmatpush1.msra.mxu0 0.0
      %6506 = vmatprep.subr.mxu0 0.0
      %6507 = vmatpush1.msra.mxu0 %v6474
      %6508 = vmatprep.subr.mxu0 0.0
      %6509 = vmatpush2.msra.mxu0 0.0
      %6510 = vmatprep.subr.mxu0 0.0
      %6511 = vmatpush2.msra.mxu0 0.0
      %6512 = vmatprep.subr.mxu0 0.0
      %6513 = vmatpush2.msra.mxu0 0.0
      %6514 = vmatprep.subr.mxu0 0.0
      %6515 = vmatpush2.msra.mxu0 0.0
      %6516 = vmatprep.subr.mxu0 0.0
      %6517 = vmatpush2.msra.mxu0 0.0
      %6518 = vmatprep.subr.mxu0 0.0
      %6519 = vmatpush2.msra.mxu0 0.0
      %6520 = vmatprep.subr.mxu0 0.0
      %6521 = vmatpush2.msra.mxu0 0.0
      %6522 = vmatprep.subr.mxu0 0.0
      %6523 = vmatpush2.msra.mxu0 0.0
      %6524 = vmatprep.subr.mxu0 0.0
      %6525 = vmatpush2.msra.mxu0 0.0
      %6526 = vmatprep.subr.mxu0 0.0
      %6527 = vmatpush2.msra.mxu0 0.0
      %6528 = vmatprep.subr.mxu0 0.0
      %6529 = vmatpush2.msra.mxu0 0.0
      %6530 = vmatprep.subr.mxu0 0.0
      %6531 = vmatpush2.msra.mxu0 0.0
      %6532 = vmatprep.subr.mxu0 0.0
      %6533 = vmatpush2.msra.mxu0 0.0
      %6534 = vmatprep.subr.mxu0 0.0
      %6535 = vmatpush2.msra.mxu0 0.0
      %6536 = vmatprep.subr.mxu0 0.0
      %6537 = vmatpush2.msra.mxu0 0.0
      %6538 = vmatprep.subr.mxu0 0.0
      %6539 = vmatpush2.msra.mxu0 0.0
      %6540 = vmatprep.mubr.f32.mxu0 0.0
      %6541 = vmatmul.mubr.f32.gmra.mxu0 %v6116
      %v6542 = vpop.f32.mrf.mxu0
      %v6543 = vadd.f32 0.0, %v6542
      %v6544 = vpop.f32.mrf.mxu0
      %6545 = vmatprep.mubr.f32.mxu0 0.0
      %6546 = vmatmul.mubr.f32.gmra.mxu0 %v6119
      %v6547 = vpop.f32.mrf.mxu0
      %v6548 = vadd.f32 0.0, %v6547
      %v6549 = vpop.f32.mrf.mxu0
      %6550 = vmatprep.mubr.f32.mxu0 0.0
      %6551 = vmatmul.mubr.f32.gmra.mxu0 %v6122
      %v6552 = vpop.f32.mrf.mxu0
      %v6553 = vadd.f32 0.0, %v6552
      %v6554 = vpop.f32.mrf.mxu0
      %6555 = vmatprep.mubr.f32.mxu0 0.0
      %6556 = vmatmul.mubr.f32.gmra.mxu0 %v6125
      %v6557 = vpop.f32.mrf.mxu0
      %v6558 = vadd.f32 0.0, %v6557
      %v6559 = vpop.f32.mrf.mxu0
      %6560 = vmatprep.mubr.f32.mxu0 0.0
      %6561 = vmatmul.mubr.f32.gmra.mxu0 %v6128
      %v6562 = vpop.f32.mrf.mxu0
      %v6563 = vadd.f32 0.0, %v6562
      %v6564 = vpop.f32.mrf.mxu0
      %6565 = vmatprep.mubr.f32.mxu0 0.0
      %6566 = vmatmul.mubr.f32.gmra.mxu0 %v6131
      %v6567 = vpop.f32.mrf.mxu0
      %v6568 = vadd.f32 0.0, %v6567
      %v6569 = vpop.f32.mrf.mxu0
      %6570 = vmatprep.mubr.f32.mxu0 0.0
      %6571 = vmatmul.mubr.f32.gmra.mxu0 %v6134
      %v6572 = vpop.f32.mrf.mxu0
      %v6573 = vadd.f32 0.0, %v6572
      %v6574 = vpop.f32.mrf.mxu0
      %6575 = vmatprep.mubr.f32.mxu0 0.0
      %6576 = vmatmul.mubr.f32.gmra.mxu0 %v6137
      %v6577 = vpop.f32.mrf.mxu0
      %v6578 = vadd.f32 0.0, %v6577
      %v6579 = vpop.f32.mrf.mxu0
      %6580 = vmatprep.mubr.f32.mxu0 0.0
      %6581 = vmatmul.mubr.f32.gmra.mxu0 %v6140
      %v6582 = vpop.f32.mrf.mxu0
      %v6583 = vadd.f32 0.0, %v6582
      %v6584 = vpop.f32.mrf.mxu0
      %6585 = vmatprep.mubr.f32.mxu0 0.0
      %6586 = vmatmul.mubr.f32.gmra.mxu0 %v6143
      %v6587 = vpop.f32.mrf.mxu0
      %v6588 = vadd.f32 0.0, %v6587
      %v6589 = vpop.f32.mrf.mxu0
      %6590 = vmatprep.mubr.f32.mxu0 0.0
      %6591 = vmatmul.mubr.f32.gmra.mxu0 %v6146
      %v6592 = vpop.f32.mrf.mxu0
      %v6593 = vadd.f32 0.0, %v6592
      %v6594 = vpop.f32.mrf.mxu0
      %6595 = vmatprep.mubr.f32.mxu0 0.0
      %6596 = vmatmul.mubr.f32.gmra.mxu0 %v6149
      %v6597 = vpop.f32.mrf.mxu0
      %v6598 = vadd.f32 0.0, %v6597
      %v6599 = vpop.f32.mrf.mxu0
      %6600 = vmatprep.mubr.f32.mxu0 0.0
      %6601 = vmatmul.mubr.f32.gmra.mxu0 %v6152
      %v6602 = vpop.f32.mrf.mxu0
      %v6603 = vadd.f32 0.0, %v6602
      %v6604 = vpop.f32.mrf.mxu0
      %6605 = vmatprep.mubr.f32.mxu0 0.0
      %6606 = vmatmul.mubr.f32.gmra.mxu0 %v6155
      %v6607 = vpop.f32.mrf.mxu0
      %v6608 = vadd.f32 0.0, %v6607
      %v6609 = vpop.f32.mrf.mxu0
      %6610 = vmatprep.mubr.f32.mxu0 0.0
      %6611 = vmatmul.mubr.f32.gmra.mxu0 %v6158
      %v6612 = vpop.f32.mrf.mxu0
      %v6613 = vadd.f32 0.0, %v6612
      %v6614 = vpop.f32.mrf.mxu0
      %6615 = vmatprep.mubr.f32.mxu0 0.0
      %6616 = vmatmul.mubr.f32.gmra.mxu0 %v6161
      %v6617 = vpop.f32.mrf.mxu0
      %v6618 = vadd.f32 0.0, %v6617
      %v6619 = vpop.f32.mrf.mxu0
      %6620 = vmatprep.mubr.f32.mxu0 0.0
      %6621 = vmatmul.mubr.f32.gmra.mxu0 %v6164
      %v6622 = vpop.f32.mrf.mxu0
      %v6623 = vadd.f32 0.0, %v6622
      %v6624 = vpop.f32.mrf.mxu0
      %6625 = vmatprep.mubr.f32.mxu0 0.0
      %6626 = vmatmul.mubr.f32.gmra.mxu0 %v6167
      %v6627 = vpop.f32.mrf.mxu0
      %v6628 = vadd.f32 0.0, %v6627
      %v6629 = vpop.f32.mrf.mxu0
      %6630 = vmatprep.mubr.f32.mxu0 0.0
      %6631 = vmatmul.mubr.f32.gmra.mxu0 %v6170
      %v6632 = vpop.f32.mrf.mxu0
      %v6633 = vadd.f32 0.0, %v6632
      %v6634 = vpop.f32.mrf.mxu0
      %6635 = vmatprep.mubr.f32.mxu0 0.0
      %6636 = vmatmul.mubr.f32.gmra.mxu0 %v6173
      %v6637 = vpop.f32.mrf.mxu0
      %v6638 = vadd.f32 0.0, %v6637
      %v6639 = vpop.f32.mrf.mxu0
      %6640 = vmatprep.mubr.f32.mxu0 0.0
      %6641 = vmatmul.mubr.f32.gmra.mxu0 %v6176
      %v6642 = vpop.f32.mrf.mxu0
      %v6643 = vadd.f32 0.0, %v6642
      %v6644 = vpop.f32.mrf.mxu0
      %6645 = vmatprep.mubr.f32.mxu0 0.0
      %6646 = vmatmul.mubr.f32.gmra.mxu0 %v6179
      %v6647 = vpop.f32.mrf.mxu0
      %v6648 = vadd.f32 0.0, %v6647
      %v6649 = vpop.f32.mrf.mxu0
      %6650 = vmatprep.mubr.f32.mxu0 0.0
      %6651 = vmatmul.mubr.f32.gmra.mxu0 %v6182
      %v6652 = vpop.f32.mrf.mxu0
      %v6653 = vadd.f32 0.0, %v6652
      %v6654 = vpop.f32.mrf.mxu0
      %6655 = vmatprep.mubr.f32.mxu0 0.0
      %6656 = vmatmul.mubr.f32.gmra.mxu0 %v6185
      %v6657 = vpop.f32.mrf.mxu0
      %v6658 = vadd.f32 0.0, %v6657
      %v6659 = vpop.f32.mrf.mxu0
      %6660 = vmatprep.mubr.f32.mxu0 0.0
      %6661 = vmatmul.mubr.f32.gmra.mxu0 %v6188
      %v6662 = vpop.f32.mrf.mxu0
      %v6663 = vadd.f32 0.0, %v6662
      %v6664 = vpop.f32.mrf.mxu0
      %6665 = vmatprep.mubr.f32.mxu0 0.0
      %6666 = vmatmul.mubr.f32.gmra.mxu0 %v6191
      %v6667 = vpop.f32.mrf.mxu0
      %v6668 = vadd.f32 0.0, %v6667
      %v6669 = vpop.f32.mrf.mxu0
      %6670 = vmatprep.mubr.f32.mxu0 0.0
      %6671 = vmatmul.mubr.f32.gmra.mxu0 %v6194
      %v6672 = vpop.f32.mrf.mxu0
      %v6673 = vadd.f32 0.0, %v6672
      %v6674 = vpop.f32.mrf.mxu0
      %6675 = vmatprep.mubr.f32.mxu0 0.0
      %6676 = vmatmul.mubr.f32.gmra.mxu0 %v6197
      %v6677 = vpop.f32.mrf.mxu0
      %v6678 = vadd.f32 0.0, %v6677
      %v6679 = vpop.f32.mrf.mxu0
      %6680 = vmatprep.mubr.f32.mxu0 0.0
      %6681 = vmatmul.mubr.f32.gmra.mxu0 %v6200
      %v6682 = vpop.f32.mrf.mxu0
      %v6683 = vadd.f32 0.0, %v6682
      %v6684 = vpop.f32.mrf.mxu0
      %6685 = vmatprep.mubr.f32.mxu0 0.0
      %6686 = vmatmul.mubr.f32.gmra.mxu0 %v6203
      %v6687 = vpop.f32.mrf.mxu0
      %v6688 = vadd.f32 0.0, %v6687
      %v6689 = vpop.f32.mrf.mxu0
      %6690 = vmatprep.mubr.f32.mxu0 0.0
      %6691 = vmatmul.mubr.f32.gmra.mxu0 %v6468
      %v6692 = vpop.f32.mrf.mxu0
      %v6693 = vadd.f32 0.0, %v6692
      %v6694 = vpop.f32.mrf.mxu0
      %6695 = vmatprep.mubr.f32.mxu0 0.0
      %6696 = vmatmul.mubr.f32.gmra.mxu0 %v6471
      %v6697 = vpop.f32.mrf.mxu0
      %v6698 = vadd.f32 0.0, %v6697
      %v6699 = vpop.f32.mrf.mxu0
      %6700 = vdwg.mxu0
      %v6701 = vadd.f32 %v6433, %v6543
      %v6702 = vadd.f32 %v6434, %v6548
      %v6703 = vadd.f32 %v6435, %v6553
      %v6704 = vadd.f32 %v6436, %v6558
      %v6705 = vadd.f32 %v6437, %v6563
      %v6706 = vadd.f32 %v6438, %v6568
      %v6707 = vadd.f32 %v6439, %v6573
      %v6708 = vadd.f32 %v6440, %v6578
      %v6709 = vadd.f32 %v6441, %v6583
      %v6710 = vadd.f32 %v6442, %v6588
      %v6711 = vadd.f32 %v6443, %v6593
      %v6712 = vadd.f32 %v6444, %v6598
      %v6713 = vadd.f32 %v6445, %v6603
      %v6714 = vadd.f32 %v6446, %v6608
      %v6715 = vadd.f32 %v6447, %v6613
      %v6716 = vadd.f32 %v6448, %v6618
      %v6717 = vadd.f32 %v6449, %v6623
      %v6718 = vadd.f32 %v6450, %v6628
      %v6719 = vadd.f32 %v6451, %v6633
      %v6720 = vadd.f32 %v6452, %v6638
      %v6721 = vadd.f32 %v6453, %v6643
      %v6722 = vadd.f32 %v6454, %v6648
      %v6723 = vadd.f32 %v6455, %v6653
      %v6724 = vadd.f32 %v6456, %v6658
      %v6725 = vadd.f32 %v6457, %v6663
      %v6726 = vadd.f32 %v6458, %v6668
      %v6727 = vadd.f32 %v6459, %v6673
      %v6728 = vadd.f32 %v6460, %v6678
      %v6729 = vadd.f32 %v6461, %v6683
      %v6730 = vadd.f32 %v6462, %v6688
      %v6731 = vadd.f32 %v6463, %v6693
      %v6732 = vadd.f32 %v6464, %v6698
      %s6733 = scalar_lea.vmem %s3, 32
      %v6734 = vld [vmem:[%s6733] sm:$0xf]
      %v6736 = vsel %vm258, %v6105, 0
      %v6739 = vsel %vm258, %v6106, 0
      %v6742 = vsel %vm1006, %v6734, 0
      %6744 = vmatprep.subr.mxu0 0.0
      %6745 = vmatpush1.msra.mxu0 0.0
      %6746 = vmatprep.subr.mxu0 0.0
      %6747 = vmatpush1.msra.mxu0 0.0
      %6748 = vmatprep.subr.mxu0 0.0
      %6749 = vmatpush1.msra.mxu0 0.0
      %6750 = vmatprep.subr.mxu0 0.0
      %6751 = vmatpush1.msra.mxu0 0.0
      %6752 = vmatprep.subr.mxu0 0.0
      %6753 = vmatpush1.msra.mxu0 0.0
      %6754 = vmatprep.subr.mxu0 0.0
      %6755 = vmatpush1.msra.mxu0 0.0
      %6756 = vmatprep.subr.mxu0 0.0
      %6757 = vmatpush1.msra.mxu0 0.0
      %6758 = vmatprep.subr.mxu0 0.0
      %6759 = vmatpush1.msra.mxu0 0.0
      %6760 = vmatprep.subr.mxu0 0.0
      %6761 = vmatpush1.msra.mxu0 0.0
      %6762 = vmatprep.subr.mxu0 0.0
      %6763 = vmatpush1.msra.mxu0 0.0
      %6764 = vmatprep.subr.mxu0 0.0
      %6765 = vmatpush1.msra.mxu0 0.0
      %6766 = vmatprep.subr.mxu0 0.0
      %6767 = vmatpush1.msra.mxu0 0.0
      %6768 = vmatprep.subr.mxu0 0.0
      %6769 = vmatpush1.msra.mxu0 0.0
      %6770 = vmatprep.subr.mxu0 0.0
      %6771 = vmatpush1.msra.mxu0 0.0
      %6772 = vmatprep.subr.mxu0 0.0
      %6773 = vmatpush1.msra.mxu0 0.0
      %6774 = vmatprep.subr.mxu0 0.0
      %6775 = vmatpush1.msra.mxu0 %v6742
      %6776 = vmatprep.subr.mxu0 0.0
      %6777 = vmatpush2.msra.mxu0 0.0
      %6778 = vmatprep.subr.mxu0 0.0
      %6779 = vmatpush2.msra.mxu0 0.0
      %6780 = vmatprep.subr.mxu0 0.0
      %6781 = vmatpush2.msra.mxu0 0.0
      %6782 = vmatprep.subr.mxu0 0.0
      %6783 = vmatpush2.msra.mxu0 0.0
      %6784 = vmatprep.subr.mxu0 0.0
      %6785 = vmatpush2.msra.mxu0 0.0
      %6786 = vmatprep.subr.mxu0 0.0
      %6787 = vmatpush2.msra.mxu0 0.0
      %6788 = vmatprep.subr.mxu0 0.0
      %6789 = vmatpush2.msra.mxu0 0.0
      %6790 = vmatprep.subr.mxu0 0.0
      %6791 = vmatpush2.msra.mxu0 0.0
      %6792 = vmatprep.subr.mxu0 0.0
      %6793 = vmatpush2.msra.mxu0 0.0
      %6794 = vmatprep.subr.mxu0 0.0
      %6795 = vmatpush2.msra.mxu0 0.0
      %6796 = vmatprep.subr.mxu0 0.0
      %6797 = vmatpush2.msra.mxu0 0.0
      %6798 = vmatprep.subr.mxu0 0.0
      %6799 = vmatpush2.msra.mxu0 0.0
      %6800 = vmatprep.subr.mxu0 0.0
      %6801 = vmatpush2.msra.mxu0 0.0
      %6802 = vmatprep.subr.mxu0 0.0
      %6803 = vmatpush2.msra.mxu0 0.0
      %6804 = vmatprep.subr.mxu0 0.0
      %6805 = vmatpush2.msra.mxu0 0.0
      %6806 = vmatprep.subr.mxu0 0.0
      %6807 = vmatpush2.msra.mxu0 0.0
      %6808 = vmatprep.mubr.f32.mxu0 0.0
      %6809 = vmatmul.mubr.f32.gmra.mxu0 %v6122
      %v6810 = vpop.f32.mrf.mxu0
      %v6811 = vadd.f32 0.0, %v6810
      %v6812 = vpop.f32.mrf.mxu0
      %6813 = vmatprep.mubr.f32.mxu0 0.0
      %6814 = vmatmul.mubr.f32.gmra.mxu0 %v6125
      %v6815 = vpop.f32.mrf.mxu0
      %v6816 = vadd.f32 0.0, %v6815
      %v6817 = vpop.f32.mrf.mxu0
      %6818 = vmatprep.mubr.f32.mxu0 0.0
      %6819 = vmatmul.mubr.f32.gmra.mxu0 %v6128
      %v6820 = vpop.f32.mrf.mxu0
      %v6821 = vadd.f32 0.0, %v6820
      %v6822 = vpop.f32.mrf.mxu0
      %6823 = vmatprep.mubr.f32.mxu0 0.0
      %6824 = vmatmul.mubr.f32.gmra.mxu0 %v6131
      %v6825 = vpop.f32.mrf.mxu0
      %v6826 = vadd.f32 0.0, %v6825
      %v6827 = vpop.f32.mrf.mxu0
      %6828 = vmatprep.mubr.f32.mxu0 0.0
      %6829 = vmatmul.mubr.f32.gmra.mxu0 %v6134
      %v6830 = vpop.f32.mrf.mxu0
      %v6831 = vadd.f32 0.0, %v6830
      %v6832 = vpop.f32.mrf.mxu0
      %6833 = vmatprep.mubr.f32.mxu0 0.0
      %6834 = vmatmul.mubr.f32.gmra.mxu0 %v6137
      %v6835 = vpop.f32.mrf.mxu0
      %v6836 = vadd.f32 0.0, %v6835
      %v6837 = vpop.f32.mrf.mxu0
      %6838 = vmatprep.mubr.f32.mxu0 0.0
      %6839 = vmatmul.mubr.f32.gmra.mxu0 %v6140
      %v6840 = vpop.f32.mrf.mxu0
      %v6841 = vadd.f32 0.0, %v6840
      %v6842 = vpop.f32.mrf.mxu0
      %6843 = vmatprep.mubr.f32.mxu0 0.0
      %6844 = vmatmul.mubr.f32.gmra.mxu0 %v6143
      %v6845 = vpop.f32.mrf.mxu0
      %v6846 = vadd.f32 0.0, %v6845
      %v6847 = vpop.f32.mrf.mxu0
      %6848 = vmatprep.mubr.f32.mxu0 0.0
      %6849 = vmatmul.mubr.f32.gmra.mxu0 %v6146
      %v6850 = vpop.f32.mrf.mxu0
      %v6851 = vadd.f32 0.0, %v6850
      %v6852 = vpop.f32.mrf.mxu0
      %6853 = vmatprep.mubr.f32.mxu0 0.0
      %6854 = vmatmul.mubr.f32.gmra.mxu0 %v6149
      %v6855 = vpop.f32.mrf.mxu0
      %v6856 = vadd.f32 0.0, %v6855
      %v6857 = vpop.f32.mrf.mxu0
      %6858 = vmatprep.mubr.f32.mxu0 0.0
      %6859 = vmatmul.mubr.f32.gmra.mxu0 %v6152
      %v6860 = vpop.f32.mrf.mxu0
      %v6861 = vadd.f32 0.0, %v6860
      %v6862 = vpop.f32.mrf.mxu0
      %6863 = vmatprep.mubr.f32.mxu0 0.0
      %6864 = vmatmul.mubr.f32.gmra.mxu0 %v6155
      %v6865 = vpop.f32.mrf.mxu0
      %v6866 = vadd.f32 0.0, %v6865
      %v6867 = vpop.f32.mrf.mxu0
      %6868 = vmatprep.mubr.f32.mxu0 0.0
      %6869 = vmatmul.mubr.f32.gmra.mxu0 %v6158
      %v6870 = vpop.f32.mrf.mxu0
      %v6871 = vadd.f32 0.0, %v6870
      %v6872 = vpop.f32.mrf.mxu0
      %6873 = vmatprep.mubr.f32.mxu0 0.0
      %6874 = vmatmul.mubr.f32.gmra.mxu0 %v6161
      %v6875 = vpop.f32.mrf.mxu0
      %v6876 = vadd.f32 0.0, %v6875
      %v6877 = vpop.f32.mrf.mxu0
      %6878 = vmatprep.mubr.f32.mxu0 0.0
      %6879 = vmatmul.mubr.f32.gmra.mxu0 %v6164
      %v6880 = vpop.f32.mrf.mxu0
      %v6881 = vadd.f32 0.0, %v6880
      %v6882 = vpop.f32.mrf.mxu0
      %6883 = vmatprep.mubr.f32.mxu0 0.0
      %6884 = vmatmul.mubr.f32.gmra.mxu0 %v6167
      %v6885 = vpop.f32.mrf.mxu0
      %v6886 = vadd.f32 0.0, %v6885
      %v6887 = vpop.f32.mrf.mxu0
      %6888 = vmatprep.mubr.f32.mxu0 0.0
      %6889 = vmatmul.mubr.f32.gmra.mxu0 %v6170
      %v6890 = vpop.f32.mrf.mxu0
      %v6891 = vadd.f32 0.0, %v6890
      %v6892 = vpop.f32.mrf.mxu0
      %6893 = vmatprep.mubr.f32.mxu0 0.0
      %6894 = vmatmul.mubr.f32.gmra.mxu0 %v6173
      %v6895 = vpop.f32.mrf.mxu0
      %v6896 = vadd.f32 0.0, %v6895
      %v6897 = vpop.f32.mrf.mxu0
      %6898 = vmatprep.mubr.f32.mxu0 0.0
      %6899 = vmatmul.mubr.f32.gmra.mxu0 %v6176
      %v6900 = vpop.f32.mrf.mxu0
      %v6901 = vadd.f32 0.0, %v6900
      %v6902 = vpop.f32.mrf.mxu0
      %6903 = vmatprep.mubr.f32.mxu0 0.0
      %6904 = vmatmul.mubr.f32.gmra.mxu0 %v6179
      %v6905 = vpop.f32.mrf.mxu0
      %v6906 = vadd.f32 0.0, %v6905
      %v6907 = vpop.f32.mrf.mxu0
      %6908 = vmatprep.mubr.f32.mxu0 0.0
      %6909 = vmatmul.mubr.f32.gmra.mxu0 %v6182
      %v6910 = vpop.f32.mrf.mxu0
      %v6911 = vadd.f32 0.0, %v6910
      %v6912 = vpop.f32.mrf.mxu0
      %6913 = vmatprep.mubr.f32.mxu0 0.0
      %6914 = vmatmul.mubr.f32.gmra.mxu0 %v6185
      %v6915 = vpop.f32.mrf.mxu0
      %v6916 = vadd.f32 0.0, %v6915
      %v6917 = vpop.f32.mrf.mxu0
      %6918 = vmatprep.mubr.f32.mxu0 0.0
      %6919 = vmatmul.mubr.f32.gmra.mxu0 %v6188
      %v6920 = vpop.f32.mrf.mxu0
      %v6921 = vadd.f32 0.0, %v6920
      %v6922 = vpop.f32.mrf.mxu0
      %6923 = vmatprep.mubr.f32.mxu0 0.0
      %6924 = vmatmul.mubr.f32.gmra.mxu0 %v6191
      %v6925 = vpop.f32.mrf.mxu0
      %v6926 = vadd.f32 0.0, %v6925
      %v6927 = vpop.f32.mrf.mxu0
      %6928 = vmatprep.mubr.f32.mxu0 0.0
      %6929 = vmatmul.mubr.f32.gmra.mxu0 %v6194
      %v6930 = vpop.f32.mrf.mxu0
      %v6931 = vadd.f32 0.0, %v6930
      %v6932 = vpop.f32.mrf.mxu0
      %6933 = vmatprep.mubr.f32.mxu0 0.0
      %6934 = vmatmul.mubr.f32.gmra.mxu0 %v6197
      %v6935 = vpop.f32.mrf.mxu0
      %v6936 = vadd.f32 0.0, %v6935
      %v6937 = vpop.f32.mrf.mxu0
      %6938 = vmatprep.mubr.f32.mxu0 0.0
      %6939 = vmatmul.mubr.f32.gmra.mxu0 %v6200
      %v6940 = vpop.f32.mrf.mxu0
      %v6941 = vadd.f32 0.0, %v6940
      %v6942 = vpop.f32.mrf.mxu0
      %6943 = vmatprep.mubr.f32.mxu0 0.0
      %6944 = vmatmul.mubr.f32.gmra.mxu0 %v6203
      %v6945 = vpop.f32.mrf.mxu0
      %v6946 = vadd.f32 0.0, %v6945
      %v6947 = vpop.f32.mrf.mxu0
      %6948 = vmatprep.mubr.f32.mxu0 0.0
      %6949 = vmatmul.mubr.f32.gmra.mxu0 %v6468
      %v6950 = vpop.f32.mrf.mxu0
      %v6951 = vadd.f32 0.0, %v6950
      %v6952 = vpop.f32.mrf.mxu0
      %6953 = vmatprep.mubr.f32.mxu0 0.0
      %6954 = vmatmul.mubr.f32.gmra.mxu0 %v6471
      %v6955 = vpop.f32.mrf.mxu0
      %v6956 = vadd.f32 0.0, %v6955
      %v6957 = vpop.f32.mrf.mxu0
      %6958 = vmatprep.mubr.f32.mxu0 0.0
      %6959 = vmatmul.mubr.f32.gmra.mxu0 %v6736
      %v6960 = vpop.f32.mrf.mxu0
      %v6961 = vadd.f32 0.0, %v6960
      %v6962 = vpop.f32.mrf.mxu0
      %6963 = vmatprep.mubr.f32.mxu0 0.0
      %6964 = vmatmul.mubr.f32.gmra.mxu0 %v6739
      %v6965 = vpop.f32.mrf.mxu0
      %v6966 = vadd.f32 0.0, %v6965
      %v6967 = vpop.f32.mrf.mxu0
      %6968 = vdwg.mxu0
      %v6969 = vadd.f32 %v6701, %v6811
      %v6970 = vadd.f32 %v6702, %v6816
      %v6971 = vadd.f32 %v6703, %v6821
      %v6972 = vadd.f32 %v6704, %v6826
      %v6973 = vadd.f32 %v6705, %v6831
      %v6974 = vadd.f32 %v6706, %v6836
      %v6975 = vadd.f32 %v6707, %v6841
      %v6976 = vadd.f32 %v6708, %v6846
      %v6977 = vadd.f32 %v6709, %v6851
      %v6978 = vadd.f32 %v6710, %v6856
      %v6979 = vadd.f32 %v6711, %v6861
      %v6980 = vadd.f32 %v6712, %v6866
      %v6981 = vadd.f32 %v6713, %v6871
      %v6982 = vadd.f32 %v6714, %v6876
      %v6983 = vadd.f32 %v6715, %v6881
      %v6984 = vadd.f32 %v6716, %v6886
      %v6985 = vadd.f32 %v6717, %v6891
      %v6986 = vadd.f32 %v6718, %v6896
      %v6987 = vadd.f32 %v6719, %v6901
      %v6988 = vadd.f32 %v6720, %v6906
      %v6989 = vadd.f32 %v6721, %v6911
      %v6990 = vadd.f32 %v6722, %v6916
      %v6991 = vadd.f32 %v6723, %v6921
      %v6992 = vadd.f32 %v6724, %v6926
      %v6993 = vadd.f32 %v6725, %v6931
      %v6994 = vadd.f32 %v6726, %v6936
      %v6995 = vadd.f32 %v6727, %v6941
      %v6996 = vadd.f32 %v6728, %v6946
      %v6997 = vadd.f32 %v6729, %v6951
      %v6998 = vadd.f32 %v6730, %v6956
      %v6999 = vadd.f32 %v6731, %v6961
      %v7000 = vadd.f32 %v6732, %v6966
      %v7001 = vld [vmem:[%s4] sm:$0x1]
      %v7003 = vlaneseq
      %v7004 = vshrl.u32 %v7003, 7
      %v7005 = vsub.s32 0, %v7004
      %v7006 = vrot.slane %v7001, %v7005
      %v7008 = vadd.f32 %v6969, %v7006
      %v7009 = vadd.f32 %v6970, %v7006
      %v7010 = vadd.f32 %v6971, %v7006
      %v7011 = vadd.f32 %v6972, %v7006
      %v7012 = vadd.f32 %v6973, %v7006
      %v7013 = vadd.f32 %v6974, %v7006
      %v7014 = vadd.f32 %v6975, %v7006
      %v7015 = vadd.f32 %v6976, %v7006
      %v7016 = vadd.f32 %v6977, %v7006
      %v7017 = vadd.f32 %v6978, %v7006
      %v7018 = vadd.f32 %v6979, %v7006
      %v7019 = vadd.f32 %v6980, %v7006
      %v7020 = vadd.f32 %v6981, %v7006
      %v7021 = vadd.f32 %v6982, %v7006
      %v7022 = vadd.f32 %v6983, %v7006
      %v7023 = vadd.f32 %v6984, %v7006
      %v7024 = vadd.f32 %v6985, %v7006
      %v7025 = vadd.f32 %v6986, %v7006
      %v7026 = vadd.f32 %v6987, %v7006
      %v7027 = vadd.f32 %v6988, %v7006
      %v7028 = vadd.f32 %v6989, %v7006
      %v7029 = vadd.f32 %v6990, %v7006
      %v7030 = vadd.f32 %v6991, %v7006
      %v7031 = vadd.f32 %v6992, %v7006
      %v7032 = vadd.f32 %v6993, %v7006
      %v7033 = vadd.f32 %v6994, %v7006
      %v7034 = vadd.f32 %v6995, %v7006
      %v7035 = vadd.f32 %v6996, %v7006
      %v7036 = vadd.f32 %v6997, %v7006
      %v7037 = vadd.f32 %v6998, %v7006
      %v7038 = vadd.f32 %v6999, %v7006
      %v7039 = vadd.f32 %v7000, %v7006
      %v7040 = vadd.f32 %v225, %v7008
      %v7041 = vadd.f32 %v226, %v7009
      %v7042 = vadd.f32 %v227, %v7010
      %v7043 = vadd.f32 %v228, %v7011
      %v7044 = vadd.f32 %v229, %v7012
      %v7045 = vadd.f32 %v230, %v7013
      %v7046 = vadd.f32 %v231, %v7014
      %v7047 = vadd.f32 %v232, %v7015
      %v7048 = vadd.f32 %v233, %v7016
      %v7049 = vadd.f32 %v234, %v7017
      %v7050 = vadd.f32 %v235, %v7018
      %v7051 = vadd.f32 %v236, %v7019
      %v7052 = vadd.f32 %v237, %v7020
      %v7053 = vadd.f32 %v238, %v7021
      %v7054 = vadd.f32 %v239, %v7022
      %v7055 = vadd.f32 %v240, %v7023
      %v7056 = vadd.f32 %v241, %v7024
      %v7057 = vadd.f32 %v242, %v7025
      %v7058 = vadd.f32 %v243, %v7026
      %v7059 = vadd.f32 %v244, %v7027
      %v7060 = vadd.f32 %v245, %v7028
      %v7061 = vadd.f32 %v246, %v7029
      %v7062 = vadd.f32 %v247, %v7030
      %v7063 = vadd.f32 %v248, %v7031
      %v7064 = vadd.f32 %v249, %v7032
      %v7065 = vadd.f32 %v250, %v7033
      %v7066 = vadd.f32 %v251, %v7034
      %v7067 = vadd.f32 %v252, %v7035
      %v7068 = vadd.f32 %v253, %v7036
      %v7069 = vadd.f32 %v254, %v7037
      %v7070 = vadd.f32 %v255, %v7038
      %v7071 = vadd.f32 %v256, %v7039
      %7072 = vst.msk [vmem:[%s224] sm:$0xff] %vm258, %v7040
      %7073 = vst.msk [vmem:[%s224 + $0x8] sm:$0xff] %vm258, %v7041
      %7074 = vst.msk [vmem:[%s224 + $0x10] sm:$0xff] %vm258, %v7042
      %7075 = vst.msk [vmem:[%s224 + $0x18] sm:$0xff] %vm258, %v7043
      %7076 = vst.msk [vmem:[%s224 + $0x20] sm:$0xff] %vm258, %v7044
      %7077 = vst.msk [vmem:[%s224 + $0x28] sm:$0xff] %vm258, %v7045
      %7078 = vst.msk [vmem:[%s224 + $0x30] sm:$0xff] %vm258, %v7046
      %7079 = vst.msk [vmem:[%s224 + $0x38] sm:$0xff] %vm258, %v7047
      %7080 = vst.msk [vmem:[%s224 + $0x40] sm:$0xff] %vm258, %v7048
      %7081 = vst.msk [vmem:[%s224 + $0x48] sm:$0xff] %vm258, %v7049
      %7082 = vst.msk [vmem:[%s224 + $0x50] sm:$0xff] %vm258, %v7050
      %7083 = vst.msk [vmem:[%s224 + $0x58] sm:$0xff] %vm258, %v7051
      %7084 = vst.msk [vmem:[%s224 + $0x60] sm:$0xff] %vm258, %v7052
      %7085 = vst.msk [vmem:[%s224 + $0x68] sm:$0xff] %vm258, %v7053
      %7086 = vst.msk [vmem:[%s224 + $0x70] sm:$0xff] %vm258, %v7054
      %7087 = vst.msk [vmem:[%s224 + $0x78] sm:$0xff] %vm258, %v7055
      %7088 = vst.msk [vmem:[%s224 + $0x80] sm:$0xff] %vm258, %v7056
      %7089 = vst.msk [vmem:[%s224 + $0x88] sm:$0xff] %vm258, %v7057
      %7090 = vst.msk [vmem:[%s224 + $0x90] sm:$0xff] %vm258, %v7058
      %7091 = vst.msk [vmem:[%s224 + $0x98] sm:$0xff] %vm258, %v7059
      %7092 = vst.msk [vmem:[%s224 + $0xa0] sm:$0xff] %vm258, %v7060
      %7093 = vst.msk [vmem:[%s224 + $0xa8] sm:$0xff] %vm258, %v7061
      %7094 = vst.msk [vmem:[%s224 + $0xb0] sm:$0xff] %vm258, %v7062
      %7095 = vst.msk [vmem:[%s224 + $0xb8] sm:$0xff] %vm258, %v7063
      %7096 = vst.msk [vmem:[%s224 + $0xc0] sm:$0xff] %vm258, %v7064
      %7097 = vst.msk [vmem:[%s224 + $0xc8] sm:$0xff] %vm258, %v7065
      %7098 = vst.msk [vmem:[%s224 + $0xd0] sm:$0xff] %vm258, %v7066
      %7099 = vst.msk [vmem:[%s224 + $0xd8] sm:$0xff] %vm258, %v7067
      %7100 = vst.msk [vmem:[%s224 + $0xe0] sm:$0xff] %vm258, %v7068
      %7101 = vst.msk [vmem:[%s224 + $0xe8] sm:$0xff] %vm258, %v7069
      %7102 = vst.msk [vmem:[%s224 + $0xf0] sm:$0xff] %vm258, %v7070
      %7103 = vst.msk [vmem:[%s224 + $0xf8] sm:$0xff] %vm258, %v7071
      %p7104 = scmp.lt.s32.totalorder %s16, 1
      %s7105 = scalar_select %p7104, %s16, 1
      %s7106 = smul.addr %s7105, 32
      %s7107 = smul.addr %s7106, 8
      %s7108 = scalar_lea.vmem %s5, %s7107
      // Predicated region
      $region41: #{tpu_custom_call.1} parent=39 // pred_check
        %p7109 = pneg %p144
      $region42: #{tpu_custom_call.1} parent=39 // pred_check_branch
        %7111 = sbr.rel (%p7109) target = $region44
      $region43: #{tpu_custom_call.1} parent=39 // pred_region
        _
      $region44: #{tpu_custom_call.1} parent=39 // pred_fallthru
        _
    $region40: #{tpu_custom_call.1} parent=5 // pred_fallthru
      _
    %p7112 = scmp.le.s32.totalorder 2, %s11
    // Predicated region
    $region45: #{tpu_custom_call.1} parent=5 // pred_check
      %p7113 = pneg %p7112
    $region46: #{tpu_custom_call.1} parent=5 // pred_check_branch
      %7115 = sbr.rel (%p7113) target = $region48
    $region47: #{tpu_custom_call.1} parent=5 // pred_region
      %s7116 = ssub.s32 %s11, 2
      // Predicated region
      $region49: #{tpu_custom_call.1} parent=47 // pred_check
        %p7117 = pneg %p150
      $region50: #{tpu_custom_call.1} parent=47 // pred_check_branch
        %7119 = sbr.rel (%p7117) target = $region52
      $region51: #{tpu_custom_call.1} parent=47 // pred_region
        %p7120 = scmp.lt.s32.totalorder %s17, 1
        %s7121 = scalar_select %p7120, %s17, 1
        %s7122 = smul.addr %s7121, 32
        %s7123 = smul.addr %s7122, 8
        %s7124 = scalar_lea.vmem %s5, %s7123
      $region52: #{tpu_custom_call.1} parent=47 // pred_fallthru
        _
    $region48: #{tpu_custom_call.1} parent=5 // pred_fallthru
      _
  $region6: #{tpu_custom_call.1} parent=0 // loop_footer
    %s15 = sadd.s32 1, %s11
  $region7: #{tpu_custom_call.1} parent=0 // loop_footer_branch
    %10 = sbr.rel target = $region3
  $region8: #{tpu_custom_call.1} parent=0 // loop_exit
    _

</llo_original>
